<compile_context>
chip_gen: v7x
topology: tpu7x:2x2x1
jax: 0.10.0
libtpu: 0.0.40
codegen_flags: <defaults>
</compile_context>

<pallas_src>
import functools

import jax
import jax.numpy as jnp
from jax import lax
from jax.experimental import pallas as pl
from jax.experimental.pallas import tpu as pltpu


def _round_up(n, m):
    return (n + m - 1) // m * m


def _attention_kernel(x_ref, wqkv_ref, wout_ref, bout_ref, o_ref, *,
                      heads, dim_head, hidden, batch_tile, n_tokens):
    """One batch *tile* (batch_tile images packed along lanes) per grid step.

    x_ref    : (1, C_pad, bt*N)   bf16   input, feature-major, lane-packed batch
    wqkv_ref : (3*hidden, C_pad)  bf16   qkv projection (Q rows pre-scaled)
    wout_ref : (D_pad, hidden)    bf16   output projection
    bout_ref : (D_pad, 1)         f32    output projection bias
    o_ref    : (1, D_pad, bt*N)   f32    output, feature-major (lane-dense)
    """
    x = x_ref[0]                                   # (C_pad, bt*N) bf16
    w = wqkv_ref[...]                              # (3*hidden, C_pad) bf16

    # 1x1 conv (to_qkv) == one matmul over channels for the whole batch tile.
    qkv = jnp.dot(w, x, preferred_element_type=jnp.float32)   # (3*hidden, bt*N)
    qkv_bf = qkv.astype(jnp.bfloat16)

    cols = []
    for b in range(batch_tile):                    # small & static
        c0 = b * n_tokens                          # 128-aligned lane offset
        outs = []
        for h in range(heads):                     # small & static
            lo = h * dim_head
            q_h = qkv_bf[lo:lo + dim_head, c0:c0 + n_tokens]              # (dh, Ni)
            k_h = qkv_bf[hidden + lo:hidden + lo + dim_head,
                         c0:c0 + n_tokens]                                # (dh, Nj)
            v_h = qkv_bf[2 * hidden + lo:2 * hidden + lo + dim_head,
                         c0:c0 + n_tokens]                                # (dh, Nj)

            # sim^T[j, i] = sum_d k[d, j] * q[d, i]  (scale already in q rows)
            simT = lax.dot_general(k_h, q_h, (((0,), (0,)), ((), ())),
                                   preferred_element_type=jnp.float32)   # (Nj, Ni)

            # Softmax over j (sublane axis); normalization deferred past attn@V.
            m = jnp.max(simT, axis=0, keepdims=True)                      # (1, Ni)
            p = jnp.exp(simT - m)                                         # (Nj, Ni)
            denom = jnp.sum(p, axis=0, keepdims=True)                     # (1, Ni)

            o_h = jnp.dot(v_h, p.astype(jnp.bfloat16),
                          preferred_element_type=jnp.float32)             # (dh, Ni)
            o_h = o_h * pl.reciprocal(denom, approx=True)
            outs.append(o_h.astype(jnp.bfloat16))  # cast early: fewer live vregs

        # Channel order (head, dim_head) == rearrange 'b h (x y) d -> b (h d) x y'.
        cols.append(jnp.concatenate(outs, axis=0))                        # (hidden, N)

    o_all = jnp.concatenate(cols, axis=1)                                 # (hidden, bt*N)

    # 1x1 conv (to_out) + bias, once for the whole batch tile.
    y = jnp.dot(wout_ref[...], o_all,
                preferred_element_type=jnp.float32)                       # (D_pad, bt*N)
    y = y + bout_ref[...]
    o_ref[0] = y.astype(o_ref.dtype)


def attention_forward(x, w_qkv, w_out, b_out, *, heads=4, dim_head=32,
                      batch_tile=None):
    """Pallas implementation of Attention.forward.

    x      : (B, dim, H, W) f32
    w_qkv  : (3*hidden, dim, 1, 1)  Conv2d weight of to_qkv (no bias)
    w_out  : (dim, hidden, 1, 1)    Conv2d weight of to_out
    b_out  : (dim,)                 Conv2d bias of to_out
    returns (B, dim, H, W) f32
    """
    B, C, H, W = x.shape
    N = H * W
    hidden = heads * dim_head
    scale = dim_head ** (-0.5)
    dim_out = w_out.shape[0]

    C_pad = _round_up(C, 8)
    D_pad = _round_up(dim_out, 8)

    # Pick how many batch elements to pack along lanes per grid step.  Lane
    # slicing inside the kernel needs 128-aligned offsets, so only pack when
    # N is a lane multiple; cap the packed lane width at ~512 to keep the
    # unrolled per-head softmax intermediates (Nj x Ni f32) off the spill path.
    if batch_tile is None:
        if N % 128 == 0 and N <= 512:
            batch_tile = max(1, min(B, 512 // N))
        else:
            batch_tile = 1
    bt = max(1, min(batch_tile, B))
    B_pad = _round_up(B, bt)
    n_tiles = B_pad // bt

    # NCHW is already feature-major per batch: (B, C, H*W).  Pad channels and
    # batch once in HBM, then lane-pack `bt` batch elements per tile.
    x_t = x.reshape(B, C, N).astype(jnp.float32)
    x_t = jnp.pad(x_t, ((0, B_pad - B), (0, C_pad - C), (0, 0)))
    x_t = (x_t.reshape(n_tiles, bt, C_pad, N)
               .transpose(0, 2, 1, 3)
               .reshape(n_tiles, C_pad, bt * N)
               .astype(jnp.bfloat16))

    # Fold the softmax scale into the Q rows (to_qkv has no bias -> exact fold).
    wqkv = w_qkv.reshape(3 * hidden, C).astype(jnp.float32)
    row_scale = jnp.concatenate([jnp.full((hidden,), scale, jnp.float32),
                                 jnp.ones((2 * hidden,), jnp.float32)])
    wqkv = wqkv * row_scale[:, None]
    wqkv = jnp.pad(wqkv, ((0, 0), (0, C_pad - C))).astype(jnp.bfloat16)

    wout = w_out.reshape(dim_out, hidden).astype(jnp.float32)
    wout = jnp.pad(wout, ((0, D_pad - dim_out), (0, 0))).astype(jnp.bfloat16)
    bout = jnp.pad(b_out.astype(jnp.float32), (0, D_pad - dim_out)).reshape(D_pad, 1)

    kernel = functools.partial(_attention_kernel, heads=heads,
                               dim_head=dim_head, hidden=hidden,
                               batch_tile=bt, n_tokens=N)

    out = pl.pallas_call(
        kernel,
        out_shape=jax.ShapeDtypeStruct((n_tiles, D_pad, bt * N), jnp.float32),
        grid_spec=pltpu.PrefetchScalarGridSpec(
            num_scalar_prefetch=0,
            grid=(n_tiles,),
            in_specs=[
                pl.BlockSpec((1, C_pad, bt * N), lambda t: (t, 0, 0)),
                pl.BlockSpec((3 * hidden, C_pad), lambda t: (0, 0)),
                pl.BlockSpec((D_pad, hidden), lambda t: (0, 0)),
                pl.BlockSpec((D_pad, 1), lambda t: (0, 0)),
            ],
            out_specs=pl.BlockSpec((1, D_pad, bt * N), lambda t: (t, 0, 0)),
        ),
        compiler_params=pltpu.CompilerParams(
            dimension_semantics=("parallel",)),
    )(x_t, wqkv, wout, bout)

    # Undo lane packing / padding.
    out = (out.reshape(n_tiles, D_pad, bt, N)
              .transpose(0, 2, 1, 3)
              .reshape(B_pad, D_pad, N))
    return out[:B, :dim_out, :].reshape(B, dim_out, H, W)


def attention_reference(x, w_qkv, w_out, b_out, *, heads, dim_head):
    """Pure-JAX f32 reference mirroring the PyTorch module."""
    B, C, H, W = x.shape
    N = H * W
    hidden = heads * dim_head
    scale = dim_head ** (-0.5)

    qkv = jnp.einsum('oc,bcn->bon', w_qkv.reshape(3 * hidden, C),
                     x.reshape(B, C, N))
    q, k, v = jnp.split(qkv, 3, axis=1)
    q = q.reshape(B, heads, dim_head, N) * scale
    k = k.reshape(B, heads, dim_head, N)
    v = v.reshape(B, heads, dim_head, N)

    sim = jnp.einsum('bhdi,bhdj->bhij', q, k)
    sim = sim - jnp.max(sim, axis=-1, keepdims=True)
    attn = jax.nn.softmax(sim, axis=-1)
    out = jnp.einsum('bhij,bhdj->bhid', attn, v)
    out = jnp.transpose(out, (0, 1, 3, 2)).reshape(B, hidden, N)

    y = jnp.einsum('oc,bcn->bon', w_out.reshape(C, hidden), out)
    y = y + b_out[None, :, None]
    return y.reshape(B, C, H, W)


if __name__ == "__main__":
    # Small shapes consistent with the module: dim=4, heads=4, dim_head=32,
    # spatial 16x16  ->  hidden=128, N=256 tokens.
    B, dim, H, W = 2, 4, 16, 16
    heads, dim_head = 4, 32
    hidden = heads * dim_head

    key = jax.random.PRNGKey(0)
    k1, k2, k3, k4 = jax.random.split(key, 4)
    x = jax.random.normal(k1, (B, dim, H, W), jnp.float32)

    bound_qkv = 1.0 / (dim ** 0.5)       # Conv2d default uniform fan-in bound
    w_qkv = jax.random.uniform(k2, (3 * hidden, dim, 1, 1), jnp.float32,
                               -bound_qkv, bound_qkv)
    bound_out = 1.0 / (hidden ** 0.5)
    w_out = jax.random.uniform(k3, (dim, hidden, 1, 1), jnp.float32,
                               -bound_out, bound_out)
    b_out = jax.random.uniform(k4, (dim,), jnp.float32, -bound_out, bound_out)

    out = attention_forward(x, w_qkv, w_out, b_out,
                            heads=heads, dim_head=dim_head)
    out = jax.block_until_ready(out)

    ref = attention_reference(x, w_qkv, w_out, b_out,
                              heads=heads, dim_head=dim_head)
    assert out.shape == (B, dim, H, W)
    max_err = float(jnp.max(jnp.abs(out - ref)))
    # bf16 MXU inputs vs f32 reference -> relaxed tolerance.
    assert jnp.allclose(out, ref, atol=2e-2, rtol=2e-2), \
        f"mismatch with reference, max abs err = {max_err}"

    print("KERNEL_OK")
</pallas_src>

<mosaic_0001>
module attributes {stable_mosaic.version = 11 : i64} {
  func.func @_attention_kernel(%arg0: i32, %arg1: memref<1x8x512xbf16, #tpu.memory_space<vmem>>, %arg2: memref<384x8xbf16, #tpu.memory_space<vmem>>, %arg3: memref<8x128xbf16, #tpu.memory_space<vmem>>, %arg4: memref<8x1xf32, #tpu.memory_space<vmem>>, %arg5: memref<1x8x512xf32, #tpu.memory_space<vmem>>) attributes {dimension_semantics = [#tpu.dimension_semantics<parallel>], iteration_bounds = array<i64: 1>, scalar_prefetch = 0 : i64, scratch_operands = 0 : i64, tpu.core_type = #tpu.core_type<tc>, window_params = [{transform_indices = @transform_0, window_bounds = array<i64: 1, 8, 512>}, {pipeline_mode = #tpu.pipeline_mode<synchronous>, transform_indices = @transform_1, window_bounds = array<i64: 384, 8>}, {pipeline_mode = #tpu.pipeline_mode<synchronous>, transform_indices = @transform_2, window_bounds = array<i64: 8, 128>}, {pipeline_mode = #tpu.pipeline_mode<synchronous>, transform_indices = @transform_3, window_bounds = array<i64: 8, 1>}, {transform_indices = @transform_4, window_bounds = array<i64: 1, 8, 512>}]} {
    %c0 = arith.constant 0 : index
    %c0_0 = arith.constant 0 : index
    %c0_1 = arith.constant 0 : index
    %0 = vector.load %arg1[%c0, %c0_0, %c0_1] : memref<1x8x512xbf16, #tpu.memory_space<vmem>>, vector<1x8x512xbf16>
    %1 = vector.shape_cast %0 : vector<1x8x512xbf16> to vector<8x512xbf16>
    %c0_2 = arith.constant 0 : index
    %c0_3 = arith.constant 0 : index
    %2 = vector.load %arg2[%c0_2, %c0_3] : memref<384x8xbf16, #tpu.memory_space<vmem>>, vector<384x8xbf16>
    %cst = arith.constant dense<0.000000e+00> : vector<384x512xf32>
    %3 = tpu.matmul %2, %1, %cst {dimension_numbers = #tpu.dot_dimension_numbers<[1], [0], [0], [1], [0, 0, 1, 1], [], []>} : vector<384x8xbf16>, vector<8x512xbf16>, vector<384x512xf32> -> vector<384x512xf32>
    %4 = arith.truncf %3 : vector<384x512xf32> to vector<384x512xbf16>
    %5 = vector.extract_strided_slice %4 {offsets = [0, 0], sizes = [32, 256], strides = [1, 1]} : vector<384x512xbf16> to vector<32x256xbf16>
    %6 = vector.extract_strided_slice %4 {offsets = [128, 0], sizes = [32, 256], strides = [1, 1]} : vector<384x512xbf16> to vector<32x256xbf16>
    %7 = vector.extract_strided_slice %4 {offsets = [256, 0], sizes = [32, 256], strides = [1, 1]} : vector<384x512xbf16> to vector<32x256xbf16>
    %cst_4 = arith.constant dense<0.000000e+00> : vector<256x256xf32>
    %8 = tpu.matmul %6, %5, %cst_4 {dimension_numbers = #tpu.dot_dimension_numbers<[0], [0], [1], [1], [0, 1, 1, 1], [], []>} : vector<32x256xbf16>, vector<32x256xbf16>, vector<256x256xf32> -> vector<256x256xf32>
    %cst_5 = arith.constant dense<0xFF800000> : vector<256xf32>
    %9 = vector.multi_reduction <maximumf>, %8, %cst_5 [0] : vector<256x256xf32> to vector<256xf32>
    %10 = vector.shape_cast %9 : vector<256xf32> to vector<1x256xf32>
    %11 = vector.broadcast %10 : vector<1x256xf32> to vector<256x256xf32>
    %12 = arith.subf %8, %11 : vector<256x256xf32>
    %13 = math.exp %12 : vector<256x256xf32>
    %cst_6 = arith.constant dense<0.000000e+00> : vector<256xf32>
    %14 = vector.multi_reduction <add>, %13, %cst_6 [0] : vector<256x256xf32> to vector<256xf32>
    %15 = vector.shape_cast %14 : vector<256xf32> to vector<1x256xf32>
    %16 = arith.truncf %13 : vector<256x256xf32> to vector<256x256xbf16>
    %cst_7 = arith.constant dense<0.000000e+00> : vector<32x256xf32>
    %17 = tpu.matmul %7, %16, %cst_7 {dimension_numbers = #tpu.dot_dimension_numbers<[1], [0], [0], [1], [0, 0, 1, 1], [], []>} : vector<32x256xbf16>, vector<256x256xbf16>, vector<32x256xf32> -> vector<32x256xf32>
    %18 = tpu.reciprocal %15 {approx = true} : vector<1x256xf32> -> vector<1x256xf32>
    %19 = vector.broadcast %18 : vector<1x256xf32> to vector<32x256xf32>
    %20 = arith.mulf %17, %19 : vector<32x256xf32>
    %21 = arith.truncf %20 : vector<32x256xf32> to vector<32x256xbf16>
    %22 = vector.extract_strided_slice %4 {offsets = [32, 0], sizes = [32, 256], strides = [1, 1]} : vector<384x512xbf16> to vector<32x256xbf16>
    %23 = vector.extract_strided_slice %4 {offsets = [160, 0], sizes = [32, 256], strides = [1, 1]} : vector<384x512xbf16> to vector<32x256xbf16>
    %24 = vector.extract_strided_slice %4 {offsets = [288, 0], sizes = [32, 256], strides = [1, 1]} : vector<384x512xbf16> to vector<32x256xbf16>
    %cst_8 = arith.constant dense<0.000000e+00> : vector<256x256xf32>
    %25 = tpu.matmul %23, %22, %cst_8 {dimension_numbers = #tpu.dot_dimension_numbers<[0], [0], [1], [1], [0, 1, 1, 1], [], []>} : vector<32x256xbf16>, vector<32x256xbf16>, vector<256x256xf32> -> vector<256x256xf32>
    %cst_9 = arith.constant dense<0xFF800000> : vector<256xf32>
    %26 = vector.multi_reduction <maximumf>, %25, %cst_9 [0] : vector<256x256xf32> to vector<256xf32>
    %27 = vector.shape_cast %26 : vector<256xf32> to vector<1x256xf32>
    %28 = vector.broadcast %27 : vector<1x256xf32> to vector<256x256xf32>
    %29 = arith.subf %25, %28 : vector<256x256xf32>
    %30 = math.exp %29 : vector<256x256xf32>
    %cst_10 = arith.constant dense<0.000000e+00> : vector<256xf32>
    %31 = vector.multi_reduction <add>, %30, %cst_10 [0] : vector<256x256xf32> to vector<256xf32>
    %32 = vector.shape_cast %31 : vector<256xf32> to vector<1x256xf32>
    %33 = arith.truncf %30 : vector<256x256xf32> to vector<256x256xbf16>
    %cst_11 = arith.constant dense<0.000000e+00> : vector<32x256xf32>
    %34 = tpu.matmul %24, %33, %cst_11 {dimension_numbers = #tpu.dot_dimension_numbers<[1], [0], [0], [1], [0, 0, 1, 1], [], []>} : vector<32x256xbf16>, vector<256x256xbf16>, vector<32x256xf32> -> vector<32x256xf32>
    %35 = tpu.reciprocal %32 {approx = true} : vector<1x256xf32> -> vector<1x256xf32>
    %36 = vector.broadcast %35 : vector<1x256xf32> to vector<32x256xf32>
    %37 = arith.mulf %34, %36 : vector<32x256xf32>
    %38 = arith.truncf %37 : vector<32x256xf32> to vector<32x256xbf16>
    %39 = vector.extract_strided_slice %4 {offsets = [64, 0], sizes = [32, 256], strides = [1, 1]} : vector<384x512xbf16> to vector<32x256xbf16>
    %40 = vector.extract_strided_slice %4 {offsets = [192, 0], sizes = [32, 256], strides = [1, 1]} : vector<384x512xbf16> to vector<32x256xbf16>
    %41 = vector.extract_strided_slice %4 {offsets = [320, 0], sizes = [32, 256], strides = [1, 1]} : vector<384x512xbf16> to vector<32x256xbf16>
    %cst_12 = arith.constant dense<0.000000e+00> : vector<256x256xf32>
    %42 = tpu.matmul %40, %39, %cst_12 {dimension_numbers = #tpu.dot_dimension_numbers<[0], [0], [1], [1], [0, 1, 1, 1], [], []>} : vector<32x256xbf16>, vector<32x256xbf16>, vector<256x256xf32> -> vector<256x256xf32>
    %cst_13 = arith.constant dense<0xFF800000> : vector<256xf32>
    %43 = vector.multi_reduction <maximumf>, %42, %cst_13 [0] : vector<256x256xf32> to vector<256xf32>
    %44 = vector.shape_cast %43 : vector<256xf32> to vector<1x256xf32>
    %45 = vector.broadcast %44 : vector<1x256xf32> to vector<256x256xf32>
    %46 = arith.subf %42, %45 : vector<256x256xf32>
    %47 = math.exp %46 : vector<256x256xf32>
    %cst_14 = arith.constant dense<0.000000e+00> : vector<256xf32>
    %48 = vector.multi_reduction <add>, %47, %cst_14 [0] : vector<256x256xf32> to vector<256xf32>
    %49 = vector.shape_cast %48 : vector<256xf32> to vector<1x256xf32>
    %50 = arith.truncf %47 : vector<256x256xf32> to vector<256x256xbf16>
    %cst_15 = arith.constant dense<0.000000e+00> : vector<32x256xf32>
    %51 = tpu.matmul %41, %50, %cst_15 {dimension_numbers = #tpu.dot_dimension_numbers<[1], [0], [0], [1], [0, 0, 1, 1], [], []>} : vector<32x256xbf16>, vector<256x256xbf16>, vector<32x256xf32> -> vector<32x256xf32>
    %52 = tpu.reciprocal %49 {approx = true} : vector<1x256xf32> -> vector<1x256xf32>
    %53 = vector.broadcast %52 : vector<1x256xf32> to vector<32x256xf32>
    %54 = arith.mulf %51, %53 : vector<32x256xf32>
    %55 = arith.truncf %54 : vector<32x256xf32> to vector<32x256xbf16>
    %56 = vector.extract_strided_slice %4 {offsets = [96, 0], sizes = [32, 256], strides = [1, 1]} : vector<384x512xbf16> to vector<32x256xbf16>
    %57 = vector.extract_strided_slice %4 {offsets = [224, 0], sizes = [32, 256], strides = [1, 1]} : vector<384x512xbf16> to vector<32x256xbf16>
    %58 = vector.extract_strided_slice %4 {offsets = [352, 0], sizes = [32, 256], strides = [1, 1]} : vector<384x512xbf16> to vector<32x256xbf16>
    %cst_16 = arith.constant dense<0.000000e+00> : vector<256x256xf32>
    %59 = tpu.matmul %57, %56, %cst_16 {dimension_numbers = #tpu.dot_dimension_numbers<[0], [0], [1], [1], [0, 1, 1, 1], [], []>} : vector<32x256xbf16>, vector<32x256xbf16>, vector<256x256xf32> -> vector<256x256xf32>
    %cst_17 = arith.constant dense<0xFF800000> : vector<256xf32>
    %60 = vector.multi_reduction <maximumf>, %59, %cst_17 [0] : vector<256x256xf32> to vector<256xf32>
    %61 = vector.shape_cast %60 : vector<256xf32> to vector<1x256xf32>
    %62 = vector.broadcast %61 : vector<1x256xf32> to vector<256x256xf32>
    %63 = arith.subf %59, %62 : vector<256x256xf32>
    %64 = math.exp %63 : vector<256x256xf32>
    %cst_18 = arith.constant dense<0.000000e+00> : vector<256xf32>
    %65 = vector.multi_reduction <add>, %64, %cst_18 [0] : vector<256x256xf32> to vector<256xf32>
    %66 = vector.shape_cast %65 : vector<256xf32> to vector<1x256xf32>
    %67 = arith.truncf %64 : vector<256x256xf32> to vector<256x256xbf16>
    %cst_19 = arith.constant dense<0.000000e+00> : vector<32x256xf32>
    %68 = tpu.matmul %58, %67, %cst_19 {dimension_numbers = #tpu.dot_dimension_numbers<[1], [0], [0], [1], [0, 0, 1, 1], [], []>} : vector<32x256xbf16>, vector<256x256xbf16>, vector<32x256xf32> -> vector<32x256xf32>
    %69 = tpu.reciprocal %66 {approx = true} : vector<1x256xf32> -> vector<1x256xf32>
    %70 = vector.broadcast %69 : vector<1x256xf32> to vector<32x256xf32>
    %71 = arith.mulf %68, %70 : vector<32x256xf32>
    %72 = arith.truncf %71 : vector<32x256xf32> to vector<32x256xbf16>
    %73 = tpu.concatenate %21, %38, %55, %72 in 0 : vector<32x256xbf16>, vector<32x256xbf16>, vector<32x256xbf16>, vector<32x256xbf16> -> vector<128x256xbf16>
    %74 = vector.extract_strided_slice %4 {offsets = [0, 256], sizes = [32, 256], strides = [1, 1]} : vector<384x512xbf16> to vector<32x256xbf16>
    %75 = vector.extract_strided_slice %4 {offsets = [128, 256], sizes = [32, 256], strides = [1, 1]} : vector<384x512xbf16> to vector<32x256xbf16>
    %76 = vector.extract_strided_slice %4 {offsets = [256, 256], sizes = [32, 256], strides = [1, 1]} : vector<384x512xbf16> to vector<32x256xbf16>
    %cst_20 = arith.constant dense<0.000000e+00> : vector<256x256xf32>
    %77 = tpu.matmul %75, %74, %cst_20 {dimension_numbers = #tpu.dot_dimension_numbers<[0], [0], [1], [1], [0, 1, 1, 1], [], []>} : vector<32x256xbf16>, vector<32x256xbf16>, vector<256x256xf32> -> vector<256x256xf32>
    %cst_21 = arith.constant dense<0xFF800000> : vector<256xf32>
    %78 = vector.multi_reduction <maximumf>, %77, %cst_21 [0] : vector<256x256xf32> to vector<256xf32>
    %79 = vector.shape_cast %78 : vector<256xf32> to vector<1x256xf32>
    %80 = vector.broadcast %79 : vector<1x256xf32> to vector<256x256xf32>
    %81 = arith.subf %77, %80 : vector<256x256xf32>
    %82 = math.exp %81 : vector<256x256xf32>
    %cst_22 = arith.constant dense<0.000000e+00> : vector<256xf32>
    %83 = vector.multi_reduction <add>, %82, %cst_22 [0] : vector<256x256xf32> to vector<256xf32>
    %84 = vector.shape_cast %83 : vector<256xf32> to vector<1x256xf32>
    %85 = arith.truncf %82 : vector<256x256xf32> to vector<256x256xbf16>
    %cst_23 = arith.constant dense<0.000000e+00> : vector<32x256xf32>
    %86 = tpu.matmul %76, %85, %cst_23 {dimension_numbers = #tpu.dot_dimension_numbers<[1], [0], [0], [1], [0, 0, 1, 1], [], []>} : vector<32x256xbf16>, vector<256x256xbf16>, vector<32x256xf32> -> vector<32x256xf32>
    %87 = tpu.reciprocal %84 {approx = true} : vector<1x256xf32> -> vector<1x256xf32>
    %88 = vector.broadcast %87 : vector<1x256xf32> to vector<32x256xf32>
    %89 = arith.mulf %86, %88 : vector<32x256xf32>
    %90 = arith.truncf %89 : vector<32x256xf32> to vector<32x256xbf16>
    %91 = vector.extract_strided_slice %4 {offsets = [32, 256], sizes = [32, 256], strides = [1, 1]} : vector<384x512xbf16> to vector<32x256xbf16>
    %92 = vector.extract_strided_slice %4 {offsets = [160, 256], sizes = [32, 256], strides = [1, 1]} : vector<384x512xbf16> to vector<32x256xbf16>
    %93 = vector.extract_strided_slice %4 {offsets = [288, 256], sizes = [32, 256], strides = [1, 1]} : vector<384x512xbf16> to vector<32x256xbf16>
    %cst_24 = arith.constant dense<0.000000e+00> : vector<256x256xf32>
    %94 = tpu.matmul %92, %91, %cst_24 {dimension_numbers = #tpu.dot_dimension_numbers<[0], [0], [1], [1], [0, 1, 1, 1], [], []>} : vector<32x256xbf16>, vector<32x256xbf16>, vector<256x256xf32> -> vector<256x256xf32>
    %cst_25 = arith.constant dense<0xFF800000> : vector<256xf32>
    %95 = vector.multi_reduction <maximumf>, %94, %cst_25 [0] : vector<256x256xf32> to vector<256xf32>
    %96 = vector.shape_cast %95 : vector<256xf32> to vector<1x256xf32>
    %97 = vector.broadcast %96 : vector<1x256xf32> to vector<256x256xf32>
    %98 = arith.subf %94, %97 : vector<256x256xf32>
    %99 = math.exp %98 : vector<256x256xf32>
    %cst_26 = arith.constant dense<0.000000e+00> : vector<256xf32>
    %100 = vector.multi_reduction <add>, %99, %cst_26 [0] : vector<256x256xf32> to vector<256xf32>
    %101 = vector.shape_cast %100 : vector<256xf32> to vector<1x256xf32>
    %102 = arith.truncf %99 : vector<256x256xf32> to vector<256x256xbf16>
    %cst_27 = arith.constant dense<0.000000e+00> : vector<32x256xf32>
    %103 = tpu.matmul %93, %102, %cst_27 {dimension_numbers = #tpu.dot_dimension_numbers<[1], [0], [0], [1], [0, 0, 1, 1], [], []>} : vector<32x256xbf16>, vector<256x256xbf16>, vector<32x256xf32> -> vector<32x256xf32>
    %104 = tpu.reciprocal %101 {approx = true} : vector<1x256xf32> -> vector<1x256xf32>
    %105 = vector.broadcast %104 : vector<1x256xf32> to vector<32x256xf32>
    %106 = arith.mulf %103, %105 : vector<32x256xf32>
    %107 = arith.truncf %106 : vector<32x256xf32> to vector<32x256xbf16>
    %108 = vector.extract_strided_slice %4 {offsets = [64, 256], sizes = [32, 256], strides = [1, 1]} : vector<384x512xbf16> to vector<32x256xbf16>
    %109 = vector.extract_strided_slice %4 {offsets = [192, 256], sizes = [32, 256], strides = [1, 1]} : vector<384x512xbf16> to vector<32x256xbf16>
    %110 = vector.extract_strided_slice %4 {offsets = [320, 256], sizes = [32, 256], strides = [1, 1]} : vector<384x512xbf16> to vector<32x256xbf16>
    %cst_28 = arith.constant dense<0.000000e+00> : vector<256x256xf32>
    %111 = tpu.matmul %109, %108, %cst_28 {dimension_numbers = #tpu.dot_dimension_numbers<[0], [0], [1], [1], [0, 1, 1, 1], [], []>} : vector<32x256xbf16>, vector<32x256xbf16>, vector<256x256xf32> -> vector<256x256xf32>
    %cst_29 = arith.constant dense<0xFF800000> : vector<256xf32>
    %112 = vector.multi_reduction <maximumf>, %111, %cst_29 [0] : vector<256x256xf32> to vector<256xf32>
    %113 = vector.shape_cast %112 : vector<256xf32> to vector<1x256xf32>
    %114 = vector.broadcast %113 : vector<1x256xf32> to vector<256x256xf32>
    %115 = arith.subf %111, %114 : vector<256x256xf32>
    %116 = math.exp %115 : vector<256x256xf32>
    %cst_30 = arith.constant dense<0.000000e+00> : vector<256xf32>
    %117 = vector.multi_reduction <add>, %116, %cst_30 [0] : vector<256x256xf32> to vector<256xf32>
    %118 = vector.shape_cast %117 : vector<256xf32> to vector<1x256xf32>
    %119 = arith.truncf %116 : vector<256x256xf32> to vector<256x256xbf16>
    %cst_31 = arith.constant dense<0.000000e+00> : vector<32x256xf32>
    %120 = tpu.matmul %110, %119, %cst_31 {dimension_numbers = #tpu.dot_dimension_numbers<[1], [0], [0], [1], [0, 0, 1, 1], [], []>} : vector<32x256xbf16>, vector<256x256xbf16>, vector<32x256xf32> -> vector<32x256xf32>
    %121 = tpu.reciprocal %118 {approx = true} : vector<1x256xf32> -> vector<1x256xf32>
    %122 = vector.broadcast %121 : vector<1x256xf32> to vector<32x256xf32>
    %123 = arith.mulf %120, %122 : vector<32x256xf32>
    %124 = arith.truncf %123 : vector<32x256xf32> to vector<32x256xbf16>
    %125 = vector.extract_strided_slice %4 {offsets = [96, 256], sizes = [32, 256], strides = [1, 1]} : vector<384x512xbf16> to vector<32x256xbf16>
    %126 = vector.extract_strided_slice %4 {offsets = [224, 256], sizes = [32, 256], strides = [1, 1]} : vector<384x512xbf16> to vector<32x256xbf16>
    %127 = vector.extract_strided_slice %4 {offsets = [352, 256], sizes = [32, 256], strides = [1, 1]} : vector<384x512xbf16> to vector<32x256xbf16>
    %cst_32 = arith.constant dense<0.000000e+00> : vector<256x256xf32>
    %128 = tpu.matmul %126, %125, %cst_32 {dimension_numbers = #tpu.dot_dimension_numbers<[0], [0], [1], [1], [0, 1, 1, 1], [], []>} : vector<32x256xbf16>, vector<32x256xbf16>, vector<256x256xf32> -> vector<256x256xf32>
    %cst_33 = arith.constant dense<0xFF800000> : vector<256xf32>
    %129 = vector.multi_reduction <maximumf>, %128, %cst_33 [0] : vector<256x256xf32> to vector<256xf32>
    %130 = vector.shape_cast %129 : vector<256xf32> to vector<1x256xf32>
    %131 = vector.broadcast %130 : vector<1x256xf32> to vector<256x256xf32>
    %132 = arith.subf %128, %131 : vector<256x256xf32>
    %133 = math.exp %132 : vector<256x256xf32>
    %cst_34 = arith.constant dense<0.000000e+00> : vector<256xf32>
    %134 = vector.multi_reduction <add>, %133, %cst_34 [0] : vector<256x256xf32> to vector<256xf32>
    %135 = vector.shape_cast %134 : vector<256xf32> to vector<1x256xf32>
    %136 = arith.truncf %133 : vector<256x256xf32> to vector<256x256xbf16>
    %cst_35 = arith.constant dense<0.000000e+00> : vector<32x256xf32>
    %137 = tpu.matmul %127, %136, %cst_35 {dimension_numbers = #tpu.dot_dimension_numbers<[1], [0], [0], [1], [0, 0, 1, 1], [], []>} : vector<32x256xbf16>, vector<256x256xbf16>, vector<32x256xf32> -> vector<32x256xf32>
    %138 = tpu.reciprocal %135 {approx = true} : vector<1x256xf32> -> vector<1x256xf32>
    %139 = vector.broadcast %138 : vector<1x256xf32> to vector<32x256xf32>
    %140 = arith.mulf %137, %139 : vector<32x256xf32>
    %141 = arith.truncf %140 : vector<32x256xf32> to vector<32x256xbf16>
    %142 = tpu.concatenate %90, %107, %124, %141 in 0 : vector<32x256xbf16>, vector<32x256xbf16>, vector<32x256xbf16>, vector<32x256xbf16> -> vector<128x256xbf16>
    %143 = tpu.concatenate %73, %142 in 1 : vector<128x256xbf16>, vector<128x256xbf16> -> vector<128x512xbf16>
    %c0_36 = arith.constant 0 : index
    %c0_37 = arith.constant 0 : index
    %144 = vector.load %arg3[%c0_36, %c0_37] : memref<8x128xbf16, #tpu.memory_space<vmem>>, vector<8x128xbf16>
    %cst_38 = arith.constant dense<0.000000e+00> : vector<8x512xf32>
    %145 = tpu.matmul %144, %143, %cst_38 {dimension_numbers = #tpu.dot_dimension_numbers<[1], [0], [0], [1], [0, 0, 1, 1], [], []>} : vector<8x128xbf16>, vector<128x512xbf16>, vector<8x512xf32> -> vector<8x512xf32>
    %c0_39 = arith.constant 0 : index
    %c0_40 = arith.constant 0 : index
    %146 = vector.load %arg4[%c0_39, %c0_40] : memref<8x1xf32, #tpu.memory_space<vmem>>, vector<8x1xf32>
    %147 = vector.broadcast %146 : vector<8x1xf32> to vector<8x512xf32>
    %148 = arith.addf %145, %147 : vector<8x512xf32>
    %c0_41 = arith.constant 0 : index
    %c0_42 = arith.constant 0 : index
    %c0_43 = arith.constant 0 : index
    %149 = vector.load %arg5[%c0_41, %c0_42, %c0_43] : memref<1x8x512xf32, #tpu.memory_space<vmem>>, vector<1x8x512xf32>
    %150 = vector.shape_cast %149 : vector<1x8x512xf32> to vector<8x512xf32>
    %151 = vector.shape_cast %148 : vector<8x512xf32> to vector<1x8x512xf32>
    tpu.vector_store %arg5[%c0_41, %c0_42, %c0_43], %151 {strides = array<i32>} : memref<1x8x512xf32, #tpu.memory_space<vmem>>, vector<1x8x512xf32>,
    return
  }
  func.func @transform_0(%arg0: i32) -> (i32, i32, i32) {
    %c0_i32 = arith.constant 0 : i32
    %c0_i32_0 = arith.constant 0 : i32
    %c0_i32_1 = arith.constant 0 : i32
    return %arg0, %c0_i32, %c0_i32_0 : i32, i32, i32
  }
  func.func @transform_1(%arg0: i32) -> (i32, i32) {
    %c0_i32 = arith.constant 0 : i32
    %c0_i32_0 = arith.constant 0 : i32
    %c0_i32_1 = arith.constant 0 : i32
    return %c0_i32, %c0_i32_0 : i32, i32
  }
  func.func @transform_2(%arg0: i32) -> (i32, i32) {
    %c0_i32 = arith.constant 0 : i32
    %c0_i32_0 = arith.constant 0 : i32
    %c0_i32_1 = arith.constant 0 : i32
    return %c0_i32, %c0_i32_0 : i32, i32
  }
  func.func @transform_3(%arg0: i32) -> (i32, i32) {
    %c0_i32 = arith.constant 0 : i32
    %c0_i32_0 = arith.constant 0 : i32
    %c0_i32_1 = arith.constant 0 : i32
    return %c0_i32, %c0_i32_0 : i32, i32
  }
  func.func @transform_4(%arg0: i32) -> (i32, i32, i32) {
    %c0_i32 = arith.constant 0 : i32
    %c0_i32_0 = arith.constant 0 : i32
    %c0_i32_1 = arith.constant 0 : i32
    return %arg0, %c0_i32, %c0_i32_0 : i32, i32, i32
  }
}

</mosaic_0001>

<llo_original>
// kernel: tpu_custom_call.1
$region0: #{tpu_custom_call.1}
  #allocation0 [shape = 'u32[]', space=smem, size = 0x4, offset = 0x4, fixed_abs, tag = 'smem constant byte address 0x4 - core index']
  #allocation1 [shape = 'u32[144,128]{1,0:T(1,128)}', space=vmem, size = 0x12000, scoped, tag = 'internal scratch']
  %s0 = inlined_call_operand.vmem [shape: bf16[1,8,512], index: 0, kind: input, shape index: {}]
  %s1 = inlined_call_operand.vmem [shape: bf16[384,8], index: 1, kind: input, shape index: {}]
  %s2 = inlined_call_operand.vmem [shape: bf16[8,128], index: 2, kind: input, shape index: {}]
  %s3 = inlined_call_operand.vmem [shape: f32[8,1], index: 3, kind: input, shape index: {}]
  %s4 = inlined_call_operand.hbm [shape: f32[1,8,512], index: 4, kind: output, shape index: {}]
  %s5 = sld [smem:[#allocation0]]
  $region26: #{tpu_custom_call.1} parent=0
    _
  %s7 = ssub.s32 1, %s5
  %s8 = scalar_select 0, %s7, %s5
  $region1: #{tpu_custom_call.1} parent=0
    #allocation2 [shape = 'u8[16384]{0}', space=vmem, size = 0x4000, scoped, tag = 'output window, operand 0, single buffered']
    #allocation3 [shape = 's32[1]{0}', space=sflag, size = 0x4, scoped, tag = 'scoped memory for tpu_custom_call.1']
    %9 = vsyncpa [#allocation3], 0
    // Predicated region
    $region2: #{tpu_custom_call.1} parent=1 // pred_check
      _
    $region3: #{tpu_custom_call.1} parent=1 // pred_check_branch
      %11 = sbr.rel (0) target = $region5
    $region4: #{tpu_custom_call.1} parent=1 // pred_region
      _
    $region5: #{tpu_custom_call.1} parent=1 // pred_fallthru
      _
    // Predicated region
    $region6: #{tpu_custom_call.1} parent=1 // pred_check
      _
    $region7: #{tpu_custom_call.1} parent=1 // pred_check_branch
      %13 = sbr.rel (0) target = $region9
    $region8: #{tpu_custom_call.1} parent=1 // pred_region
      _
    $region9: #{tpu_custom_call.1} parent=1 // pred_fallthru
      _
    // Predicated region
    $region10: #{tpu_custom_call.1} parent=1 // pred_check
      _
    $region11: #{tpu_custom_call.1} parent=1 // pred_check_branch
      %15 = sbr.rel (0) target = $region13
    $region12: #{tpu_custom_call.1} parent=1 // pred_region
      _
    $region13: #{tpu_custom_call.1} parent=1 // pred_fallthru
      _
    // Predicated region
    $region14: #{tpu_custom_call.1} parent=1 // pred_check
      _
    $region15: #{tpu_custom_call.1} parent=1 // pred_check_branch
      %17 = sbr.rel (0) target = $region17
    $region16: #{tpu_custom_call.1} parent=1 // pred_region
      _
    $region17: #{tpu_custom_call.1} parent=1 // pred_fallthru
      _
    %v19 = vld [vmem:[%s0] sm:$0xff]
    %v20 = vld [vmem:[%s0 + $0x8] sm:$0xff]
    %v21 = vld [vmem:[%s1] sm:$0xf]
    %v22 = vld [vmem:[%s1 + $0x4] sm:$0xf]
    %v23 = vld [vmem:[%s1 + $0x8] sm:$0xf]
    %v24 = vld [vmem:[%s1 + $0xc] sm:$0xf]
    %v25 = vld [vmem:[%s1 + $0x10] sm:$0xf]
    %v26 = vld [vmem:[%s1 + $0x14] sm:$0xf]
    %v27 = vld [vmem:[%s1 + $0x18] sm:$0xf]
    %v28 = vld [vmem:[%s1 + $0x1c] sm:$0xf]
    %v29 = vld [vmem:[%s1 + $0x20] sm:$0xf]
    %v30 = vld [vmem:[%s1 + $0x24] sm:$0xf]
    %v31 = vld [vmem:[%s1 + $0x28] sm:$0xf]
    %v32 = vld [vmem:[%s1 + $0x2c] sm:$0xf]
    %v33 = vld [vmem:[%s1 + $0x30] sm:$0xf]
    %v34 = vld [vmem:[%s1 + $0x34] sm:$0xf]
    %v35 = vld [vmem:[%s1 + $0x38] sm:$0xf]
    %v36 = vld [vmem:[%s1 + $0x3c] sm:$0xf]
    %v37 = vld [vmem:[%s1 + $0x40] sm:$0xf]
    %v38 = vld [vmem:[%s1 + $0x44] sm:$0xf]
    %v39 = vld [vmem:[%s1 + $0x48] sm:$0xf]
    %v40 = vld [vmem:[%s1 + $0x4c] sm:$0xf]
    %v41 = vld [vmem:[%s1 + $0x50] sm:$0xf]
    %v42 = vld [vmem:[%s1 + $0x54] sm:$0xf]
    %v43 = vld [vmem:[%s1 + $0x58] sm:$0xf]
    %v44 = vld [vmem:[%s1 + $0x5c] sm:$0xf]
    %v45 = vld [vmem:[%s1 + $0x60] sm:$0xf]
    %v46 = vld [vmem:[%s1 + $0x64] sm:$0xf]
    %v47 = vld [vmem:[%s1 + $0x68] sm:$0xf]
    %v48 = vld [vmem:[%s1 + $0x6c] sm:$0xf]
    %v49 = vld [vmem:[%s1 + $0x70] sm:$0xf]
    %v50 = vld [vmem:[%s1 + $0x74] sm:$0xf]
    %v51 = vld [vmem:[%s1 + $0x78] sm:$0xf]
    %v52 = vld [vmem:[%s1 + $0x7c] sm:$0xf]
    %v53 = vld [vmem:[%s1 + $0x80] sm:$0xf]
    %v54 = vld [vmem:[%s1 + $0x84] sm:$0xf]
    %v55 = vld [vmem:[%s1 + $0x88] sm:$0xf]
    %v56 = vld [vmem:[%s1 + $0x8c] sm:$0xf]
    %v57 = vld [vmem:[%s1 + $0x90] sm:$0xf]
    %v58 = vld [vmem:[%s1 + $0x94] sm:$0xf]
    %v59 = vld [vmem:[%s1 + $0x98] sm:$0xf]
    %v60 = vld [vmem:[%s1 + $0x9c] sm:$0xf]
    %v61 = vld [vmem:[%s1 + $0xa0] sm:$0xf]
    %v62 = vld [vmem:[%s1 + $0xa4] sm:$0xf]
    %v63 = vld [vmem:[%s1 + $0xa8] sm:$0xf]
    %v64 = vld [vmem:[%s1 + $0xac] sm:$0xf]
    %v65 = vld [vmem:[%s1 + $0xb0] sm:$0xf]
    %v66 = vld [vmem:[%s1 + $0xb4] sm:$0xf]
    %v67 = vld [vmem:[%s1 + $0xb8] sm:$0xf]
    %v68 = vld [vmem:[%s1 + $0xbc] sm:$0xf]
    %v117 = vunpack.c.l.b16 %v21
    %v118 = vunpack.c.l.b16 %v22
    %v119 = vunpack.c.l.b16 %v23
    %v120 = vunpack.c.l.b16 %v24
    %v121 = vunpack.c.l.b16 %v25
    %v122 = vunpack.c.l.b16 %v26
    %v123 = vunpack.c.l.b16 %v27
    %v124 = vunpack.c.l.b16 %v28
    %v125 = vunpack.c.l.b16 %v29
    %v126 = vunpack.c.l.b16 %v30
    %v127 = vunpack.c.l.b16 %v31
    %v128 = vunpack.c.l.b16 %v32
    %v129 = vunpack.c.l.b16 %v33
    %v130 = vunpack.c.l.b16 %v34
    %v131 = vunpack.c.l.b16 %v35
    %v132 = vunpack.c.l.b16 %v36
    %v133 = vunpack.c.l.b16 %v37
    %v134 = vunpack.c.l.b16 %v38
    %v135 = vunpack.c.l.b16 %v39
    %v136 = vunpack.c.l.b16 %v40
    %v137 = vunpack.c.l.b16 %v41
    %v138 = vunpack.c.l.b16 %v42
    %v139 = vunpack.c.l.b16 %v43
    %v140 = vunpack.c.l.b16 %v44
    %v141 = vunpack.c.l.b16 %v45
    %v142 = vunpack.c.l.b16 %v46
    %v143 = vunpack.c.l.b16 %v47
    %v144 = vunpack.c.l.b16 %v48
    %v145 = vunpack.c.l.b16 %v49
    %v146 = vunpack.c.l.b16 %v50
    %v147 = vunpack.c.l.b16 %v51
    %v148 = vunpack.c.l.b16 %v52
    %v149 = vunpack.c.l.b16 %v53
    %v150 = vunpack.c.l.b16 %v54
    %v151 = vunpack.c.l.b16 %v55
    %v152 = vunpack.c.l.b16 %v56
    %v153 = vunpack.c.l.b16 %v57
    %v154 = vunpack.c.l.b16 %v58
    %v155 = vunpack.c.l.b16 %v59
    %v156 = vunpack.c.l.b16 %v60
    %v157 = vunpack.c.l.b16 %v61
    %v158 = vunpack.c.l.b16 %v62
    %v159 = vunpack.c.l.b16 %v63
    %v160 = vunpack.c.l.b16 %v64
    %v161 = vunpack.c.l.b16 %v65
    %v162 = vunpack.c.l.b16 %v66
    %v163 = vunpack.c.l.b16 %v67
    %v164 = vunpack.c.l.b16 %v68
    %v165 = vpack.c.b16 %v118, %v117
    %v166 = vpack.c.b16 %v120, %v119
    %v167 = vpack.c.b16 %v122, %v121
    %v168 = vpack.c.b16 %v124, %v123
    %v169 = vpack.c.b16 %v126, %v125
    %v170 = vpack.c.b16 %v128, %v127
    %v171 = vpack.c.b16 %v130, %v129
    %v172 = vpack.c.b16 %v132, %v131
    %v173 = vpack.c.b16 %v134, %v133
    %v174 = vpack.c.b16 %v136, %v135
    %v175 = vpack.c.b16 %v138, %v137
    %v176 = vpack.c.b16 %v140, %v139
    %v177 = vpack.c.b16 %v142, %v141
    %v178 = vpack.c.b16 %v144, %v143
    %v179 = vpack.c.b16 %v146, %v145
    %v180 = vpack.c.b16 %v148, %v147
    %v181 = vpack.c.b16 %v150, %v149
    %v182 = vpack.c.b16 %v152, %v151
    %v183 = vpack.c.b16 %v154, %v153
    %v184 = vpack.c.b16 %v156, %v155
    %v185 = vpack.c.b16 %v158, %v157
    %v186 = vpack.c.b16 %v160, %v159
    %v187 = vpack.c.b16 %v162, %v161
    %v188 = vpack.c.b16 %v164, %v163
    %v191 = vunpack.c.l.b16 %v19
    %v192 = vunpack.c.h.b16 %v19
    %v193 = vunpack.c.l.b16 %v20
    %v194 = vunpack.c.h.b16 %v20
    %v195 = vpack.c.b16 %v191, %v191
    %v196 = vpack.c.b16 %v192, %v192
    %v197 = vpack.c.b16 %v193, %v193
    %v198 = vpack.c.b16 %v194, %v194
    %vm199 = vcmask 64512
    %v201 = vsel %vm199, %v165, 0
    %v204 = vsel %vm199, %v166, 0
    %v207 = vsel %vm199, %v167, 0
    %v210 = vsel %vm199, %v168, 0
    %v213 = vsel %vm199, %v169, 0
    %v216 = vsel %vm199, %v170, 0
    %v219 = vsel %vm199, %v171, 0
    %v222 = vsel %vm199, %v172, 0
    %v225 = vsel %vm199, %v173, 0
    %v228 = vsel %vm199, %v174, 0
    %v231 = vsel %vm199, %v175, 0
    %v234 = vsel %vm199, %v176, 0
    %v237 = vsel %vm199, %v177, 0
    %v240 = vsel %vm199, %v178, 0
    %v243 = vsel %vm199, %v179, 0
    %v246 = vsel %vm199, %v180, 0
    %v249 = vsel %vm199, %v181, 0
    %v252 = vsel %vm199, %v182, 0
    %v255 = vsel %vm199, %v183, 0
    %v258 = vsel %vm199, %v184, 0
    %v261 = vsel %vm199, %v185, 0
    %v264 = vsel %vm199, %v186, 0
    %v267 = vsel %vm199, %v187, 0
    %v270 = vsel %vm199, %v188, 0
    %vm272 = vcmask 1043456
    %v274 = vsel %vm272, %v195, 0
    %v277 = vsel %vm272, %v196, 0
    %v280 = vsel %vm272, %v197, 0
    %v283 = vsel %vm272, %v198, 0
    %285 = vmatprep.subr.bf16.mxu0 %v277
    %286 = vmatpush1.bf16.msra.mxu0 %v274
    %287 = vmatprep.subr.bf16.mxu0 0
    %288 = vmatpush1.bf16.msra.mxu0 0
    %289 = vmatprep.subr.bf16.mxu0 0
    %290 = vmatpush1.bf16.msra.mxu0 0
    %291 = vmatprep.subr.bf16.mxu0 0
    %292 = vmatpush1.bf16.msra.mxu0 0
    %293 = vmatprep.subr.bf16.mxu0 0
    %294 = vmatpush1.bf16.msra.mxu0 0
    %295 = vmatprep.subr.bf16.mxu0 0
    %296 = vmatpush1.bf16.msra.mxu0 0
    %297 = vmatprep.subr.bf16.mxu0 0
    %298 = vmatpush1.bf16.msra.mxu0 0
    %299 = vmatprep.subr.bf16.mxu0 0
    %300 = vmatpush1.bf16.msra.mxu0 0
    %301 = vmatprep.subr.bf16.mxu0 0
    %302 = vmatpush1.bf16.msra.mxu0 0
    %303 = vmatprep.subr.bf16.mxu0 0
    %304 = vmatpush1.bf16.msra.mxu0 0
    %305 = vmatprep.subr.bf16.mxu0 0
    %306 = vmatpush1.bf16.msra.mxu0 0
    %307 = vmatprep.subr.bf16.mxu0 0
    %308 = vmatpush1.bf16.msra.mxu0 0
    %309 = vmatprep.subr.bf16.mxu0 0
    %310 = vmatpush1.bf16.msra.mxu0 0
    %311 = vmatprep.subr.bf16.mxu0 0
    %312 = vmatpush1.bf16.msra.mxu0 0
    %313 = vmatprep.subr.bf16.mxu0 0
    %314 = vmatpush1.bf16.msra.mxu0 0
    %315 = vmatprep.subr.bf16.mxu0 0
    %316 = vmatpush1.bf16.msra.mxu0 0
    %317 = vmatprep.mubr.bf16.mxu0 0
    %318 = vmatmul.mubr.bf16.gmra.mrb[0].mxu0 %v201
    %v319 = vpop.f32.mrb[0].mxu0
    %v320 = vadd.f32 0.0, %v319
    %v321 = vpop.f32.mrb[0].mxu0
    %v322 = vadd.f32 0.0, %v321
    %v323 = vpop.f32.mrb[0].mxu0
    %v324 = vadd.f32 0.0, %v323
    %v325 = vpop.f32.mrb[0].mxu0
    %v326 = vadd.f32 0.0, %v325
    %327 = vmatprep.mubr.bf16.mxu0 0
    %328 = vmatmul.mubr.bf16.gmra.mrb[0].mxu0 %v204
    %v329 = vpop.f32.mrb[0].mxu0
    %v330 = vadd.f32 0.0, %v329
    %v331 = vpop.f32.mrb[0].mxu0
    %v332 = vadd.f32 0.0, %v331
    %v333 = vpop.f32.mrb[0].mxu0
    %v334 = vadd.f32 0.0, %v333
    %v335 = vpop.f32.mrb[0].mxu0
    %v336 = vadd.f32 0.0, %v335
    %337 = vmatprep.mubr.bf16.mxu0 0
    %338 = vmatmul.mubr.bf16.gmra.mrb[0].mxu0 %v207
    %v339 = vpop.f32.mrb[0].mxu0
    %v340 = vadd.f32 0.0, %v339
    %v341 = vpop.f32.mrb[0].mxu0
    %v342 = vadd.f32 0.0, %v341
    %v343 = vpop.f32.mrb[0].mxu0
    %v344 = vadd.f32 0.0, %v343
    %v345 = vpop.f32.mrb[0].mxu0
    %v346 = vadd.f32 0.0, %v345
    %347 = vmatprep.mubr.bf16.mxu0 0
    %348 = vmatmul.mubr.bf16.gmra.mrb[0].mxu0 %v210
    %v349 = vpop.f32.mrb[0].mxu0
    %v350 = vadd.f32 0.0, %v349
    %v351 = vpop.f32.mrb[0].mxu0
    %v352 = vadd.f32 0.0, %v351
    %v353 = vpop.f32.mrb[0].mxu0
    %v354 = vadd.f32 0.0, %v353
    %v355 = vpop.f32.mrb[0].mxu0
    %v356 = vadd.f32 0.0, %v355
    %357 = vmatprep.mubr.bf16.mxu0 0
    %358 = vmatmul.mubr.bf16.gmra.mrb[0].mxu0 %v213
    %v359 = vpop.f32.mrb[0].mxu0
    %v360 = vadd.f32 0.0, %v359
    %v361 = vpop.f32.mrb[0].mxu0
    %v362 = vadd.f32 0.0, %v361
    %v363 = vpop.f32.mrb[0].mxu0
    %v364 = vadd.f32 0.0, %v363
    %v365 = vpop.f32.mrb[0].mxu0
    %v366 = vadd.f32 0.0, %v365
    %367 = vmatprep.mubr.bf16.mxu0 0
    %368 = vmatmul.mubr.bf16.gmra.mrb[0].mxu0 %v216
    %v369 = vpop.f32.mrb[0].mxu0
    %v370 = vadd.f32 0.0, %v369
    %v371 = vpop.f32.mrb[0].mxu0
    %v372 = vadd.f32 0.0, %v371
    %v373 = vpop.f32.mrb[0].mxu0
    %v374 = vadd.f32 0.0, %v373
    %v375 = vpop.f32.mrb[0].mxu0
    %v376 = vadd.f32 0.0, %v375
    %377 = vmatprep.mubr.bf16.mxu0 0
    %378 = vmatmul.mubr.bf16.gmra.mrb[0].mxu0 %v219
    %v379 = vpop.f32.mrb[0].mxu0
    %v380 = vadd.f32 0.0, %v379
    %v381 = vpop.f32.mrb[0].mxu0
    %v382 = vadd.f32 0.0, %v381
    %v383 = vpop.f32.mrb[0].mxu0
    %v384 = vadd.f32 0.0, %v383
    %v385 = vpop.f32.mrb[0].mxu0
    %v386 = vadd.f32 0.0, %v385
    %387 = vmatprep.mubr.bf16.mxu0 0
    %388 = vmatmul.mubr.bf16.gmra.mrb[0].mxu0 %v222
    %v389 = vpop.f32.mrb[0].mxu0
    %v390 = vadd.f32 0.0, %v389
    %v391 = vpop.f32.mrb[0].mxu0
    %v392 = vadd.f32 0.0, %v391
    %v393 = vpop.f32.mrb[0].mxu0
    %v394 = vadd.f32 0.0, %v393
    %v395 = vpop.f32.mrb[0].mxu0
    %v396 = vadd.f32 0.0, %v395
    %397 = vmatprep.mubr.bf16.mxu0 0
    %398 = vmatmul.mubr.bf16.gmra.mrb[0].mxu0 %v225
    %v399 = vpop.f32.mrb[0].mxu0
    %v400 = vadd.f32 0.0, %v399
    %v401 = vpop.f32.mrb[0].mxu0
    %v402 = vadd.f32 0.0, %v401
    %v403 = vpop.f32.mrb[0].mxu0
    %v404 = vadd.f32 0.0, %v403
    %v405 = vpop.f32.mrb[0].mxu0
    %v406 = vadd.f32 0.0, %v405
    %407 = vmatprep.mubr.bf16.mxu0 0
    %408 = vmatmul.mubr.bf16.gmra.mrb[0].mxu0 %v228
    %v409 = vpop.f32.mrb[0].mxu0
    %v410 = vadd.f32 0.0, %v409
    %v411 = vpop.f32.mrb[0].mxu0
    %v412 = vadd.f32 0.0, %v411
    %v413 = vpop.f32.mrb[0].mxu0
    %v414 = vadd.f32 0.0, %v413
    %v415 = vpop.f32.mrb[0].mxu0
    %v416 = vadd.f32 0.0, %v415
    %417 = vmatprep.mubr.bf16.mxu0 0
    %418 = vmatmul.mubr.bf16.gmra.mrb[0].mxu0 %v231
    %v419 = vpop.f32.mrb[0].mxu0
    %v420 = vadd.f32 0.0, %v419
    %v421 = vpop.f32.mrb[0].mxu0
    %v422 = vadd.f32 0.0, %v421
    %v423 = vpop.f32.mrb[0].mxu0
    %v424 = vadd.f32 0.0, %v423
    %v425 = vpop.f32.mrb[0].mxu0
    %v426 = vadd.f32 0.0, %v425
    %427 = vmatprep.mubr.bf16.mxu0 0
    %428 = vmatmul.mubr.bf16.gmra.mrb[0].mxu0 %v234
    %v429 = vpop.f32.mrb[0].mxu0
    %v430 = vadd.f32 0.0, %v429
    %v431 = vpop.f32.mrb[0].mxu0
    %v432 = vadd.f32 0.0, %v431
    %v433 = vpop.f32.mrb[0].mxu0
    %v434 = vadd.f32 0.0, %v433
    %v435 = vpop.f32.mrb[0].mxu0
    %v436 = vadd.f32 0.0, %v435
    %437 = vmatprep.mubr.bf16.mxu0 0
    %438 = vmatmul.mubr.bf16.gmra.mrb[0].mxu0 %v237
    %v439 = vpop.f32.mrb[0].mxu0
    %v440 = vadd.f32 0.0, %v439
    %v441 = vpop.f32.mrb[0].mxu0
    %v442 = vadd.f32 0.0, %v441
    %v443 = vpop.f32.mrb[0].mxu0
    %v444 = vadd.f32 0.0, %v443
    %v445 = vpop.f32.mrb[0].mxu0
    %v446 = vadd.f32 0.0, %v445
    %447 = vmatprep.mubr.bf16.mxu0 0
    %448 = vmatmul.mubr.bf16.gmra.mrb[0].mxu0 %v240
    %v449 = vpop.f32.mrb[0].mxu0
    %v450 = vadd.f32 0.0, %v449
    %v451 = vpop.f32.mrb[0].mxu0
    %v452 = vadd.f32 0.0, %v451
    %v453 = vpop.f32.mrb[0].mxu0
    %v454 = vadd.f32 0.0, %v453
    %v455 = vpop.f32.mrb[0].mxu0
    %v456 = vadd.f32 0.0, %v455
    %457 = vmatprep.mubr.bf16.mxu0 0
    %458 = vmatmul.mubr.bf16.gmra.mrb[0].mxu0 %v243
    %v459 = vpop.f32.mrb[0].mxu0
    %v460 = vadd.f32 0.0, %v459
    %v461 = vpop.f32.mrb[0].mxu0
    %v462 = vadd.f32 0.0, %v461
    %v463 = vpop.f32.mrb[0].mxu0
    %v464 = vadd.f32 0.0, %v463
    %v465 = vpop.f32.mrb[0].mxu0
    %v466 = vadd.f32 0.0, %v465
    %467 = vmatprep.mubr.bf16.mxu0 0
    %468 = vmatmul.mubr.bf16.gmra.mrb[0].mxu0 %v246
    %v469 = vpop.f32.mrb[0].mxu0
    %v470 = vadd.f32 0.0, %v469
    %v471 = vpop.f32.mrb[0].mxu0
    %v472 = vadd.f32 0.0, %v471
    %v473 = vpop.f32.mrb[0].mxu0
    %v474 = vadd.f32 0.0, %v473
    %v475 = vpop.f32.mrb[0].mxu0
    %v476 = vadd.f32 0.0, %v475
    %477 = vmatprep.mubr.bf16.mxu0 0
    %478 = vmatmul.mubr.bf16.gmra.mrb[0].mxu0 %v249
    %v479 = vpop.f32.mrb[0].mxu0
    %v480 = vadd.f32 0.0, %v479
    %v481 = vpop.f32.mrb[0].mxu0
    %v482 = vadd.f32 0.0, %v481
    %v483 = vpop.f32.mrb[0].mxu0
    %v484 = vadd.f32 0.0, %v483
    %v485 = vpop.f32.mrb[0].mxu0
    %v486 = vadd.f32 0.0, %v485
    %487 = vmatprep.mubr.bf16.mxu0 0
    %488 = vmatmul.mubr.bf16.gmra.mrb[0].mxu0 %v252
    %v489 = vpop.f32.mrb[0].mxu0
    %v490 = vadd.f32 0.0, %v489
    %v491 = vpop.f32.mrb[0].mxu0
    %v492 = vadd.f32 0.0, %v491
    %v493 = vpop.f32.mrb[0].mxu0
    %v494 = vadd.f32 0.0, %v493
    %v495 = vpop.f32.mrb[0].mxu0
    %v496 = vadd.f32 0.0, %v495
    %497 = vmatprep.mubr.bf16.mxu0 0
    %498 = vmatmul.mubr.bf16.gmra.mrb[0].mxu0 %v255
    %v499 = vpop.f32.mrb[0].mxu0
    %v500 = vadd.f32 0.0, %v499
    %v501 = vpop.f32.mrb[0].mxu0
    %v502 = vadd.f32 0.0, %v501
    %v503 = vpop.f32.mrb[0].mxu0
    %v504 = vadd.f32 0.0, %v503
    %v505 = vpop.f32.mrb[0].mxu0
    %v506 = vadd.f32 0.0, %v505
    %507 = vmatprep.mubr.bf16.mxu0 0
    %508 = vmatmul.mubr.bf16.gmra.mrb[0].mxu0 %v258
    %v509 = vpop.f32.mrb[0].mxu0
    %v510 = vadd.f32 0.0, %v509
    %v511 = vpop.f32.mrb[0].mxu0
    %v512 = vadd.f32 0.0, %v511
    %v513 = vpop.f32.mrb[0].mxu0
    %v514 = vadd.f32 0.0, %v513
    %v515 = vpop.f32.mrb[0].mxu0
    %v516 = vadd.f32 0.0, %v515
    %517 = vmatprep.mubr.bf16.mxu0 0
    %518 = vmatmul.mubr.bf16.gmra.mrb[0].mxu0 %v261
    %v519 = vpop.f32.mrb[0].mxu0
    %v520 = vadd.f32 0.0, %v519
    %v521 = vpop.f32.mrb[0].mxu0
    %v522 = vadd.f32 0.0, %v521
    %v523 = vpop.f32.mrb[0].mxu0
    %v524 = vadd.f32 0.0, %v523
    %v525 = vpop.f32.mrb[0].mxu0
    %v526 = vadd.f32 0.0, %v525
    %527 = vmatprep.mubr.bf16.mxu0 0
    %528 = vmatmul.mubr.bf16.gmra.mrb[0].mxu0 %v264
    %v529 = vpop.f32.mrb[0].mxu0
    %v530 = vadd.f32 0.0, %v529
    %v531 = vpop.f32.mrb[0].mxu0
    %v532 = vadd.f32 0.0, %v531
    %v533 = vpop.f32.mrb[0].mxu0
    %v534 = vadd.f32 0.0, %v533
    %v535 = vpop.f32.mrb[0].mxu0
    %v536 = vadd.f32 0.0, %v535
    %537 = vmatprep.mubr.bf16.mxu0 0
    %538 = vmatmul.mubr.bf16.gmra.mrb[0].mxu0 %v267
    %v539 = vpop.f32.mrb[0].mxu0
    %v540 = vadd.f32 0.0, %v539
    %v541 = vpop.f32.mrb[0].mxu0
    %v542 = vadd.f32 0.0, %v541
    %v543 = vpop.f32.mrb[0].mxu0
    %v544 = vadd.f32 0.0, %v543
    %v545 = vpop.f32.mrb[0].mxu0
    %v546 = vadd.f32 0.0, %v545
    %547 = vmatprep.mubr.bf16.mxu0 0
    %548 = vmatmul.mubr.bf16.gmra.mrb[0].mxu0 %v270
    %v549 = vpop.f32.mrb[0].mxu0
    %v550 = vadd.f32 0.0, %v549
    %v551 = vpop.f32.mrb[0].mxu0
    %v552 = vadd.f32 0.0, %v551
    %v553 = vpop.f32.mrb[0].mxu0
    %v554 = vadd.f32 0.0, %v553
    %v555 = vpop.f32.mrb[0].mxu0
    %v556 = vadd.f32 0.0, %v555
    %557 = vdwg.mxu0
    %558 = vmatprep.subr.bf16.mxu0 %v283
    %559 = vmatpush1.bf16.msra.mxu0 %v280
    %560 = vmatprep.subr.bf16.mxu0 0
    %561 = vmatpush1.bf16.msra.mxu0 0
    %562 = vmatprep.subr.bf16.mxu0 0
    %563 = vmatpush1.bf16.msra.mxu0 0
    %564 = vmatprep.subr.bf16.mxu0 0
    %565 = vmatpush1.bf16.msra.mxu0 0
    %566 = vmatprep.subr.bf16.mxu0 0
    %567 = vmatpush1.bf16.msra.mxu0 0
    %568 = vmatprep.subr.bf16.mxu0 0
    %569 = vmatpush1.bf16.msra.mxu0 0
    %570 = vmatprep.subr.bf16.mxu0 0
    %571 = vmatpush1.bf16.msra.mxu0 0
    %572 = vmatprep.subr.bf16.mxu0 0
    %573 = vmatpush1.bf16.msra.mxu0 0
    %574 = vmatprep.subr.bf16.mxu0 0
    %575 = vmatpush1.bf16.msra.mxu0 0
    %576 = vmatprep.subr.bf16.mxu0 0
    %577 = vmatpush1.bf16.msra.mxu0 0
    %578 = vmatprep.subr.bf16.mxu0 0
    %579 = vmatpush1.bf16.msra.mxu0 0
    %580 = vmatprep.subr.bf16.mxu0 0
    %581 = vmatpush1.bf16.msra.mxu0 0
    %582 = vmatprep.subr.bf16.mxu0 0
    %583 = vmatpush1.bf16.msra.mxu0 0
    %584 = vmatprep.subr.bf16.mxu0 0
    %585 = vmatpush1.bf16.msra.mxu0 0
    %586 = vmatprep.subr.bf16.mxu0 0
    %587 = vmatpush1.bf16.msra.mxu0 0
    %588 = vmatprep.subr.bf16.mxu0 0
    %589 = vmatpush1.bf16.msra.mxu0 0
    %590 = vmatprep.mubr.bf16.mxu0 0
    %591 = vmatmul.mubr.bf16.gmra.mrb[0].mxu0 %v201
    %v592 = vpop.f32.mrb[0].mxu0
    %v593 = vadd.f32 0.0, %v592
    %v594 = vpop.f32.mrb[0].mxu0
    %v595 = vadd.f32 0.0, %v594
    %v596 = vpop.f32.mrb[0].mxu0
    %v597 = vadd.f32 0.0, %v596
    %v598 = vpop.f32.mrb[0].mxu0
    %v599 = vadd.f32 0.0, %v598
    %600 = vmatprep.mubr.bf16.mxu0 0
    %601 = vmatmul.mubr.bf16.gmra.mrb[0].mxu0 %v204
    %v602 = vpop.f32.mrb[0].mxu0
    %v603 = vadd.f32 0.0, %v602
    %v604 = vpop.f32.mrb[0].mxu0
    %v605 = vadd.f32 0.0, %v604
    %v606 = vpop.f32.mrb[0].mxu0
    %v607 = vadd.f32 0.0, %v606
    %v608 = vpop.f32.mrb[0].mxu0
    %v609 = vadd.f32 0.0, %v608
    %610 = vmatprep.mubr.bf16.mxu0 0
    %611 = vmatmul.mubr.bf16.gmra.mrb[0].mxu0 %v207
    %v612 = vpop.f32.mrb[0].mxu0
    %v613 = vadd.f32 0.0, %v612
    %v614 = vpop.f32.mrb[0].mxu0
    %v615 = vadd.f32 0.0, %v614
    %v616 = vpop.f32.mrb[0].mxu0
    %v617 = vadd.f32 0.0, %v616
    %v618 = vpop.f32.mrb[0].mxu0
    %v619 = vadd.f32 0.0, %v618
    %620 = vmatprep.mubr.bf16.mxu0 0
    %621 = vmatmul.mubr.bf16.gmra.mrb[0].mxu0 %v210
    %v622 = vpop.f32.mrb[0].mxu0
    %v623 = vadd.f32 0.0, %v622
    %v624 = vpop.f32.mrb[0].mxu0
    %v625 = vadd.f32 0.0, %v624
    %v626 = vpop.f32.mrb[0].mxu0
    %v627 = vadd.f32 0.0, %v626
    %v628 = vpop.f32.mrb[0].mxu0
    %v629 = vadd.f32 0.0, %v628
    %630 = vmatprep.mubr.bf16.mxu0 0
    %631 = vmatmul.mubr.bf16.gmra.mrb[0].mxu0 %v213
    %v632 = vpop.f32.mrb[0].mxu0
    %v633 = vadd.f32 0.0, %v632
    %v634 = vpop.f32.mrb[0].mxu0
    %v635 = vadd.f32 0.0, %v634
    %v636 = vpop.f32.mrb[0].mxu0
    %v637 = vadd.f32 0.0, %v636
    %v638 = vpop.f32.mrb[0].mxu0
    %v639 = vadd.f32 0.0, %v638
    %640 = vmatprep.mubr.bf16.mxu0 0
    %641 = vmatmul.mubr.bf16.gmra.mrb[0].mxu0 %v216
    %v642 = vpop.f32.mrb[0].mxu0
    %v643 = vadd.f32 0.0, %v642
    %v644 = vpop.f32.mrb[0].mxu0
    %v645 = vadd.f32 0.0, %v644
    %v646 = vpop.f32.mrb[0].mxu0
    %v647 = vadd.f32 0.0, %v646
    %v648 = vpop.f32.mrb[0].mxu0
    %v649 = vadd.f32 0.0, %v648
    %650 = vmatprep.mubr.bf16.mxu0 0
    %651 = vmatmul.mubr.bf16.gmra.mrb[0].mxu0 %v219
    %v652 = vpop.f32.mrb[0].mxu0
    %v653 = vadd.f32 0.0, %v652
    %v654 = vpop.f32.mrb[0].mxu0
    %v655 = vadd.f32 0.0, %v654
    %v656 = vpop.f32.mrb[0].mxu0
    %v657 = vadd.f32 0.0, %v656
    %v658 = vpop.f32.mrb[0].mxu0
    %v659 = vadd.f32 0.0, %v658
    %660 = vmatprep.mubr.bf16.mxu0 0
    %661 = vmatmul.mubr.bf16.gmra.mrb[0].mxu0 %v222
    %v662 = vpop.f32.mrb[0].mxu0
    %v663 = vadd.f32 0.0, %v662
    %v664 = vpop.f32.mrb[0].mxu0
    %v665 = vadd.f32 0.0, %v664
    %v666 = vpop.f32.mrb[0].mxu0
    %v667 = vadd.f32 0.0, %v666
    %v668 = vpop.f32.mrb[0].mxu0
    %v669 = vadd.f32 0.0, %v668
    %670 = vmatprep.mubr.bf16.mxu0 0
    %671 = vmatmul.mubr.bf16.gmra.mrb[0].mxu0 %v225
    %v672 = vpop.f32.mrb[0].mxu0
    %v673 = vadd.f32 0.0, %v672
    %v674 = vpop.f32.mrb[0].mxu0
    %v675 = vadd.f32 0.0, %v674
    %v676 = vpop.f32.mrb[0].mxu0
    %v677 = vadd.f32 0.0, %v676
    %v678 = vpop.f32.mrb[0].mxu0
    %v679 = vadd.f32 0.0, %v678
    %680 = vmatprep.mubr.bf16.mxu0 0
    %681 = vmatmul.mubr.bf16.gmra.mrb[0].mxu0 %v228
    %v682 = vpop.f32.mrb[0].mxu0
    %v683 = vadd.f32 0.0, %v682
    %v684 = vpop.f32.mrb[0].mxu0
    %v685 = vadd.f32 0.0, %v684
    %v686 = vpop.f32.mrb[0].mxu0
    %v687 = vadd.f32 0.0, %v686
    %v688 = vpop.f32.mrb[0].mxu0
    %v689 = vadd.f32 0.0, %v688
    %690 = vmatprep.mubr.bf16.mxu0 0
    %691 = vmatmul.mubr.bf16.gmra.mrb[0].mxu0 %v231
    %v692 = vpop.f32.mrb[0].mxu0
    %v693 = vadd.f32 0.0, %v692
    %v694 = vpop.f32.mrb[0].mxu0
    %v695 = vadd.f32 0.0, %v694
    %v696 = vpop.f32.mrb[0].mxu0
    %v697 = vadd.f32 0.0, %v696
    %v698 = vpop.f32.mrb[0].mxu0
    %v699 = vadd.f32 0.0, %v698
    %700 = vmatprep.mubr.bf16.mxu0 0
    %701 = vmatmul.mubr.bf16.gmra.mrb[0].mxu0 %v234
    %v702 = vpop.f32.mrb[0].mxu0
    %v703 = vadd.f32 0.0, %v702
    %v704 = vpop.f32.mrb[0].mxu0
    %v705 = vadd.f32 0.0, %v704
    %v706 = vpop.f32.mrb[0].mxu0
    %v707 = vadd.f32 0.0, %v706
    %v708 = vpop.f32.mrb[0].mxu0
    %v709 = vadd.f32 0.0, %v708
    %710 = vmatprep.mubr.bf16.mxu0 0
    %711 = vmatmul.mubr.bf16.gmra.mrb[0].mxu0 %v237
    %v712 = vpop.f32.mrb[0].mxu0
    %v713 = vadd.f32 0.0, %v712
    %v714 = vpop.f32.mrb[0].mxu0
    %v715 = vadd.f32 0.0, %v714
    %v716 = vpop.f32.mrb[0].mxu0
    %v717 = vadd.f32 0.0, %v716
    %v718 = vpop.f32.mrb[0].mxu0
    %v719 = vadd.f32 0.0, %v718
    %720 = vmatprep.mubr.bf16.mxu0 0
    %721 = vmatmul.mubr.bf16.gmra.mrb[0].mxu0 %v240
    %v722 = vpop.f32.mrb[0].mxu0
    %v723 = vadd.f32 0.0, %v722
    %v724 = vpop.f32.mrb[0].mxu0
    %v725 = vadd.f32 0.0, %v724
    %v726 = vpop.f32.mrb[0].mxu0
    %v727 = vadd.f32 0.0, %v726
    %v728 = vpop.f32.mrb[0].mxu0
    %v729 = vadd.f32 0.0, %v728
    %730 = vmatprep.mubr.bf16.mxu0 0
    %731 = vmatmul.mubr.bf16.gmra.mrb[0].mxu0 %v243
    %v732 = vpop.f32.mrb[0].mxu0
    %v733 = vadd.f32 0.0, %v732
    %v734 = vpop.f32.mrb[0].mxu0
    %v735 = vadd.f32 0.0, %v734
    %v736 = vpop.f32.mrb[0].mxu0
    %v737 = vadd.f32 0.0, %v736
    %v738 = vpop.f32.mrb[0].mxu0
    %v739 = vadd.f32 0.0, %v738
    %740 = vmatprep.mubr.bf16.mxu0 0
    %741 = vmatmul.mubr.bf16.gmra.mrb[0].mxu0 %v246
    %v742 = vpop.f32.mrb[0].mxu0
    %v743 = vadd.f32 0.0, %v742
    %v744 = vpop.f32.mrb[0].mxu0
    %v745 = vadd.f32 0.0, %v744
    %v746 = vpop.f32.mrb[0].mxu0
    %v747 = vadd.f32 0.0, %v746
    %v748 = vpop.f32.mrb[0].mxu0
    %v749 = vadd.f32 0.0, %v748
    %750 = vmatprep.mubr.bf16.mxu0 0
    %751 = vmatmul.mubr.bf16.gmra.mrb[0].mxu0 %v249
    %v752 = vpop.f32.mrb[0].mxu0
    %v753 = vadd.f32 0.0, %v752
    %v754 = vpop.f32.mrb[0].mxu0
    %v755 = vadd.f32 0.0, %v754
    %v756 = vpop.f32.mrb[0].mxu0
    %v757 = vadd.f32 0.0, %v756
    %v758 = vpop.f32.mrb[0].mxu0
    %v759 = vadd.f32 0.0, %v758
    %760 = vmatprep.mubr.bf16.mxu0 0
    %761 = vmatmul.mubr.bf16.gmra.mrb[0].mxu0 %v252
    %v762 = vpop.f32.mrb[0].mxu0
    %v763 = vadd.f32 0.0, %v762
    %v764 = vpop.f32.mrb[0].mxu0
    %v765 = vadd.f32 0.0, %v764
    %v766 = vpop.f32.mrb[0].mxu0
    %v767 = vadd.f32 0.0, %v766
    %v768 = vpop.f32.mrb[0].mxu0
    %v769 = vadd.f32 0.0, %v768
    %770 = vmatprep.mubr.bf16.mxu0 0
    %771 = vmatmul.mubr.bf16.gmra.mrb[0].mxu0 %v255
    %v772 = vpop.f32.mrb[0].mxu0
    %v773 = vadd.f32 0.0, %v772
    %v774 = vpop.f32.mrb[0].mxu0
    %v775 = vadd.f32 0.0, %v774
    %v776 = vpop.f32.mrb[0].mxu0
    %v777 = vadd.f32 0.0, %v776
    %v778 = vpop.f32.mrb[0].mxu0
    %v779 = vadd.f32 0.0, %v778
    %780 = vmatprep.mubr.bf16.mxu0 0
    %781 = vmatmul.mubr.bf16.gmra.mrb[0].mxu0 %v258
    %v782 = vpop.f32.mrb[0].mxu0
    %v783 = vadd.f32 0.0, %v782
    %v784 = vpop.f32.mrb[0].mxu0
    %v785 = vadd.f32 0.0, %v784
    %v786 = vpop.f32.mrb[0].mxu0
    %v787 = vadd.f32 0.0, %v786
    %v788 = vpop.f32.mrb[0].mxu0
    %v789 = vadd.f32 0.0, %v788
    %790 = vmatprep.mubr.bf16.mxu0 0
    %791 = vmatmul.mubr.bf16.gmra.mrb[0].mxu0 %v261
    %v792 = vpop.f32.mrb[0].mxu0
    %v793 = vadd.f32 0.0, %v792
    %v794 = vpop.f32.mrb[0].mxu0
    %v795 = vadd.f32 0.0, %v794
    %v796 = vpop.f32.mrb[0].mxu0
    %v797 = vadd.f32 0.0, %v796
    %v798 = vpop.f32.mrb[0].mxu0
    %v799 = vadd.f32 0.0, %v798
    %800 = vmatprep.mubr.bf16.mxu0 0
    %801 = vmatmul.mubr.bf16.gmra.mrb[0].mxu0 %v264
    %v802 = vpop.f32.mrb[0].mxu0
    %v803 = vadd.f32 0.0, %v802
    %v804 = vpop.f32.mrb[0].mxu0
    %v805 = vadd.f32 0.0, %v804
    %v806 = vpop.f32.mrb[0].mxu0
    %v807 = vadd.f32 0.0, %v806
    %v808 = vpop.f32.mrb[0].mxu0
    %v809 = vadd.f32 0.0, %v808
    %810 = vmatprep.mubr.bf16.mxu0 0
    %811 = vmatmul.mubr.bf16.gmra.mrb[0].mxu0 %v267
    %v812 = vpop.f32.mrb[0].mxu0
    %v813 = vadd.f32 0.0, %v812
    %v814 = vpop.f32.mrb[0].mxu0
    %v815 = vadd.f32 0.0, %v814
    %v816 = vpop.f32.mrb[0].mxu0
    %v817 = vadd.f32 0.0, %v816
    %v818 = vpop.f32.mrb[0].mxu0
    %v819 = vadd.f32 0.0, %v818
    %820 = vmatprep.mubr.bf16.mxu0 0
    %821 = vmatmul.mubr.bf16.gmra.mrb[0].mxu0 %v270
    %v822 = vpop.f32.mrb[0].mxu0
    %v823 = vadd.f32 0.0, %v822
    %v824 = vpop.f32.mrb[0].mxu0
    %v825 = vadd.f32 0.0, %v824
    %v826 = vpop.f32.mrb[0].mxu0
    %v827 = vadd.f32 0.0, %v826
    %v828 = vpop.f32.mrb[0].mxu0
    %v829 = vadd.f32 0.0, %v828
    %830 = vdwg.mxu0
    %v831 = vpack.c.bf16 %v324, %v320
    %v832 = vpack.c.bf16 %v326, %v322
    %v833 = vpack.c.bf16 %v597, %v593
    %v834 = vpack.c.bf16 %v599, %v595
    %v835 = vpack.c.bf16 %v334, %v330
    %v836 = vpack.c.bf16 %v336, %v332
    %v837 = vpack.c.bf16 %v607, %v603
    %v838 = vpack.c.bf16 %v609, %v605
    %v839 = vpack.c.bf16 %v344, %v340
    %v840 = vpack.c.bf16 %v346, %v342
    %v841 = vpack.c.bf16 %v617, %v613
    %v842 = vpack.c.bf16 %v619, %v615
    %v843 = vpack.c.bf16 %v354, %v350
    %v844 = vpack.c.bf16 %v356, %v352
    %v845 = vpack.c.bf16 %v627, %v623
    %v846 = vpack.c.bf16 %v629, %v625
    %v847 = vpack.c.bf16 %v364, %v360
    %v848 = vpack.c.bf16 %v366, %v362
    %v849 = vpack.c.bf16 %v637, %v633
    %v850 = vpack.c.bf16 %v639, %v635
    %v851 = vpack.c.bf16 %v374, %v370
    %v852 = vpack.c.bf16 %v376, %v372
    %v853 = vpack.c.bf16 %v647, %v643
    %v854 = vpack.c.bf16 %v649, %v645
    %v855 = vpack.c.bf16 %v384, %v380
    %v856 = vpack.c.bf16 %v386, %v382
    %v857 = vpack.c.bf16 %v657, %v653
    %v858 = vpack.c.bf16 %v659, %v655
    %v859 = vpack.c.bf16 %v394, %v390
    %v860 = vpack.c.bf16 %v396, %v392
    %v861 = vpack.c.bf16 %v667, %v663
    %v862 = vpack.c.bf16 %v669, %v665
    %v863 = vpack.c.bf16 %v404, %v400
    %v864 = vpack.c.bf16 %v406, %v402
    %v865 = vpack.c.bf16 %v677, %v673
    %v866 = vpack.c.bf16 %v679, %v675
    %v867 = vpack.c.bf16 %v414, %v410
    %v868 = vpack.c.bf16 %v416, %v412
    %v869 = vpack.c.bf16 %v687, %v683
    %v870 = vpack.c.bf16 %v689, %v685
    %v871 = vpack.c.bf16 %v424, %v420
    %v872 = vpack.c.bf16 %v426, %v422
    %v873 = vpack.c.bf16 %v697, %v693
    %v874 = vpack.c.bf16 %v699, %v695
    %v875 = vpack.c.bf16 %v434, %v430
    %v876 = vpack.c.bf16 %v436, %v432
    %v877 = vpack.c.bf16 %v707, %v703
    %v878 = vpack.c.bf16 %v709, %v705
    %v879 = vpack.c.bf16 %v444, %v440
    %v880 = vpack.c.bf16 %v446, %v442
    %v881 = vpack.c.bf16 %v717, %v713
    %v882 = vpack.c.bf16 %v719, %v715
    %v883 = vpack.c.bf16 %v454, %v450
    %v884 = vpack.c.bf16 %v456, %v452
    %v885 = vpack.c.bf16 %v727, %v723
    %v886 = vpack.c.bf16 %v729, %v725
    %v887 = vpack.c.bf16 %v464, %v460
    %v888 = vpack.c.bf16 %v466, %v462
    %v889 = vpack.c.bf16 %v737, %v733
    %v890 = vpack.c.bf16 %v739, %v735
    %v891 = vpack.c.bf16 %v474, %v470
    %v892 = vpack.c.bf16 %v476, %v472
    %v893 = vpack.c.bf16 %v747, %v743
    %v894 = vpack.c.bf16 %v749, %v745
    %v895 = vpack.c.bf16 %v484, %v480
    %v896 = vpack.c.bf16 %v486, %v482
    %v897 = vpack.c.bf16 %v757, %v753
    %v898 = vpack.c.bf16 %v759, %v755
    %v899 = vpack.c.bf16 %v494, %v490
    %v900 = vpack.c.bf16 %v496, %v492
    %v901 = vpack.c.bf16 %v767, %v763
    %v902 = vpack.c.bf16 %v769, %v765
    %v903 = vpack.c.bf16 %v504, %v500
    %v904 = vpack.c.bf16 %v506, %v502
    %v905 = vpack.c.bf16 %v777, %v773
    %v906 = vpack.c.bf16 %v779, %v775
    %v907 = vpack.c.bf16 %v514, %v510
    %v908 = vpack.c.bf16 %v516, %v512
    %v909 = vpack.c.bf16 %v787, %v783
    %v910 = vpack.c.bf16 %v789, %v785
    %v911 = vpack.c.bf16 %v524, %v520
    %v912 = vpack.c.bf16 %v526, %v522
    %v913 = vpack.c.bf16 %v797, %v793
    %v914 = vpack.c.bf16 %v799, %v795
    %v915 = vpack.c.bf16 %v534, %v530
    %v916 = vpack.c.bf16 %v536, %v532
    %v917 = vpack.c.bf16 %v807, %v803
    %v918 = vpack.c.bf16 %v809, %v805
    %v919 = vpack.c.bf16 %v544, %v540
    %v920 = vpack.c.bf16 %v546, %v542
    %v921 = vpack.c.bf16 %v817, %v813
    %v922 = vpack.c.bf16 %v819, %v815
    %v923 = vpack.c.bf16 %v554, %v550
    %v924 = vpack.c.bf16 %v556, %v552
    %v925 = vpack.c.bf16 %v827, %v823
    %v926 = vpack.c.bf16 %v829, %v825
    %927 = vxpose.xlu0.c.b16.start [1/8] %v863, 128
    %928 = vxpose.xlu0.c.b16.cont [2/8] %v867, 128
    %929 = vxpose.xlu0.c.b16.cont [3/8] 0, 128
    %930 = vxpose.xlu0.c.b16.cont [4/8] 0, 128
    %931 = vxpose.xlu0.c.b16.cont [5/8] 0, 128
    %932 = vxpose.xlu0.c.b16.cont [6/8] 0, 128
    %933 = vxpose.xlu0.c.b16.cont [7/8] 0, 128
    %934 = vxpose.xlu0.c.b16.end [8/8] 0, 128
    %v935 = vpop.trf.xlu0
    %v936 = vpop.trf.xlu0
    %v937 = vpop.trf.xlu0
    %v938 = vpop.trf.xlu0
    %v939 = vpop.trf.xlu0
    %v940 = vpop.trf.xlu0
    %v941 = vpop.trf.xlu0
    %v942 = vpop.trf.xlu0
    %943 = vxpose.xlu0.c.b16.start [1/8] %v864, 128
    %944 = vxpose.xlu0.c.b16.cont [2/8] %v868, 128
    %945 = vxpose.xlu0.c.b16.cont [3/8] 0, 128
    %946 = vxpose.xlu0.c.b16.cont [4/8] 0, 128
    %947 = vxpose.xlu0.c.b16.cont [5/8] 0, 128
    %948 = vxpose.xlu0.c.b16.cont [6/8] 0, 128
    %949 = vxpose.xlu0.c.b16.cont [7/8] 0, 128
    %950 = vxpose.xlu0.c.b16.end [8/8] 0, 128
    %v951 = vpop.trf.xlu0
    %v952 = vpop.trf.xlu0
    %v953 = vpop.trf.xlu0
    %v954 = vpop.trf.xlu0
    %v955 = vpop.trf.xlu0
    %v956 = vpop.trf.xlu0
    %v957 = vpop.trf.xlu0
    %v958 = vpop.trf.xlu0
    %vm959 = vcmask 261120
    %v961 = vsel %vm959, %v935, 0
    %v964 = vsel %vm959, %v936, 0
    %v967 = vsel %vm959, %v937, 0
    %v970 = vsel %vm959, %v938, 0
    %v973 = vsel %vm959, %v939, 0
    %v976 = vsel %vm959, %v940, 0
    %v979 = vsel %vm959, %v941, 0
    %v982 = vsel %vm959, %v942, 0
    %v985 = vsel %vm959, %v951, 0
    %v988 = vsel %vm959, %v952, 0
    %v991 = vsel %vm959, %v953, 0
    %v994 = vsel %vm959, %v954, 0
    %v997 = vsel %vm959, %v955, 0
    %v1000 = vsel %vm959, %v956, 0
    %v1003 = vsel %vm959, %v957, 0
    %v1006 = vsel %vm959, %v958, 0
    %1008 = vmatprep.subr.bf16.mxu0 %v832
    %1009 = vmatpush1.bf16.msra.mxu0 %v831
    %1010 = vmatprep.subr.bf16.mxu0 %v836
    %1011 = vmatpush1.bf16.msra.mxu0 %v835
    %1012 = vmatprep.subr.bf16.mxu0 0
    %1013 = vmatpush1.bf16.msra.mxu0 0
    %1014 = vmatprep.subr.bf16.mxu0 0
    %1015 = vmatpush1.bf16.msra.mxu0 0
    %1016 = vmatprep.subr.bf16.mxu0 0
    %1017 = vmatpush1.bf16.msra.mxu0 0
    %1018 = vmatprep.subr.bf16.mxu0 0
    %1019 = vmatpush1.bf16.msra.mxu0 0
    %1020 = vmatprep.subr.bf16.mxu0 0
    %1021 = vmatpush1.bf16.msra.mxu0 0
    %1022 = vmatprep.subr.bf16.mxu0 0
    %1023 = vmatpush1.bf16.msra.mxu0 0
    %1024 = vmatprep.subr.bf16.mxu0 0
    %1025 = vmatpush1.bf16.msra.mxu0 0
    %1026 = vmatprep.subr.bf16.mxu0 0
    %1027 = vmatpush1.bf16.msra.mxu0 0
    %1028 = vmatprep.subr.bf16.mxu0 0
    %1029 = vmatpush1.bf16.msra.mxu0 0
    %1030 = vmatprep.subr.bf16.mxu0 0
    %1031 = vmatpush1.bf16.msra.mxu0 0
    %1032 = vmatprep.subr.bf16.mxu0 0
    %1033 = vmatpush1.bf16.msra.mxu0 0
    %1034 = vmatprep.subr.bf16.mxu0 0
    %1035 = vmatpush1.bf16.msra.mxu0 0
    %1036 = vmatprep.subr.bf16.mxu0 0
    %1037 = vmatpush1.bf16.msra.mxu0 0
    %1038 = vmatprep.subr.bf16.mxu0 0
    %1039 = vmatpush1.bf16.msra.mxu0 0
    %1040 = vmatprep.mubr.bf16.mxu0 0
    %1041 = vmatmul.mubr.bf16.gmra.mrb[0].mxu0 %v961
    %v1042 = vpop.f32.mrb[0].mxu0
    %v1043 = vadd.f32 0.0, %v1042
    %v1044 = vpop.f32.mrb[0].mxu0
    %v1045 = vadd.f32 0.0, %v1044
    %v1046 = vpop.f32.mrb[0].mxu0
    %v1047 = vadd.f32 0.0, %v1046
    %v1048 = vpop.f32.mrb[0].mxu0
    %v1049 = vadd.f32 0.0, %v1048
    %1050 = vmatprep.mubr.bf16.mxu0 0
    %1051 = vmatmul.mubr.bf16.gmra.mrb[0].mxu0 %v964
    %v1052 = vpop.f32.mrb[0].mxu0
    %v1053 = vadd.f32 0.0, %v1052
    %v1054 = vpop.f32.mrb[0].mxu0
    %v1055 = vadd.f32 0.0, %v1054
    %v1056 = vpop.f32.mrb[0].mxu0
    %v1057 = vadd.f32 0.0, %v1056
    %v1058 = vpop.f32.mrb[0].mxu0
    %v1059 = vadd.f32 0.0, %v1058
    %1060 = vmatprep.mubr.bf16.mxu0 0
    %1061 = vmatmul.mubr.bf16.gmra.mrb[0].mxu0 %v967
    %v1062 = vpop.f32.mrb[0].mxu0
    %v1063 = vadd.f32 0.0, %v1062
    %v1064 = vpop.f32.mrb[0].mxu0
    %v1065 = vadd.f32 0.0, %v1064
    %v1066 = vpop.f32.mrb[0].mxu0
    %v1067 = vadd.f32 0.0, %v1066
    %v1068 = vpop.f32.mrb[0].mxu0
    %v1069 = vadd.f32 0.0, %v1068
    %1070 = vmatprep.mubr.bf16.mxu0 0
    %1071 = vmatmul.mubr.bf16.gmra.mrb[0].mxu0 %v970
    %v1072 = vpop.f32.mrb[0].mxu0
    %v1073 = vadd.f32 0.0, %v1072
    %v1074 = vpop.f32.mrb[0].mxu0
    %v1075 = vadd.f32 0.0, %v1074
    %v1076 = vpop.f32.mrb[0].mxu0
    %v1077 = vadd.f32 0.0, %v1076
    %v1078 = vpop.f32.mrb[0].mxu0
    %v1079 = vadd.f32 0.0, %v1078
    %1080 = vmatprep.mubr.bf16.mxu0 0
    %1081 = vmatmul.mubr.bf16.gmra.mrb[0].mxu0 %v973
    %v1082 = vpop.f32.mrb[0].mxu0
    %v1083 = vadd.f32 0.0, %v1082
    %v1084 = vpop.f32.mrb[0].mxu0
    %v1085 = vadd.f32 0.0, %v1084
    %v1086 = vpop.f32.mrb[0].mxu0
    %v1087 = vadd.f32 0.0, %v1086
    %v1088 = vpop.f32.mrb[0].mxu0
    %v1089 = vadd.f32 0.0, %v1088
    %1090 = vmatprep.mubr.bf16.mxu0 0
    %1091 = vmatmul.mubr.bf16.gmra.mrb[0].mxu0 %v976
    %v1092 = vpop.f32.mrb[0].mxu0
    %v1093 = vadd.f32 0.0, %v1092
    %v1094 = vpop.f32.mrb[0].mxu0
    %v1095 = vadd.f32 0.0, %v1094
    %v1096 = vpop.f32.mrb[0].mxu0
    %v1097 = vadd.f32 0.0, %v1096
    %v1098 = vpop.f32.mrb[0].mxu0
    %v1099 = vadd.f32 0.0, %v1098
    %1100 = vmatprep.mubr.bf16.mxu0 0
    %1101 = vmatmul.mubr.bf16.gmra.mrb[0].mxu0 %v979
    %v1102 = vpop.f32.mrb[0].mxu0
    %v1103 = vadd.f32 0.0, %v1102
    %v1104 = vpop.f32.mrb[0].mxu0
    %v1105 = vadd.f32 0.0, %v1104
    %v1106 = vpop.f32.mrb[0].mxu0
    %v1107 = vadd.f32 0.0, %v1106
    %v1108 = vpop.f32.mrb[0].mxu0
    %v1109 = vadd.f32 0.0, %v1108
    %1110 = vmatprep.mubr.bf16.mxu0 0
    %1111 = vmatmul.mubr.bf16.gmra.mrb[0].mxu0 %v982
    %v1112 = vpop.f32.mrb[0].mxu0
    %v1113 = vadd.f32 0.0, %v1112
    %v1114 = vpop.f32.mrb[0].mxu0
    %v1115 = vadd.f32 0.0, %v1114
    %v1116 = vpop.f32.mrb[0].mxu0
    %v1117 = vadd.f32 0.0, %v1116
    %v1118 = vpop.f32.mrb[0].mxu0
    %v1119 = vadd.f32 0.0, %v1118
    %1120 = vmatprep.mubr.bf16.mxu0 0
    %1121 = vmatmul.mubr.bf16.gmra.mrb[0].mxu0 %v985
    %v1122 = vpop.f32.mrb[0].mxu0
    %v1123 = vadd.f32 0.0, %v1122
    %v1124 = vpop.f32.mrb[0].mxu0
    %v1125 = vadd.f32 0.0, %v1124
    %v1126 = vpop.f32.mrb[0].mxu0
    %v1127 = vadd.f32 0.0, %v1126
    %v1128 = vpop.f32.mrb[0].mxu0
    %v1129 = vadd.f32 0.0, %v1128
    %1130 = vmatprep.mubr.bf16.mxu0 0
    %1131 = vmatmul.mubr.bf16.gmra.mrb[0].mxu0 %v988
    %v1132 = vpop.f32.mrb[0].mxu0
    %v1133 = vadd.f32 0.0, %v1132
    %v1134 = vpop.f32.mrb[0].mxu0
    %v1135 = vadd.f32 0.0, %v1134
    %v1136 = vpop.f32.mrb[0].mxu0
    %v1137 = vadd.f32 0.0, %v1136
    %v1138 = vpop.f32.mrb[0].mxu0
    %v1139 = vadd.f32 0.0, %v1138
    %1140 = vmatprep.mubr.bf16.mxu0 0
    %1141 = vmatmul.mubr.bf16.gmra.mrb[0].mxu0 %v991
    %v1142 = vpop.f32.mrb[0].mxu0
    %v1143 = vadd.f32 0.0, %v1142
    %v1144 = vpop.f32.mrb[0].mxu0
    %v1145 = vadd.f32 0.0, %v1144
    %v1146 = vpop.f32.mrb[0].mxu0
    %v1147 = vadd.f32 0.0, %v1146
    %v1148 = vpop.f32.mrb[0].mxu0
    %v1149 = vadd.f32 0.0, %v1148
    %1150 = vmatprep.mubr.bf16.mxu0 0
    %1151 = vmatmul.mubr.bf16.gmra.mrb[0].mxu0 %v994
    %v1152 = vpop.f32.mrb[0].mxu0
    %v1153 = vadd.f32 0.0, %v1152
    %v1154 = vpop.f32.mrb[0].mxu0
    %v1155 = vadd.f32 0.0, %v1154
    %v1156 = vpop.f32.mrb[0].mxu0
    %v1157 = vadd.f32 0.0, %v1156
    %v1158 = vpop.f32.mrb[0].mxu0
    %v1159 = vadd.f32 0.0, %v1158
    %1160 = vmatprep.mubr.bf16.mxu0 0
    %1161 = vmatmul.mubr.bf16.gmra.mrb[0].mxu0 %v997
    %v1162 = vpop.f32.mrb[0].mxu0
    %v1163 = vadd.f32 0.0, %v1162
    %v1164 = vpop.f32.mrb[0].mxu0
    %v1165 = vadd.f32 0.0, %v1164
    %v1166 = vpop.f32.mrb[0].mxu0
    %v1167 = vadd.f32 0.0, %v1166
    %v1168 = vpop.f32.mrb[0].mxu0
    %v1169 = vadd.f32 0.0, %v1168
    %1170 = vmatprep.mubr.bf16.mxu0 0
    %1171 = vmatmul.mubr.bf16.gmra.mrb[0].mxu0 %v1000
    %v1172 = vpop.f32.mrb[0].mxu0
    %v1173 = vadd.f32 0.0, %v1172
    %v1174 = vpop.f32.mrb[0].mxu0
    %v1175 = vadd.f32 0.0, %v1174
    %v1176 = vpop.f32.mrb[0].mxu0
    %v1177 = vadd.f32 0.0, %v1176
    %v1178 = vpop.f32.mrb[0].mxu0
    %v1179 = vadd.f32 0.0, %v1178
    %1180 = vmatprep.mubr.bf16.mxu0 0
    %1181 = vmatmul.mubr.bf16.gmra.mrb[0].mxu0 %v1003
    %v1182 = vpop.f32.mrb[0].mxu0
    %v1183 = vadd.f32 0.0, %v1182
    %v1184 = vpop.f32.mrb[0].mxu0
    %v1185 = vadd.f32 0.0, %v1184
    %v1186 = vpop.f32.mrb[0].mxu0
    %v1187 = vadd.f32 0.0, %v1186
    %v1188 = vpop.f32.mrb[0].mxu0
    %v1189 = vadd.f32 0.0, %v1188
    %1190 = vmatprep.mubr.bf16.mxu0 0
    %1191 = vmatmul.mubr.bf16.gmra.mrb[0].mxu0 %v1006
    %v1192 = vpop.f32.mrb[0].mxu0
    %v1193 = vadd.f32 0.0, %v1192
    %v1194 = vpop.f32.mrb[0].mxu0
    %v1195 = vadd.f32 0.0, %v1194
    %v1196 = vpop.f32.mrb[0].mxu0
    %v1197 = vadd.f32 0.0, %v1196
    %v1198 = vpop.f32.mrb[0].mxu0
    %v1199 = vadd.f32 0.0, %v1198
    %1200 = vdwg.mxu0
    %v1201 = vmax.f32 %v1043, %v1053
    %v1202 = vmax.f32 %v1047, %v1057
    %v1203 = vmax.f32 %v1201, %v1063
    %v1204 = vmax.f32 %v1202, %v1067
    %v1205 = vmax.f32 %v1203, %v1073
    %v1206 = vmax.f32 %v1204, %v1077
    %v1207 = vmax.f32 %v1205, %v1083
    %v1208 = vmax.f32 %v1206, %v1087
    %v1209 = vmax.f32 %v1207, %v1093
    %v1210 = vmax.f32 %v1208, %v1097
    %v1211 = vmax.f32 %v1209, %v1103
    %v1212 = vmax.f32 %v1210, %v1107
    %v1213 = vmax.f32 %v1211, %v1113
    %v1214 = vmax.f32 %v1212, %v1117
    %v1215 = vmax.f32 %v1213, %v1123
    %v1216 = vmax.f32 %v1214, %v1127
    %v1217 = vmax.f32 %v1215, %v1133
    %v1218 = vmax.f32 %v1216, %v1137
    %v1219 = vmax.f32 %v1217, %v1143
    %v1220 = vmax.f32 %v1218, %v1147
    %v1221 = vmax.f32 %v1219, %v1153
    %v1222 = vmax.f32 %v1220, %v1157
    %v1223 = vmax.f32 %v1221, %v1163
    %v1224 = vmax.f32 %v1222, %v1167
    %v1225 = vmax.f32 %v1223, %v1173
    %v1226 = vmax.f32 %v1224, %v1177
    %v1227 = vmax.f32 %v1225, %v1183
    %v1228 = vmax.f32 %v1226, %v1187
    %v1229 = vmax.f32 %v1227, %v1193
    %v1230 = vmax.f32 %v1228, %v1197
    %v1231 = vmax.f32 %v1229, %v1230
    %v1232 = vrot.slane %v1231, 4
    %v1233 = vmax.f32 %v1231, %v1232
    %v1234 = vrot.slane %v1233, 2
    %v1235 = vmax.f32 %v1233, %v1234
    %v1236 = vrot.slane %v1235, 1
    %v1237 = vmax.f32 %v1235, %v1236
    %v1238 = vmax.f32 %v1045, %v1055
    %v1239 = vmax.f32 %v1049, %v1059
    %v1240 = vmax.f32 %v1238, %v1065
    %v1241 = vmax.f32 %v1239, %v1069
    %v1242 = vmax.f32 %v1240, %v1075
    %v1243 = vmax.f32 %v1241, %v1079
    %v1244 = vmax.f32 %v1242, %v1085
    %v1245 = vmax.f32 %v1243, %v1089
    %v1246 = vmax.f32 %v1244, %v1095
    %v1247 = vmax.f32 %v1245, %v1099
    %v1248 = vmax.f32 %v1246, %v1105
    %v1249 = vmax.f32 %v1247, %v1109
    %v1250 = vmax.f32 %v1248, %v1115
    %v1251 = vmax.f32 %v1249, %v1119
    %v1252 = vmax.f32 %v1250, %v1125
    %v1253 = vmax.f32 %v1251, %v1129
    %v1254 = vmax.f32 %v1252, %v1135
    %v1255 = vmax.f32 %v1253, %v1139
    %v1256 = vmax.f32 %v1254, %v1145
    %v1257 = vmax.f32 %v1255, %v1149
    %v1258 = vmax.f32 %v1256, %v1155
    %v1259 = vmax.f32 %v1257, %v1159
    %v1260 = vmax.f32 %v1258, %v1165
    %v1261 = vmax.f32 %v1259, %v1169
    %v1262 = vmax.f32 %v1260, %v1175
    %v1263 = vmax.f32 %v1261, %v1179
    %v1264 = vmax.f32 %v1262, %v1185
    %v1265 = vmax.f32 %v1263, %v1189
    %v1266 = vmax.f32 %v1264, %v1195
    %v1267 = vmax.f32 %v1265, %v1199
    %v1268 = vmax.f32 %v1266, %v1267
    %v1269 = vrot.slane %v1268, 4
    %v1270 = vmax.f32 %v1268, %v1269
    %v1271 = vrot.slane %v1270, 2
    %v1272 = vmax.f32 %v1270, %v1271
    %v1273 = vrot.slane %v1272, 1
    %v1274 = vmax.f32 %v1272, %v1273
    %v1275 = vsub.f32 %v1043, %v1237
    %v1276 = vsub.f32 %v1045, %v1274
    %v1277 = vsub.f32 %v1047, %v1237
    %v1278 = vsub.f32 %v1049, %v1274
    %v1279 = vsub.f32 %v1053, %v1237
    %v1280 = vsub.f32 %v1055, %v1274
    %v1281 = vsub.f32 %v1057, %v1237
    %v1282 = vsub.f32 %v1059, %v1274
    %v1283 = vsub.f32 %v1063, %v1237
    %v1284 = vsub.f32 %v1065, %v1274
    %v1285 = vsub.f32 %v1067, %v1237
    %v1286 = vsub.f32 %v1069, %v1274
    %v1287 = vsub.f32 %v1073, %v1237
    %v1288 = vsub.f32 %v1075, %v1274
    %v1289 = vsub.f32 %v1077, %v1237
    %v1290 = vsub.f32 %v1079, %v1274
    %v1291 = vsub.f32 %v1083, %v1237
    %v1292 = vsub.f32 %v1085, %v1274
    %v1293 = vsub.f32 %v1087, %v1237
    %v1294 = vsub.f32 %v1089, %v1274
    %v1295 = vsub.f32 %v1093, %v1237
    %v1296 = vsub.f32 %v1095, %v1274
    %v1297 = vsub.f32 %v1097, %v1237
    %v1298 = vsub.f32 %v1099, %v1274
    %v1299 = vsub.f32 %v1103, %v1237
    %v1300 = vsub.f32 %v1105, %v1274
    %v1301 = vsub.f32 %v1107, %v1237
    %v1302 = vsub.f32 %v1109, %v1274
    %v1303 = vsub.f32 %v1113, %v1237
    %v1304 = vsub.f32 %v1115, %v1274
    %v1305 = vsub.f32 %v1117, %v1237
    %v1306 = vsub.f32 %v1119, %v1274
    %v1307 = vsub.f32 %v1123, %v1237
    %v1308 = vsub.f32 %v1125, %v1274
    %v1309 = vsub.f32 %v1127, %v1237
    %v1310 = vsub.f32 %v1129, %v1274
    %v1311 = vsub.f32 %v1133, %v1237
    %v1312 = vsub.f32 %v1135, %v1274
    %v1313 = vsub.f32 %v1137, %v1237
    %v1314 = vsub.f32 %v1139, %v1274
    %v1315 = vsub.f32 %v1143, %v1237
    %v1316 = vsub.f32 %v1145, %v1274
    %v1317 = vsub.f32 %v1147, %v1237
    %v1318 = vsub.f32 %v1149, %v1274
    %v1319 = vsub.f32 %v1153, %v1237
    %v1320 = vsub.f32 %v1155, %v1274
    %v1321 = vsub.f32 %v1157, %v1237
    %v1322 = vsub.f32 %v1159, %v1274
    %v1323 = vsub.f32 %v1163, %v1237
    %v1324 = vsub.f32 %v1165, %v1274
    %v1325 = vsub.f32 %v1167, %v1237
    %v1326 = vsub.f32 %v1169, %v1274
    %v1327 = vsub.f32 %v1173, %v1237
    %v1328 = vsub.f32 %v1175, %v1274
    %v1329 = vsub.f32 %v1177, %v1237
    %v1330 = vsub.f32 %v1179, %v1274
    %v1331 = vsub.f32 %v1183, %v1237
    %v1332 = vsub.f32 %v1185, %v1274
    %v1333 = vsub.f32 %v1187, %v1237
    %v1334 = vsub.f32 %v1189, %v1274
    %v1335 = vsub.f32 %v1193, %v1237
    %v1336 = vsub.f32 %v1195, %v1274
    %v1337 = vsub.f32 %v1197, %v1237
    %v1338 = vsub.f32 %v1199, %v1274
    %v1339 = vmul.f32 %v1275, 1.442695
    %v1340 = vpow.pop %v1339
    %v1341 = vmul.f32 %v1276, 1.442695
    %v1342 = vpow.pop %v1341
    %v1343 = vmul.f32 %v1277, 1.442695
    %v1344 = vpow.pop %v1343
    %v1345 = vmul.f32 %v1278, 1.442695
    %v1346 = vpow.pop %v1345
    %v1347 = vmul.f32 %v1279, 1.442695
    %v1348 = vpow.pop %v1347
    %v1349 = vmul.f32 %v1280, 1.442695
    %v1350 = vpow.pop %v1349
    %v1351 = vmul.f32 %v1281, 1.442695
    %v1352 = vpow.pop %v1351
    %v1353 = vmul.f32 %v1282, 1.442695
    %v1354 = vpow.pop %v1353
    %v1355 = vmul.f32 %v1283, 1.442695
    %v1356 = vpow.pop %v1355
    %v1357 = vmul.f32 %v1284, 1.442695
    %v1358 = vpow.pop %v1357
    %v1359 = vmul.f32 %v1285, 1.442695
    %v1360 = vpow.pop %v1359
    %v1361 = vmul.f32 %v1286, 1.442695
    %v1362 = vpow.pop %v1361
    %v1363 = vmul.f32 %v1287, 1.442695
    %v1364 = vpow.pop %v1363
    %v1365 = vmul.f32 %v1288, 1.442695
    %v1366 = vpow.pop %v1365
    %v1367 = vmul.f32 %v1289, 1.442695
    %v1368 = vpow.pop %v1367
    %v1369 = vmul.f32 %v1290, 1.442695
    %v1370 = vpow.pop %v1369
    %v1371 = vmul.f32 %v1291, 1.442695
    %v1372 = vpow.pop %v1371
    %v1373 = vmul.f32 %v1292, 1.442695
    %v1374 = vpow.pop %v1373
    %v1375 = vmul.f32 %v1293, 1.442695
    %v1376 = vpow.pop %v1375
    %v1377 = vmul.f32 %v1294, 1.442695
    %v1378 = vpow.pop %v1377
    %v1379 = vmul.f32 %v1295, 1.442695
    %v1380 = vpow.pop %v1379
    %v1381 = vmul.f32 %v1296, 1.442695
    %v1382 = vpow.pop %v1381
    %v1383 = vmul.f32 %v1297, 1.442695
    %v1384 = vpow.pop %v1383
    %v1385 = vmul.f32 %v1298, 1.442695
    %v1386 = vpow.pop %v1385
    %v1387 = vmul.f32 %v1299, 1.442695
    %v1388 = vpow.pop %v1387
    %v1389 = vmul.f32 %v1300, 1.442695
    %v1390 = vpow.pop %v1389
    %v1391 = vmul.f32 %v1301, 1.442695
    %v1392 = vpow.pop %v1391
    %v1393 = vmul.f32 %v1302, 1.442695
    %v1394 = vpow.pop %v1393
    %v1395 = vmul.f32 %v1303, 1.442695
    %v1396 = vpow.pop %v1395
    %v1397 = vmul.f32 %v1304, 1.442695
    %v1398 = vpow.pop %v1397
    %v1399 = vmul.f32 %v1305, 1.442695
    %v1400 = vpow.pop %v1399
    %v1401 = vmul.f32 %v1306, 1.442695
    %v1402 = vpow.pop %v1401
    %v1403 = vmul.f32 %v1307, 1.442695
    %v1404 = vpow.pop %v1403
    %v1405 = vmul.f32 %v1308, 1.442695
    %v1406 = vpow.pop %v1405
    %v1407 = vmul.f32 %v1309, 1.442695
    %v1408 = vpow.pop %v1407
    %v1409 = vmul.f32 %v1310, 1.442695
    %v1410 = vpow.pop %v1409
    %v1411 = vmul.f32 %v1311, 1.442695
    %v1412 = vpow.pop %v1411
    %v1413 = vmul.f32 %v1312, 1.442695
    %v1414 = vpow.pop %v1413
    %v1415 = vmul.f32 %v1313, 1.442695
    %v1416 = vpow.pop %v1415
    %v1417 = vmul.f32 %v1314, 1.442695
    %v1418 = vpow.pop %v1417
    %v1419 = vmul.f32 %v1315, 1.442695
    %v1420 = vpow.pop %v1419
    %v1421 = vmul.f32 %v1316, 1.442695
    %v1422 = vpow.pop %v1421
    %v1423 = vmul.f32 %v1317, 1.442695
    %v1424 = vpow.pop %v1423
    %v1425 = vmul.f32 %v1318, 1.442695
    %v1426 = vpow.pop %v1425
    %v1427 = vmul.f32 %v1319, 1.442695
    %v1428 = vpow.pop %v1427
    %v1429 = vmul.f32 %v1320, 1.442695
    %v1430 = vpow.pop %v1429
    %v1431 = vmul.f32 %v1321, 1.442695
    %v1432 = vpow.pop %v1431
    %v1433 = vmul.f32 %v1322, 1.442695
    %v1434 = vpow.pop %v1433
    %v1435 = vmul.f32 %v1323, 1.442695
    %v1436 = vpow.pop %v1435
    %v1437 = vmul.f32 %v1324, 1.442695
    %v1438 = vpow.pop %v1437
    %v1439 = vmul.f32 %v1325, 1.442695
    %v1440 = vpow.pop %v1439
    %v1441 = vmul.f32 %v1326, 1.442695
    %v1442 = vpow.pop %v1441
    %v1443 = vmul.f32 %v1327, 1.442695
    %v1444 = vpow.pop %v1443
    %v1445 = vmul.f32 %v1328, 1.442695
    %v1446 = vpow.pop %v1445
    %v1447 = vmul.f32 %v1329, 1.442695
    %v1448 = vpow.pop %v1447
    %v1449 = vmul.f32 %v1330, 1.442695
    %v1450 = vpow.pop %v1449
    %v1451 = vmul.f32 %v1331, 1.442695
    %v1452 = vpow.pop %v1451
    %v1453 = vmul.f32 %v1332, 1.442695
    %v1454 = vpow.pop %v1453
    %v1455 = vmul.f32 %v1333, 1.442695
    %v1456 = vpow.pop %v1455
    %v1457 = vmul.f32 %v1334, 1.442695
    %v1458 = vpow.pop %v1457
    %v1459 = vmul.f32 %v1335, 1.442695
    %v1460 = vpow.pop %v1459
    %v1461 = vmul.f32 %v1336, 1.442695
    %v1462 = vpow.pop %v1461
    %v1463 = vmul.f32 %v1337, 1.442695
    %v1464 = vpow.pop %v1463
    %v1465 = vmul.f32 %v1338, 1.442695
    %v1466 = vpow.pop %v1465
    %v1467 = vadd.f32 %v1340, %v1344
    %v1468 = vadd.f32 %v1467, %v1348
    %v1469 = vadd.f32 %v1468, %v1352
    %v1470 = vadd.f32 %v1469, %v1356
    %v1471 = vadd.f32 %v1470, %v1360
    %v1472 = vadd.f32 %v1471, %v1364
    %v1473 = vadd.f32 %v1472, %v1368
    %v1474 = vadd.f32 %v1473, %v1372
    %v1475 = vadd.f32 %v1474, %v1376
    %v1476 = vadd.f32 %v1475, %v1380
    %v1477 = vadd.f32 %v1476, %v1384
    %v1478 = vadd.f32 %v1477, %v1388
    %v1479 = vadd.f32 %v1478, %v1392
    %v1480 = vadd.f32 %v1479, %v1396
    %v1481 = vadd.f32 %v1480, %v1400
    %v1482 = vadd.f32 %v1481, %v1404
    %v1483 = vadd.f32 %v1482, %v1408
    %v1484 = vadd.f32 %v1483, %v1412
    %v1485 = vadd.f32 %v1484, %v1416
    %v1486 = vadd.f32 %v1485, %v1420
    %v1487 = vadd.f32 %v1486, %v1424
    %v1488 = vadd.f32 %v1487, %v1428
    %v1489 = vadd.f32 %v1488, %v1432
    %v1490 = vadd.f32 %v1489, %v1436
    %v1491 = vadd.f32 %v1490, %v1440
    %v1492 = vadd.f32 %v1491, %v1444
    %v1493 = vadd.f32 %v1492, %v1448
    %v1494 = vadd.f32 %v1493, %v1452
    %v1495 = vadd.f32 %v1494, %v1456
    %v1496 = vadd.f32 %v1495, %v1460
    %v1497 = vadd.f32 %v1496, %v1464
    %v1498 = vrot.slane %v1497, 4
    %v1499 = vadd.f32 %v1497, %v1498
    %v1500 = vrot.slane %v1499, 2
    %v1501 = vadd.f32 %v1499, %v1500
    %v1502 = vrot.slane %v1501, 1
    %v1503 = vadd.f32 %v1501, %v1502
    %v1504 = vadd.f32 %v1342, %v1346
    %v1505 = vadd.f32 %v1504, %v1350
    %v1506 = vadd.f32 %v1505, %v1354
    %v1507 = vadd.f32 %v1506, %v1358
    %v1508 = vadd.f32 %v1507, %v1362
    %v1509 = vadd.f32 %v1508, %v1366
    %v1510 = vadd.f32 %v1509, %v1370
    %v1511 = vadd.f32 %v1510, %v1374
    %v1512 = vadd.f32 %v1511, %v1378
    %v1513 = vadd.f32 %v1512, %v1382
    %v1514 = vadd.f32 %v1513, %v1386
    %v1515 = vadd.f32 %v1514, %v1390
    %v1516 = vadd.f32 %v1515, %v1394
    %v1517 = vadd.f32 %v1516, %v1398
    %v1518 = vadd.f32 %v1517, %v1402
    %v1519 = vadd.f32 %v1518, %v1406
    %v1520 = vadd.f32 %v1519, %v1410
    %v1521 = vadd.f32 %v1520, %v1414
    %v1522 = vadd.f32 %v1521, %v1418
    %v1523 = vadd.f32 %v1522, %v1422
    %v1524 = vadd.f32 %v1523, %v1426
    %v1525 = vadd.f32 %v1524, %v1430
    %v1526 = vadd.f32 %v1525, %v1434
    %v1527 = vadd.f32 %v1526, %v1438
    %v1528 = vadd.f32 %v1527, %v1442
    %v1529 = vadd.f32 %v1528, %v1446
    %v1530 = vadd.f32 %v1529, %v1450
    %v1531 = vadd.f32 %v1530, %v1454
    %v1532 = vadd.f32 %v1531, %v1458
    %v1533 = vadd.f32 %v1532, %v1462
    %v1534 = vadd.f32 %v1533, %v1466
    %v1535 = vrot.slane %v1534, 4
    %v1536 = vadd.f32 %v1534, %v1535
    %v1537 = vrot.slane %v1536, 2
    %v1538 = vadd.f32 %v1536, %v1537
    %v1539 = vrot.slane %v1538, 1
    %v1540 = vadd.f32 %v1538, %v1539
    %v1541 = vpack.c.bf16 %v1344, %v1340
    %v1542 = vpack.c.bf16 %v1346, %v1342
    %v1543 = vpack.c.bf16 %v1352, %v1348
    %v1544 = vpack.c.bf16 %v1354, %v1350
    %v1545 = vpack.c.bf16 %v1360, %v1356
    %v1546 = vpack.c.bf16 %v1362, %v1358
    %v1547 = vpack.c.bf16 %v1368, %v1364
    %v1548 = vpack.c.bf16 %v1370, %v1366
    %v1549 = vpack.c.bf16 %v1376, %v1372
    %v1550 = vpack.c.bf16 %v1378, %v1374
    %v1551 = vpack.c.bf16 %v1384, %v1380
    %v1552 = vpack.c.bf16 %v1386, %v1382
    %v1553 = vpack.c.bf16 %v1392, %v1388
    %v1554 = vpack.c.bf16 %v1394, %v1390
    %v1555 = vpack.c.bf16 %v1400, %v1396
    %v1556 = vpack.c.bf16 %v1402, %v1398
    %v1557 = vpack.c.bf16 %v1408, %v1404
    %v1558 = vpack.c.bf16 %v1410, %v1406
    %v1559 = vpack.c.bf16 %v1416, %v1412
    %v1560 = vpack.c.bf16 %v1418, %v1414
    %v1561 = vpack.c.bf16 %v1424, %v1420
    %v1562 = vpack.c.bf16 %v1426, %v1422
    %v1563 = vpack.c.bf16 %v1432, %v1428
    %v1564 = vpack.c.bf16 %v1434, %v1430
    %v1565 = vpack.c.bf16 %v1440, %v1436
    %v1566 = vpack.c.bf16 %v1442, %v1438
    %v1567 = vpack.c.bf16 %v1448, %v1444
    %v1568 = vpack.c.bf16 %v1450, %v1446
    %v1569 = vpack.c.bf16 %v1456, %v1452
    %v1570 = vpack.c.bf16 %v1458, %v1454
    %v1571 = vpack.c.bf16 %v1464, %v1460
    %v1572 = vpack.c.bf16 %v1466, %v1462
    %1573 = vmatprep.subr.bf16.mxu0 %v1542
    %1574 = vmatpush1.bf16.msra.mxu0 %v1541
    %1575 = vmatprep.subr.bf16.mxu0 %v1544
    %1576 = vmatpush1.bf16.msra.mxu0 %v1543
    %1577 = vmatprep.subr.bf16.mxu0 %v1546
    %1578 = vmatpush1.bf16.msra.mxu0 %v1545
    %1579 = vmatprep.subr.bf16.mxu0 %v1548
    %1580 = vmatpush1.bf16.msra.mxu0 %v1547
    %1581 = vmatprep.subr.bf16.mxu0 %v1550
    %1582 = vmatpush1.bf16.msra.mxu0 %v1549
    %1583 = vmatprep.subr.bf16.mxu0 %v1552
    %1584 = vmatpush1.bf16.msra.mxu0 %v1551
    %1585 = vmatprep.subr.bf16.mxu0 %v1554
    %1586 = vmatpush1.bf16.msra.mxu0 %v1553
    %1587 = vmatprep.subr.bf16.mxu0 %v1556
    %1588 = vmatpush1.bf16.msra.mxu0 %v1555
    %1589 = vmatprep.subr.bf16.mxu0 %v1558
    %1590 = vmatpush1.bf16.msra.mxu0 %v1557
    %1591 = vmatprep.subr.bf16.mxu0 %v1560
    %1592 = vmatpush1.bf16.msra.mxu0 %v1559
    %1593 = vmatprep.subr.bf16.mxu0 %v1562
    %1594 = vmatpush1.bf16.msra.mxu0 %v1561
    %1595 = vmatprep.subr.bf16.mxu0 %v1564
    %1596 = vmatpush1.bf16.msra.mxu0 %v1563
    %1597 = vmatprep.subr.bf16.mxu0 %v1566
    %1598 = vmatpush1.bf16.msra.mxu0 %v1565
    %1599 = vmatprep.subr.bf16.mxu0 %v1568
    %1600 = vmatpush1.bf16.msra.mxu0 %v1567
    %1601 = vmatprep.subr.bf16.mxu0 %v1570
    %1602 = vmatpush1.bf16.msra.mxu0 %v1569
    %1603 = vmatprep.subr.bf16.mxu0 %v1572
    %1604 = vmatpush1.bf16.msra.mxu0 %v1571
    %1605 = vmatprep.mubr.bf16.mxu0 %v896
    %1606 = vmatmul.mubr.bf16.gmra.mrb[0].mxu0 %v895
    %v1607 = vpop.f32.mrb[0].mxu0
    %v1608 = vadd.f32 0.0, %v1607
    %v1609 = vpop.f32.mrb[0].mxu0
    %v1610 = vadd.f32 0.0, %v1609
    %v1611 = vpop.f32.mrb[0].mxu0
    %v1612 = vadd.f32 0.0, %v1611
    %v1613 = vpop.f32.mrb[0].mxu0
    %v1614 = vadd.f32 0.0, %v1613
    %1615 = vmatprep.mubr.bf16.mxu0 %v900
    %1616 = vmatmul.mubr.bf16.gmra.mrb[0].mxu0 %v899
    %v1617 = vpop.f32.mrb[0].mxu0
    %v1618 = vadd.f32 0.0, %v1617
    %v1619 = vpop.f32.mrb[0].mxu0
    %v1620 = vadd.f32 0.0, %v1619
    %v1621 = vpop.f32.mrb[0].mxu0
    %v1622 = vadd.f32 0.0, %v1621
    %v1623 = vpop.f32.mrb[0].mxu0
    %v1624 = vadd.f32 0.0, %v1623
    %1625 = vdwg.mxu0
    %v1626 = vrcp.pop %v1503
    %v1627 = vrcp.pop %v1540
    %v1628 = vmul.f32 %v1608, %v1626
    %v1629 = vmul.f32 %v1610, %v1627
    %v1630 = vmul.f32 %v1612, %v1626
    %v1631 = vmul.f32 %v1614, %v1627
    %v1632 = vmul.f32 %v1618, %v1626
    %v1633 = vmul.f32 %v1620, %v1627
    %v1634 = vmul.f32 %v1622, %v1626
    %v1635 = vmul.f32 %v1624, %v1627
    %v1636 = vpack.c.bf16 %v1630, %v1628
    %v1637 = vpack.c.bf16 %v1631, %v1629
    %v1638 = vpack.c.bf16 %v1634, %v1632
    %v1639 = vpack.c.bf16 %v1635, %v1633
    %1640 = vxpose.xlu0.c.b16.start [1/8] %v871, 128
    %1641 = vxpose.xlu0.c.b16.cont [2/8] %v875, 128
    %1642 = vxpose.xlu0.c.b16.cont [3/8] 0, 128
    %1643 = vxpose.xlu0.c.b16.cont [4/8] 0, 128
    %1644 = vxpose.xlu0.c.b16.cont [5/8] 0, 128
    %1645 = vxpose.xlu0.c.b16.cont [6/8] 0, 128
    %1646 = vxpose.xlu0.c.b16.cont [7/8] 0, 128
    %1647 = vxpose.xlu0.c.b16.end [8/8] 0, 128
    %v1648 = vpop.trf.xlu0
    %v1649 = vpop.trf.xlu0
    %v1650 = vpop.trf.xlu0
    %v1651 = vpop.trf.xlu0
    %v1652 = vpop.trf.xlu0
    %v1653 = vpop.trf.xlu0
    %v1654 = vpop.trf.xlu0
    %v1655 = vpop.trf.xlu0
    %1656 = vxpose.xlu0.c.b16.start [1/8] %v872, 128
    %1657 = vxpose.xlu0.c.b16.cont [2/8] %v876, 128
    %1658 = vxpose.xlu0.c.b16.cont [3/8] 0, 128
    %1659 = vxpose.xlu0.c.b16.cont [4/8] 0, 128
    %1660 = vxpose.xlu0.c.b16.cont [5/8] 0, 128
    %1661 = vxpose.xlu0.c.b16.cont [6/8] 0, 128
    %1662 = vxpose.xlu0.c.b16.cont [7/8] 0, 128
    %1663 = vxpose.xlu0.c.b16.end [8/8] 0, 128
    %v1664 = vpop.trf.xlu0
    %v1665 = vpop.trf.xlu0
    %v1666 = vpop.trf.xlu0
    %v1667 = vpop.trf.xlu0
    %v1668 = vpop.trf.xlu0
    %v1669 = vpop.trf.xlu0
    %v1670 = vpop.trf.xlu0
    %v1671 = vpop.trf.xlu0
    %v1673 = vsel %vm959, %v1648, 0
    %v1676 = vsel %vm959, %v1649, 0
    %v1679 = vsel %vm959, %v1650, 0
    %v1682 = vsel %vm959, %v1651, 0
    %v1685 = vsel %vm959, %v1652, 0
    %v1688 = vsel %vm959, %v1653, 0
    %v1691 = vsel %vm959, %v1654, 0
    %v1694 = vsel %vm959, %v1655, 0
    %v1697 = vsel %vm959, %v1664, 0
    %v1700 = vsel %vm959, %v1665, 0
    %v1703 = vsel %vm959, %v1666, 0
    %v1706 = vsel %vm959, %v1667, 0
    %v1709 = vsel %vm959, %v1668, 0
    %v1712 = vsel %vm959, %v1669, 0
    %v1715 = vsel %vm959, %v1670, 0
    %v1718 = vsel %vm959, %v1671, 0
    %1720 = vmatprep.subr.bf16.mxu0 %v840
    %1721 = vmatpush1.bf16.msra.mxu0 %v839
    %1722 = vmatprep.subr.bf16.mxu0 %v844
    %1723 = vmatpush1.bf16.msra.mxu0 %v843
    %1724 = vmatprep.subr.bf16.mxu0 0
    %1725 = vmatpush1.bf16.msra.mxu0 0
    %1726 = vmatprep.subr.bf16.mxu0 0
    %1727 = vmatpush1.bf16.msra.mxu0 0
    %1728 = vmatprep.subr.bf16.mxu0 0
    %1729 = vmatpush1.bf16.msra.mxu0 0
    %1730 = vmatprep.subr.bf16.mxu0 0
    %1731 = vmatpush1.bf16.msra.mxu0 0
    %1732 = vmatprep.subr.bf16.mxu0 0
    %1733 = vmatpush1.bf16.msra.mxu0 0
    %1734 = vmatprep.subr.bf16.mxu0 0
    %1735 = vmatpush1.bf16.msra.mxu0 0
    %1736 = vmatprep.subr.bf16.mxu0 0
    %1737 = vmatpush1.bf16.msra.mxu0 0
    %1738 = vmatprep.subr.bf16.mxu0 0
    %1739 = vmatpush1.bf16.msra.mxu0 0
    %1740 = vmatprep.subr.bf16.mxu0 0
    %1741 = vmatpush1.bf16.msra.mxu0 0
    %1742 = vmatprep.subr.bf16.mxu0 0
    %1743 = vmatpush1.bf16.msra.mxu0 0
    %1744 = vmatprep.subr.bf16.mxu0 0
    %1745 = vmatpush1.bf16.msra.mxu0 0
    %1746 = vmatprep.subr.bf16.mxu0 0
    %1747 = vmatpush1.bf16.msra.mxu0 0
    %1748 = vmatprep.subr.bf16.mxu0 0
    %1749 = vmatpush1.bf16.msra.mxu0 0
    %1750 = vmatprep.subr.bf16.mxu0 0
    %1751 = vmatpush1.bf16.msra.mxu0 0
    %1752 = vmatprep.mubr.bf16.mxu0 0
    %1753 = vmatmul.mubr.bf16.gmra.mrb[0].mxu0 %v1673
    %v1754 = vpop.f32.mrb[0].mxu0
    %v1755 = vadd.f32 0.0, %v1754
    %v1756 = vpop.f32.mrb[0].mxu0
    %v1757 = vadd.f32 0.0, %v1756
    %v1758 = vpop.f32.mrb[0].mxu0
    %v1759 = vadd.f32 0.0, %v1758
    %v1760 = vpop.f32.mrb[0].mxu0
    %v1761 = vadd.f32 0.0, %v1760
    %1762 = vmatprep.mubr.bf16.mxu0 0
    %1763 = vmatmul.mubr.bf16.gmra.mrb[0].mxu0 %v1676
    %v1764 = vpop.f32.mrb[0].mxu0
    %v1765 = vadd.f32 0.0, %v1764
    %v1766 = vpop.f32.mrb[0].mxu0
    %v1767 = vadd.f32 0.0, %v1766
    %v1768 = vpop.f32.mrb[0].mxu0
    %v1769 = vadd.f32 0.0, %v1768
    %v1770 = vpop.f32.mrb[0].mxu0
    %v1771 = vadd.f32 0.0, %v1770
    %1772 = vmatprep.mubr.bf16.mxu0 0
    %1773 = vmatmul.mubr.bf16.gmra.mrb[0].mxu0 %v1679
    %v1774 = vpop.f32.mrb[0].mxu0
    %v1775 = vadd.f32 0.0, %v1774
    %v1776 = vpop.f32.mrb[0].mxu0
    %v1777 = vadd.f32 0.0, %v1776
    %v1778 = vpop.f32.mrb[0].mxu0
    %v1779 = vadd.f32 0.0, %v1778
    %v1780 = vpop.f32.mrb[0].mxu0
    %v1781 = vadd.f32 0.0, %v1780
    %1782 = vmatprep.mubr.bf16.mxu0 0
    %1783 = vmatmul.mubr.bf16.gmra.mrb[0].mxu0 %v1682
    %v1784 = vpop.f32.mrb[0].mxu0
    %v1785 = vadd.f32 0.0, %v1784
    %v1786 = vpop.f32.mrb[0].mxu0
    %v1787 = vadd.f32 0.0, %v1786
    %v1788 = vpop.f32.mrb[0].mxu0
    %v1789 = vadd.f32 0.0, %v1788
    %v1790 = vpop.f32.mrb[0].mxu0
    %v1791 = vadd.f32 0.0, %v1790
    %1792 = vmatprep.mubr.bf16.mxu0 0
    %1793 = vmatmul.mubr.bf16.gmra.mrb[0].mxu0 %v1685
    %v1794 = vpop.f32.mrb[0].mxu0
    %v1795 = vadd.f32 0.0, %v1794
    %v1796 = vpop.f32.mrb[0].mxu0
    %v1797 = vadd.f32 0.0, %v1796
    %v1798 = vpop.f32.mrb[0].mxu0
    %v1799 = vadd.f32 0.0, %v1798
    %v1800 = vpop.f32.mrb[0].mxu0
    %v1801 = vadd.f32 0.0, %v1800
    %1802 = vmatprep.mubr.bf16.mxu0 0
    %1803 = vmatmul.mubr.bf16.gmra.mrb[0].mxu0 %v1688
    %v1804 = vpop.f32.mrb[0].mxu0
    %v1805 = vadd.f32 0.0, %v1804
    %v1806 = vpop.f32.mrb[0].mxu0
    %v1807 = vadd.f32 0.0, %v1806
    %v1808 = vpop.f32.mrb[0].mxu0
    %v1809 = vadd.f32 0.0, %v1808
    %v1810 = vpop.f32.mrb[0].mxu0
    %v1811 = vadd.f32 0.0, %v1810
    %1812 = vmatprep.mubr.bf16.mxu0 0
    %1813 = vmatmul.mubr.bf16.gmra.mrb[0].mxu0 %v1691
    %v1814 = vpop.f32.mrb[0].mxu0
    %v1815 = vadd.f32 0.0, %v1814
    %v1816 = vpop.f32.mrb[0].mxu0
    %v1817 = vadd.f32 0.0, %v1816
    %v1818 = vpop.f32.mrb[0].mxu0
    %v1819 = vadd.f32 0.0, %v1818
    %v1820 = vpop.f32.mrb[0].mxu0
    %v1821 = vadd.f32 0.0, %v1820
    %1822 = vmatprep.mubr.bf16.mxu0 0
    %1823 = vmatmul.mubr.bf16.gmra.mrb[0].mxu0 %v1694
    %v1824 = vpop.f32.mrb[0].mxu0
    %v1825 = vadd.f32 0.0, %v1824
    %v1826 = vpop.f32.mrb[0].mxu0
    %v1827 = vadd.f32 0.0, %v1826
    %v1828 = vpop.f32.mrb[0].mxu0
    %v1829 = vadd.f32 0.0, %v1828
    %v1830 = vpop.f32.mrb[0].mxu0
    %v1831 = vadd.f32 0.0, %v1830
    %1832 = vmatprep.mubr.bf16.mxu0 0
    %1833 = vmatmul.mubr.bf16.gmra.mrb[0].mxu0 %v1697
    %v1834 = vpop.f32.mrb[0].mxu0
    %v1835 = vadd.f32 0.0, %v1834
    %v1836 = vpop.f32.mrb[0].mxu0
    %v1837 = vadd.f32 0.0, %v1836
    %v1838 = vpop.f32.mrb[0].mxu0
    %v1839 = vadd.f32 0.0, %v1838
    %v1840 = vpop.f32.mrb[0].mxu0
    %v1841 = vadd.f32 0.0, %v1840
    %1842 = vmatprep.mubr.bf16.mxu0 0
    %1843 = vmatmul.mubr.bf16.gmra.mrb[0].mxu0 %v1700
    %v1844 = vpop.f32.mrb[0].mxu0
    %v1845 = vadd.f32 0.0, %v1844
    %v1846 = vpop.f32.mrb[0].mxu0
    %v1847 = vadd.f32 0.0, %v1846
    %v1848 = vpop.f32.mrb[0].mxu0
    %v1849 = vadd.f32 0.0, %v1848
    %v1850 = vpop.f32.mrb[0].mxu0
    %v1851 = vadd.f32 0.0, %v1850
    %1852 = vmatprep.mubr.bf16.mxu0 0
    %1853 = vmatmul.mubr.bf16.gmra.mrb[0].mxu0 %v1703
    %v1854 = vpop.f32.mrb[0].mxu0
    %v1855 = vadd.f32 0.0, %v1854
    %v1856 = vpop.f32.mrb[0].mxu0
    %v1857 = vadd.f32 0.0, %v1856
    %v1858 = vpop.f32.mrb[0].mxu0
    %v1859 = vadd.f32 0.0, %v1858
    %v1860 = vpop.f32.mrb[0].mxu0
    %v1861 = vadd.f32 0.0, %v1860
    %1862 = vmatprep.mubr.bf16.mxu0 0
    %1863 = vmatmul.mubr.bf16.gmra.mrb[0].mxu0 %v1706
    %v1864 = vpop.f32.mrb[0].mxu0
    %v1865 = vadd.f32 0.0, %v1864
    %v1866 = vpop.f32.mrb[0].mxu0
    %v1867 = vadd.f32 0.0, %v1866
    %v1868 = vpop.f32.mrb[0].mxu0
    %v1869 = vadd.f32 0.0, %v1868
    %v1870 = vpop.f32.mrb[0].mxu0
    %v1871 = vadd.f32 0.0, %v1870
    %1872 = vmatprep.mubr.bf16.mxu0 0
    %1873 = vmatmul.mubr.bf16.gmra.mrb[0].mxu0 %v1709
    %v1874 = vpop.f32.mrb[0].mxu0
    %v1875 = vadd.f32 0.0, %v1874
    %v1876 = vpop.f32.mrb[0].mxu0
    %v1877 = vadd.f32 0.0, %v1876
    %v1878 = vpop.f32.mrb[0].mxu0
    %v1879 = vadd.f32 0.0, %v1878
    %v1880 = vpop.f32.mrb[0].mxu0
    %v1881 = vadd.f32 0.0, %v1880
    %1882 = vmatprep.mubr.bf16.mxu0 0
    %1883 = vmatmul.mubr.bf16.gmra.mrb[0].mxu0 %v1712
    %v1884 = vpop.f32.mrb[0].mxu0
    %v1885 = vadd.f32 0.0, %v1884
    %v1886 = vpop.f32.mrb[0].mxu0
    %v1887 = vadd.f32 0.0, %v1886
    %v1888 = vpop.f32.mrb[0].mxu0
    %v1889 = vadd.f32 0.0, %v1888
    %v1890 = vpop.f32.mrb[0].mxu0
    %v1891 = vadd.f32 0.0, %v1890
    %1892 = vmatprep.mubr.bf16.mxu0 0
    %1893 = vmatmul.mubr.bf16.gmra.mrb[0].mxu0 %v1715
    %v1894 = vpop.f32.mrb[0].mxu0
    %v1895 = vadd.f32 0.0, %v1894
    %v1896 = vpop.f32.mrb[0].mxu0
    %v1897 = vadd.f32 0.0, %v1896
    %v1898 = vpop.f32.mrb[0].mxu0
    %v1899 = vadd.f32 0.0, %v1898
    %v1900 = vpop.f32.mrb[0].mxu0
    %v1901 = vadd.f32 0.0, %v1900
    %1902 = vmatprep.mubr.bf16.mxu0 0
    %1903 = vmatmul.mubr.bf16.gmra.mrb[0].mxu0 %v1718
    %v1904 = vpop.f32.mrb[0].mxu0
    %v1905 = vadd.f32 0.0, %v1904
    %v1906 = vpop.f32.mrb[0].mxu0
    %v1907 = vadd.f32 0.0, %v1906
    %v1908 = vpop.f32.mrb[0].mxu0
    %v1909 = vadd.f32 0.0, %v1908
    %v1910 = vpop.f32.mrb[0].mxu0
    %v1911 = vadd.f32 0.0, %v1910
    %1912 = vdwg.mxu0
    %v1913 = vmax.f32 %v1755, %v1765
    %v1914 = vmax.f32 %v1759, %v1769
    %v1915 = vmax.f32 %v1913, %v1775
    %v1916 = vmax.f32 %v1914, %v1779
    %v1917 = vmax.f32 %v1915, %v1785
    %v1918 = vmax.f32 %v1916, %v1789
    %v1919 = vmax.f32 %v1917, %v1795
    %v1920 = vmax.f32 %v1918, %v1799
    %v1921 = vmax.f32 %v1919, %v1805
    %v1922 = vmax.f32 %v1920, %v1809
    %v1923 = vmax.f32 %v1921, %v1815
    %v1924 = vmax.f32 %v1922, %v1819
    %v1925 = vmax.f32 %v1923, %v1825
    %v1926 = vmax.f32 %v1924, %v1829
    %v1927 = vmax.f32 %v1925, %v1835
    %v1928 = vmax.f32 %v1926, %v1839
    %v1929 = vmax.f32 %v1927, %v1845
    %v1930 = vmax.f32 %v1928, %v1849
    %v1931 = vmax.f32 %v1929, %v1855
    %v1932 = vmax.f32 %v1930, %v1859
    %v1933 = vmax.f32 %v1931, %v1865
    %v1934 = vmax.f32 %v1932, %v1869
    %v1935 = vmax.f32 %v1933, %v1875
    %v1936 = vmax.f32 %v1934, %v1879
    %v1937 = vmax.f32 %v1935, %v1885
    %v1938 = vmax.f32 %v1936, %v1889
    %v1939 = vmax.f32 %v1937, %v1895
    %v1940 = vmax.f32 %v1938, %v1899
    %v1941 = vmax.f32 %v1939, %v1905
    %v1942 = vmax.f32 %v1940, %v1909
    %v1943 = vmax.f32 %v1941, %v1942
    %v1944 = vrot.slane %v1943, 4
    %v1945 = vmax.f32 %v1943, %v1944
    %v1946 = vrot.slane %v1945, 2
    %v1947 = vmax.f32 %v1945, %v1946
    %v1948 = vrot.slane %v1947, 1
    %v1949 = vmax.f32 %v1947, %v1948
    %v1950 = vmax.f32 %v1757, %v1767
    %v1951 = vmax.f32 %v1761, %v1771
    %v1952 = vmax.f32 %v1950, %v1777
    %v1953 = vmax.f32 %v1951, %v1781
    %v1954 = vmax.f32 %v1952, %v1787
    %v1955 = vmax.f32 %v1953, %v1791
    %v1956 = vmax.f32 %v1954, %v1797
    %v1957 = vmax.f32 %v1955, %v1801
    %v1958 = vmax.f32 %v1956, %v1807
    %v1959 = vmax.f32 %v1957, %v1811
    %v1960 = vmax.f32 %v1958, %v1817
    %v1961 = vmax.f32 %v1959, %v1821
    %v1962 = vmax.f32 %v1960, %v1827
    %v1963 = vmax.f32 %v1961, %v1831
    %v1964 = vmax.f32 %v1962, %v1837
    %v1965 = vmax.f32 %v1963, %v1841
    %v1966 = vmax.f32 %v1964, %v1847
    %v1967 = vmax.f32 %v1965, %v1851
    %v1968 = vmax.f32 %v1966, %v1857
    %v1969 = vmax.f32 %v1967, %v1861
    %v1970 = vmax.f32 %v1968, %v1867
    %v1971 = vmax.f32 %v1969, %v1871
    %v1972 = vmax.f32 %v1970, %v1877
    %v1973 = vmax.f32 %v1971, %v1881
    %v1974 = vmax.f32 %v1972, %v1887
    %v1975 = vmax.f32 %v1973, %v1891
    %v1976 = vmax.f32 %v1974, %v1897
    %v1977 = vmax.f32 %v1975, %v1901
    %v1978 = vmax.f32 %v1976, %v1907
    %v1979 = vmax.f32 %v1977, %v1911
    %v1980 = vmax.f32 %v1978, %v1979
    %v1981 = vrot.slane %v1980, 4
    %v1982 = vmax.f32 %v1980, %v1981
    %v1983 = vrot.slane %v1982, 2
    %v1984 = vmax.f32 %v1982, %v1983
    %v1985 = vrot.slane %v1984, 1
    %v1986 = vmax.f32 %v1984, %v1985
    %v1987 = vsub.f32 %v1755, %v1949
    %v1988 = vsub.f32 %v1757, %v1986
    %v1989 = vsub.f32 %v1759, %v1949
    %v1990 = vsub.f32 %v1761, %v1986
    %v1991 = vsub.f32 %v1765, %v1949
    %v1992 = vsub.f32 %v1767, %v1986
    %v1993 = vsub.f32 %v1769, %v1949
    %v1994 = vsub.f32 %v1771, %v1986
    %v1995 = vsub.f32 %v1775, %v1949
    %v1996 = vsub.f32 %v1777, %v1986
    %v1997 = vsub.f32 %v1779, %v1949
    %v1998 = vsub.f32 %v1781, %v1986
    %v1999 = vsub.f32 %v1785, %v1949
    %v2000 = vsub.f32 %v1787, %v1986
    %v2001 = vsub.f32 %v1789, %v1949
    %v2002 = vsub.f32 %v1791, %v1986
    %v2003 = vsub.f32 %v1795, %v1949
    %v2004 = vsub.f32 %v1797, %v1986
    %v2005 = vsub.f32 %v1799, %v1949
    %v2006 = vsub.f32 %v1801, %v1986
    %v2007 = vsub.f32 %v1805, %v1949
    %v2008 = vsub.f32 %v1807, %v1986
    %v2009 = vsub.f32 %v1809, %v1949
    %v2010 = vsub.f32 %v1811, %v1986
    %v2011 = vsub.f32 %v1815, %v1949
    %v2012 = vsub.f32 %v1817, %v1986
    %v2013 = vsub.f32 %v1819, %v1949
    %v2014 = vsub.f32 %v1821, %v1986
    %v2015 = vsub.f32 %v1825, %v1949
    %v2016 = vsub.f32 %v1827, %v1986
    %v2017 = vsub.f32 %v1829, %v1949
    %v2018 = vsub.f32 %v1831, %v1986
    %v2019 = vsub.f32 %v1835, %v1949
    %v2020 = vsub.f32 %v1837, %v1986
    %v2021 = vsub.f32 %v1839, %v1949
    %v2022 = vsub.f32 %v1841, %v1986
    %v2023 = vsub.f32 %v1845, %v1949
    %v2024 = vsub.f32 %v1847, %v1986
    %v2025 = vsub.f32 %v1849, %v1949
    %v2026 = vsub.f32 %v1851, %v1986
    %v2027 = vsub.f32 %v1855, %v1949
    %v2028 = vsub.f32 %v1857, %v1986
    %v2029 = vsub.f32 %v1859, %v1949
    %v2030 = vsub.f32 %v1861, %v1986
    %v2031 = vsub.f32 %v1865, %v1949
    %v2032 = vsub.f32 %v1867, %v1986
    %v2033 = vsub.f32 %v1869, %v1949
    %v2034 = vsub.f32 %v1871, %v1986
    %v2035 = vsub.f32 %v1875, %v1949
    %v2036 = vsub.f32 %v1877, %v1986
    %v2037 = vsub.f32 %v1879, %v1949
    %v2038 = vsub.f32 %v1881, %v1986
    %v2039 = vsub.f32 %v1885, %v1949
    %v2040 = vsub.f32 %v1887, %v1986
    %v2041 = vsub.f32 %v1889, %v1949
    %v2042 = vsub.f32 %v1891, %v1986
    %v2043 = vsub.f32 %v1895, %v1949
    %v2044 = vsub.f32 %v1897, %v1986
    %v2045 = vsub.f32 %v1899, %v1949
    %v2046 = vsub.f32 %v1901, %v1986
    %v2047 = vsub.f32 %v1905, %v1949
    %v2048 = vsub.f32 %v1907, %v1986
    %v2049 = vsub.f32 %v1909, %v1949
    %v2050 = vsub.f32 %v1911, %v1986
    %v2051 = vmul.f32 %v1987, 1.442695
    %v2052 = vpow.pop %v2051
    %v2053 = vmul.f32 %v1988, 1.442695
    %v2054 = vpow.pop %v2053
    %v2055 = vmul.f32 %v1989, 1.442695
    %v2056 = vpow.pop %v2055
    %v2057 = vmul.f32 %v1990, 1.442695
    %v2058 = vpow.pop %v2057
    %v2059 = vmul.f32 %v1991, 1.442695
    %v2060 = vpow.pop %v2059
    %v2061 = vmul.f32 %v1992, 1.442695
    %v2062 = vpow.pop %v2061
    %v2063 = vmul.f32 %v1993, 1.442695
    %v2064 = vpow.pop %v2063
    %v2065 = vmul.f32 %v1994, 1.442695
    %v2066 = vpow.pop %v2065
    %v2067 = vmul.f32 %v1995, 1.442695
    %v2068 = vpow.pop %v2067
    %v2069 = vmul.f32 %v1996, 1.442695
    %v2070 = vpow.pop %v2069
    %v2071 = vmul.f32 %v1997, 1.442695
    %v2072 = vpow.pop %v2071
    %v2073 = vmul.f32 %v1998, 1.442695
    %v2074 = vpow.pop %v2073
    %v2075 = vmul.f32 %v1999, 1.442695
    %v2076 = vpow.pop %v2075
    %v2077 = vmul.f32 %v2000, 1.442695
    %v2078 = vpow.pop %v2077
    %v2079 = vmul.f32 %v2001, 1.442695
    %v2080 = vpow.pop %v2079
    %v2081 = vmul.f32 %v2002, 1.442695
    %v2082 = vpow.pop %v2081
    %v2083 = vmul.f32 %v2003, 1.442695
    %v2084 = vpow.pop %v2083
    %v2085 = vmul.f32 %v2004, 1.442695
    %v2086 = vpow.pop %v2085
    %v2087 = vmul.f32 %v2005, 1.442695
    %v2088 = vpow.pop %v2087
    %v2089 = vmul.f32 %v2006, 1.442695
    %v2090 = vpow.pop %v2089
    %v2091 = vmul.f32 %v2007, 1.442695
    %v2092 = vpow.pop %v2091
    %v2093 = vmul.f32 %v2008, 1.442695
    %v2094 = vpow.pop %v2093
    %v2095 = vmul.f32 %v2009, 1.442695
    %v2096 = vpow.pop %v2095
    %v2097 = vmul.f32 %v2010, 1.442695
    %v2098 = vpow.pop %v2097
    %v2099 = vmul.f32 %v2011, 1.442695
    %v2100 = vpow.pop %v2099
    %v2101 = vmul.f32 %v2012, 1.442695
    %v2102 = vpow.pop %v2101
    %v2103 = vmul.f32 %v2013, 1.442695
    %v2104 = vpow.pop %v2103
    %v2105 = vmul.f32 %v2014, 1.442695
    %v2106 = vpow.pop %v2105
    %v2107 = vmul.f32 %v2015, 1.442695
    %v2108 = vpow.pop %v2107
    %v2109 = vmul.f32 %v2016, 1.442695
    %v2110 = vpow.pop %v2109
    %v2111 = vmul.f32 %v2017, 1.442695
    %v2112 = vpow.pop %v2111
    %v2113 = vmul.f32 %v2018, 1.442695
    %v2114 = vpow.pop %v2113
    %v2115 = vmul.f32 %v2019, 1.442695
    %v2116 = vpow.pop %v2115
    %v2117 = vmul.f32 %v2020, 1.442695
    %v2118 = vpow.pop %v2117
    %v2119 = vmul.f32 %v2021, 1.442695
    %v2120 = vpow.pop %v2119
    %v2121 = vmul.f32 %v2022, 1.442695
    %v2122 = vpow.pop %v2121
    %v2123 = vmul.f32 %v2023, 1.442695
    %v2124 = vpow.pop %v2123
    %v2125 = vmul.f32 %v2024, 1.442695
    %v2126 = vpow.pop %v2125
    %v2127 = vmul.f32 %v2025, 1.442695
    %v2128 = vpow.pop %v2127
    %v2129 = vmul.f32 %v2026, 1.442695
    %v2130 = vpow.pop %v2129
    %v2131 = vmul.f32 %v2027, 1.442695
    %v2132 = vpow.pop %v2131
    %v2133 = vmul.f32 %v2028, 1.442695
    %v2134 = vpow.pop %v2133
    %v2135 = vmul.f32 %v2029, 1.442695
    %v2136 = vpow.pop %v2135
    %v2137 = vmul.f32 %v2030, 1.442695
    %v2138 = vpow.pop %v2137
    %v2139 = vmul.f32 %v2031, 1.442695
    %v2140 = vpow.pop %v2139
    %v2141 = vmul.f32 %v2032, 1.442695
    %v2142 = vpow.pop %v2141
    %v2143 = vmul.f32 %v2033, 1.442695
    %v2144 = vpow.pop %v2143
    %v2145 = vmul.f32 %v2034, 1.442695
    %v2146 = vpow.pop %v2145
    %v2147 = vmul.f32 %v2035, 1.442695
    %v2148 = vpow.pop %v2147
    %v2149 = vmul.f32 %v2036, 1.442695
    %v2150 = vpow.pop %v2149
    %v2151 = vmul.f32 %v2037, 1.442695
    %v2152 = vpow.pop %v2151
    %v2153 = vmul.f32 %v2038, 1.442695
    %v2154 = vpow.pop %v2153
    %v2155 = vmul.f32 %v2039, 1.442695
    %v2156 = vpow.pop %v2155
    %v2157 = vmul.f32 %v2040, 1.442695
    %v2158 = vpow.pop %v2157
    %v2159 = vmul.f32 %v2041, 1.442695
    %v2160 = vpow.pop %v2159
    %v2161 = vmul.f32 %v2042, 1.442695
    %v2162 = vpow.pop %v2161
    %v2163 = vmul.f32 %v2043, 1.442695
    %v2164 = vpow.pop %v2163
    %v2165 = vmul.f32 %v2044, 1.442695
    %v2166 = vpow.pop %v2165
    %v2167 = vmul.f32 %v2045, 1.442695
    %v2168 = vpow.pop %v2167
    %v2169 = vmul.f32 %v2046, 1.442695
    %v2170 = vpow.pop %v2169
    %v2171 = vmul.f32 %v2047, 1.442695
    %v2172 = vpow.pop %v2171
    %v2173 = vmul.f32 %v2048, 1.442695
    %v2174 = vpow.pop %v2173
    %v2175 = vmul.f32 %v2049, 1.442695
    %v2176 = vpow.pop %v2175
    %v2177 = vmul.f32 %v2050, 1.442695
    %v2178 = vpow.pop %v2177
    %v2179 = vadd.f32 %v2052, %v2056
    %v2180 = vadd.f32 %v2179, %v2060
    %v2181 = vadd.f32 %v2180, %v2064
    %v2182 = vadd.f32 %v2181, %v2068
    %v2183 = vadd.f32 %v2182, %v2072
    %v2184 = vadd.f32 %v2183, %v2076
    %v2185 = vadd.f32 %v2184, %v2080
    %v2186 = vadd.f32 %v2185, %v2084
    %v2187 = vadd.f32 %v2186, %v2088
    %v2188 = vadd.f32 %v2187, %v2092
    %v2189 = vadd.f32 %v2188, %v2096
    %v2190 = vadd.f32 %v2189, %v2100
    %v2191 = vadd.f32 %v2190, %v2104
    %v2192 = vadd.f32 %v2191, %v2108
    %v2193 = vadd.f32 %v2192, %v2112
    %v2194 = vadd.f32 %v2193, %v2116
    %v2195 = vadd.f32 %v2194, %v2120
    %v2196 = vadd.f32 %v2195, %v2124
    %v2197 = vadd.f32 %v2196, %v2128
    %v2198 = vadd.f32 %v2197, %v2132
    %v2199 = vadd.f32 %v2198, %v2136
    %v2200 = vadd.f32 %v2199, %v2140
    %v2201 = vadd.f32 %v2200, %v2144
    %v2202 = vadd.f32 %v2201, %v2148
    %v2203 = vadd.f32 %v2202, %v2152
    %v2204 = vadd.f32 %v2203, %v2156
    %v2205 = vadd.f32 %v2204, %v2160
    %v2206 = vadd.f32 %v2205, %v2164
    %v2207 = vadd.f32 %v2206, %v2168
    %v2208 = vadd.f32 %v2207, %v2172
    %v2209 = vadd.f32 %v2208, %v2176
    %v2210 = vrot.slane %v2209, 4
    %v2211 = vadd.f32 %v2209, %v2210
    %v2212 = vrot.slane %v2211, 2
    %v2213 = vadd.f32 %v2211, %v2212
    %v2214 = vrot.slane %v2213, 1
    %v2215 = vadd.f32 %v2213, %v2214
    %v2216 = vadd.f32 %v2054, %v2058
    %v2217 = vadd.f32 %v2216, %v2062
    %v2218 = vadd.f32 %v2217, %v2066
    %v2219 = vadd.f32 %v2218, %v2070
    %v2220 = vadd.f32 %v2219, %v2074
    %v2221 = vadd.f32 %v2220, %v2078
    %v2222 = vadd.f32 %v2221, %v2082
    %v2223 = vadd.f32 %v2222, %v2086
    %v2224 = vadd.f32 %v2223, %v2090
    %v2225 = vadd.f32 %v2224, %v2094
    %v2226 = vadd.f32 %v2225, %v2098
    %v2227 = vadd.f32 %v2226, %v2102
    %v2228 = vadd.f32 %v2227, %v2106
    %v2229 = vadd.f32 %v2228, %v2110
    %v2230 = vadd.f32 %v2229, %v2114
    %v2231 = vadd.f32 %v2230, %v2118
    %v2232 = vadd.f32 %v2231, %v2122
    %v2233 = vadd.f32 %v2232, %v2126
    %v2234 = vadd.f32 %v2233, %v2130
    %v2235 = vadd.f32 %v2234, %v2134
    %v2236 = vadd.f32 %v2235, %v2138
    %v2237 = vadd.f32 %v2236, %v2142
    %v2238 = vadd.f32 %v2237, %v2146
    %v2239 = vadd.f32 %v2238, %v2150
    %v2240 = vadd.f32 %v2239, %v2154
    %v2241 = vadd.f32 %v2240, %v2158
    %v2242 = vadd.f32 %v2241, %v2162
    %v2243 = vadd.f32 %v2242, %v2166
    %v2244 = vadd.f32 %v2243, %v2170
    %v2245 = vadd.f32 %v2244, %v2174
    %v2246 = vadd.f32 %v2245, %v2178
    %v2247 = vrot.slane %v2246, 4
    %v2248 = vadd.f32 %v2246, %v2247
    %v2249 = vrot.slane %v2248, 2
    %v2250 = vadd.f32 %v2248, %v2249
    %v2251 = vrot.slane %v2250, 1
    %v2252 = vadd.f32 %v2250, %v2251
    %v2253 = vpack.c.bf16 %v2056, %v2052
    %v2254 = vpack.c.bf16 %v2058, %v2054
    %v2255 = vpack.c.bf16 %v2064, %v2060
    %v2256 = vpack.c.bf16 %v2066, %v2062
    %v2257 = vpack.c.bf16 %v2072, %v2068
    %v2258 = vpack.c.bf16 %v2074, %v2070
    %v2259 = vpack.c.bf16 %v2080, %v2076
    %v2260 = vpack.c.bf16 %v2082, %v2078
    %v2261 = vpack.c.bf16 %v2088, %v2084
    %v2262 = vpack.c.bf16 %v2090, %v2086
    %v2263 = vpack.c.bf16 %v2096, %v2092
    %v2264 = vpack.c.bf16 %v2098, %v2094
    %v2265 = vpack.c.bf16 %v2104, %v2100
    %v2266 = vpack.c.bf16 %v2106, %v2102
    %v2267 = vpack.c.bf16 %v2112, %v2108
    %v2268 = vpack.c.bf16 %v2114, %v2110
    %v2269 = vpack.c.bf16 %v2120, %v2116
    %v2270 = vpack.c.bf16 %v2122, %v2118
    %v2271 = vpack.c.bf16 %v2128, %v2124
    %v2272 = vpack.c.bf16 %v2130, %v2126
    %v2273 = vpack.c.bf16 %v2136, %v2132
    %v2274 = vpack.c.bf16 %v2138, %v2134
    %v2275 = vpack.c.bf16 %v2144, %v2140
    %v2276 = vpack.c.bf16 %v2146, %v2142
    %v2277 = vpack.c.bf16 %v2152, %v2148
    %v2278 = vpack.c.bf16 %v2154, %v2150
    %v2279 = vpack.c.bf16 %v2160, %v2156
    %v2280 = vpack.c.bf16 %v2162, %v2158
    %v2281 = vpack.c.bf16 %v2168, %v2164
    %v2282 = vpack.c.bf16 %v2170, %v2166
    %v2283 = vpack.c.bf16 %v2176, %v2172
    %v2284 = vpack.c.bf16 %v2178, %v2174
    %2285 = vmatprep.subr.bf16.mxu0 %v2254
    %2286 = vmatpush1.bf16.msra.mxu0 %v2253
    %2287 = vmatprep.subr.bf16.mxu0 %v2256
    %2288 = vmatpush1.bf16.msra.mxu0 %v2255
    %2289 = vmatprep.subr.bf16.mxu0 %v2258
    %2290 = vmatpush1.bf16.msra.mxu0 %v2257
    %2291 = vmatprep.subr.bf16.mxu0 %v2260
    %2292 = vmatpush1.bf16.msra.mxu0 %v2259
    %2293 = vmatprep.subr.bf16.mxu0 %v2262
    %2294 = vmatpush1.bf16.msra.mxu0 %v2261
    %2295 = vmatprep.subr.bf16.mxu0 %v2264
    %2296 = vmatpush1.bf16.msra.mxu0 %v2263
    %2297 = vmatprep.subr.bf16.mxu0 %v2266
    %2298 = vmatpush1.bf16.msra.mxu0 %v2265
    %2299 = vmatprep.subr.bf16.mxu0 %v2268
    %2300 = vmatpush1.bf16.msra.mxu0 %v2267
    %2301 = vmatprep.subr.bf16.mxu0 %v2270
    %2302 = vmatpush1.bf16.msra.mxu0 %v2269
    %2303 = vmatprep.subr.bf16.mxu0 %v2272
    %2304 = vmatpush1.bf16.msra.mxu0 %v2271
    %2305 = vmatprep.subr.bf16.mxu0 %v2274
    %2306 = vmatpush1.bf16.msra.mxu0 %v2273
    %2307 = vmatprep.subr.bf16.mxu0 %v2276
    %2308 = vmatpush1.bf16.msra.mxu0 %v2275
    %2309 = vmatprep.subr.bf16.mxu0 %v2278
    %2310 = vmatpush1.bf16.msra.mxu0 %v2277
    %2311 = vmatprep.subr.bf16.mxu0 %v2280
    %2312 = vmatpush1.bf16.msra.mxu0 %v2279
    %2313 = vmatprep.subr.bf16.mxu0 %v2282
    %2314 = vmatpush1.bf16.msra.mxu0 %v2281
    %2315 = vmatprep.subr.bf16.mxu0 %v2284
    %2316 = vmatpush1.bf16.msra.mxu0 %v2283
    %2317 = vmatprep.mubr.bf16.mxu0 %v904
    %2318 = vmatmul.mubr.bf16.gmra.mrb[0].mxu0 %v903
    %v2319 = vpop.f32.mrb[0].mxu0
    %v2320 = vadd.f32 0.0, %v2319
    %v2321 = vpop.f32.mrb[0].mxu0
    %v2322 = vadd.f32 0.0, %v2321
    %v2323 = vpop.f32.mrb[0].mxu0
    %v2324 = vadd.f32 0.0, %v2323
    %v2325 = vpop.f32.mrb[0].mxu0
    %v2326 = vadd.f32 0.0, %v2325
    %2327 = vmatprep.mubr.bf16.mxu0 %v908
    %2328 = vmatmul.mubr.bf16.gmra.mrb[0].mxu0 %v907
    %v2329 = vpop.f32.mrb[0].mxu0
    %v2330 = vadd.f32 0.0, %v2329
    %v2331 = vpop.f32.mrb[0].mxu0
    %v2332 = vadd.f32 0.0, %v2331
    %v2333 = vpop.f32.mrb[0].mxu0
    %v2334 = vadd.f32 0.0, %v2333
    %v2335 = vpop.f32.mrb[0].mxu0
    %v2336 = vadd.f32 0.0, %v2335
    %2337 = vdwg.mxu0
    %v2338 = vrcp.pop %v2215
    %v2339 = vrcp.pop %v2252
    %v2340 = vmul.f32 %v2320, %v2338
    %v2341 = vmul.f32 %v2322, %v2339
    %v2342 = vmul.f32 %v2324, %v2338
    %v2343 = vmul.f32 %v2326, %v2339
    %v2344 = vmul.f32 %v2330, %v2338
    %v2345 = vmul.f32 %v2332, %v2339
    %v2346 = vmul.f32 %v2334, %v2338
    %v2347 = vmul.f32 %v2336, %v2339
    %v2348 = vpack.c.bf16 %v2342, %v2340
    %v2349 = vpack.c.bf16 %v2343, %v2341
    %v2350 = vpack.c.bf16 %v2346, %v2344
    %v2351 = vpack.c.bf16 %v2347, %v2345
    %2352 = vxpose.xlu0.c.b16.start [1/8] %v879, 128
    %2353 = vxpose.xlu0.c.b16.cont [2/8] %v883, 128
    %2354 = vxpose.xlu0.c.b16.cont [3/8] 0, 128
    %2355 = vxpose.xlu0.c.b16.cont [4/8] 0, 128
    %2356 = vxpose.xlu0.c.b16.cont [5/8] 0, 128
    %2357 = vxpose.xlu0.c.b16.cont [6/8] 0, 128
    %2358 = vxpose.xlu0.c.b16.cont [7/8] 0, 128
    %2359 = vxpose.xlu0.c.b16.end [8/8] 0, 128
    %v2360 = vpop.trf.xlu0
    %v2361 = vpop.trf.xlu0
    %v2362 = vpop.trf.xlu0
    %v2363 = vpop.trf.xlu0
    %v2364 = vpop.trf.xlu0
    %v2365 = vpop.trf.xlu0
    %v2366 = vpop.trf.xlu0
    %v2367 = vpop.trf.xlu0
    %2368 = vxpose.xlu0.c.b16.start [1/8] %v880, 128
    %2369 = vxpose.xlu0.c.b16.cont [2/8] %v884, 128
    %2370 = vxpose.xlu0.c.b16.cont [3/8] 0, 128
    %2371 = vxpose.xlu0.c.b16.cont [4/8] 0, 128
    %2372 = vxpose.xlu0.c.b16.cont [5/8] 0, 128
    %2373 = vxpose.xlu0.c.b16.cont [6/8] 0, 128
    %2374 = vxpose.xlu0.c.b16.cont [7/8] 0, 128
    %2375 = vxpose.xlu0.c.b16.end [8/8] 0, 128
    %v2376 = vpop.trf.xlu0
    %v2377 = vpop.trf.xlu0
    %v2378 = vpop.trf.xlu0
    %v2379 = vpop.trf.xlu0
    %v2380 = vpop.trf.xlu0
    %v2381 = vpop.trf.xlu0
    %v2382 = vpop.trf.xlu0
    %v2383 = vpop.trf.xlu0
    %v2385 = vsel %vm959, %v2360, 0
    %v2388 = vsel %vm959, %v2361, 0
    %v2391 = vsel %vm959, %v2362, 0
    %v2394 = vsel %vm959, %v2363, 0
    %v2397 = vsel %vm959, %v2364, 0
    %v2400 = vsel %vm959, %v2365, 0
    %v2403 = vsel %vm959, %v2366, 0
    %v2406 = vsel %vm959, %v2367, 0
    %v2409 = vsel %vm959, %v2376, 0
    %v2412 = vsel %vm959, %v2377, 0
    %v2415 = vsel %vm959, %v2378, 0
    %v2418 = vsel %vm959, %v2379, 0
    %v2421 = vsel %vm959, %v2380, 0
    %v2424 = vsel %vm959, %v2381, 0
    %v2427 = vsel %vm959, %v2382, 0
    %v2430 = vsel %vm959, %v2383, 0
    %2432 = vmatprep.subr.bf16.mxu0 %v848
    %2433 = vmatpush1.bf16.msra.mxu0 %v847
    %2434 = vmatprep.subr.bf16.mxu0 %v852
    %2435 = vmatpush1.bf16.msra.mxu0 %v851
    %2436 = vmatprep.subr.bf16.mxu0 0
    %2437 = vmatpush1.bf16.msra.mxu0 0
    %2438 = vmatprep.subr.bf16.mxu0 0
    %2439 = vmatpush1.bf16.msra.mxu0 0
    %2440 = vmatprep.subr.bf16.mxu0 0
    %2441 = vmatpush1.bf16.msra.mxu0 0
    %2442 = vmatprep.subr.bf16.mxu0 0
    %2443 = vmatpush1.bf16.msra.mxu0 0
    %2444 = vmatprep.subr.bf16.mxu0 0
    %2445 = vmatpush1.bf16.msra.mxu0 0
    %2446 = vmatprep.subr.bf16.mxu0 0
    %2447 = vmatpush1.bf16.msra.mxu0 0
    %2448 = vmatprep.subr.bf16.mxu0 0
    %2449 = vmatpush1.bf16.msra.mxu0 0
    %2450 = vmatprep.subr.bf16.mxu0 0
    %2451 = vmatpush1.bf16.msra.mxu0 0
    %2452 = vmatprep.subr.bf16.mxu0 0
    %2453 = vmatpush1.bf16.msra.mxu0 0
    %2454 = vmatprep.subr.bf16.mxu0 0
    %2455 = vmatpush1.bf16.msra.mxu0 0
    %2456 = vmatprep.subr.bf16.mxu0 0
    %2457 = vmatpush1.bf16.msra.mxu0 0
    %2458 = vmatprep.subr.bf16.mxu0 0
    %2459 = vmatpush1.bf16.msra.mxu0 0
    %2460 = vmatprep.subr.bf16.mxu0 0
    %2461 = vmatpush1.bf16.msra.mxu0 0
    %2462 = vmatprep.subr.bf16.mxu0 0
    %2463 = vmatpush1.bf16.msra.mxu0 0
    %2464 = vmatprep.mubr.bf16.mxu0 0
    %2465 = vmatmul.mubr.bf16.gmra.mrb[0].mxu0 %v2385
    %v2466 = vpop.f32.mrb[0].mxu0
    %v2467 = vadd.f32 0.0, %v2466
    %v2468 = vpop.f32.mrb[0].mxu0
    %v2469 = vadd.f32 0.0, %v2468
    %v2470 = vpop.f32.mrb[0].mxu0
    %v2471 = vadd.f32 0.0, %v2470
    %v2472 = vpop.f32.mrb[0].mxu0
    %v2473 = vadd.f32 0.0, %v2472
    %2474 = vmatprep.mubr.bf16.mxu0 0
    %2475 = vmatmul.mubr.bf16.gmra.mrb[0].mxu0 %v2388
    %v2476 = vpop.f32.mrb[0].mxu0
    %v2477 = vadd.f32 0.0, %v2476
    %v2478 = vpop.f32.mrb[0].mxu0
    %v2479 = vadd.f32 0.0, %v2478
    %v2480 = vpop.f32.mrb[0].mxu0
    %v2481 = vadd.f32 0.0, %v2480
    %v2482 = vpop.f32.mrb[0].mxu0
    %v2483 = vadd.f32 0.0, %v2482
    %2484 = vmatprep.mubr.bf16.mxu0 0
    %2485 = vmatmul.mubr.bf16.gmra.mrb[0].mxu0 %v2391
    %v2486 = vpop.f32.mrb[0].mxu0
    %v2487 = vadd.f32 0.0, %v2486
    %v2488 = vpop.f32.mrb[0].mxu0
    %v2489 = vadd.f32 0.0, %v2488
    %v2490 = vpop.f32.mrb[0].mxu0
    %v2491 = vadd.f32 0.0, %v2490
    %v2492 = vpop.f32.mrb[0].mxu0
    %v2493 = vadd.f32 0.0, %v2492
    %2494 = vmatprep.mubr.bf16.mxu0 0
    %2495 = vmatmul.mubr.bf16.gmra.mrb[0].mxu0 %v2394
    %v2496 = vpop.f32.mrb[0].mxu0
    %v2497 = vadd.f32 0.0, %v2496
    %v2498 = vpop.f32.mrb[0].mxu0
    %v2499 = vadd.f32 0.0, %v2498
    %v2500 = vpop.f32.mrb[0].mxu0
    %v2501 = vadd.f32 0.0, %v2500
    %v2502 = vpop.f32.mrb[0].mxu0
    %v2503 = vadd.f32 0.0, %v2502
    %2504 = vmatprep.mubr.bf16.mxu0 0
    %2505 = vmatmul.mubr.bf16.gmra.mrb[0].mxu0 %v2397
    %v2506 = vpop.f32.mrb[0].mxu0
    %v2507 = vadd.f32 0.0, %v2506
    %v2508 = vpop.f32.mrb[0].mxu0
    %v2509 = vadd.f32 0.0, %v2508
    %v2510 = vpop.f32.mrb[0].mxu0
    %v2511 = vadd.f32 0.0, %v2510
    %v2512 = vpop.f32.mrb[0].mxu0
    %v2513 = vadd.f32 0.0, %v2512
    %2514 = vmatprep.mubr.bf16.mxu0 0
    %2515 = vmatmul.mubr.bf16.gmra.mrb[0].mxu0 %v2400
    %v2516 = vpop.f32.mrb[0].mxu0
    %v2517 = vadd.f32 0.0, %v2516
    %v2518 = vpop.f32.mrb[0].mxu0
    %v2519 = vadd.f32 0.0, %v2518
    %v2520 = vpop.f32.mrb[0].mxu0
    %v2521 = vadd.f32 0.0, %v2520
    %v2522 = vpop.f32.mrb[0].mxu0
    %v2523 = vadd.f32 0.0, %v2522
    %2524 = vmatprep.mubr.bf16.mxu0 0
    %2525 = vmatmul.mubr.bf16.gmra.mrb[0].mxu0 %v2403
    %v2526 = vpop.f32.mrb[0].mxu0
    %v2527 = vadd.f32 0.0, %v2526
    %v2528 = vpop.f32.mrb[0].mxu0
    %v2529 = vadd.f32 0.0, %v2528
    %v2530 = vpop.f32.mrb[0].mxu0
    %v2531 = vadd.f32 0.0, %v2530
    %v2532 = vpop.f32.mrb[0].mxu0
    %v2533 = vadd.f32 0.0, %v2532
    %2534 = vmatprep.mubr.bf16.mxu0 0
    %2535 = vmatmul.mubr.bf16.gmra.mrb[0].mxu0 %v2406
    %v2536 = vpop.f32.mrb[0].mxu0
    %v2537 = vadd.f32 0.0, %v2536
    %v2538 = vpop.f32.mrb[0].mxu0
    %v2539 = vadd.f32 0.0, %v2538
    %v2540 = vpop.f32.mrb[0].mxu0
    %v2541 = vadd.f32 0.0, %v2540
    %v2542 = vpop.f32.mrb[0].mxu0
    %v2543 = vadd.f32 0.0, %v2542
    %2544 = vmatprep.mubr.bf16.mxu0 0
    %2545 = vmatmul.mubr.bf16.gmra.mrb[0].mxu0 %v2409
    %v2546 = vpop.f32.mrb[0].mxu0
    %v2547 = vadd.f32 0.0, %v2546
    %v2548 = vpop.f32.mrb[0].mxu0
    %v2549 = vadd.f32 0.0, %v2548
    %v2550 = vpop.f32.mrb[0].mxu0
    %v2551 = vadd.f32 0.0, %v2550
    %v2552 = vpop.f32.mrb[0].mxu0
    %v2553 = vadd.f32 0.0, %v2552
    %2554 = vmatprep.mubr.bf16.mxu0 0
    %2555 = vmatmul.mubr.bf16.gmra.mrb[0].mxu0 %v2412
    %v2556 = vpop.f32.mrb[0].mxu0
    %v2557 = vadd.f32 0.0, %v2556
    %v2558 = vpop.f32.mrb[0].mxu0
    %v2559 = vadd.f32 0.0, %v2558
    %v2560 = vpop.f32.mrb[0].mxu0
    %v2561 = vadd.f32 0.0, %v2560
    %v2562 = vpop.f32.mrb[0].mxu0
    %v2563 = vadd.f32 0.0, %v2562
    %2564 = vmatprep.mubr.bf16.mxu0 0
    %2565 = vmatmul.mubr.bf16.gmra.mrb[0].mxu0 %v2415
    %v2566 = vpop.f32.mrb[0].mxu0
    %v2567 = vadd.f32 0.0, %v2566
    %v2568 = vpop.f32.mrb[0].mxu0
    %v2569 = vadd.f32 0.0, %v2568
    %v2570 = vpop.f32.mrb[0].mxu0
    %v2571 = vadd.f32 0.0, %v2570
    %v2572 = vpop.f32.mrb[0].mxu0
    %v2573 = vadd.f32 0.0, %v2572
    %2574 = vmatprep.mubr.bf16.mxu0 0
    %2575 = vmatmul.mubr.bf16.gmra.mrb[0].mxu0 %v2418
    %v2576 = vpop.f32.mrb[0].mxu0
    %v2577 = vadd.f32 0.0, %v2576
    %v2578 = vpop.f32.mrb[0].mxu0
    %v2579 = vadd.f32 0.0, %v2578
    %v2580 = vpop.f32.mrb[0].mxu0
    %v2581 = vadd.f32 0.0, %v2580
    %v2582 = vpop.f32.mrb[0].mxu0
    %v2583 = vadd.f32 0.0, %v2582
    %2584 = vmatprep.mubr.bf16.mxu0 0
    %2585 = vmatmul.mubr.bf16.gmra.mrb[0].mxu0 %v2421
    %v2586 = vpop.f32.mrb[0].mxu0
    %v2587 = vadd.f32 0.0, %v2586
    %v2588 = vpop.f32.mrb[0].mxu0
    %v2589 = vadd.f32 0.0, %v2588
    %v2590 = vpop.f32.mrb[0].mxu0
    %v2591 = vadd.f32 0.0, %v2590
    %v2592 = vpop.f32.mrb[0].mxu0
    %v2593 = vadd.f32 0.0, %v2592
    %2594 = vmatprep.mubr.bf16.mxu0 0
    %2595 = vmatmul.mubr.bf16.gmra.mrb[0].mxu0 %v2424
    %v2596 = vpop.f32.mrb[0].mxu0
    %v2597 = vadd.f32 0.0, %v2596
    %v2598 = vpop.f32.mrb[0].mxu0
    %v2599 = vadd.f32 0.0, %v2598
    %v2600 = vpop.f32.mrb[0].mxu0
    %v2601 = vadd.f32 0.0, %v2600
    %v2602 = vpop.f32.mrb[0].mxu0
    %v2603 = vadd.f32 0.0, %v2602
    %2604 = vmatprep.mubr.bf16.mxu0 0
    %2605 = vmatmul.mubr.bf16.gmra.mrb[0].mxu0 %v2427
    %v2606 = vpop.f32.mrb[0].mxu0
    %v2607 = vadd.f32 0.0, %v2606
    %v2608 = vpop.f32.mrb[0].mxu0
    %v2609 = vadd.f32 0.0, %v2608
    %v2610 = vpop.f32.mrb[0].mxu0
    %v2611 = vadd.f32 0.0, %v2610
    %v2612 = vpop.f32.mrb[0].mxu0
    %v2613 = vadd.f32 0.0, %v2612
    %2614 = vmatprep.mubr.bf16.mxu0 0
    %2615 = vmatmul.mubr.bf16.gmra.mrb[0].mxu0 %v2430
    %v2616 = vpop.f32.mrb[0].mxu0
    %v2617 = vadd.f32 0.0, %v2616
    %v2618 = vpop.f32.mrb[0].mxu0
    %v2619 = vadd.f32 0.0, %v2618
    %v2620 = vpop.f32.mrb[0].mxu0
    %v2621 = vadd.f32 0.0, %v2620
    %v2622 = vpop.f32.mrb[0].mxu0
    %v2623 = vadd.f32 0.0, %v2622
    %2624 = vdwg.mxu0
    %v2625 = vmax.f32 %v2467, %v2477
    %v2626 = vmax.f32 %v2471, %v2481
    %v2627 = vmax.f32 %v2625, %v2487
    %v2628 = vmax.f32 %v2626, %v2491
    %v2629 = vmax.f32 %v2627, %v2497
    %v2630 = vmax.f32 %v2628, %v2501
    %v2631 = vmax.f32 %v2629, %v2507
    %v2632 = vmax.f32 %v2630, %v2511
    %v2633 = vmax.f32 %v2631, %v2517
    %v2634 = vmax.f32 %v2632, %v2521
    %v2635 = vmax.f32 %v2633, %v2527
    %v2636 = vmax.f32 %v2634, %v2531
    %v2637 = vmax.f32 %v2635, %v2537
    %v2638 = vmax.f32 %v2636, %v2541
    %v2639 = vmax.f32 %v2637, %v2547
    %v2640 = vmax.f32 %v2638, %v2551
    %v2641 = vmax.f32 %v2639, %v2557
    %v2642 = vmax.f32 %v2640, %v2561
    %v2643 = vmax.f32 %v2641, %v2567
    %v2644 = vmax.f32 %v2642, %v2571
    %v2645 = vmax.f32 %v2643, %v2577
    %v2646 = vmax.f32 %v2644, %v2581
    %v2647 = vmax.f32 %v2645, %v2587
    %v2648 = vmax.f32 %v2646, %v2591
    %v2649 = vmax.f32 %v2647, %v2597
    %v2650 = vmax.f32 %v2648, %v2601
    %v2651 = vmax.f32 %v2649, %v2607
    %v2652 = vmax.f32 %v2650, %v2611
    %v2653 = vmax.f32 %v2651, %v2617
    %v2654 = vmax.f32 %v2652, %v2621
    %v2655 = vmax.f32 %v2653, %v2654
    %v2656 = vrot.slane %v2655, 4
    %v2657 = vmax.f32 %v2655, %v2656
    %v2658 = vrot.slane %v2657, 2
    %v2659 = vmax.f32 %v2657, %v2658
    %v2660 = vrot.slane %v2659, 1
    %v2661 = vmax.f32 %v2659, %v2660
    %v2662 = vmax.f32 %v2469, %v2479
    %v2663 = vmax.f32 %v2473, %v2483
    %v2664 = vmax.f32 %v2662, %v2489
    %v2665 = vmax.f32 %v2663, %v2493
    %v2666 = vmax.f32 %v2664, %v2499
    %v2667 = vmax.f32 %v2665, %v2503
    %v2668 = vmax.f32 %v2666, %v2509
    %v2669 = vmax.f32 %v2667, %v2513
    %v2670 = vmax.f32 %v2668, %v2519
    %v2671 = vmax.f32 %v2669, %v2523
    %v2672 = vmax.f32 %v2670, %v2529
    %v2673 = vmax.f32 %v2671, %v2533
    %v2674 = vmax.f32 %v2672, %v2539
    %v2675 = vmax.f32 %v2673, %v2543
    %v2676 = vmax.f32 %v2674, %v2549
    %v2677 = vmax.f32 %v2675, %v2553
    %v2678 = vmax.f32 %v2676, %v2559
    %v2679 = vmax.f32 %v2677, %v2563
    %v2680 = vmax.f32 %v2678, %v2569
    %v2681 = vmax.f32 %v2679, %v2573
    %v2682 = vmax.f32 %v2680, %v2579
    %v2683 = vmax.f32 %v2681, %v2583
    %v2684 = vmax.f32 %v2682, %v2589
    %v2685 = vmax.f32 %v2683, %v2593
    %v2686 = vmax.f32 %v2684, %v2599
    %v2687 = vmax.f32 %v2685, %v2603
    %v2688 = vmax.f32 %v2686, %v2609
    %v2689 = vmax.f32 %v2687, %v2613
    %v2690 = vmax.f32 %v2688, %v2619
    %v2691 = vmax.f32 %v2689, %v2623
    %v2692 = vmax.f32 %v2690, %v2691
    %v2693 = vrot.slane %v2692, 4
    %v2694 = vmax.f32 %v2692, %v2693
    %v2695 = vrot.slane %v2694, 2
    %v2696 = vmax.f32 %v2694, %v2695
    %v2697 = vrot.slane %v2696, 1
    %v2698 = vmax.f32 %v2696, %v2697
    %v2699 = vsub.f32 %v2467, %v2661
    %v2700 = vsub.f32 %v2469, %v2698
    %v2701 = vsub.f32 %v2471, %v2661
    %v2702 = vsub.f32 %v2473, %v2698
    %v2703 = vsub.f32 %v2477, %v2661
    %v2704 = vsub.f32 %v2479, %v2698
    %v2705 = vsub.f32 %v2481, %v2661
    %v2706 = vsub.f32 %v2483, %v2698
    %v2707 = vsub.f32 %v2487, %v2661
    %v2708 = vsub.f32 %v2489, %v2698
    %v2709 = vsub.f32 %v2491, %v2661
    %v2710 = vsub.f32 %v2493, %v2698
    %v2711 = vsub.f32 %v2497, %v2661
    %v2712 = vsub.f32 %v2499, %v2698
    %v2713 = vsub.f32 %v2501, %v2661
    %v2714 = vsub.f32 %v2503, %v2698
    %v2715 = vsub.f32 %v2507, %v2661
    %v2716 = vsub.f32 %v2509, %v2698
    %v2717 = vsub.f32 %v2511, %v2661
    %v2718 = vsub.f32 %v2513, %v2698
    %v2719 = vsub.f32 %v2517, %v2661
    %v2720 = vsub.f32 %v2519, %v2698
    %v2721 = vsub.f32 %v2521, %v2661
    %v2722 = vsub.f32 %v2523, %v2698
    %v2723 = vsub.f32 %v2527, %v2661
    %v2724 = vsub.f32 %v2529, %v2698
    %v2725 = vsub.f32 %v2531, %v2661
    %v2726 = vsub.f32 %v2533, %v2698
    %v2727 = vsub.f32 %v2537, %v2661
    %v2728 = vsub.f32 %v2539, %v2698
    %v2729 = vsub.f32 %v2541, %v2661
    %v2730 = vsub.f32 %v2543, %v2698
    %v2731 = vsub.f32 %v2547, %v2661
    %v2732 = vsub.f32 %v2549, %v2698
    %v2733 = vsub.f32 %v2551, %v2661
    %v2734 = vsub.f32 %v2553, %v2698
    %v2735 = vsub.f32 %v2557, %v2661
    %v2736 = vsub.f32 %v2559, %v2698
    %v2737 = vsub.f32 %v2561, %v2661
    %v2738 = vsub.f32 %v2563, %v2698
    %v2739 = vsub.f32 %v2567, %v2661
    %v2740 = vsub.f32 %v2569, %v2698
    %v2741 = vsub.f32 %v2571, %v2661
    %v2742 = vsub.f32 %v2573, %v2698
    %v2743 = vsub.f32 %v2577, %v2661
    %v2744 = vsub.f32 %v2579, %v2698
    %v2745 = vsub.f32 %v2581, %v2661
    %v2746 = vsub.f32 %v2583, %v2698
    %v2747 = vsub.f32 %v2587, %v2661
    %v2748 = vsub.f32 %v2589, %v2698
    %v2749 = vsub.f32 %v2591, %v2661
    %v2750 = vsub.f32 %v2593, %v2698
    %v2751 = vsub.f32 %v2597, %v2661
    %v2752 = vsub.f32 %v2599, %v2698
    %v2753 = vsub.f32 %v2601, %v2661
    %v2754 = vsub.f32 %v2603, %v2698
    %v2755 = vsub.f32 %v2607, %v2661
    %v2756 = vsub.f32 %v2609, %v2698
    %v2757 = vsub.f32 %v2611, %v2661
    %v2758 = vsub.f32 %v2613, %v2698
    %v2759 = vsub.f32 %v2617, %v2661
    %v2760 = vsub.f32 %v2619, %v2698
    %v2761 = vsub.f32 %v2621, %v2661
    %v2762 = vsub.f32 %v2623, %v2698
    %v2763 = vmul.f32 %v2699, 1.442695
    %v2764 = vpow.pop %v2763
    %v2765 = vmul.f32 %v2700, 1.442695
    %v2766 = vpow.pop %v2765
    %v2767 = vmul.f32 %v2701, 1.442695
    %v2768 = vpow.pop %v2767
    %v2769 = vmul.f32 %v2702, 1.442695
    %v2770 = vpow.pop %v2769
    %v2771 = vmul.f32 %v2703, 1.442695
    %v2772 = vpow.pop %v2771
    %v2773 = vmul.f32 %v2704, 1.442695
    %v2774 = vpow.pop %v2773
    %v2775 = vmul.f32 %v2705, 1.442695
    %v2776 = vpow.pop %v2775
    %v2777 = vmul.f32 %v2706, 1.442695
    %v2778 = vpow.pop %v2777
    %v2779 = vmul.f32 %v2707, 1.442695
    %v2780 = vpow.pop %v2779
    %v2781 = vmul.f32 %v2708, 1.442695
    %v2782 = vpow.pop %v2781
    %v2783 = vmul.f32 %v2709, 1.442695
    %v2784 = vpow.pop %v2783
    %v2785 = vmul.f32 %v2710, 1.442695
    %v2786 = vpow.pop %v2785
    %v2787 = vmul.f32 %v2711, 1.442695
    %v2788 = vpow.pop %v2787
    %v2789 = vmul.f32 %v2712, 1.442695
    %v2790 = vpow.pop %v2789
    %v2791 = vmul.f32 %v2713, 1.442695
    %v2792 = vpow.pop %v2791
    %v2793 = vmul.f32 %v2714, 1.442695
    %v2794 = vpow.pop %v2793
    %v2795 = vmul.f32 %v2715, 1.442695
    %v2796 = vpow.pop %v2795
    %v2797 = vmul.f32 %v2716, 1.442695
    %v2798 = vpow.pop %v2797
    %v2799 = vmul.f32 %v2717, 1.442695
    %v2800 = vpow.pop %v2799
    %v2801 = vmul.f32 %v2718, 1.442695
    %v2802 = vpow.pop %v2801
    %v2803 = vmul.f32 %v2719, 1.442695
    %v2804 = vpow.pop %v2803
    %v2805 = vmul.f32 %v2720, 1.442695
    %v2806 = vpow.pop %v2805
    %v2807 = vmul.f32 %v2721, 1.442695
    %v2808 = vpow.pop %v2807
    %v2809 = vmul.f32 %v2722, 1.442695
    %v2810 = vpow.pop %v2809
    %v2811 = vmul.f32 %v2723, 1.442695
    %v2812 = vpow.pop %v2811
    %v2813 = vmul.f32 %v2724, 1.442695
    %v2814 = vpow.pop %v2813
    %v2815 = vmul.f32 %v2725, 1.442695
    %v2816 = vpow.pop %v2815
    %v2817 = vmul.f32 %v2726, 1.442695
    %v2818 = vpow.pop %v2817
    %v2819 = vmul.f32 %v2727, 1.442695
    %v2820 = vpow.pop %v2819
    %v2821 = vmul.f32 %v2728, 1.442695
    %v2822 = vpow.pop %v2821
    %v2823 = vmul.f32 %v2729, 1.442695
    %v2824 = vpow.pop %v2823
    %v2825 = vmul.f32 %v2730, 1.442695
    %v2826 = vpow.pop %v2825
    %v2827 = vmul.f32 %v2731, 1.442695
    %v2828 = vpow.pop %v2827
    %v2829 = vmul.f32 %v2732, 1.442695
    %v2830 = vpow.pop %v2829
    %v2831 = vmul.f32 %v2733, 1.442695
    %v2832 = vpow.pop %v2831
    %v2833 = vmul.f32 %v2734, 1.442695
    %v2834 = vpow.pop %v2833
    %v2835 = vmul.f32 %v2735, 1.442695
    %v2836 = vpow.pop %v2835
    %v2837 = vmul.f32 %v2736, 1.442695
    %v2838 = vpow.pop %v2837
    %v2839 = vmul.f32 %v2737, 1.442695
    %v2840 = vpow.pop %v2839
    %v2841 = vmul.f32 %v2738, 1.442695
    %v2842 = vpow.pop %v2841
    %v2843 = vmul.f32 %v2739, 1.442695
    %v2844 = vpow.pop %v2843
    %v2845 = vmul.f32 %v2740, 1.442695
    %v2846 = vpow.pop %v2845
    %v2847 = vmul.f32 %v2741, 1.442695
    %v2848 = vpow.pop %v2847
    %v2849 = vmul.f32 %v2742, 1.442695
    %v2850 = vpow.pop %v2849
    %v2851 = vmul.f32 %v2743, 1.442695
    %v2852 = vpow.pop %v2851
    %v2853 = vmul.f32 %v2744, 1.442695
    %v2854 = vpow.pop %v2853
    %v2855 = vmul.f32 %v2745, 1.442695
    %v2856 = vpow.pop %v2855
    %v2857 = vmul.f32 %v2746, 1.442695
    %v2858 = vpow.pop %v2857
    %v2859 = vmul.f32 %v2747, 1.442695
    %v2860 = vpow.pop %v2859
    %v2861 = vmul.f32 %v2748, 1.442695
    %v2862 = vpow.pop %v2861
    %v2863 = vmul.f32 %v2749, 1.442695
    %v2864 = vpow.pop %v2863
    %v2865 = vmul.f32 %v2750, 1.442695
    %v2866 = vpow.pop %v2865
    %v2867 = vmul.f32 %v2751, 1.442695
    %v2868 = vpow.pop %v2867
    %v2869 = vmul.f32 %v2752, 1.442695
    %v2870 = vpow.pop %v2869
    %v2871 = vmul.f32 %v2753, 1.442695
    %v2872 = vpow.pop %v2871
    %v2873 = vmul.f32 %v2754, 1.442695
    %v2874 = vpow.pop %v2873
    %v2875 = vmul.f32 %v2755, 1.442695
    %v2876 = vpow.pop %v2875
    %v2877 = vmul.f32 %v2756, 1.442695
    %v2878 = vpow.pop %v2877
    %v2879 = vmul.f32 %v2757, 1.442695
    %v2880 = vpow.pop %v2879
    %v2881 = vmul.f32 %v2758, 1.442695
    %v2882 = vpow.pop %v2881
    %v2883 = vmul.f32 %v2759, 1.442695
    %v2884 = vpow.pop %v2883
    %v2885 = vmul.f32 %v2760, 1.442695
    %v2886 = vpow.pop %v2885
    %v2887 = vmul.f32 %v2761, 1.442695
    %v2888 = vpow.pop %v2887
    %v2889 = vmul.f32 %v2762, 1.442695
    %v2890 = vpow.pop %v2889
    %v2891 = vadd.f32 %v2764, %v2768
    %v2892 = vadd.f32 %v2891, %v2772
    %v2893 = vadd.f32 %v2892, %v2776
    %v2894 = vadd.f32 %v2893, %v2780
    %v2895 = vadd.f32 %v2894, %v2784
    %v2896 = vadd.f32 %v2895, %v2788
    %v2897 = vadd.f32 %v2896, %v2792
    %v2898 = vadd.f32 %v2897, %v2796
    %v2899 = vadd.f32 %v2898, %v2800
    %v2900 = vadd.f32 %v2899, %v2804
    %v2901 = vadd.f32 %v2900, %v2808
    %v2902 = vadd.f32 %v2901, %v2812
    %v2903 = vadd.f32 %v2902, %v2816
    %v2904 = vadd.f32 %v2903, %v2820
    %v2905 = vadd.f32 %v2904, %v2824
    %v2906 = vadd.f32 %v2905, %v2828
    %v2907 = vadd.f32 %v2906, %v2832
    %v2908 = vadd.f32 %v2907, %v2836
    %v2909 = vadd.f32 %v2908, %v2840
    %v2910 = vadd.f32 %v2909, %v2844
    %v2911 = vadd.f32 %v2910, %v2848
    %v2912 = vadd.f32 %v2911, %v2852
    %v2913 = vadd.f32 %v2912, %v2856
    %v2914 = vadd.f32 %v2913, %v2860
    %v2915 = vadd.f32 %v2914, %v2864
    %v2916 = vadd.f32 %v2915, %v2868
    %v2917 = vadd.f32 %v2916, %v2872
    %v2918 = vadd.f32 %v2917, %v2876
    %v2919 = vadd.f32 %v2918, %v2880
    %v2920 = vadd.f32 %v2919, %v2884
    %v2921 = vadd.f32 %v2920, %v2888
    %v2922 = vrot.slane %v2921, 4
    %v2923 = vadd.f32 %v2921, %v2922
    %v2924 = vrot.slane %v2923, 2
    %v2925 = vadd.f32 %v2923, %v2924
    %v2926 = vrot.slane %v2925, 1
    %v2927 = vadd.f32 %v2925, %v2926
    %v2928 = vadd.f32 %v2766, %v2770
    %v2929 = vadd.f32 %v2928, %v2774
    %v2930 = vadd.f32 %v2929, %v2778
    %v2931 = vadd.f32 %v2930, %v2782
    %v2932 = vadd.f32 %v2931, %v2786
    %v2933 = vadd.f32 %v2932, %v2790
    %v2934 = vadd.f32 %v2933, %v2794
    %v2935 = vadd.f32 %v2934, %v2798
    %v2936 = vadd.f32 %v2935, %v2802
    %v2937 = vadd.f32 %v2936, %v2806
    %v2938 = vadd.f32 %v2937, %v2810
    %v2939 = vadd.f32 %v2938, %v2814
    %v2940 = vadd.f32 %v2939, %v2818
    %v2941 = vadd.f32 %v2940, %v2822
    %v2942 = vadd.f32 %v2941, %v2826
    %v2943 = vadd.f32 %v2942, %v2830
    %v2944 = vadd.f32 %v2943, %v2834
    %v2945 = vadd.f32 %v2944, %v2838
    %v2946 = vadd.f32 %v2945, %v2842
    %v2947 = vadd.f32 %v2946, %v2846
    %v2948 = vadd.f32 %v2947, %v2850
    %v2949 = vadd.f32 %v2948, %v2854
    %v2950 = vadd.f32 %v2949, %v2858
    %v2951 = vadd.f32 %v2950, %v2862
    %v2952 = vadd.f32 %v2951, %v2866
    %v2953 = vadd.f32 %v2952, %v2870
    %v2954 = vadd.f32 %v2953, %v2874
    %v2955 = vadd.f32 %v2954, %v2878
    %v2956 = vadd.f32 %v2955, %v2882
    %v2957 = vadd.f32 %v2956, %v2886
    %v2958 = vadd.f32 %v2957, %v2890
    %v2959 = vrot.slane %v2958, 4
    %v2960 = vadd.f32 %v2958, %v2959
    %v2961 = vrot.slane %v2960, 2
    %v2962 = vadd.f32 %v2960, %v2961
    %v2963 = vrot.slane %v2962, 1
    %v2964 = vadd.f32 %v2962, %v2963
    %v2965 = vpack.c.bf16 %v2768, %v2764
    %v2966 = vpack.c.bf16 %v2770, %v2766
    %v2967 = vpack.c.bf16 %v2776, %v2772
    %v2968 = vpack.c.bf16 %v2778, %v2774
    %v2969 = vpack.c.bf16 %v2784, %v2780
    %v2970 = vpack.c.bf16 %v2786, %v2782
    %v2971 = vpack.c.bf16 %v2792, %v2788
    %v2972 = vpack.c.bf16 %v2794, %v2790
    %v2973 = vpack.c.bf16 %v2800, %v2796
    %v2974 = vpack.c.bf16 %v2802, %v2798
    %v2975 = vpack.c.bf16 %v2808, %v2804
    %v2976 = vpack.c.bf16 %v2810, %v2806
    %v2977 = vpack.c.bf16 %v2816, %v2812
    %v2978 = vpack.c.bf16 %v2818, %v2814
    %v2979 = vpack.c.bf16 %v2824, %v2820
    %v2980 = vpack.c.bf16 %v2826, %v2822
    %v2981 = vpack.c.bf16 %v2832, %v2828
    %v2982 = vpack.c.bf16 %v2834, %v2830
    %v2983 = vpack.c.bf16 %v2840, %v2836
    %v2984 = vpack.c.bf16 %v2842, %v2838
    %v2985 = vpack.c.bf16 %v2848, %v2844
    %v2986 = vpack.c.bf16 %v2850, %v2846
    %v2987 = vpack.c.bf16 %v2856, %v2852
    %v2988 = vpack.c.bf16 %v2858, %v2854
    %v2989 = vpack.c.bf16 %v2864, %v2860
    %v2990 = vpack.c.bf16 %v2866, %v2862
    %v2991 = vpack.c.bf16 %v2872, %v2868
    %v2992 = vpack.c.bf16 %v2874, %v2870
    %v2993 = vpack.c.bf16 %v2880, %v2876
    %v2994 = vpack.c.bf16 %v2882, %v2878
    %v2995 = vpack.c.bf16 %v2888, %v2884
    %v2996 = vpack.c.bf16 %v2890, %v2886
    %2997 = vmatprep.subr.bf16.mxu0 %v2966
    %2998 = vmatpush1.bf16.msra.mxu0 %v2965
    %2999 = vmatprep.subr.bf16.mxu0 %v2968
    %3000 = vmatpush1.bf16.msra.mxu0 %v2967
    %3001 = vmatprep.subr.bf16.mxu0 %v2970
    %3002 = vmatpush1.bf16.msra.mxu0 %v2969
    %3003 = vmatprep.subr.bf16.mxu0 %v2972
    %3004 = vmatpush1.bf16.msra.mxu0 %v2971
    %3005 = vmatprep.subr.bf16.mxu0 %v2974
    %3006 = vmatpush1.bf16.msra.mxu0 %v2973
    %3007 = vmatprep.subr.bf16.mxu0 %v2976
    %3008 = vmatpush1.bf16.msra.mxu0 %v2975
    %3009 = vmatprep.subr.bf16.mxu0 %v2978
    %3010 = vmatpush1.bf16.msra.mxu0 %v2977
    %3011 = vmatprep.subr.bf16.mxu0 %v2980
    %3012 = vmatpush1.bf16.msra.mxu0 %v2979
    %3013 = vmatprep.subr.bf16.mxu0 %v2982
    %3014 = vmatpush1.bf16.msra.mxu0 %v2981
    %3015 = vmatprep.subr.bf16.mxu0 %v2984
    %3016 = vmatpush1.bf16.msra.mxu0 %v2983
    %3017 = vmatprep.subr.bf16.mxu0 %v2986
    %3018 = vmatpush1.bf16.msra.mxu0 %v2985
    %3019 = vmatprep.subr.bf16.mxu0 %v2988
    %3020 = vmatpush1.bf16.msra.mxu0 %v2987
    %3021 = vmatprep.subr.bf16.mxu0 %v2990
    %3022 = vmatpush1.bf16.msra.mxu0 %v2989
    %3023 = vmatprep.subr.bf16.mxu0 %v2992
    %3024 = vmatpush1.bf16.msra.mxu0 %v2991
    %3025 = vmatprep.subr.bf16.mxu0 %v2994
    %3026 = vmatpush1.bf16.msra.mxu0 %v2993
    %3027 = vmatprep.subr.bf16.mxu0 %v2996
    %3028 = vmatpush1.bf16.msra.mxu0 %v2995
    %3029 = vmatprep.mubr.bf16.mxu0 %v912
    %3030 = vmatmul.mubr.bf16.gmra.mrb[0].mxu0 %v911
    %v3031 = vpop.f32.mrb[0].mxu0
    %v3032 = vadd.f32 0.0, %v3031
    %v3033 = vpop.f32.mrb[0].mxu0
    %v3034 = vadd.f32 0.0, %v3033
    %v3035 = vpop.f32.mrb[0].mxu0
    %v3036 = vadd.f32 0.0, %v3035
    %v3037 = vpop.f32.mrb[0].mxu0
    %v3038 = vadd.f32 0.0, %v3037
    %3039 = vmatprep.mubr.bf16.mxu0 %v916
    %3040 = vmatmul.mubr.bf16.gmra.mrb[0].mxu0 %v915
    %v3041 = vpop.f32.mrb[0].mxu0
    %v3042 = vadd.f32 0.0, %v3041
    %v3043 = vpop.f32.mrb[0].mxu0
    %v3044 = vadd.f32 0.0, %v3043
    %v3045 = vpop.f32.mrb[0].mxu0
    %v3046 = vadd.f32 0.0, %v3045
    %v3047 = vpop.f32.mrb[0].mxu0
    %v3048 = vadd.f32 0.0, %v3047
    %3049 = vdwg.mxu0
    %v3050 = vrcp.pop %v2927
    %v3051 = vrcp.pop %v2964
    %v3052 = vmul.f32 %v3032, %v3050
    %v3053 = vmul.f32 %v3034, %v3051
    %v3054 = vmul.f32 %v3036, %v3050
    %v3055 = vmul.f32 %v3038, %v3051
    %v3056 = vmul.f32 %v3042, %v3050
    %v3057 = vmul.f32 %v3044, %v3051
    %v3058 = vmul.f32 %v3046, %v3050
    %v3059 = vmul.f32 %v3048, %v3051
    %v3060 = vpack.c.bf16 %v3054, %v3052
    %v3061 = vpack.c.bf16 %v3055, %v3053
    %v3062 = vpack.c.bf16 %v3058, %v3056
    %v3063 = vpack.c.bf16 %v3059, %v3057
    %3064 = vxpose.xlu0.c.b16.start [1/8] %v887, 128
    %3065 = vxpose.xlu0.c.b16.cont [2/8] %v891, 128
    %3066 = vxpose.xlu0.c.b16.cont [3/8] 0, 128
    %3067 = vxpose.xlu0.c.b16.cont [4/8] 0, 128
    %3068 = vxpose.xlu0.c.b16.cont [5/8] 0, 128
    %3069 = vxpose.xlu0.c.b16.cont [6/8] 0, 128
    %3070 = vxpose.xlu0.c.b16.cont [7/8] 0, 128
    %3071 = vxpose.xlu0.c.b16.end [8/8] 0, 128
    %v3072 = vpop.trf.xlu0
    %v3073 = vpop.trf.xlu0
    %v3074 = vpop.trf.xlu0
    %v3075 = vpop.trf.xlu0
    %v3076 = vpop.trf.xlu0
    %v3077 = vpop.trf.xlu0
    %v3078 = vpop.trf.xlu0
    %v3079 = vpop.trf.xlu0
    %3080 = vxpose.xlu0.c.b16.start [1/8] %v888, 128
    %3081 = vxpose.xlu0.c.b16.cont [2/8] %v892, 128
    %3082 = vxpose.xlu0.c.b16.cont [3/8] 0, 128
    %3083 = vxpose.xlu0.c.b16.cont [4/8] 0, 128
    %3084 = vxpose.xlu0.c.b16.cont [5/8] 0, 128
    %3085 = vxpose.xlu0.c.b16.cont [6/8] 0, 128
    %3086 = vxpose.xlu0.c.b16.cont [7/8] 0, 128
    %3087 = vxpose.xlu0.c.b16.end [8/8] 0, 128
    %v3088 = vpop.trf.xlu0
    %v3089 = vpop.trf.xlu0
    %v3090 = vpop.trf.xlu0
    %v3091 = vpop.trf.xlu0
    %v3092 = vpop.trf.xlu0
    %v3093 = vpop.trf.xlu0
    %v3094 = vpop.trf.xlu0
    %v3095 = vpop.trf.xlu0
    %v3097 = vsel %vm959, %v3072, 0
    %v3100 = vsel %vm959, %v3073, 0
    %v3103 = vsel %vm959, %v3074, 0
    %v3106 = vsel %vm959, %v3075, 0
    %v3109 = vsel %vm959, %v3076, 0
    %v3112 = vsel %vm959, %v3077, 0
    %v3115 = vsel %vm959, %v3078, 0
    %v3118 = vsel %vm959, %v3079, 0
    %v3121 = vsel %vm959, %v3088, 0
    %v3124 = vsel %vm959, %v3089, 0
    %v3127 = vsel %vm959, %v3090, 0
    %v3130 = vsel %vm959, %v3091, 0
    %v3133 = vsel %vm959, %v3092, 0
    %v3136 = vsel %vm959, %v3093, 0
    %v3139 = vsel %vm959, %v3094, 0
    %v3142 = vsel %vm959, %v3095, 0
    %3144 = vmatprep.subr.bf16.mxu0 %v856
    %3145 = vmatpush1.bf16.msra.mxu0 %v855
    %3146 = vmatprep.subr.bf16.mxu0 %v860
    %3147 = vmatpush1.bf16.msra.mxu0 %v859
    %3148 = vmatprep.subr.bf16.mxu0 0
    %3149 = vmatpush1.bf16.msra.mxu0 0
    %3150 = vmatprep.subr.bf16.mxu0 0
    %3151 = vmatpush1.bf16.msra.mxu0 0
    %3152 = vmatprep.subr.bf16.mxu0 0
    %3153 = vmatpush1.bf16.msra.mxu0 0
    %3154 = vmatprep.subr.bf16.mxu0 0
    %3155 = vmatpush1.bf16.msra.mxu0 0
    %3156 = vmatprep.subr.bf16.mxu0 0
    %3157 = vmatpush1.bf16.msra.mxu0 0
    %3158 = vmatprep.subr.bf16.mxu0 0
    %3159 = vmatpush1.bf16.msra.mxu0 0
    %3160 = vmatprep.subr.bf16.mxu0 0
    %3161 = vmatpush1.bf16.msra.mxu0 0
    %3162 = vmatprep.subr.bf16.mxu0 0
    %3163 = vmatpush1.bf16.msra.mxu0 0
    %3164 = vmatprep.subr.bf16.mxu0 0
    %3165 = vmatpush1.bf16.msra.mxu0 0
    %3166 = vmatprep.subr.bf16.mxu0 0
    %3167 = vmatpush1.bf16.msra.mxu0 0
    %3168 = vmatprep.subr.bf16.mxu0 0
    %3169 = vmatpush1.bf16.msra.mxu0 0
    %3170 = vmatprep.subr.bf16.mxu0 0
    %3171 = vmatpush1.bf16.msra.mxu0 0
    %3172 = vmatprep.subr.bf16.mxu0 0
    %3173 = vmatpush1.bf16.msra.mxu0 0
    %3174 = vmatprep.subr.bf16.mxu0 0
    %3175 = vmatpush1.bf16.msra.mxu0 0
    %3176 = vmatprep.mubr.bf16.mxu0 0
    %3177 = vmatmul.mubr.bf16.gmra.mrb[0].mxu0 %v3097
    %v3178 = vpop.f32.mrb[0].mxu0
    %v3179 = vadd.f32 0.0, %v3178
    %v3180 = vpop.f32.mrb[0].mxu0
    %v3181 = vadd.f32 0.0, %v3180
    %v3182 = vpop.f32.mrb[0].mxu0
    %v3183 = vadd.f32 0.0, %v3182
    %v3184 = vpop.f32.mrb[0].mxu0
    %v3185 = vadd.f32 0.0, %v3184
    %3186 = vmatprep.mubr.bf16.mxu0 0
    %3187 = vmatmul.mubr.bf16.gmra.mrb[0].mxu0 %v3100
    %v3188 = vpop.f32.mrb[0].mxu0
    %v3189 = vadd.f32 0.0, %v3188
    %v3190 = vpop.f32.mrb[0].mxu0
    %v3191 = vadd.f32 0.0, %v3190
    %v3192 = vpop.f32.mrb[0].mxu0
    %v3193 = vadd.f32 0.0, %v3192
    %v3194 = vpop.f32.mrb[0].mxu0
    %v3195 = vadd.f32 0.0, %v3194
    %3196 = vmatprep.mubr.bf16.mxu0 0
    %3197 = vmatmul.mubr.bf16.gmra.mrb[0].mxu0 %v3103
    %v3198 = vpop.f32.mrb[0].mxu0
    %v3199 = vadd.f32 0.0, %v3198
    %v3200 = vpop.f32.mrb[0].mxu0
    %v3201 = vadd.f32 0.0, %v3200
    %v3202 = vpop.f32.mrb[0].mxu0
    %v3203 = vadd.f32 0.0, %v3202
    %v3204 = vpop.f32.mrb[0].mxu0
    %v3205 = vadd.f32 0.0, %v3204
    %3206 = vmatprep.mubr.bf16.mxu0 0
    %3207 = vmatmul.mubr.bf16.gmra.mrb[0].mxu0 %v3106
    %v3208 = vpop.f32.mrb[0].mxu0
    %v3209 = vadd.f32 0.0, %v3208
    %v3210 = vpop.f32.mrb[0].mxu0
    %v3211 = vadd.f32 0.0, %v3210
    %v3212 = vpop.f32.mrb[0].mxu0
    %v3213 = vadd.f32 0.0, %v3212
    %v3214 = vpop.f32.mrb[0].mxu0
    %v3215 = vadd.f32 0.0, %v3214
    %3216 = vmatprep.mubr.bf16.mxu0 0
    %3217 = vmatmul.mubr.bf16.gmra.mrb[0].mxu0 %v3109
    %v3218 = vpop.f32.mrb[0].mxu0
    %v3219 = vadd.f32 0.0, %v3218
    %v3220 = vpop.f32.mrb[0].mxu0
    %v3221 = vadd.f32 0.0, %v3220
    %v3222 = vpop.f32.mrb[0].mxu0
    %v3223 = vadd.f32 0.0, %v3222
    %v3224 = vpop.f32.mrb[0].mxu0
    %v3225 = vadd.f32 0.0, %v3224
    %3226 = vmatprep.mubr.bf16.mxu0 0
    %3227 = vmatmul.mubr.bf16.gmra.mrb[0].mxu0 %v3112
    %v3228 = vpop.f32.mrb[0].mxu0
    %v3229 = vadd.f32 0.0, %v3228
    %v3230 = vpop.f32.mrb[0].mxu0
    %v3231 = vadd.f32 0.0, %v3230
    %v3232 = vpop.f32.mrb[0].mxu0
    %v3233 = vadd.f32 0.0, %v3232
    %v3234 = vpop.f32.mrb[0].mxu0
    %v3235 = vadd.f32 0.0, %v3234
    %3236 = vmatprep.mubr.bf16.mxu0 0
    %3237 = vmatmul.mubr.bf16.gmra.mrb[0].mxu0 %v3115
    %v3238 = vpop.f32.mrb[0].mxu0
    %v3239 = vadd.f32 0.0, %v3238
    %v3240 = vpop.f32.mrb[0].mxu0
    %v3241 = vadd.f32 0.0, %v3240
    %v3242 = vpop.f32.mrb[0].mxu0
    %v3243 = vadd.f32 0.0, %v3242
    %v3244 = vpop.f32.mrb[0].mxu0
    %v3245 = vadd.f32 0.0, %v3244
    %3246 = vmatprep.mubr.bf16.mxu0 0
    %3247 = vmatmul.mubr.bf16.gmra.mrb[0].mxu0 %v3118
    %v3248 = vpop.f32.mrb[0].mxu0
    %v3249 = vadd.f32 0.0, %v3248
    %v3250 = vpop.f32.mrb[0].mxu0
    %v3251 = vadd.f32 0.0, %v3250
    %v3252 = vpop.f32.mrb[0].mxu0
    %v3253 = vadd.f32 0.0, %v3252
    %v3254 = vpop.f32.mrb[0].mxu0
    %v3255 = vadd.f32 0.0, %v3254
    %3256 = vmatprep.mubr.bf16.mxu0 0
    %3257 = vmatmul.mubr.bf16.gmra.mrb[0].mxu0 %v3121
    %v3258 = vpop.f32.mrb[0].mxu0
    %v3259 = vadd.f32 0.0, %v3258
    %v3260 = vpop.f32.mrb[0].mxu0
    %v3261 = vadd.f32 0.0, %v3260
    %v3262 = vpop.f32.mrb[0].mxu0
    %v3263 = vadd.f32 0.0, %v3262
    %v3264 = vpop.f32.mrb[0].mxu0
    %v3265 = vadd.f32 0.0, %v3264
    %3266 = vmatprep.mubr.bf16.mxu0 0
    %3267 = vmatmul.mubr.bf16.gmra.mrb[0].mxu0 %v3124
    %v3268 = vpop.f32.mrb[0].mxu0
    %v3269 = vadd.f32 0.0, %v3268
    %v3270 = vpop.f32.mrb[0].mxu0
    %v3271 = vadd.f32 0.0, %v3270
    %v3272 = vpop.f32.mrb[0].mxu0
    %v3273 = vadd.f32 0.0, %v3272
    %v3274 = vpop.f32.mrb[0].mxu0
    %v3275 = vadd.f32 0.0, %v3274
    %3276 = vmatprep.mubr.bf16.mxu0 0
    %3277 = vmatmul.mubr.bf16.gmra.mrb[0].mxu0 %v3127
    %v3278 = vpop.f32.mrb[0].mxu0
    %v3279 = vadd.f32 0.0, %v3278
    %v3280 = vpop.f32.mrb[0].mxu0
    %v3281 = vadd.f32 0.0, %v3280
    %v3282 = vpop.f32.mrb[0].mxu0
    %v3283 = vadd.f32 0.0, %v3282
    %v3284 = vpop.f32.mrb[0].mxu0
    %v3285 = vadd.f32 0.0, %v3284
    %3286 = vmatprep.mubr.bf16.mxu0 0
    %3287 = vmatmul.mubr.bf16.gmra.mrb[0].mxu0 %v3130
    %v3288 = vpop.f32.mrb[0].mxu0
    %v3289 = vadd.f32 0.0, %v3288
    %v3290 = vpop.f32.mrb[0].mxu0
    %v3291 = vadd.f32 0.0, %v3290
    %v3292 = vpop.f32.mrb[0].mxu0
    %v3293 = vadd.f32 0.0, %v3292
    %v3294 = vpop.f32.mrb[0].mxu0
    %v3295 = vadd.f32 0.0, %v3294
    %3296 = vmatprep.mubr.bf16.mxu0 0
    %3297 = vmatmul.mubr.bf16.gmra.mrb[0].mxu0 %v3133
    %v3298 = vpop.f32.mrb[0].mxu0
    %v3299 = vadd.f32 0.0, %v3298
    %v3300 = vpop.f32.mrb[0].mxu0
    %v3301 = vadd.f32 0.0, %v3300
    %v3302 = vpop.f32.mrb[0].mxu0
    %v3303 = vadd.f32 0.0, %v3302
    %v3304 = vpop.f32.mrb[0].mxu0
    %v3305 = vadd.f32 0.0, %v3304
    %3306 = vmatprep.mubr.bf16.mxu0 0
    %3307 = vmatmul.mubr.bf16.gmra.mrb[0].mxu0 %v3136
    %v3308 = vpop.f32.mrb[0].mxu0
    %v3309 = vadd.f32 0.0, %v3308
    %v3310 = vpop.f32.mrb[0].mxu0
    %v3311 = vadd.f32 0.0, %v3310
    %v3312 = vpop.f32.mrb[0].mxu0
    %v3313 = vadd.f32 0.0, %v3312
    %v3314 = vpop.f32.mrb[0].mxu0
    %v3315 = vadd.f32 0.0, %v3314
    %3316 = vmatprep.mubr.bf16.mxu0 0
    %3317 = vmatmul.mubr.bf16.gmra.mrb[0].mxu0 %v3139
    %v3318 = vpop.f32.mrb[0].mxu0
    %v3319 = vadd.f32 0.0, %v3318
    %v3320 = vpop.f32.mrb[0].mxu0
    %v3321 = vadd.f32 0.0, %v3320
    %v3322 = vpop.f32.mrb[0].mxu0
    %v3323 = vadd.f32 0.0, %v3322
    %v3324 = vpop.f32.mrb[0].mxu0
    %v3325 = vadd.f32 0.0, %v3324
    %3326 = vmatprep.mubr.bf16.mxu0 0
    %3327 = vmatmul.mubr.bf16.gmra.mrb[0].mxu0 %v3142
    %v3328 = vpop.f32.mrb[0].mxu0
    %v3329 = vadd.f32 0.0, %v3328
    %v3330 = vpop.f32.mrb[0].mxu0
    %v3331 = vadd.f32 0.0, %v3330
    %v3332 = vpop.f32.mrb[0].mxu0
    %v3333 = vadd.f32 0.0, %v3332
    %v3334 = vpop.f32.mrb[0].mxu0
    %v3335 = vadd.f32 0.0, %v3334
    %3336 = vdwg.mxu0
    %v3337 = vmax.f32 %v3179, %v3189
    %v3338 = vmax.f32 %v3183, %v3193
    %v3339 = vmax.f32 %v3337, %v3199
    %v3340 = vmax.f32 %v3338, %v3203
    %v3341 = vmax.f32 %v3339, %v3209
    %v3342 = vmax.f32 %v3340, %v3213
    %v3343 = vmax.f32 %v3341, %v3219
    %v3344 = vmax.f32 %v3342, %v3223
    %v3345 = vmax.f32 %v3343, %v3229
    %v3346 = vmax.f32 %v3344, %v3233
    %v3347 = vmax.f32 %v3345, %v3239
    %v3348 = vmax.f32 %v3346, %v3243
    %v3349 = vmax.f32 %v3347, %v3249
    %v3350 = vmax.f32 %v3348, %v3253
    %v3351 = vmax.f32 %v3349, %v3259
    %v3352 = vmax.f32 %v3350, %v3263
    %v3353 = vmax.f32 %v3351, %v3269
    %v3354 = vmax.f32 %v3352, %v3273
    %v3355 = vmax.f32 %v3353, %v3279
    %v3356 = vmax.f32 %v3354, %v3283
    %v3357 = vmax.f32 %v3355, %v3289
    %v3358 = vmax.f32 %v3356, %v3293
    %v3359 = vmax.f32 %v3357, %v3299
    %v3360 = vmax.f32 %v3358, %v3303
    %v3361 = vmax.f32 %v3359, %v3309
    %v3362 = vmax.f32 %v3360, %v3313
    %v3363 = vmax.f32 %v3361, %v3319
    %v3364 = vmax.f32 %v3362, %v3323
    %v3365 = vmax.f32 %v3363, %v3329
    %v3366 = vmax.f32 %v3364, %v3333
    %v3367 = vmax.f32 %v3365, %v3366
    %v3368 = vrot.slane %v3367, 4
    %v3369 = vmax.f32 %v3367, %v3368
    %v3370 = vrot.slane %v3369, 2
    %v3371 = vmax.f32 %v3369, %v3370
    %v3372 = vrot.slane %v3371, 1
    %v3373 = vmax.f32 %v3371, %v3372
    %v3374 = vmax.f32 %v3181, %v3191
    %v3375 = vmax.f32 %v3185, %v3195
    %v3376 = vmax.f32 %v3374, %v3201
    %v3377 = vmax.f32 %v3375, %v3205
    %v3378 = vmax.f32 %v3376, %v3211
    %v3379 = vmax.f32 %v3377, %v3215
    %v3380 = vmax.f32 %v3378, %v3221
    %v3381 = vmax.f32 %v3379, %v3225
    %v3382 = vmax.f32 %v3380, %v3231
    %v3383 = vmax.f32 %v3381, %v3235
    %v3384 = vmax.f32 %v3382, %v3241
    %v3385 = vmax.f32 %v3383, %v3245
    %v3386 = vmax.f32 %v3384, %v3251
    %v3387 = vmax.f32 %v3385, %v3255
    %v3388 = vmax.f32 %v3386, %v3261
    %v3389 = vmax.f32 %v3387, %v3265
    %v3390 = vmax.f32 %v3388, %v3271
    %v3391 = vmax.f32 %v3389, %v3275
    %v3392 = vmax.f32 %v3390, %v3281
    %v3393 = vmax.f32 %v3391, %v3285
    %v3394 = vmax.f32 %v3392, %v3291
    %v3395 = vmax.f32 %v3393, %v3295
    %v3396 = vmax.f32 %v3394, %v3301
    %v3397 = vmax.f32 %v3395, %v3305
    %v3398 = vmax.f32 %v3396, %v3311
    %v3399 = vmax.f32 %v3397, %v3315
    %v3400 = vmax.f32 %v3398, %v3321
    %v3401 = vmax.f32 %v3399, %v3325
    %v3402 = vmax.f32 %v3400, %v3331
    %v3403 = vmax.f32 %v3401, %v3335
    %v3404 = vmax.f32 %v3402, %v3403
    %v3405 = vrot.slane %v3404, 4
    %v3406 = vmax.f32 %v3404, %v3405
    %v3407 = vrot.slane %v3406, 2
    %v3408 = vmax.f32 %v3406, %v3407
    %v3409 = vrot.slane %v3408, 1
    %v3410 = vmax.f32 %v3408, %v3409
    %v3411 = vsub.f32 %v3179, %v3373
    %v3412 = vsub.f32 %v3181, %v3410
    %v3413 = vsub.f32 %v3183, %v3373
    %v3414 = vsub.f32 %v3185, %v3410
    %v3415 = vsub.f32 %v3189, %v3373
    %v3416 = vsub.f32 %v3191, %v3410
    %v3417 = vsub.f32 %v3193, %v3373
    %v3418 = vsub.f32 %v3195, %v3410
    %v3419 = vsub.f32 %v3199, %v3373
    %v3420 = vsub.f32 %v3201, %v3410
    %v3421 = vsub.f32 %v3203, %v3373
    %v3422 = vsub.f32 %v3205, %v3410
    %v3423 = vsub.f32 %v3209, %v3373
    %v3424 = vsub.f32 %v3211, %v3410
    %v3425 = vsub.f32 %v3213, %v3373
    %v3426 = vsub.f32 %v3215, %v3410
    %v3427 = vsub.f32 %v3219, %v3373
    %v3428 = vsub.f32 %v3221, %v3410
    %v3429 = vsub.f32 %v3223, %v3373
    %v3430 = vsub.f32 %v3225, %v3410
    %v3431 = vsub.f32 %v3229, %v3373
    %v3432 = vsub.f32 %v3231, %v3410
    %v3433 = vsub.f32 %v3233, %v3373
    %v3434 = vsub.f32 %v3235, %v3410
    %v3435 = vsub.f32 %v3239, %v3373
    %v3436 = vsub.f32 %v3241, %v3410
    %v3437 = vsub.f32 %v3243, %v3373
    %v3438 = vsub.f32 %v3245, %v3410
    %v3439 = vsub.f32 %v3249, %v3373
    %v3440 = vsub.f32 %v3251, %v3410
    %v3441 = vsub.f32 %v3253, %v3373
    %v3442 = vsub.f32 %v3255, %v3410
    %v3443 = vsub.f32 %v3259, %v3373
    %v3444 = vsub.f32 %v3261, %v3410
    %v3445 = vsub.f32 %v3263, %v3373
    %v3446 = vsub.f32 %v3265, %v3410
    %v3447 = vsub.f32 %v3269, %v3373
    %v3448 = vsub.f32 %v3271, %v3410
    %v3449 = vsub.f32 %v3273, %v3373
    %v3450 = vsub.f32 %v3275, %v3410
    %v3451 = vsub.f32 %v3279, %v3373
    %v3452 = vsub.f32 %v3281, %v3410
    %v3453 = vsub.f32 %v3283, %v3373
    %v3454 = vsub.f32 %v3285, %v3410
    %v3455 = vsub.f32 %v3289, %v3373
    %v3456 = vsub.f32 %v3291, %v3410
    %v3457 = vsub.f32 %v3293, %v3373
    %v3458 = vsub.f32 %v3295, %v3410
    %v3459 = vsub.f32 %v3299, %v3373
    %v3460 = vsub.f32 %v3301, %v3410
    %v3461 = vsub.f32 %v3303, %v3373
    %v3462 = vsub.f32 %v3305, %v3410
    %v3463 = vsub.f32 %v3309, %v3373
    %v3464 = vsub.f32 %v3311, %v3410
    %v3465 = vsub.f32 %v3313, %v3373
    %v3466 = vsub.f32 %v3315, %v3410
    %v3467 = vsub.f32 %v3319, %v3373
    %v3468 = vsub.f32 %v3321, %v3410
    %v3469 = vsub.f32 %v3323, %v3373
    %v3470 = vsub.f32 %v3325, %v3410
    %v3471 = vsub.f32 %v3329, %v3373
    %v3472 = vsub.f32 %v3331, %v3410
    %v3473 = vsub.f32 %v3333, %v3373
    %v3474 = vsub.f32 %v3335, %v3410
    %v3475 = vmul.f32 %v3411, 1.442695
    %v3476 = vpow.pop %v3475
    %v3477 = vmul.f32 %v3412, 1.442695
    %v3478 = vpow.pop %v3477
    %v3479 = vmul.f32 %v3413, 1.442695
    %v3480 = vpow.pop %v3479
    %v3481 = vmul.f32 %v3414, 1.442695
    %v3482 = vpow.pop %v3481
    %v3483 = vmul.f32 %v3415, 1.442695
    %v3484 = vpow.pop %v3483
    %v3485 = vmul.f32 %v3416, 1.442695
    %v3486 = vpow.pop %v3485
    %v3487 = vmul.f32 %v3417, 1.442695
    %v3488 = vpow.pop %v3487
    %v3489 = vmul.f32 %v3418, 1.442695
    %v3490 = vpow.pop %v3489
    %v3491 = vmul.f32 %v3419, 1.442695
    %v3492 = vpow.pop %v3491
    %v3493 = vmul.f32 %v3420, 1.442695
    %v3494 = vpow.pop %v3493
    %v3495 = vmul.f32 %v3421, 1.442695
    %v3496 = vpow.pop %v3495
    %v3497 = vmul.f32 %v3422, 1.442695
    %v3498 = vpow.pop %v3497
    %v3499 = vmul.f32 %v3423, 1.442695
    %v3500 = vpow.pop %v3499
    %v3501 = vmul.f32 %v3424, 1.442695
    %v3502 = vpow.pop %v3501
    %v3503 = vmul.f32 %v3425, 1.442695
    %v3504 = vpow.pop %v3503
    %v3505 = vmul.f32 %v3426, 1.442695
    %v3506 = vpow.pop %v3505
    %v3507 = vmul.f32 %v3427, 1.442695
    %v3508 = vpow.pop %v3507
    %v3509 = vmul.f32 %v3428, 1.442695
    %v3510 = vpow.pop %v3509
    %v3511 = vmul.f32 %v3429, 1.442695
    %v3512 = vpow.pop %v3511
    %v3513 = vmul.f32 %v3430, 1.442695
    %v3514 = vpow.pop %v3513
    %v3515 = vmul.f32 %v3431, 1.442695
    %v3516 = vpow.pop %v3515
    %v3517 = vmul.f32 %v3432, 1.442695
    %v3518 = vpow.pop %v3517
    %v3519 = vmul.f32 %v3433, 1.442695
    %v3520 = vpow.pop %v3519
    %v3521 = vmul.f32 %v3434, 1.442695
    %v3522 = vpow.pop %v3521
    %v3523 = vmul.f32 %v3435, 1.442695
    %v3524 = vpow.pop %v3523
    %v3525 = vmul.f32 %v3436, 1.442695
    %v3526 = vpow.pop %v3525
    %v3527 = vmul.f32 %v3437, 1.442695
    %v3528 = vpow.pop %v3527
    %v3529 = vmul.f32 %v3438, 1.442695
    %v3530 = vpow.pop %v3529
    %v3531 = vmul.f32 %v3439, 1.442695
    %v3532 = vpow.pop %v3531
    %v3533 = vmul.f32 %v3440, 1.442695
    %v3534 = vpow.pop %v3533
    %v3535 = vmul.f32 %v3441, 1.442695
    %v3536 = vpow.pop %v3535
    %v3537 = vmul.f32 %v3442, 1.442695
    %v3538 = vpow.pop %v3537
    %v3539 = vmul.f32 %v3443, 1.442695
    %v3540 = vpow.pop %v3539
    %v3541 = vmul.f32 %v3444, 1.442695
    %v3542 = vpow.pop %v3541
    %v3543 = vmul.f32 %v3445, 1.442695
    %v3544 = vpow.pop %v3543
    %v3545 = vmul.f32 %v3446, 1.442695
    %v3546 = vpow.pop %v3545
    %v3547 = vmul.f32 %v3447, 1.442695
    %v3548 = vpow.pop %v3547
    %v3549 = vmul.f32 %v3448, 1.442695
    %v3550 = vpow.pop %v3549
    %v3551 = vmul.f32 %v3449, 1.442695
    %v3552 = vpow.pop %v3551
    %v3553 = vmul.f32 %v3450, 1.442695
    %v3554 = vpow.pop %v3553
    %v3555 = vmul.f32 %v3451, 1.442695
    %v3556 = vpow.pop %v3555
    %v3557 = vmul.f32 %v3452, 1.442695
    %v3558 = vpow.pop %v3557
    %v3559 = vmul.f32 %v3453, 1.442695
    %v3560 = vpow.pop %v3559
    %v3561 = vmul.f32 %v3454, 1.442695
    %v3562 = vpow.pop %v3561
    %v3563 = vmul.f32 %v3455, 1.442695
    %v3564 = vpow.pop %v3563
    %v3565 = vmul.f32 %v3456, 1.442695
    %v3566 = vpow.pop %v3565
    %v3567 = vmul.f32 %v3457, 1.442695
    %v3568 = vpow.pop %v3567
    %v3569 = vmul.f32 %v3458, 1.442695
    %v3570 = vpow.pop %v3569
    %v3571 = vmul.f32 %v3459, 1.442695
    %v3572 = vpow.pop %v3571
    %v3573 = vmul.f32 %v3460, 1.442695
    %v3574 = vpow.pop %v3573
    %v3575 = vmul.f32 %v3461, 1.442695
    %v3576 = vpow.pop %v3575
    %v3577 = vmul.f32 %v3462, 1.442695
    %v3578 = vpow.pop %v3577
    %v3579 = vmul.f32 %v3463, 1.442695
    %v3580 = vpow.pop %v3579
    %v3581 = vmul.f32 %v3464, 1.442695
    %v3582 = vpow.pop %v3581
    %v3583 = vmul.f32 %v3465, 1.442695
    %v3584 = vpow.pop %v3583
    %v3585 = vmul.f32 %v3466, 1.442695
    %v3586 = vpow.pop %v3585
    %v3587 = vmul.f32 %v3467, 1.442695
    %v3588 = vpow.pop %v3587
    %v3589 = vmul.f32 %v3468, 1.442695
    %v3590 = vpow.pop %v3589
    %v3591 = vmul.f32 %v3469, 1.442695
    %v3592 = vpow.pop %v3591
    %v3593 = vmul.f32 %v3470, 1.442695
    %v3594 = vpow.pop %v3593
    %v3595 = vmul.f32 %v3471, 1.442695
    %v3596 = vpow.pop %v3595
    %v3597 = vmul.f32 %v3472, 1.442695
    %v3598 = vpow.pop %v3597
    %v3599 = vmul.f32 %v3473, 1.442695
    %v3600 = vpow.pop %v3599
    %v3601 = vmul.f32 %v3474, 1.442695
    %v3602 = vpow.pop %v3601
    %v3603 = vadd.f32 %v3476, %v3480
    %v3604 = vadd.f32 %v3603, %v3484
    %v3605 = vadd.f32 %v3604, %v3488
    %v3606 = vadd.f32 %v3605, %v3492
    %v3607 = vadd.f32 %v3606, %v3496
    %v3608 = vadd.f32 %v3607, %v3500
    %v3609 = vadd.f32 %v3608, %v3504
    %v3610 = vadd.f32 %v3609, %v3508
    %v3611 = vadd.f32 %v3610, %v3512
    %v3612 = vadd.f32 %v3611, %v3516
    %v3613 = vadd.f32 %v3612, %v3520
    %v3614 = vadd.f32 %v3613, %v3524
    %v3615 = vadd.f32 %v3614, %v3528
    %v3616 = vadd.f32 %v3615, %v3532
    %v3617 = vadd.f32 %v3616, %v3536
    %v3618 = vadd.f32 %v3617, %v3540
    %v3619 = vadd.f32 %v3618, %v3544
    %v3620 = vadd.f32 %v3619, %v3548
    %v3621 = vadd.f32 %v3620, %v3552
    %v3622 = vadd.f32 %v3621, %v3556
    %v3623 = vadd.f32 %v3622, %v3560
    %v3624 = vadd.f32 %v3623, %v3564
    %v3625 = vadd.f32 %v3624, %v3568
    %v3626 = vadd.f32 %v3625, %v3572
    %v3627 = vadd.f32 %v3626, %v3576
    %v3628 = vadd.f32 %v3627, %v3580
    %v3629 = vadd.f32 %v3628, %v3584
    %v3630 = vadd.f32 %v3629, %v3588
    %v3631 = vadd.f32 %v3630, %v3592
    %v3632 = vadd.f32 %v3631, %v3596
    %v3633 = vadd.f32 %v3632, %v3600
    %v3634 = vrot.slane %v3633, 4
    %v3635 = vadd.f32 %v3633, %v3634
    %v3636 = vrot.slane %v3635, 2
    %v3637 = vadd.f32 %v3635, %v3636
    %v3638 = vrot.slane %v3637, 1
    %v3639 = vadd.f32 %v3637, %v3638
    %v3640 = vadd.f32 %v3478, %v3482
    %v3641 = vadd.f32 %v3640, %v3486
    %v3642 = vadd.f32 %v3641, %v3490
    %v3643 = vadd.f32 %v3642, %v3494
    %v3644 = vadd.f32 %v3643, %v3498
    %v3645 = vadd.f32 %v3644, %v3502
    %v3646 = vadd.f32 %v3645, %v3506
    %v3647 = vadd.f32 %v3646, %v3510
    %v3648 = vadd.f32 %v3647, %v3514
    %v3649 = vadd.f32 %v3648, %v3518
    %v3650 = vadd.f32 %v3649, %v3522
    %v3651 = vadd.f32 %v3650, %v3526
    %v3652 = vadd.f32 %v3651, %v3530
    %v3653 = vadd.f32 %v3652, %v3534
    %v3654 = vadd.f32 %v3653, %v3538
    %v3655 = vadd.f32 %v3654, %v3542
    %v3656 = vadd.f32 %v3655, %v3546
    %v3657 = vadd.f32 %v3656, %v3550
    %v3658 = vadd.f32 %v3657, %v3554
    %v3659 = vadd.f32 %v3658, %v3558
    %v3660 = vadd.f32 %v3659, %v3562
    %v3661 = vadd.f32 %v3660, %v3566
    %v3662 = vadd.f32 %v3661, %v3570
    %v3663 = vadd.f32 %v3662, %v3574
    %v3664 = vadd.f32 %v3663, %v3578
    %v3665 = vadd.f32 %v3664, %v3582
    %v3666 = vadd.f32 %v3665, %v3586
    %v3667 = vadd.f32 %v3666, %v3590
    %v3668 = vadd.f32 %v3667, %v3594
    %v3669 = vadd.f32 %v3668, %v3598
    %v3670 = vadd.f32 %v3669, %v3602
    %v3671 = vrot.slane %v3670, 4
    %v3672 = vadd.f32 %v3670, %v3671
    %v3673 = vrot.slane %v3672, 2
    %v3674 = vadd.f32 %v3672, %v3673
    %v3675 = vrot.slane %v3674, 1
    %v3676 = vadd.f32 %v3674, %v3675
    %v3677 = vpack.c.bf16 %v3480, %v3476
    %v3678 = vpack.c.bf16 %v3482, %v3478
    %v3679 = vpack.c.bf16 %v3488, %v3484
    %v3680 = vpack.c.bf16 %v3490, %v3486
    %v3681 = vpack.c.bf16 %v3496, %v3492
    %v3682 = vpack.c.bf16 %v3498, %v3494
    %v3683 = vpack.c.bf16 %v3504, %v3500
    %v3684 = vpack.c.bf16 %v3506, %v3502
    %v3685 = vpack.c.bf16 %v3512, %v3508
    %v3686 = vpack.c.bf16 %v3514, %v3510
    %v3687 = vpack.c.bf16 %v3520, %v3516
    %v3688 = vpack.c.bf16 %v3522, %v3518
    %v3689 = vpack.c.bf16 %v3528, %v3524
    %v3690 = vpack.c.bf16 %v3530, %v3526
    %v3691 = vpack.c.bf16 %v3536, %v3532
    %v3692 = vpack.c.bf16 %v3538, %v3534
    %v3693 = vpack.c.bf16 %v3544, %v3540
    %v3694 = vpack.c.bf16 %v3546, %v3542
    %v3695 = vpack.c.bf16 %v3552, %v3548
    %v3696 = vpack.c.bf16 %v3554, %v3550
    %v3697 = vpack.c.bf16 %v3560, %v3556
    %v3698 = vpack.c.bf16 %v3562, %v3558
    %v3699 = vpack.c.bf16 %v3568, %v3564
    %v3700 = vpack.c.bf16 %v3570, %v3566
    %v3701 = vpack.c.bf16 %v3576, %v3572
    %v3702 = vpack.c.bf16 %v3578, %v3574
    %v3703 = vpack.c.bf16 %v3584, %v3580
    %v3704 = vpack.c.bf16 %v3586, %v3582
    %v3705 = vpack.c.bf16 %v3592, %v3588
    %v3706 = vpack.c.bf16 %v3594, %v3590
    %v3707 = vpack.c.bf16 %v3600, %v3596
    %v3708 = vpack.c.bf16 %v3602, %v3598
    %3709 = vmatprep.subr.bf16.mxu0 %v3678
    %3710 = vmatpush1.bf16.msra.mxu0 %v3677
    %3711 = vmatprep.subr.bf16.mxu0 %v3680
    %3712 = vmatpush1.bf16.msra.mxu0 %v3679
    %3713 = vmatprep.subr.bf16.mxu0 %v3682
    %3714 = vmatpush1.bf16.msra.mxu0 %v3681
    %3715 = vmatprep.subr.bf16.mxu0 %v3684
    %3716 = vmatpush1.bf16.msra.mxu0 %v3683
    %3717 = vmatprep.subr.bf16.mxu0 %v3686
    %3718 = vmatpush1.bf16.msra.mxu0 %v3685
    %3719 = vmatprep.subr.bf16.mxu0 %v3688
    %3720 = vmatpush1.bf16.msra.mxu0 %v3687
    %3721 = vmatprep.subr.bf16.mxu0 %v3690
    %3722 = vmatpush1.bf16.msra.mxu0 %v3689
    %3723 = vmatprep.subr.bf16.mxu0 %v3692
    %3724 = vmatpush1.bf16.msra.mxu0 %v3691
    %3725 = vmatprep.subr.bf16.mxu0 %v3694
    %3726 = vmatpush1.bf16.msra.mxu0 %v3693
    %3727 = vmatprep.subr.bf16.mxu0 %v3696
    %3728 = vmatpush1.bf16.msra.mxu0 %v3695
    %3729 = vmatprep.subr.bf16.mxu0 %v3698
    %3730 = vmatpush1.bf16.msra.mxu0 %v3697
    %3731 = vmatprep.subr.bf16.mxu0 %v3700
    %3732 = vmatpush1.bf16.msra.mxu0 %v3699
    %3733 = vmatprep.subr.bf16.mxu0 %v3702
    %3734 = vmatpush1.bf16.msra.mxu0 %v3701
    %3735 = vmatprep.subr.bf16.mxu0 %v3704
    %3736 = vmatpush1.bf16.msra.mxu0 %v3703
    %3737 = vmatprep.subr.bf16.mxu0 %v3706
    %3738 = vmatpush1.bf16.msra.mxu0 %v3705
    %3739 = vmatprep.subr.bf16.mxu0 %v3708
    %3740 = vmatpush1.bf16.msra.mxu0 %v3707
    %3741 = vmatprep.mubr.bf16.mxu0 %v920
    %3742 = vmatmul.mubr.bf16.gmra.mrb[0].mxu0 %v919
    %v3743 = vpop.f32.mrb[0].mxu0
    %v3744 = vadd.f32 0.0, %v3743
    %v3745 = vpop.f32.mrb[0].mxu0
    %v3746 = vadd.f32 0.0, %v3745
    %v3747 = vpop.f32.mrb[0].mxu0
    %v3748 = vadd.f32 0.0, %v3747
    %v3749 = vpop.f32.mrb[0].mxu0
    %v3750 = vadd.f32 0.0, %v3749
    %3751 = vmatprep.mubr.bf16.mxu0 %v924
    %3752 = vmatmul.mubr.bf16.gmra.mrb[0].mxu0 %v923
    %v3753 = vpop.f32.mrb[0].mxu0
    %v3754 = vadd.f32 0.0, %v3753
    %v3755 = vpop.f32.mrb[0].mxu0
    %v3756 = vadd.f32 0.0, %v3755
    %v3757 = vpop.f32.mrb[0].mxu0
    %v3758 = vadd.f32 0.0, %v3757
    %v3759 = vpop.f32.mrb[0].mxu0
    %v3760 = vadd.f32 0.0, %v3759
    %3761 = vdwg.mxu0
    %v3762 = vrcp.pop %v3639
    %v3763 = vrcp.pop %v3676
    %v3764 = vmul.f32 %v3744, %v3762
    %v3765 = vmul.f32 %v3746, %v3763
    %v3766 = vmul.f32 %v3748, %v3762
    %v3767 = vmul.f32 %v3750, %v3763
    %v3768 = vmul.f32 %v3754, %v3762
    %v3769 = vmul.f32 %v3756, %v3763
    %v3770 = vmul.f32 %v3758, %v3762
    %v3771 = vmul.f32 %v3760, %v3763
    %v3772 = vpack.c.bf16 %v3766, %v3764
    %v3773 = vpack.c.bf16 %v3767, %v3765
    %v3774 = vpack.c.bf16 %v3770, %v3768
    %v3775 = vpack.c.bf16 %v3771, %v3769
    %3776 = vxpose.xlu0.c.b16.start [1/8] %v865, 128
    %3777 = vxpose.xlu0.c.b16.cont [2/8] %v869, 128
    %3778 = vxpose.xlu0.c.b16.cont [3/8] 0, 128
    %3779 = vxpose.xlu0.c.b16.cont [4/8] 0, 128
    %3780 = vxpose.xlu0.c.b16.cont [5/8] 0, 128
    %3781 = vxpose.xlu0.c.b16.cont [6/8] 0, 128
    %3782 = vxpose.xlu0.c.b16.cont [7/8] 0, 128
    %3783 = vxpose.xlu0.c.b16.end [8/8] 0, 128
    %v3784 = vpop.trf.xlu0
    %v3785 = vpop.trf.xlu0
    %v3786 = vpop.trf.xlu0
    %v3787 = vpop.trf.xlu0
    %v3788 = vpop.trf.xlu0
    %v3789 = vpop.trf.xlu0
    %v3790 = vpop.trf.xlu0
    %v3791 = vpop.trf.xlu0
    %3792 = vxpose.xlu0.c.b16.start [1/8] %v866, 128
    %3793 = vxpose.xlu0.c.b16.cont [2/8] %v870, 128
    %3794 = vxpose.xlu0.c.b16.cont [3/8] 0, 128
    %3795 = vxpose.xlu0.c.b16.cont [4/8] 0, 128
    %3796 = vxpose.xlu0.c.b16.cont [5/8] 0, 128
    %3797 = vxpose.xlu0.c.b16.cont [6/8] 0, 128
    %3798 = vxpose.xlu0.c.b16.cont [7/8] 0, 128
    %3799 = vxpose.xlu0.c.b16.end [8/8] 0, 128
    %v3800 = vpop.trf.xlu0
    %v3801 = vpop.trf.xlu0
    %v3802 = vpop.trf.xlu0
    %v3803 = vpop.trf.xlu0
    %v3804 = vpop.trf.xlu0
    %v3805 = vpop.trf.xlu0
    %v3806 = vpop.trf.xlu0
    %v3807 = vpop.trf.xlu0
    %v3809 = vsel %vm959, %v3784, 0
    %v3812 = vsel %vm959, %v3785, 0
    %v3815 = vsel %vm959, %v3786, 0
    %v3818 = vsel %vm959, %v3787, 0
    %v3821 = vsel %vm959, %v3788, 0
    %v3824 = vsel %vm959, %v3789, 0
    %v3827 = vsel %vm959, %v3790, 0
    %v3830 = vsel %vm959, %v3791, 0
    %v3833 = vsel %vm959, %v3800, 0
    %v3836 = vsel %vm959, %v3801, 0
    %v3839 = vsel %vm959, %v3802, 0
    %v3842 = vsel %vm959, %v3803, 0
    %v3845 = vsel %vm959, %v3804, 0
    %v3848 = vsel %vm959, %v3805, 0
    %v3851 = vsel %vm959, %v3806, 0
    %v3854 = vsel %vm959, %v3807, 0
    %3856 = vmatprep.subr.bf16.mxu0 %v834
    %3857 = vmatpush1.bf16.msra.mxu0 %v833
    %3858 = vmatprep.subr.bf16.mxu0 %v838
    %3859 = vmatpush1.bf16.msra.mxu0 %v837
    %3860 = vmatprep.subr.bf16.mxu0 0
    %3861 = vmatpush1.bf16.msra.mxu0 0
    %3862 = vmatprep.subr.bf16.mxu0 0
    %3863 = vmatpush1.bf16.msra.mxu0 0
    %3864 = vmatprep.subr.bf16.mxu0 0
    %3865 = vmatpush1.bf16.msra.mxu0 0
    %3866 = vmatprep.subr.bf16.mxu0 0
    %3867 = vmatpush1.bf16.msra.mxu0 0
    %3868 = vmatprep.subr.bf16.mxu0 0
    %3869 = vmatpush1.bf16.msra.mxu0 0
    %3870 = vmatprep.subr.bf16.mxu0 0
    %3871 = vmatpush1.bf16.msra.mxu0 0
    %3872 = vmatprep.subr.bf16.mxu0 0
    %3873 = vmatpush1.bf16.msra.mxu0 0
    %3874 = vmatprep.subr.bf16.mxu0 0
    %3875 = vmatpush1.bf16.msra.mxu0 0
    %3876 = vmatprep.subr.bf16.mxu0 0
    %3877 = vmatpush1.bf16.msra.mxu0 0
    %3878 = vmatprep.subr.bf16.mxu0 0
    %3879 = vmatpush1.bf16.msra.mxu0 0
    %3880 = vmatprep.subr.bf16.mxu0 0
    %3881 = vmatpush1.bf16.msra.mxu0 0
    %3882 = vmatprep.subr.bf16.mxu0 0
    %3883 = vmatpush1.bf16.msra.mxu0 0
    %3884 = vmatprep.subr.bf16.mxu0 0
    %3885 = vmatpush1.bf16.msra.mxu0 0
    %3886 = vmatprep.subr.bf16.mxu0 0
    %3887 = vmatpush1.bf16.msra.mxu0 0
    %3888 = vmatprep.mubr.bf16.mxu0 0
    %3889 = vmatmul.mubr.bf16.gmra.mrb[0].mxu0 %v3809
    %v3890 = vpop.f32.mrb[0].mxu0
    %v3891 = vadd.f32 0.0, %v3890
    %v3892 = vpop.f32.mrb[0].mxu0
    %v3893 = vadd.f32 0.0, %v3892
    %v3894 = vpop.f32.mrb[0].mxu0
    %v3895 = vadd.f32 0.0, %v3894
    %v3896 = vpop.f32.mrb[0].mxu0
    %v3897 = vadd.f32 0.0, %v3896
    %3898 = vmatprep.mubr.bf16.mxu0 0
    %3899 = vmatmul.mubr.bf16.gmra.mrb[0].mxu0 %v3812
    %v3900 = vpop.f32.mrb[0].mxu0
    %v3901 = vadd.f32 0.0, %v3900
    %v3902 = vpop.f32.mrb[0].mxu0
    %v3903 = vadd.f32 0.0, %v3902
    %v3904 = vpop.f32.mrb[0].mxu0
    %v3905 = vadd.f32 0.0, %v3904
    %v3906 = vpop.f32.mrb[0].mxu0
    %v3907 = vadd.f32 0.0, %v3906
    %3908 = vmatprep.mubr.bf16.mxu0 0
    %3909 = vmatmul.mubr.bf16.gmra.mrb[0].mxu0 %v3815
    %v3910 = vpop.f32.mrb[0].mxu0
    %v3911 = vadd.f32 0.0, %v3910
    %v3912 = vpop.f32.mrb[0].mxu0
    %v3913 = vadd.f32 0.0, %v3912
    %v3914 = vpop.f32.mrb[0].mxu0
    %v3915 = vadd.f32 0.0, %v3914
    %v3916 = vpop.f32.mrb[0].mxu0
    %v3917 = vadd.f32 0.0, %v3916
    %3918 = vmatprep.mubr.bf16.mxu0 0
    %3919 = vmatmul.mubr.bf16.gmra.mrb[0].mxu0 %v3818
    %v3920 = vpop.f32.mrb[0].mxu0
    %v3921 = vadd.f32 0.0, %v3920
    %v3922 = vpop.f32.mrb[0].mxu0
    %v3923 = vadd.f32 0.0, %v3922
    %v3924 = vpop.f32.mrb[0].mxu0
    %v3925 = vadd.f32 0.0, %v3924
    %v3926 = vpop.f32.mrb[0].mxu0
    %v3927 = vadd.f32 0.0, %v3926
    %3928 = vmatprep.mubr.bf16.mxu0 0
    %3929 = vmatmul.mubr.bf16.gmra.mrb[0].mxu0 %v3821
    %v3930 = vpop.f32.mrb[0].mxu0
    %v3931 = vadd.f32 0.0, %v3930
    %v3932 = vpop.f32.mrb[0].mxu0
    %v3933 = vadd.f32 0.0, %v3932
    %v3934 = vpop.f32.mrb[0].mxu0
    %v3935 = vadd.f32 0.0, %v3934
    %v3936 = vpop.f32.mrb[0].mxu0
    %v3937 = vadd.f32 0.0, %v3936
    %3938 = vmatprep.mubr.bf16.mxu0 0
    %3939 = vmatmul.mubr.bf16.gmra.mrb[0].mxu0 %v3824
    %v3940 = vpop.f32.mrb[0].mxu0
    %v3941 = vadd.f32 0.0, %v3940
    %v3942 = vpop.f32.mrb[0].mxu0
    %v3943 = vadd.f32 0.0, %v3942
    %v3944 = vpop.f32.mrb[0].mxu0
    %v3945 = vadd.f32 0.0, %v3944
    %v3946 = vpop.f32.mrb[0].mxu0
    %v3947 = vadd.f32 0.0, %v3946
    %3948 = vmatprep.mubr.bf16.mxu0 0
    %3949 = vmatmul.mubr.bf16.gmra.mrb[0].mxu0 %v3827
    %v3950 = vpop.f32.mrb[0].mxu0
    %v3951 = vadd.f32 0.0, %v3950
    %v3952 = vpop.f32.mrb[0].mxu0
    %v3953 = vadd.f32 0.0, %v3952
    %v3954 = vpop.f32.mrb[0].mxu0
    %v3955 = vadd.f32 0.0, %v3954
    %v3956 = vpop.f32.mrb[0].mxu0
    %v3957 = vadd.f32 0.0, %v3956
    %3958 = vmatprep.mubr.bf16.mxu0 0
    %3959 = vmatmul.mubr.bf16.gmra.mrb[0].mxu0 %v3830
    %v3960 = vpop.f32.mrb[0].mxu0
    %v3961 = vadd.f32 0.0, %v3960
    %v3962 = vpop.f32.mrb[0].mxu0
    %v3963 = vadd.f32 0.0, %v3962
    %v3964 = vpop.f32.mrb[0].mxu0
    %v3965 = vadd.f32 0.0, %v3964
    %v3966 = vpop.f32.mrb[0].mxu0
    %v3967 = vadd.f32 0.0, %v3966
    %3968 = vmatprep.mubr.bf16.mxu0 0
    %3969 = vmatmul.mubr.bf16.gmra.mrb[0].mxu0 %v3833
    %v3970 = vpop.f32.mrb[0].mxu0
    %v3971 = vadd.f32 0.0, %v3970
    %v3972 = vpop.f32.mrb[0].mxu0
    %v3973 = vadd.f32 0.0, %v3972
    %v3974 = vpop.f32.mrb[0].mxu0
    %v3975 = vadd.f32 0.0, %v3974
    %v3976 = vpop.f32.mrb[0].mxu0
    %v3977 = vadd.f32 0.0, %v3976
    %3978 = vmatprep.mubr.bf16.mxu0 0
    %3979 = vmatmul.mubr.bf16.gmra.mrb[0].mxu0 %v3836
    %v3980 = vpop.f32.mrb[0].mxu0
    %v3981 = vadd.f32 0.0, %v3980
    %v3982 = vpop.f32.mrb[0].mxu0
    %v3983 = vadd.f32 0.0, %v3982
    %v3984 = vpop.f32.mrb[0].mxu0
    %v3985 = vadd.f32 0.0, %v3984
    %v3986 = vpop.f32.mrb[0].mxu0
    %v3987 = vadd.f32 0.0, %v3986
    %3988 = vmatprep.mubr.bf16.mxu0 0
    %3989 = vmatmul.mubr.bf16.gmra.mrb[0].mxu0 %v3839
    %v3990 = vpop.f32.mrb[0].mxu0
    %v3991 = vadd.f32 0.0, %v3990
    %v3992 = vpop.f32.mrb[0].mxu0
    %v3993 = vadd.f32 0.0, %v3992
    %v3994 = vpop.f32.mrb[0].mxu0
    %v3995 = vadd.f32 0.0, %v3994
    %v3996 = vpop.f32.mrb[0].mxu0
    %v3997 = vadd.f32 0.0, %v3996
    %3998 = vmatprep.mubr.bf16.mxu0 0
    %3999 = vmatmul.mubr.bf16.gmra.mrb[0].mxu0 %v3842
    %v4000 = vpop.f32.mrb[0].mxu0
    %v4001 = vadd.f32 0.0, %v4000
    %v4002 = vpop.f32.mrb[0].mxu0
    %v4003 = vadd.f32 0.0, %v4002
    %v4004 = vpop.f32.mrb[0].mxu0
    %v4005 = vadd.f32 0.0, %v4004
    %v4006 = vpop.f32.mrb[0].mxu0
    %v4007 = vadd.f32 0.0, %v4006
    %4008 = vmatprep.mubr.bf16.mxu0 0
    %4009 = vmatmul.mubr.bf16.gmra.mrb[0].mxu0 %v3845
    %v4010 = vpop.f32.mrb[0].mxu0
    %v4011 = vadd.f32 0.0, %v4010
    %v4012 = vpop.f32.mrb[0].mxu0
    %v4013 = vadd.f32 0.0, %v4012
    %v4014 = vpop.f32.mrb[0].mxu0
    %v4015 = vadd.f32 0.0, %v4014
    %v4016 = vpop.f32.mrb[0].mxu0
    %v4017 = vadd.f32 0.0, %v4016
    %4018 = vmatprep.mubr.bf16.mxu0 0
    %4019 = vmatmul.mubr.bf16.gmra.mrb[0].mxu0 %v3848
    %v4020 = vpop.f32.mrb[0].mxu0
    %v4021 = vadd.f32 0.0, %v4020
    %v4022 = vpop.f32.mrb[0].mxu0
    %v4023 = vadd.f32 0.0, %v4022
    %v4024 = vpop.f32.mrb[0].mxu0
    %v4025 = vadd.f32 0.0, %v4024
    %v4026 = vpop.f32.mrb[0].mxu0
    %v4027 = vadd.f32 0.0, %v4026
    %4028 = vmatprep.mubr.bf16.mxu0 0
    %4029 = vmatmul.mubr.bf16.gmra.mrb[0].mxu0 %v3851
    %v4030 = vpop.f32.mrb[0].mxu0
    %v4031 = vadd.f32 0.0, %v4030
    %v4032 = vpop.f32.mrb[0].mxu0
    %v4033 = vadd.f32 0.0, %v4032
    %v4034 = vpop.f32.mrb[0].mxu0
    %v4035 = vadd.f32 0.0, %v4034
    %v4036 = vpop.f32.mrb[0].mxu0
    %v4037 = vadd.f32 0.0, %v4036
    %4038 = vmatprep.mubr.bf16.mxu0 0
    %4039 = vmatmul.mubr.bf16.gmra.mrb[0].mxu0 %v3854
    %v4040 = vpop.f32.mrb[0].mxu0
    %v4041 = vadd.f32 0.0, %v4040
    %v4042 = vpop.f32.mrb[0].mxu0
    %v4043 = vadd.f32 0.0, %v4042
    %v4044 = vpop.f32.mrb[0].mxu0
    %v4045 = vadd.f32 0.0, %v4044
    %v4046 = vpop.f32.mrb[0].mxu0
    %v4047 = vadd.f32 0.0, %v4046
    %4048 = vdwg.mxu0
    %v4049 = vmax.f32 %v3891, %v3901
    %v4050 = vmax.f32 %v3895, %v3905
    %v4051 = vmax.f32 %v4049, %v3911
    %v4052 = vmax.f32 %v4050, %v3915
    %v4053 = vmax.f32 %v4051, %v3921
    %v4054 = vmax.f32 %v4052, %v3925
    %v4055 = vmax.f32 %v4053, %v3931
    %v4056 = vmax.f32 %v4054, %v3935
    %v4057 = vmax.f32 %v4055, %v3941
    %v4058 = vmax.f32 %v4056, %v3945
    %v4059 = vmax.f32 %v4057, %v3951
    %v4060 = vmax.f32 %v4058, %v3955
    %v4061 = vmax.f32 %v4059, %v3961
    %v4062 = vmax.f32 %v4060, %v3965
    %v4063 = vmax.f32 %v4061, %v3971
    %v4064 = vmax.f32 %v4062, %v3975
    %v4065 = vmax.f32 %v4063, %v3981
    %v4066 = vmax.f32 %v4064, %v3985
    %v4067 = vmax.f32 %v4065, %v3991
    %v4068 = vmax.f32 %v4066, %v3995
    %v4069 = vmax.f32 %v4067, %v4001
    %v4070 = vmax.f32 %v4068, %v4005
    %v4071 = vmax.f32 %v4069, %v4011
    %v4072 = vmax.f32 %v4070, %v4015
    %v4073 = vmax.f32 %v4071, %v4021
    %v4074 = vmax.f32 %v4072, %v4025
    %v4075 = vmax.f32 %v4073, %v4031
    %v4076 = vmax.f32 %v4074, %v4035
    %v4077 = vmax.f32 %v4075, %v4041
    %v4078 = vmax.f32 %v4076, %v4045
    %v4079 = vmax.f32 %v4077, %v4078
    %v4080 = vrot.slane %v4079, 4
    %v4081 = vmax.f32 %v4079, %v4080
    %v4082 = vrot.slane %v4081, 2
    %v4083 = vmax.f32 %v4081, %v4082
    %v4084 = vrot.slane %v4083, 1
    %v4085 = vmax.f32 %v4083, %v4084
    %v4086 = vmax.f32 %v3893, %v3903
    %v4087 = vmax.f32 %v3897, %v3907
    %v4088 = vmax.f32 %v4086, %v3913
    %v4089 = vmax.f32 %v4087, %v3917
    %v4090 = vmax.f32 %v4088, %v3923
    %v4091 = vmax.f32 %v4089, %v3927
    %v4092 = vmax.f32 %v4090, %v3933
    %v4093 = vmax.f32 %v4091, %v3937
    %v4094 = vmax.f32 %v4092, %v3943
    %v4095 = vmax.f32 %v4093, %v3947
    %v4096 = vmax.f32 %v4094, %v3953
    %v4097 = vmax.f32 %v4095, %v3957
    %v4098 = vmax.f32 %v4096, %v3963
    %v4099 = vmax.f32 %v4097, %v3967
    %v4100 = vmax.f32 %v4098, %v3973
    %v4101 = vmax.f32 %v4099, %v3977
    %v4102 = vmax.f32 %v4100, %v3983
    %v4103 = vmax.f32 %v4101, %v3987
    %v4104 = vmax.f32 %v4102, %v3993
    %v4105 = vmax.f32 %v4103, %v3997
    %v4106 = vmax.f32 %v4104, %v4003
    %v4107 = vmax.f32 %v4105, %v4007
    %v4108 = vmax.f32 %v4106, %v4013
    %v4109 = vmax.f32 %v4107, %v4017
    %v4110 = vmax.f32 %v4108, %v4023
    %v4111 = vmax.f32 %v4109, %v4027
    %v4112 = vmax.f32 %v4110, %v4033
    %v4113 = vmax.f32 %v4111, %v4037
    %v4114 = vmax.f32 %v4112, %v4043
    %v4115 = vmax.f32 %v4113, %v4047
    %v4116 = vmax.f32 %v4114, %v4115
    %v4117 = vrot.slane %v4116, 4
    %v4118 = vmax.f32 %v4116, %v4117
    %v4119 = vrot.slane %v4118, 2
    %v4120 = vmax.f32 %v4118, %v4119
    %v4121 = vrot.slane %v4120, 1
    %v4122 = vmax.f32 %v4120, %v4121
    %v4123 = vsub.f32 %v3891, %v4085
    %v4124 = vsub.f32 %v3893, %v4122
    %v4125 = vsub.f32 %v3895, %v4085
    %v4126 = vsub.f32 %v3897, %v4122
    %v4127 = vsub.f32 %v3901, %v4085
    %v4128 = vsub.f32 %v3903, %v4122
    %v4129 = vsub.f32 %v3905, %v4085
    %v4130 = vsub.f32 %v3907, %v4122
    %v4131 = vsub.f32 %v3911, %v4085
    %v4132 = vsub.f32 %v3913, %v4122
    %v4133 = vsub.f32 %v3915, %v4085
    %v4134 = vsub.f32 %v3917, %v4122
    %v4135 = vsub.f32 %v3921, %v4085
    %v4136 = vsub.f32 %v3923, %v4122
    %v4137 = vsub.f32 %v3925, %v4085
    %v4138 = vsub.f32 %v3927, %v4122
    %v4139 = vsub.f32 %v3931, %v4085
    %v4140 = vsub.f32 %v3933, %v4122
    %v4141 = vsub.f32 %v3935, %v4085
    %v4142 = vsub.f32 %v3937, %v4122
    %v4143 = vsub.f32 %v3941, %v4085
    %v4144 = vsub.f32 %v3943, %v4122
    %v4145 = vsub.f32 %v3945, %v4085
    %v4146 = vsub.f32 %v3947, %v4122
    %v4147 = vsub.f32 %v3951, %v4085
    %v4148 = vsub.f32 %v3953, %v4122
    %v4149 = vsub.f32 %v3955, %v4085
    %v4150 = vsub.f32 %v3957, %v4122
    %v4151 = vsub.f32 %v3961, %v4085
    %v4152 = vsub.f32 %v3963, %v4122
    %v4153 = vsub.f32 %v3965, %v4085
    %v4154 = vsub.f32 %v3967, %v4122
    %v4155 = vsub.f32 %v3971, %v4085
    %v4156 = vsub.f32 %v3973, %v4122
    %v4157 = vsub.f32 %v3975, %v4085
    %v4158 = vsub.f32 %v3977, %v4122
    %v4159 = vsub.f32 %v3981, %v4085
    %v4160 = vsub.f32 %v3983, %v4122
    %v4161 = vsub.f32 %v3985, %v4085
    %v4162 = vsub.f32 %v3987, %v4122
    %v4163 = vsub.f32 %v3991, %v4085
    %v4164 = vsub.f32 %v3993, %v4122
    %v4165 = vsub.f32 %v3995, %v4085
    %v4166 = vsub.f32 %v3997, %v4122
    %v4167 = vsub.f32 %v4001, %v4085
    %v4168 = vsub.f32 %v4003, %v4122
    %v4169 = vsub.f32 %v4005, %v4085
    %v4170 = vsub.f32 %v4007, %v4122
    %v4171 = vsub.f32 %v4011, %v4085
    %v4172 = vsub.f32 %v4013, %v4122
    %v4173 = vsub.f32 %v4015, %v4085
    %v4174 = vsub.f32 %v4017, %v4122
    %v4175 = vsub.f32 %v4021, %v4085
    %v4176 = vsub.f32 %v4023, %v4122
    %v4177 = vsub.f32 %v4025, %v4085
    %v4178 = vsub.f32 %v4027, %v4122
    %v4179 = vsub.f32 %v4031, %v4085
    %v4180 = vsub.f32 %v4033, %v4122
    %v4181 = vsub.f32 %v4035, %v4085
    %v4182 = vsub.f32 %v4037, %v4122
    %v4183 = vsub.f32 %v4041, %v4085
    %v4184 = vsub.f32 %v4043, %v4122
    %v4185 = vsub.f32 %v4045, %v4085
    %v4186 = vsub.f32 %v4047, %v4122
    %v4187 = vmul.f32 %v4123, 1.442695
    %v4188 = vpow.pop %v4187
    %v4189 = vmul.f32 %v4124, 1.442695
    %v4190 = vpow.pop %v4189
    %v4191 = vmul.f32 %v4125, 1.442695
    %v4192 = vpow.pop %v4191
    %v4193 = vmul.f32 %v4126, 1.442695
    %v4194 = vpow.pop %v4193
    %v4195 = vmul.f32 %v4127, 1.442695
    %v4196 = vpow.pop %v4195
    %v4197 = vmul.f32 %v4128, 1.442695
    %v4198 = vpow.pop %v4197
    %v4199 = vmul.f32 %v4129, 1.442695
    %v4200 = vpow.pop %v4199
    %v4201 = vmul.f32 %v4130, 1.442695
    %v4202 = vpow.pop %v4201
    %v4203 = vmul.f32 %v4131, 1.442695
    %v4204 = vpow.pop %v4203
    %v4205 = vmul.f32 %v4132, 1.442695
    %v4206 = vpow.pop %v4205
    %v4207 = vmul.f32 %v4133, 1.442695
    %v4208 = vpow.pop %v4207
    %v4209 = vmul.f32 %v4134, 1.442695
    %v4210 = vpow.pop %v4209
    %v4211 = vmul.f32 %v4135, 1.442695
    %v4212 = vpow.pop %v4211
    %v4213 = vmul.f32 %v4136, 1.442695
    %v4214 = vpow.pop %v4213
    %v4215 = vmul.f32 %v4137, 1.442695
    %v4216 = vpow.pop %v4215
    %v4217 = vmul.f32 %v4138, 1.442695
    %v4218 = vpow.pop %v4217
    %v4219 = vmul.f32 %v4139, 1.442695
    %v4220 = vpow.pop %v4219
    %v4221 = vmul.f32 %v4140, 1.442695
    %v4222 = vpow.pop %v4221
    %v4223 = vmul.f32 %v4141, 1.442695
    %v4224 = vpow.pop %v4223
    %v4225 = vmul.f32 %v4142, 1.442695
    %v4226 = vpow.pop %v4225
    %v4227 = vmul.f32 %v4143, 1.442695
    %v4228 = vpow.pop %v4227
    %v4229 = vmul.f32 %v4144, 1.442695
    %v4230 = vpow.pop %v4229
    %v4231 = vmul.f32 %v4145, 1.442695
    %v4232 = vpow.pop %v4231
    %v4233 = vmul.f32 %v4146, 1.442695
    %v4234 = vpow.pop %v4233
    %v4235 = vmul.f32 %v4147, 1.442695
    %v4236 = vpow.pop %v4235
    %v4237 = vmul.f32 %v4148, 1.442695
    %v4238 = vpow.pop %v4237
    %v4239 = vmul.f32 %v4149, 1.442695
    %v4240 = vpow.pop %v4239
    %v4241 = vmul.f32 %v4150, 1.442695
    %v4242 = vpow.pop %v4241
    %v4243 = vmul.f32 %v4151, 1.442695
    %v4244 = vpow.pop %v4243
    %v4245 = vmul.f32 %v4152, 1.442695
    %v4246 = vpow.pop %v4245
    %v4247 = vmul.f32 %v4153, 1.442695
    %v4248 = vpow.pop %v4247
    %v4249 = vmul.f32 %v4154, 1.442695
    %v4250 = vpow.pop %v4249
    %v4251 = vmul.f32 %v4155, 1.442695
    %v4252 = vpow.pop %v4251
    %v4253 = vmul.f32 %v4156, 1.442695
    %v4254 = vpow.pop %v4253
    %v4255 = vmul.f32 %v4157, 1.442695
    %v4256 = vpow.pop %v4255
    %v4257 = vmul.f32 %v4158, 1.442695
    %v4258 = vpow.pop %v4257
    %v4259 = vmul.f32 %v4159, 1.442695
    %v4260 = vpow.pop %v4259
    %v4261 = vmul.f32 %v4160, 1.442695
    %v4262 = vpow.pop %v4261
    %v4263 = vmul.f32 %v4161, 1.442695
    %v4264 = vpow.pop %v4263
    %v4265 = vmul.f32 %v4162, 1.442695
    %v4266 = vpow.pop %v4265
    %v4267 = vmul.f32 %v4163, 1.442695
    %v4268 = vpow.pop %v4267
    %v4269 = vmul.f32 %v4164, 1.442695
    %v4270 = vpow.pop %v4269
    %v4271 = vmul.f32 %v4165, 1.442695
    %v4272 = vpow.pop %v4271
    %v4273 = vmul.f32 %v4166, 1.442695
    %v4274 = vpow.pop %v4273
    %v4275 = vmul.f32 %v4167, 1.442695
    %v4276 = vpow.pop %v4275
    %v4277 = vmul.f32 %v4168, 1.442695
    %v4278 = vpow.pop %v4277
    %v4279 = vmul.f32 %v4169, 1.442695
    %v4280 = vpow.pop %v4279
    %v4281 = vmul.f32 %v4170, 1.442695
    %v4282 = vpow.pop %v4281
    %v4283 = vmul.f32 %v4171, 1.442695
    %v4284 = vpow.pop %v4283
    %v4285 = vmul.f32 %v4172, 1.442695
    %v4286 = vpow.pop %v4285
    %v4287 = vmul.f32 %v4173, 1.442695
    %v4288 = vpow.pop %v4287
    %v4289 = vmul.f32 %v4174, 1.442695
    %v4290 = vpow.pop %v4289
    %v4291 = vmul.f32 %v4175, 1.442695
    %v4292 = vpow.pop %v4291
    %v4293 = vmul.f32 %v4176, 1.442695
    %v4294 = vpow.pop %v4293
    %v4295 = vmul.f32 %v4177, 1.442695
    %v4296 = vpow.pop %v4295
    %v4297 = vmul.f32 %v4178, 1.442695
    %v4298 = vpow.pop %v4297
    %v4299 = vmul.f32 %v4179, 1.442695
    %v4300 = vpow.pop %v4299
    %v4301 = vmul.f32 %v4180, 1.442695
    %v4302 = vpow.pop %v4301
    %v4303 = vmul.f32 %v4181, 1.442695
    %v4304 = vpow.pop %v4303
    %v4305 = vmul.f32 %v4182, 1.442695
    %v4306 = vpow.pop %v4305
    %v4307 = vmul.f32 %v4183, 1.442695
    %v4308 = vpow.pop %v4307
    %v4309 = vmul.f32 %v4184, 1.442695
    %v4310 = vpow.pop %v4309
    %v4311 = vmul.f32 %v4185, 1.442695
    %v4312 = vpow.pop %v4311
    %v4313 = vmul.f32 %v4186, 1.442695
    %v4314 = vpow.pop %v4313
    %v4315 = vadd.f32 %v4188, %v4192
    %v4316 = vadd.f32 %v4315, %v4196
    %v4317 = vadd.f32 %v4316, %v4200
    %v4318 = vadd.f32 %v4317, %v4204
    %v4319 = vadd.f32 %v4318, %v4208
    %v4320 = vadd.f32 %v4319, %v4212
    %v4321 = vadd.f32 %v4320, %v4216
    %v4322 = vadd.f32 %v4321, %v4220
    %v4323 = vadd.f32 %v4322, %v4224
    %v4324 = vadd.f32 %v4323, %v4228
    %v4325 = vadd.f32 %v4324, %v4232
    %v4326 = vadd.f32 %v4325, %v4236
    %v4327 = vadd.f32 %v4326, %v4240
    %v4328 = vadd.f32 %v4327, %v4244
    %v4329 = vadd.f32 %v4328, %v4248
    %v4330 = vadd.f32 %v4329, %v4252
    %v4331 = vadd.f32 %v4330, %v4256
    %v4332 = vadd.f32 %v4331, %v4260
    %v4333 = vadd.f32 %v4332, %v4264
    %v4334 = vadd.f32 %v4333, %v4268
    %v4335 = vadd.f32 %v4334, %v4272
    %v4336 = vadd.f32 %v4335, %v4276
    %v4337 = vadd.f32 %v4336, %v4280
    %v4338 = vadd.f32 %v4337, %v4284
    %v4339 = vadd.f32 %v4338, %v4288
    %v4340 = vadd.f32 %v4339, %v4292
    %v4341 = vadd.f32 %v4340, %v4296
    %v4342 = vadd.f32 %v4341, %v4300
    %v4343 = vadd.f32 %v4342, %v4304
    %v4344 = vadd.f32 %v4343, %v4308
    %v4345 = vadd.f32 %v4344, %v4312
    %v4346 = vrot.slane %v4345, 4
    %v4347 = vadd.f32 %v4345, %v4346
    %v4348 = vrot.slane %v4347, 2
    %v4349 = vadd.f32 %v4347, %v4348
    %v4350 = vrot.slane %v4349, 1
    %v4351 = vadd.f32 %v4349, %v4350
    %v4352 = vadd.f32 %v4190, %v4194
    %v4353 = vadd.f32 %v4352, %v4198
    %v4354 = vadd.f32 %v4353, %v4202
    %v4355 = vadd.f32 %v4354, %v4206
    %v4356 = vadd.f32 %v4355, %v4210
    %v4357 = vadd.f32 %v4356, %v4214
    %v4358 = vadd.f32 %v4357, %v4218
    %v4359 = vadd.f32 %v4358, %v4222
    %v4360 = vadd.f32 %v4359, %v4226
    %v4361 = vadd.f32 %v4360, %v4230
    %v4362 = vadd.f32 %v4361, %v4234
    %v4363 = vadd.f32 %v4362, %v4238
    %v4364 = vadd.f32 %v4363, %v4242
    %v4365 = vadd.f32 %v4364, %v4246
    %v4366 = vadd.f32 %v4365, %v4250
    %v4367 = vadd.f32 %v4366, %v4254
    %v4368 = vadd.f32 %v4367, %v4258
    %v4369 = vadd.f32 %v4368, %v4262
    %v4370 = vadd.f32 %v4369, %v4266
    %v4371 = vadd.f32 %v4370, %v4270
    %v4372 = vadd.f32 %v4371, %v4274
    %v4373 = vadd.f32 %v4372, %v4278
    %v4374 = vadd.f32 %v4373, %v4282
    %v4375 = vadd.f32 %v4374, %v4286
    %v4376 = vadd.f32 %v4375, %v4290
    %v4377 = vadd.f32 %v4376, %v4294
    %v4378 = vadd.f32 %v4377, %v4298
    %v4379 = vadd.f32 %v4378, %v4302
    %v4380 = vadd.f32 %v4379, %v4306
    %v4381 = vadd.f32 %v4380, %v4310
    %v4382 = vadd.f32 %v4381, %v4314
    %v4383 = vrot.slane %v4382, 4
    %v4384 = vadd.f32 %v4382, %v4383
    %v4385 = vrot.slane %v4384, 2
    %v4386 = vadd.f32 %v4384, %v4385
    %v4387 = vrot.slane %v4386, 1
    %v4388 = vadd.f32 %v4386, %v4387
    %v4389 = vpack.c.bf16 %v4192, %v4188
    %v4390 = vpack.c.bf16 %v4194, %v4190
    %v4391 = vpack.c.bf16 %v4200, %v4196
    %v4392 = vpack.c.bf16 %v4202, %v4198
    %v4393 = vpack.c.bf16 %v4208, %v4204
    %v4394 = vpack.c.bf16 %v4210, %v4206
    %v4395 = vpack.c.bf16 %v4216, %v4212
    %v4396 = vpack.c.bf16 %v4218, %v4214
    %v4397 = vpack.c.bf16 %v4224, %v4220
    %v4398 = vpack.c.bf16 %v4226, %v4222
    %v4399 = vpack.c.bf16 %v4232, %v4228
    %v4400 = vpack.c.bf16 %v4234, %v4230
    %v4401 = vpack.c.bf16 %v4240, %v4236
    %v4402 = vpack.c.bf16 %v4242, %v4238
    %v4403 = vpack.c.bf16 %v4248, %v4244
    %v4404 = vpack.c.bf16 %v4250, %v4246
    %v4405 = vpack.c.bf16 %v4256, %v4252
    %v4406 = vpack.c.bf16 %v4258, %v4254
    %v4407 = vpack.c.bf16 %v4264, %v4260
    %v4408 = vpack.c.bf16 %v4266, %v4262
    %v4409 = vpack.c.bf16 %v4272, %v4268
    %v4410 = vpack.c.bf16 %v4274, %v4270
    %v4411 = vpack.c.bf16 %v4280, %v4276
    %v4412 = vpack.c.bf16 %v4282, %v4278
    %v4413 = vpack.c.bf16 %v4288, %v4284
    %v4414 = vpack.c.bf16 %v4290, %v4286
    %v4415 = vpack.c.bf16 %v4296, %v4292
    %v4416 = vpack.c.bf16 %v4298, %v4294
    %v4417 = vpack.c.bf16 %v4304, %v4300
    %v4418 = vpack.c.bf16 %v4306, %v4302
    %v4419 = vpack.c.bf16 %v4312, %v4308
    %v4420 = vpack.c.bf16 %v4314, %v4310
    %4421 = vmatprep.subr.bf16.mxu0 %v4390
    %4422 = vmatpush1.bf16.msra.mxu0 %v4389
    %4423 = vmatprep.subr.bf16.mxu0 %v4392
    %4424 = vmatpush1.bf16.msra.mxu0 %v4391
    %4425 = vmatprep.subr.bf16.mxu0 %v4394
    %4426 = vmatpush1.bf16.msra.mxu0 %v4393
    %4427 = vmatprep.subr.bf16.mxu0 %v4396
    %4428 = vmatpush1.bf16.msra.mxu0 %v4395
    %4429 = vmatprep.subr.bf16.mxu0 %v4398
    %4430 = vmatpush1.bf16.msra.mxu0 %v4397
    %4431 = vmatprep.subr.bf16.mxu0 %v4400
    %4432 = vmatpush1.bf16.msra.mxu0 %v4399
    %4433 = vmatprep.subr.bf16.mxu0 %v4402
    %4434 = vmatpush1.bf16.msra.mxu0 %v4401
    %4435 = vmatprep.subr.bf16.mxu0 %v4404
    %4436 = vmatpush1.bf16.msra.mxu0 %v4403
    %4437 = vmatprep.subr.bf16.mxu0 %v4406
    %4438 = vmatpush1.bf16.msra.mxu0 %v4405
    %4439 = vmatprep.subr.bf16.mxu0 %v4408
    %4440 = vmatpush1.bf16.msra.mxu0 %v4407
    %4441 = vmatprep.subr.bf16.mxu0 %v4410
    %4442 = vmatpush1.bf16.msra.mxu0 %v4409
    %4443 = vmatprep.subr.bf16.mxu0 %v4412
    %4444 = vmatpush1.bf16.msra.mxu0 %v4411
    %4445 = vmatprep.subr.bf16.mxu0 %v4414
    %4446 = vmatpush1.bf16.msra.mxu0 %v4413
    %4447 = vmatprep.subr.bf16.mxu0 %v4416
    %4448 = vmatpush1.bf16.msra.mxu0 %v4415
    %4449 = vmatprep.subr.bf16.mxu0 %v4418
    %4450 = vmatpush1.bf16.msra.mxu0 %v4417
    %4451 = vmatprep.subr.bf16.mxu0 %v4420
    %4452 = vmatpush1.bf16.msra.mxu0 %v4419
    %4453 = vmatprep.mubr.bf16.mxu0 %v898
    %4454 = vmatmul.mubr.bf16.gmra.mrb[0].mxu0 %v897
    %v4455 = vpop.f32.mrb[0].mxu0
    %v4456 = vadd.f32 0.0, %v4455
    %v4457 = vpop.f32.mrb[0].mxu0
    %v4458 = vadd.f32 0.0, %v4457
    %v4459 = vpop.f32.mrb[0].mxu0
    %v4460 = vadd.f32 0.0, %v4459
    %v4461 = vpop.f32.mrb[0].mxu0
    %v4462 = vadd.f32 0.0, %v4461
    %4463 = vmatprep.mubr.bf16.mxu0 %v902
    %4464 = vmatmul.mubr.bf16.gmra.mrb[0].mxu0 %v901
    %v4465 = vpop.f32.mrb[0].mxu0
    %v4466 = vadd.f32 0.0, %v4465
    %v4467 = vpop.f32.mrb[0].mxu0
    %v4468 = vadd.f32 0.0, %v4467
    %v4469 = vpop.f32.mrb[0].mxu0
    %v4470 = vadd.f32 0.0, %v4469
    %v4471 = vpop.f32.mrb[0].mxu0
    %v4472 = vadd.f32 0.0, %v4471
    %4473 = vdwg.mxu0
    %v4474 = vrcp.pop %v4351
    %v4475 = vrcp.pop %v4388
    %v4476 = vmul.f32 %v4456, %v4474
    %v4477 = vmul.f32 %v4458, %v4475
    %v4478 = vmul.f32 %v4460, %v4474
    %v4479 = vmul.f32 %v4462, %v4475
    %v4480 = vmul.f32 %v4466, %v4474
    %v4481 = vmul.f32 %v4468, %v4475
    %v4482 = vmul.f32 %v4470, %v4474
    %v4483 = vmul.f32 %v4472, %v4475
    %v4484 = vpack.c.bf16 %v4478, %v4476
    %v4485 = vpack.c.bf16 %v4479, %v4477
    %v4486 = vpack.c.bf16 %v4482, %v4480
    %v4487 = vpack.c.bf16 %v4483, %v4481
    %4488 = vxpose.xlu0.c.b16.start [1/8] %v873, 128
    %4489 = vxpose.xlu0.c.b16.cont [2/8] %v877, 128
    %4490 = vxpose.xlu0.c.b16.cont [3/8] 0, 128
    %4491 = vxpose.xlu0.c.b16.cont [4/8] 0, 128
    %4492 = vxpose.xlu0.c.b16.cont [5/8] 0, 128
    %4493 = vxpose.xlu0.c.b16.cont [6/8] 0, 128
    %4494 = vxpose.xlu0.c.b16.cont [7/8] 0, 128
    %4495 = vxpose.xlu0.c.b16.end [8/8] 0, 128
    %v4496 = vpop.trf.xlu0
    %v4497 = vpop.trf.xlu0
    %v4498 = vpop.trf.xlu0
    %v4499 = vpop.trf.xlu0
    %v4500 = vpop.trf.xlu0
    %v4501 = vpop.trf.xlu0
    %v4502 = vpop.trf.xlu0
    %v4503 = vpop.trf.xlu0
    %4504 = vxpose.xlu0.c.b16.start [1/8] %v874, 128
    %4505 = vxpose.xlu0.c.b16.cont [2/8] %v878, 128
    %4506 = vxpose.xlu0.c.b16.cont [3/8] 0, 128
    %4507 = vxpose.xlu0.c.b16.cont [4/8] 0, 128
    %4508 = vxpose.xlu0.c.b16.cont [5/8] 0, 128
    %4509 = vxpose.xlu0.c.b16.cont [6/8] 0, 128
    %4510 = vxpose.xlu0.c.b16.cont [7/8] 0, 128
    %4511 = vxpose.xlu0.c.b16.end [8/8] 0, 128
    %v4512 = vpop.trf.xlu0
    %v4513 = vpop.trf.xlu0
    %v4514 = vpop.trf.xlu0
    %v4515 = vpop.trf.xlu0
    %v4516 = vpop.trf.xlu0
    %v4517 = vpop.trf.xlu0
    %v4518 = vpop.trf.xlu0
    %v4519 = vpop.trf.xlu0
    %v4521 = vsel %vm959, %v4496, 0
    %v4524 = vsel %vm959, %v4497, 0
    %v4527 = vsel %vm959, %v4498, 0
    %v4530 = vsel %vm959, %v4499, 0
    %v4533 = vsel %vm959, %v4500, 0
    %v4536 = vsel %vm959, %v4501, 0
    %v4539 = vsel %vm959, %v4502, 0
    %v4542 = vsel %vm959, %v4503, 0
    %v4545 = vsel %vm959, %v4512, 0
    %v4548 = vsel %vm959, %v4513, 0
    %v4551 = vsel %vm959, %v4514, 0
    %v4554 = vsel %vm959, %v4515, 0
    %v4557 = vsel %vm959, %v4516, 0
    %v4560 = vsel %vm959, %v4517, 0
    %v4563 = vsel %vm959, %v4518, 0
    %v4566 = vsel %vm959, %v4519, 0
    %4568 = vmatprep.subr.bf16.mxu0 %v842
    %4569 = vmatpush1.bf16.msra.mxu0 %v841
    %4570 = vmatprep.subr.bf16.mxu0 %v846
    %4571 = vmatpush1.bf16.msra.mxu0 %v845
    %4572 = vmatprep.subr.bf16.mxu0 0
    %4573 = vmatpush1.bf16.msra.mxu0 0
    %4574 = vmatprep.subr.bf16.mxu0 0
    %4575 = vmatpush1.bf16.msra.mxu0 0
    %4576 = vmatprep.subr.bf16.mxu0 0
    %4577 = vmatpush1.bf16.msra.mxu0 0
    %4578 = vmatprep.subr.bf16.mxu0 0
    %4579 = vmatpush1.bf16.msra.mxu0 0
    %4580 = vmatprep.subr.bf16.mxu0 0
    %4581 = vmatpush1.bf16.msra.mxu0 0
    %4582 = vmatprep.subr.bf16.mxu0 0
    %4583 = vmatpush1.bf16.msra.mxu0 0
    %4584 = vmatprep.subr.bf16.mxu0 0
    %4585 = vmatpush1.bf16.msra.mxu0 0
    %4586 = vmatprep.subr.bf16.mxu0 0
    %4587 = vmatpush1.bf16.msra.mxu0 0
    %4588 = vmatprep.subr.bf16.mxu0 0
    %4589 = vmatpush1.bf16.msra.mxu0 0
    %4590 = vmatprep.subr.bf16.mxu0 0
    %4591 = vmatpush1.bf16.msra.mxu0 0
    %4592 = vmatprep.subr.bf16.mxu0 0
    %4593 = vmatpush1.bf16.msra.mxu0 0
    %4594 = vmatprep.subr.bf16.mxu0 0
    %4595 = vmatpush1.bf16.msra.mxu0 0
    %4596 = vmatprep.subr.bf16.mxu0 0
    %4597 = vmatpush1.bf16.msra.mxu0 0
    %4598 = vmatprep.subr.bf16.mxu0 0
    %4599 = vmatpush1.bf16.msra.mxu0 0
    %4600 = vmatprep.mubr.bf16.mxu0 0
    %4601 = vmatmul.mubr.bf16.gmra.mrb[0].mxu0 %v4521
    %v4602 = vpop.f32.mrb[0].mxu0
    %v4603 = vadd.f32 0.0, %v4602
    %v4604 = vpop.f32.mrb[0].mxu0
    %v4605 = vadd.f32 0.0, %v4604
    %v4606 = vpop.f32.mrb[0].mxu0
    %v4607 = vadd.f32 0.0, %v4606
    %v4608 = vpop.f32.mrb[0].mxu0
    %v4609 = vadd.f32 0.0, %v4608
    %4610 = vmatprep.mubr.bf16.mxu0 0
    %4611 = vmatmul.mubr.bf16.gmra.mrb[0].mxu0 %v4524
    %v4612 = vpop.f32.mrb[0].mxu0
    %v4613 = vadd.f32 0.0, %v4612
    %v4614 = vpop.f32.mrb[0].mxu0
    %v4615 = vadd.f32 0.0, %v4614
    %v4616 = vpop.f32.mrb[0].mxu0
    %v4617 = vadd.f32 0.0, %v4616
    %v4618 = vpop.f32.mrb[0].mxu0
    %v4619 = vadd.f32 0.0, %v4618
    %4620 = vmatprep.mubr.bf16.mxu0 0
    %4621 = vmatmul.mubr.bf16.gmra.mrb[0].mxu0 %v4527
    %v4622 = vpop.f32.mrb[0].mxu0
    %v4623 = vadd.f32 0.0, %v4622
    %v4624 = vpop.f32.mrb[0].mxu0
    %v4625 = vadd.f32 0.0, %v4624
    %v4626 = vpop.f32.mrb[0].mxu0
    %v4627 = vadd.f32 0.0, %v4626
    %v4628 = vpop.f32.mrb[0].mxu0
    %v4629 = vadd.f32 0.0, %v4628
    %4630 = vmatprep.mubr.bf16.mxu0 0
    %4631 = vmatmul.mubr.bf16.gmra.mrb[0].mxu0 %v4530
    %v4632 = vpop.f32.mrb[0].mxu0
    %v4633 = vadd.f32 0.0, %v4632
    %v4634 = vpop.f32.mrb[0].mxu0
    %v4635 = vadd.f32 0.0, %v4634
    %v4636 = vpop.f32.mrb[0].mxu0
    %v4637 = vadd.f32 0.0, %v4636
    %v4638 = vpop.f32.mrb[0].mxu0
    %v4639 = vadd.f32 0.0, %v4638
    %4640 = vmatprep.mubr.bf16.mxu0 0
    %4641 = vmatmul.mubr.bf16.gmra.mrb[0].mxu0 %v4533
    %v4642 = vpop.f32.mrb[0].mxu0
    %v4643 = vadd.f32 0.0, %v4642
    %v4644 = vpop.f32.mrb[0].mxu0
    %v4645 = vadd.f32 0.0, %v4644
    %v4646 = vpop.f32.mrb[0].mxu0
    %v4647 = vadd.f32 0.0, %v4646
    %v4648 = vpop.f32.mrb[0].mxu0
    %v4649 = vadd.f32 0.0, %v4648
    %4650 = vmatprep.mubr.bf16.mxu0 0
    %4651 = vmatmul.mubr.bf16.gmra.mrb[0].mxu0 %v4536
    %v4652 = vpop.f32.mrb[0].mxu0
    %v4653 = vadd.f32 0.0, %v4652
    %v4654 = vpop.f32.mrb[0].mxu0
    %v4655 = vadd.f32 0.0, %v4654
    %v4656 = vpop.f32.mrb[0].mxu0
    %v4657 = vadd.f32 0.0, %v4656
    %v4658 = vpop.f32.mrb[0].mxu0
    %v4659 = vadd.f32 0.0, %v4658
    %4660 = vmatprep.mubr.bf16.mxu0 0
    %4661 = vmatmul.mubr.bf16.gmra.mrb[0].mxu0 %v4539
    %v4662 = vpop.f32.mrb[0].mxu0
    %v4663 = vadd.f32 0.0, %v4662
    %v4664 = vpop.f32.mrb[0].mxu0
    %v4665 = vadd.f32 0.0, %v4664
    %v4666 = vpop.f32.mrb[0].mxu0
    %v4667 = vadd.f32 0.0, %v4666
    %v4668 = vpop.f32.mrb[0].mxu0
    %v4669 = vadd.f32 0.0, %v4668
    %4670 = vmatprep.mubr.bf16.mxu0 0
    %4671 = vmatmul.mubr.bf16.gmra.mrb[0].mxu0 %v4542
    %v4672 = vpop.f32.mrb[0].mxu0
    %v4673 = vadd.f32 0.0, %v4672
    %v4674 = vpop.f32.mrb[0].mxu0
    %v4675 = vadd.f32 0.0, %v4674
    %v4676 = vpop.f32.mrb[0].mxu0
    %v4677 = vadd.f32 0.0, %v4676
    %v4678 = vpop.f32.mrb[0].mxu0
    %v4679 = vadd.f32 0.0, %v4678
    %4680 = vmatprep.mubr.bf16.mxu0 0
    %4681 = vmatmul.mubr.bf16.gmra.mrb[0].mxu0 %v4545
    %v4682 = vpop.f32.mrb[0].mxu0
    %v4683 = vadd.f32 0.0, %v4682
    %v4684 = vpop.f32.mrb[0].mxu0
    %v4685 = vadd.f32 0.0, %v4684
    %v4686 = vpop.f32.mrb[0].mxu0
    %v4687 = vadd.f32 0.0, %v4686
    %v4688 = vpop.f32.mrb[0].mxu0
    %v4689 = vadd.f32 0.0, %v4688
    %4690 = vmatprep.mubr.bf16.mxu0 0
    %4691 = vmatmul.mubr.bf16.gmra.mrb[0].mxu0 %v4548
    %v4692 = vpop.f32.mrb[0].mxu0
    %v4693 = vadd.f32 0.0, %v4692
    %v4694 = vpop.f32.mrb[0].mxu0
    %v4695 = vadd.f32 0.0, %v4694
    %v4696 = vpop.f32.mrb[0].mxu0
    %v4697 = vadd.f32 0.0, %v4696
    %v4698 = vpop.f32.mrb[0].mxu0
    %v4699 = vadd.f32 0.0, %v4698
    %4700 = vmatprep.mubr.bf16.mxu0 0
    %4701 = vmatmul.mubr.bf16.gmra.mrb[0].mxu0 %v4551
    %v4702 = vpop.f32.mrb[0].mxu0
    %v4703 = vadd.f32 0.0, %v4702
    %v4704 = vpop.f32.mrb[0].mxu0
    %v4705 = vadd.f32 0.0, %v4704
    %v4706 = vpop.f32.mrb[0].mxu0
    %v4707 = vadd.f32 0.0, %v4706
    %v4708 = vpop.f32.mrb[0].mxu0
    %v4709 = vadd.f32 0.0, %v4708
    %4710 = vmatprep.mubr.bf16.mxu0 0
    %4711 = vmatmul.mubr.bf16.gmra.mrb[0].mxu0 %v4554
    %v4712 = vpop.f32.mrb[0].mxu0
    %v4713 = vadd.f32 0.0, %v4712
    %v4714 = vpop.f32.mrb[0].mxu0
    %v4715 = vadd.f32 0.0, %v4714
    %v4716 = vpop.f32.mrb[0].mxu0
    %v4717 = vadd.f32 0.0, %v4716
    %v4718 = vpop.f32.mrb[0].mxu0
    %v4719 = vadd.f32 0.0, %v4718
    %4720 = vmatprep.mubr.bf16.mxu0 0
    %4721 = vmatmul.mubr.bf16.gmra.mrb[0].mxu0 %v4557
    %v4722 = vpop.f32.mrb[0].mxu0
    %v4723 = vadd.f32 0.0, %v4722
    %v4724 = vpop.f32.mrb[0].mxu0
    %v4725 = vadd.f32 0.0, %v4724
    %v4726 = vpop.f32.mrb[0].mxu0
    %v4727 = vadd.f32 0.0, %v4726
    %v4728 = vpop.f32.mrb[0].mxu0
    %v4729 = vadd.f32 0.0, %v4728
    %4730 = vmatprep.mubr.bf16.mxu0 0
    %4731 = vmatmul.mubr.bf16.gmra.mrb[0].mxu0 %v4560
    %v4732 = vpop.f32.mrb[0].mxu0
    %v4733 = vadd.f32 0.0, %v4732
    %v4734 = vpop.f32.mrb[0].mxu0
    %v4735 = vadd.f32 0.0, %v4734
    %v4736 = vpop.f32.mrb[0].mxu0
    %v4737 = vadd.f32 0.0, %v4736
    %v4738 = vpop.f32.mrb[0].mxu0
    %v4739 = vadd.f32 0.0, %v4738
    %4740 = vmatprep.mubr.bf16.mxu0 0
    %4741 = vmatmul.mubr.bf16.gmra.mrb[0].mxu0 %v4563
    %v4742 = vpop.f32.mrb[0].mxu0
    %v4743 = vadd.f32 0.0, %v4742
    %v4744 = vpop.f32.mrb[0].mxu0
    %v4745 = vadd.f32 0.0, %v4744
    %v4746 = vpop.f32.mrb[0].mxu0
    %v4747 = vadd.f32 0.0, %v4746
    %v4748 = vpop.f32.mrb[0].mxu0
    %v4749 = vadd.f32 0.0, %v4748
    %4750 = vmatprep.mubr.bf16.mxu0 0
    %4751 = vmatmul.mubr.bf16.gmra.mrb[0].mxu0 %v4566
    %v4752 = vpop.f32.mrb[0].mxu0
    %v4753 = vadd.f32 0.0, %v4752
    %v4754 = vpop.f32.mrb[0].mxu0
    %v4755 = vadd.f32 0.0, %v4754
    %v4756 = vpop.f32.mrb[0].mxu0
    %v4757 = vadd.f32 0.0, %v4756
    %v4758 = vpop.f32.mrb[0].mxu0
    %v4759 = vadd.f32 0.0, %v4758
    %4760 = vdwg.mxu0
    %v4761 = vmax.f32 %v4603, %v4613
    %v4762 = vmax.f32 %v4607, %v4617
    %v4763 = vmax.f32 %v4761, %v4623
    %v4764 = vmax.f32 %v4762, %v4627
    %v4765 = vmax.f32 %v4763, %v4633
    %v4766 = vmax.f32 %v4764, %v4637
    %v4767 = vmax.f32 %v4765, %v4643
    %v4768 = vmax.f32 %v4766, %v4647
    %v4769 = vmax.f32 %v4767, %v4653
    %v4770 = vmax.f32 %v4768, %v4657
    %v4771 = vmax.f32 %v4769, %v4663
    %v4772 = vmax.f32 %v4770, %v4667
    %v4773 = vmax.f32 %v4771, %v4673
    %v4774 = vmax.f32 %v4772, %v4677
    %v4775 = vmax.f32 %v4773, %v4683
    %v4776 = vmax.f32 %v4774, %v4687
    %v4777 = vmax.f32 %v4775, %v4693
    %v4778 = vmax.f32 %v4776, %v4697
    %v4779 = vmax.f32 %v4777, %v4703
    %v4780 = vmax.f32 %v4778, %v4707
    %v4781 = vmax.f32 %v4779, %v4713
    %v4782 = vmax.f32 %v4780, %v4717
    %v4783 = vmax.f32 %v4781, %v4723
    %v4784 = vmax.f32 %v4782, %v4727
    %v4785 = vmax.f32 %v4783, %v4733
    %v4786 = vmax.f32 %v4784, %v4737
    %v4787 = vmax.f32 %v4785, %v4743
    %v4788 = vmax.f32 %v4786, %v4747
    %v4789 = vmax.f32 %v4787, %v4753
    %v4790 = vmax.f32 %v4788, %v4757
    %v4791 = vmax.f32 %v4789, %v4790
    %v4792 = vrot.slane %v4791, 4
    %v4793 = vmax.f32 %v4791, %v4792
    %v4794 = vrot.slane %v4793, 2
    %v4795 = vmax.f32 %v4793, %v4794
    %v4796 = vrot.slane %v4795, 1
    %v4797 = vmax.f32 %v4795, %v4796
    %v4798 = vmax.f32 %v4605, %v4615
    %v4799 = vmax.f32 %v4609, %v4619
    %v4800 = vmax.f32 %v4798, %v4625
    %v4801 = vmax.f32 %v4799, %v4629
    %v4802 = vmax.f32 %v4800, %v4635
    %v4803 = vmax.f32 %v4801, %v4639
    %v4804 = vmax.f32 %v4802, %v4645
    %v4805 = vmax.f32 %v4803, %v4649
    %v4806 = vmax.f32 %v4804, %v4655
    %v4807 = vmax.f32 %v4805, %v4659
    %v4808 = vmax.f32 %v4806, %v4665
    %v4809 = vmax.f32 %v4807, %v4669
    %v4810 = vmax.f32 %v4808, %v4675
    %v4811 = vmax.f32 %v4809, %v4679
    %v4812 = vmax.f32 %v4810, %v4685
    %v4813 = vmax.f32 %v4811, %v4689
    %v4814 = vmax.f32 %v4812, %v4695
    %v4815 = vmax.f32 %v4813, %v4699
    %v4816 = vmax.f32 %v4814, %v4705
    %v4817 = vmax.f32 %v4815, %v4709
    %v4818 = vmax.f32 %v4816, %v4715
    %v4819 = vmax.f32 %v4817, %v4719
    %v4820 = vmax.f32 %v4818, %v4725
    %v4821 = vmax.f32 %v4819, %v4729
    %v4822 = vmax.f32 %v4820, %v4735
    %v4823 = vmax.f32 %v4821, %v4739
    %v4824 = vmax.f32 %v4822, %v4745
    %v4825 = vmax.f32 %v4823, %v4749
    %v4826 = vmax.f32 %v4824, %v4755
    %v4827 = vmax.f32 %v4825, %v4759
    %v4828 = vmax.f32 %v4826, %v4827
    %v4829 = vrot.slane %v4828, 4
    %v4830 = vmax.f32 %v4828, %v4829
    %v4831 = vrot.slane %v4830, 2
    %v4832 = vmax.f32 %v4830, %v4831
    %v4833 = vrot.slane %v4832, 1
    %v4834 = vmax.f32 %v4832, %v4833
    %v4835 = vsub.f32 %v4603, %v4797
    %v4836 = vsub.f32 %v4605, %v4834
    %v4837 = vsub.f32 %v4607, %v4797
    %v4838 = vsub.f32 %v4609, %v4834
    %v4839 = vsub.f32 %v4613, %v4797
    %v4840 = vsub.f32 %v4615, %v4834
    %v4841 = vsub.f32 %v4617, %v4797
    %v4842 = vsub.f32 %v4619, %v4834
    %v4843 = vsub.f32 %v4623, %v4797
    %v4844 = vsub.f32 %v4625, %v4834
    %v4845 = vsub.f32 %v4627, %v4797
    %v4846 = vsub.f32 %v4629, %v4834
    %v4847 = vsub.f32 %v4633, %v4797
    %v4848 = vsub.f32 %v4635, %v4834
    %v4849 = vsub.f32 %v4637, %v4797
    %v4850 = vsub.f32 %v4639, %v4834
    %v4851 = vsub.f32 %v4643, %v4797
    %v4852 = vsub.f32 %v4645, %v4834
    %v4853 = vsub.f32 %v4647, %v4797
    %v4854 = vsub.f32 %v4649, %v4834
    %v4855 = vsub.f32 %v4653, %v4797
    %v4856 = vsub.f32 %v4655, %v4834
    %v4857 = vsub.f32 %v4657, %v4797
    %v4858 = vsub.f32 %v4659, %v4834
    %v4859 = vsub.f32 %v4663, %v4797
    %v4860 = vsub.f32 %v4665, %v4834
    %v4861 = vsub.f32 %v4667, %v4797
    %v4862 = vsub.f32 %v4669, %v4834
    %v4863 = vsub.f32 %v4673, %v4797
    %v4864 = vsub.f32 %v4675, %v4834
    %v4865 = vsub.f32 %v4677, %v4797
    %v4866 = vsub.f32 %v4679, %v4834
    %v4867 = vsub.f32 %v4683, %v4797
    %v4868 = vsub.f32 %v4685, %v4834
    %v4869 = vsub.f32 %v4687, %v4797
    %v4870 = vsub.f32 %v4689, %v4834
    %v4871 = vsub.f32 %v4693, %v4797
    %v4872 = vsub.f32 %v4695, %v4834
    %v4873 = vsub.f32 %v4697, %v4797
    %v4874 = vsub.f32 %v4699, %v4834
    %v4875 = vsub.f32 %v4703, %v4797
    %v4876 = vsub.f32 %v4705, %v4834
    %v4877 = vsub.f32 %v4707, %v4797
    %v4878 = vsub.f32 %v4709, %v4834
    %v4879 = vsub.f32 %v4713, %v4797
    %v4880 = vsub.f32 %v4715, %v4834
    %v4881 = vsub.f32 %v4717, %v4797
    %v4882 = vsub.f32 %v4719, %v4834
    %v4883 = vsub.f32 %v4723, %v4797
    %v4884 = vsub.f32 %v4725, %v4834
    %v4885 = vsub.f32 %v4727, %v4797
    %v4886 = vsub.f32 %v4729, %v4834
    %v4887 = vsub.f32 %v4733, %v4797
    %v4888 = vsub.f32 %v4735, %v4834
    %v4889 = vsub.f32 %v4737, %v4797
    %v4890 = vsub.f32 %v4739, %v4834
    %v4891 = vsub.f32 %v4743, %v4797
    %v4892 = vsub.f32 %v4745, %v4834
    %v4893 = vsub.f32 %v4747, %v4797
    %v4894 = vsub.f32 %v4749, %v4834
    %v4895 = vsub.f32 %v4753, %v4797
    %v4896 = vsub.f32 %v4755, %v4834
    %v4897 = vsub.f32 %v4757, %v4797
    %v4898 = vsub.f32 %v4759, %v4834
    %v4899 = vmul.f32 %v4835, 1.442695
    %v4900 = vpow.pop %v4899
    %v4901 = vmul.f32 %v4836, 1.442695
    %v4902 = vpow.pop %v4901
    %v4903 = vmul.f32 %v4837, 1.442695
    %v4904 = vpow.pop %v4903
    %v4905 = vmul.f32 %v4838, 1.442695
    %v4906 = vpow.pop %v4905
    %v4907 = vmul.f32 %v4839, 1.442695
    %v4908 = vpow.pop %v4907
    %v4909 = vmul.f32 %v4840, 1.442695
    %v4910 = vpow.pop %v4909
    %v4911 = vmul.f32 %v4841, 1.442695
    %v4912 = vpow.pop %v4911
    %v4913 = vmul.f32 %v4842, 1.442695
    %v4914 = vpow.pop %v4913
    %v4915 = vmul.f32 %v4843, 1.442695
    %v4916 = vpow.pop %v4915
    %v4917 = vmul.f32 %v4844, 1.442695
    %v4918 = vpow.pop %v4917
    %v4919 = vmul.f32 %v4845, 1.442695
    %v4920 = vpow.pop %v4919
    %v4921 = vmul.f32 %v4846, 1.442695
    %v4922 = vpow.pop %v4921
    %v4923 = vmul.f32 %v4847, 1.442695
    %v4924 = vpow.pop %v4923
    %v4925 = vmul.f32 %v4848, 1.442695
    %v4926 = vpow.pop %v4925
    %v4927 = vmul.f32 %v4849, 1.442695
    %v4928 = vpow.pop %v4927
    %v4929 = vmul.f32 %v4850, 1.442695
    %v4930 = vpow.pop %v4929
    %v4931 = vmul.f32 %v4851, 1.442695
    %v4932 = vpow.pop %v4931
    %v4933 = vmul.f32 %v4852, 1.442695
    %v4934 = vpow.pop %v4933
    %v4935 = vmul.f32 %v4853, 1.442695
    %v4936 = vpow.pop %v4935
    %v4937 = vmul.f32 %v4854, 1.442695
    %v4938 = vpow.pop %v4937
    %v4939 = vmul.f32 %v4855, 1.442695
    %v4940 = vpow.pop %v4939
    %v4941 = vmul.f32 %v4856, 1.442695
    %v4942 = vpow.pop %v4941
    %v4943 = vmul.f32 %v4857, 1.442695
    %v4944 = vpow.pop %v4943
    %v4945 = vmul.f32 %v4858, 1.442695
    %v4946 = vpow.pop %v4945
    %v4947 = vmul.f32 %v4859, 1.442695
    %v4948 = vpow.pop %v4947
    %v4949 = vmul.f32 %v4860, 1.442695
    %v4950 = vpow.pop %v4949
    %v4951 = vmul.f32 %v4861, 1.442695
    %v4952 = vpow.pop %v4951
    %v4953 = vmul.f32 %v4862, 1.442695
    %v4954 = vpow.pop %v4953
    %v4955 = vmul.f32 %v4863, 1.442695
    %v4956 = vpow.pop %v4955
    %v4957 = vmul.f32 %v4864, 1.442695
    %v4958 = vpow.pop %v4957
    %v4959 = vmul.f32 %v4865, 1.442695
    %v4960 = vpow.pop %v4959
    %v4961 = vmul.f32 %v4866, 1.442695
    %v4962 = vpow.pop %v4961
    %v4963 = vmul.f32 %v4867, 1.442695
    %v4964 = vpow.pop %v4963
    %v4965 = vmul.f32 %v4868, 1.442695
    %v4966 = vpow.pop %v4965
    %v4967 = vmul.f32 %v4869, 1.442695
    %v4968 = vpow.pop %v4967
    %v4969 = vmul.f32 %v4870, 1.442695
    %v4970 = vpow.pop %v4969
    %v4971 = vmul.f32 %v4871, 1.442695
    %v4972 = vpow.pop %v4971
    %v4973 = vmul.f32 %v4872, 1.442695
    %v4974 = vpow.pop %v4973
    %v4975 = vmul.f32 %v4873, 1.442695
    %v4976 = vpow.pop %v4975
    %v4977 = vmul.f32 %v4874, 1.442695
    %v4978 = vpow.pop %v4977
    %v4979 = vmul.f32 %v4875, 1.442695
    %v4980 = vpow.pop %v4979
    %v4981 = vmul.f32 %v4876, 1.442695
    %v4982 = vpow.pop %v4981
    %v4983 = vmul.f32 %v4877, 1.442695
    %v4984 = vpow.pop %v4983
    %v4985 = vmul.f32 %v4878, 1.442695
    %v4986 = vpow.pop %v4985
    %v4987 = vmul.f32 %v4879, 1.442695
    %v4988 = vpow.pop %v4987
    %v4989 = vmul.f32 %v4880, 1.442695
    %v4990 = vpow.pop %v4989
    %v4991 = vmul.f32 %v4881, 1.442695
    %v4992 = vpow.pop %v4991
    %v4993 = vmul.f32 %v4882, 1.442695
    %v4994 = vpow.pop %v4993
    %v4995 = vmul.f32 %v4883, 1.442695
    %v4996 = vpow.pop %v4995
    %v4997 = vmul.f32 %v4884, 1.442695
    %v4998 = vpow.pop %v4997
    %v4999 = vmul.f32 %v4885, 1.442695
    %v5000 = vpow.pop %v4999
    %v5001 = vmul.f32 %v4886, 1.442695
    %v5002 = vpow.pop %v5001
    %v5003 = vmul.f32 %v4887, 1.442695
    %v5004 = vpow.pop %v5003
    %v5005 = vmul.f32 %v4888, 1.442695
    %v5006 = vpow.pop %v5005
    %v5007 = vmul.f32 %v4889, 1.442695
    %v5008 = vpow.pop %v5007
    %v5009 = vmul.f32 %v4890, 1.442695
    %v5010 = vpow.pop %v5009
    %v5011 = vmul.f32 %v4891, 1.442695
    %v5012 = vpow.pop %v5011
    %v5013 = vmul.f32 %v4892, 1.442695
    %v5014 = vpow.pop %v5013
    %v5015 = vmul.f32 %v4893, 1.442695
    %v5016 = vpow.pop %v5015
    %v5017 = vmul.f32 %v4894, 1.442695
    %v5018 = vpow.pop %v5017
    %v5019 = vmul.f32 %v4895, 1.442695
    %v5020 = vpow.pop %v5019
    %v5021 = vmul.f32 %v4896, 1.442695
    %v5022 = vpow.pop %v5021
    %v5023 = vmul.f32 %v4897, 1.442695
    %v5024 = vpow.pop %v5023
    %v5025 = vmul.f32 %v4898, 1.442695
    %v5026 = vpow.pop %v5025
    %v5027 = vadd.f32 %v4900, %v4904
    %v5028 = vadd.f32 %v5027, %v4908
    %v5029 = vadd.f32 %v5028, %v4912
    %v5030 = vadd.f32 %v5029, %v4916
    %v5031 = vadd.f32 %v5030, %v4920
    %v5032 = vadd.f32 %v5031, %v4924
    %v5033 = vadd.f32 %v5032, %v4928
    %v5034 = vadd.f32 %v5033, %v4932
    %v5035 = vadd.f32 %v5034, %v4936
    %v5036 = vadd.f32 %v5035, %v4940
    %v5037 = vadd.f32 %v5036, %v4944
    %v5038 = vadd.f32 %v5037, %v4948
    %v5039 = vadd.f32 %v5038, %v4952
    %v5040 = vadd.f32 %v5039, %v4956
    %v5041 = vadd.f32 %v5040, %v4960
    %v5042 = vadd.f32 %v5041, %v4964
    %v5043 = vadd.f32 %v5042, %v4968
    %v5044 = vadd.f32 %v5043, %v4972
    %v5045 = vadd.f32 %v5044, %v4976
    %v5046 = vadd.f32 %v5045, %v4980
    %v5047 = vadd.f32 %v5046, %v4984
    %v5048 = vadd.f32 %v5047, %v4988
    %v5049 = vadd.f32 %v5048, %v4992
    %v5050 = vadd.f32 %v5049, %v4996
    %v5051 = vadd.f32 %v5050, %v5000
    %v5052 = vadd.f32 %v5051, %v5004
    %v5053 = vadd.f32 %v5052, %v5008
    %v5054 = vadd.f32 %v5053, %v5012
    %v5055 = vadd.f32 %v5054, %v5016
    %v5056 = vadd.f32 %v5055, %v5020
    %v5057 = vadd.f32 %v5056, %v5024
    %v5058 = vrot.slane %v5057, 4
    %v5059 = vadd.f32 %v5057, %v5058
    %v5060 = vrot.slane %v5059, 2
    %v5061 = vadd.f32 %v5059, %v5060
    %v5062 = vrot.slane %v5061, 1
    %v5063 = vadd.f32 %v5061, %v5062
    %v5064 = vadd.f32 %v4902, %v4906
    %v5065 = vadd.f32 %v5064, %v4910
    %v5066 = vadd.f32 %v5065, %v4914
    %v5067 = vadd.f32 %v5066, %v4918
    %v5068 = vadd.f32 %v5067, %v4922
    %v5069 = vadd.f32 %v5068, %v4926
    %v5070 = vadd.f32 %v5069, %v4930
    %v5071 = vadd.f32 %v5070, %v4934
    %v5072 = vadd.f32 %v5071, %v4938
    %v5073 = vadd.f32 %v5072, %v4942
    %v5074 = vadd.f32 %v5073, %v4946
    %v5075 = vadd.f32 %v5074, %v4950
    %v5076 = vadd.f32 %v5075, %v4954
    %v5077 = vadd.f32 %v5076, %v4958
    %v5078 = vadd.f32 %v5077, %v4962
    %v5079 = vadd.f32 %v5078, %v4966
    %v5080 = vadd.f32 %v5079, %v4970
    %v5081 = vadd.f32 %v5080, %v4974
    %v5082 = vadd.f32 %v5081, %v4978
    %v5083 = vadd.f32 %v5082, %v4982
    %v5084 = vadd.f32 %v5083, %v4986
    %v5085 = vadd.f32 %v5084, %v4990
    %v5086 = vadd.f32 %v5085, %v4994
    %v5087 = vadd.f32 %v5086, %v4998
    %v5088 = vadd.f32 %v5087, %v5002
    %v5089 = vadd.f32 %v5088, %v5006
    %v5090 = vadd.f32 %v5089, %v5010
    %v5091 = vadd.f32 %v5090, %v5014
    %v5092 = vadd.f32 %v5091, %v5018
    %v5093 = vadd.f32 %v5092, %v5022
    %v5094 = vadd.f32 %v5093, %v5026
    %v5095 = vrot.slane %v5094, 4
    %v5096 = vadd.f32 %v5094, %v5095
    %v5097 = vrot.slane %v5096, 2
    %v5098 = vadd.f32 %v5096, %v5097
    %v5099 = vrot.slane %v5098, 1
    %v5100 = vadd.f32 %v5098, %v5099
    %v5101 = vpack.c.bf16 %v4904, %v4900
    %v5102 = vpack.c.bf16 %v4906, %v4902
    %v5103 = vpack.c.bf16 %v4912, %v4908
    %v5104 = vpack.c.bf16 %v4914, %v4910
    %v5105 = vpack.c.bf16 %v4920, %v4916
    %v5106 = vpack.c.bf16 %v4922, %v4918
    %v5107 = vpack.c.bf16 %v4928, %v4924
    %v5108 = vpack.c.bf16 %v4930, %v4926
    %v5109 = vpack.c.bf16 %v4936, %v4932
    %v5110 = vpack.c.bf16 %v4938, %v4934
    %v5111 = vpack.c.bf16 %v4944, %v4940
    %v5112 = vpack.c.bf16 %v4946, %v4942
    %v5113 = vpack.c.bf16 %v4952, %v4948
    %v5114 = vpack.c.bf16 %v4954, %v4950
    %v5115 = vpack.c.bf16 %v4960, %v4956
    %v5116 = vpack.c.bf16 %v4962, %v4958
    %v5117 = vpack.c.bf16 %v4968, %v4964
    %v5118 = vpack.c.bf16 %v4970, %v4966
    %v5119 = vpack.c.bf16 %v4976, %v4972
    %v5120 = vpack.c.bf16 %v4978, %v4974
    %v5121 = vpack.c.bf16 %v4984, %v4980
    %v5122 = vpack.c.bf16 %v4986, %v4982
    %v5123 = vpack.c.bf16 %v4992, %v4988
    %v5124 = vpack.c.bf16 %v4994, %v4990
    %v5125 = vpack.c.bf16 %v5000, %v4996
    %v5126 = vpack.c.bf16 %v5002, %v4998
    %v5127 = vpack.c.bf16 %v5008, %v5004
    %v5128 = vpack.c.bf16 %v5010, %v5006
    %v5129 = vpack.c.bf16 %v5016, %v5012
    %v5130 = vpack.c.bf16 %v5018, %v5014
    %v5131 = vpack.c.bf16 %v5024, %v5020
    %v5132 = vpack.c.bf16 %v5026, %v5022
    %5133 = vmatprep.subr.bf16.mxu0 %v5102
    %5134 = vmatpush1.bf16.msra.mxu0 %v5101
    %5135 = vmatprep.subr.bf16.mxu0 %v5104
    %5136 = vmatpush1.bf16.msra.mxu0 %v5103
    %5137 = vmatprep.subr.bf16.mxu0 %v5106
    %5138 = vmatpush1.bf16.msra.mxu0 %v5105
    %5139 = vmatprep.subr.bf16.mxu0 %v5108
    %5140 = vmatpush1.bf16.msra.mxu0 %v5107
    %5141 = vmatprep.subr.bf16.mxu0 %v5110
    %5142 = vmatpush1.bf16.msra.mxu0 %v5109
    %5143 = vmatprep.subr.bf16.mxu0 %v5112
    %5144 = vmatpush1.bf16.msra.mxu0 %v5111
    %5145 = vmatprep.subr.bf16.mxu0 %v5114
    %5146 = vmatpush1.bf16.msra.mxu0 %v5113
    %5147 = vmatprep.subr.bf16.mxu0 %v5116
    %5148 = vmatpush1.bf16.msra.mxu0 %v5115
    %5149 = vmatprep.subr.bf16.mxu0 %v5118
    %5150 = vmatpush1.bf16.msra.mxu0 %v5117
    %5151 = vmatprep.subr.bf16.mxu0 %v5120
    %5152 = vmatpush1.bf16.msra.mxu0 %v5119
    %5153 = vmatprep.subr.bf16.mxu0 %v5122
    %5154 = vmatpush1.bf16.msra.mxu0 %v5121
    %5155 = vmatprep.subr.bf16.mxu0 %v5124
    %5156 = vmatpush1.bf16.msra.mxu0 %v5123
    %5157 = vmatprep.subr.bf16.mxu0 %v5126
    %5158 = vmatpush1.bf16.msra.mxu0 %v5125
    %5159 = vmatprep.subr.bf16.mxu0 %v5128
    %5160 = vmatpush1.bf16.msra.mxu0 %v5127
    %5161 = vmatprep.subr.bf16.mxu0 %v5130
    %5162 = vmatpush1.bf16.msra.mxu0 %v5129
    %5163 = vmatprep.subr.bf16.mxu0 %v5132
    %5164 = vmatpush1.bf16.msra.mxu0 %v5131
    %5165 = vmatprep.mubr.bf16.mxu0 %v906
    %5166 = vmatmul.mubr.bf16.gmra.mrb[0].mxu0 %v905
    %v5167 = vpop.f32.mrb[0].mxu0
    %v5168 = vadd.f32 0.0, %v5167
    %v5169 = vpop.f32.mrb[0].mxu0
    %v5170 = vadd.f32 0.0, %v5169
    %v5171 = vpop.f32.mrb[0].mxu0
    %v5172 = vadd.f32 0.0, %v5171
    %v5173 = vpop.f32.mrb[0].mxu0
    %v5174 = vadd.f32 0.0, %v5173
    %5175 = vmatprep.mubr.bf16.mxu0 %v910
    %5176 = vmatmul.mubr.bf16.gmra.mrb[0].mxu0 %v909
    %v5177 = vpop.f32.mrb[0].mxu0
    %v5178 = vadd.f32 0.0, %v5177
    %v5179 = vpop.f32.mrb[0].mxu0
    %v5180 = vadd.f32 0.0, %v5179
    %v5181 = vpop.f32.mrb[0].mxu0
    %v5182 = vadd.f32 0.0, %v5181
    %v5183 = vpop.f32.mrb[0].mxu0
    %v5184 = vadd.f32 0.0, %v5183
    %5185 = vdwg.mxu0
    %v5186 = vrcp.pop %v5063
    %v5187 = vrcp.pop %v5100
    %v5188 = vmul.f32 %v5168, %v5186
    %v5189 = vmul.f32 %v5170, %v5187
    %v5190 = vmul.f32 %v5172, %v5186
    %v5191 = vmul.f32 %v5174, %v5187
    %v5192 = vmul.f32 %v5178, %v5186
    %v5193 = vmul.f32 %v5180, %v5187
    %v5194 = vmul.f32 %v5182, %v5186
    %v5195 = vmul.f32 %v5184, %v5187
    %v5196 = vpack.c.bf16 %v5190, %v5188
    %v5197 = vpack.c.bf16 %v5191, %v5189
    %v5198 = vpack.c.bf16 %v5194, %v5192
    %v5199 = vpack.c.bf16 %v5195, %v5193
    %5200 = vxpose.xlu0.c.b16.start [1/8] %v881, 128
    %5201 = vxpose.xlu0.c.b16.cont [2/8] %v885, 128
    %5202 = vxpose.xlu0.c.b16.cont [3/8] 0, 128
    %5203 = vxpose.xlu0.c.b16.cont [4/8] 0, 128
    %5204 = vxpose.xlu0.c.b16.cont [5/8] 0, 128
    %5205 = vxpose.xlu0.c.b16.cont [6/8] 0, 128
    %5206 = vxpose.xlu0.c.b16.cont [7/8] 0, 128
    %5207 = vxpose.xlu0.c.b16.end [8/8] 0, 128
    %v5208 = vpop.trf.xlu0
    %v5209 = vpop.trf.xlu0
    %v5210 = vpop.trf.xlu0
    %v5211 = vpop.trf.xlu0
    %v5212 = vpop.trf.xlu0
    %v5213 = vpop.trf.xlu0
    %v5214 = vpop.trf.xlu0
    %v5215 = vpop.trf.xlu0
    %5216 = vxpose.xlu0.c.b16.start [1/8] %v882, 128
    %5217 = vxpose.xlu0.c.b16.cont [2/8] %v886, 128
    %5218 = vxpose.xlu0.c.b16.cont [3/8] 0, 128
    %5219 = vxpose.xlu0.c.b16.cont [4/8] 0, 128
    %5220 = vxpose.xlu0.c.b16.cont [5/8] 0, 128
    %5221 = vxpose.xlu0.c.b16.cont [6/8] 0, 128
    %5222 = vxpose.xlu0.c.b16.cont [7/8] 0, 128
    %5223 = vxpose.xlu0.c.b16.end [8/8] 0, 128
    %v5224 = vpop.trf.xlu0
    %v5225 = vpop.trf.xlu0
    %v5226 = vpop.trf.xlu0
    %v5227 = vpop.trf.xlu0
    %v5228 = vpop.trf.xlu0
    %v5229 = vpop.trf.xlu0
    %v5230 = vpop.trf.xlu0
    %v5231 = vpop.trf.xlu0
    %v5233 = vsel %vm959, %v5208, 0
    %v5236 = vsel %vm959, %v5209, 0
    %v5239 = vsel %vm959, %v5210, 0
    %v5242 = vsel %vm959, %v5211, 0
    %v5245 = vsel %vm959, %v5212, 0
    %v5248 = vsel %vm959, %v5213, 0
    %v5251 = vsel %vm959, %v5214, 0
    %v5254 = vsel %vm959, %v5215, 0
    %v5257 = vsel %vm959, %v5224, 0
    %v5260 = vsel %vm959, %v5225, 0
    %v5263 = vsel %vm959, %v5226, 0
    %v5266 = vsel %vm959, %v5227, 0
    %v5269 = vsel %vm959, %v5228, 0
    %v5272 = vsel %vm959, %v5229, 0
    %v5275 = vsel %vm959, %v5230, 0
    %v5278 = vsel %vm959, %v5231, 0
    %5280 = vmatprep.subr.bf16.mxu0 %v850
    %5281 = vmatpush1.bf16.msra.mxu0 %v849
    %5282 = vmatprep.subr.bf16.mxu0 %v854
    %5283 = vmatpush1.bf16.msra.mxu0 %v853
    %5284 = vmatprep.subr.bf16.mxu0 0
    %5285 = vmatpush1.bf16.msra.mxu0 0
    %5286 = vmatprep.subr.bf16.mxu0 0
    %5287 = vmatpush1.bf16.msra.mxu0 0
    %5288 = vmatprep.subr.bf16.mxu0 0
    %5289 = vmatpush1.bf16.msra.mxu0 0
    %5290 = vmatprep.subr.bf16.mxu0 0
    %5291 = vmatpush1.bf16.msra.mxu0 0
    %5292 = vmatprep.subr.bf16.mxu0 0
    %5293 = vmatpush1.bf16.msra.mxu0 0
    %5294 = vmatprep.subr.bf16.mxu0 0
    %5295 = vmatpush1.bf16.msra.mxu0 0
    %5296 = vmatprep.subr.bf16.mxu0 0
    %5297 = vmatpush1.bf16.msra.mxu0 0
    %5298 = vmatprep.subr.bf16.mxu0 0
    %5299 = vmatpush1.bf16.msra.mxu0 0
    %5300 = vmatprep.subr.bf16.mxu0 0
    %5301 = vmatpush1.bf16.msra.mxu0 0
    %5302 = vmatprep.subr.bf16.mxu0 0
    %5303 = vmatpush1.bf16.msra.mxu0 0
    %5304 = vmatprep.subr.bf16.mxu0 0
    %5305 = vmatpush1.bf16.msra.mxu0 0
    %5306 = vmatprep.subr.bf16.mxu0 0
    %5307 = vmatpush1.bf16.msra.mxu0 0
    %5308 = vmatprep.subr.bf16.mxu0 0
    %5309 = vmatpush1.bf16.msra.mxu0 0
    %5310 = vmatprep.subr.bf16.mxu0 0
    %5311 = vmatpush1.bf16.msra.mxu0 0
    %5312 = vmatprep.mubr.bf16.mxu0 0
    %5313 = vmatmul.mubr.bf16.gmra.mrb[0].mxu0 %v5233
    %v5314 = vpop.f32.mrb[0].mxu0
    %v5315 = vadd.f32 0.0, %v5314
    %v5316 = vpop.f32.mrb[0].mxu0
    %v5317 = vadd.f32 0.0, %v5316
    %v5318 = vpop.f32.mrb[0].mxu0
    %v5319 = vadd.f32 0.0, %v5318
    %v5320 = vpop.f32.mrb[0].mxu0
    %v5321 = vadd.f32 0.0, %v5320
    %5322 = vmatprep.mubr.bf16.mxu0 0
    %5323 = vmatmul.mubr.bf16.gmra.mrb[0].mxu0 %v5236
    %v5324 = vpop.f32.mrb[0].mxu0
    %v5325 = vadd.f32 0.0, %v5324
    %v5326 = vpop.f32.mrb[0].mxu0
    %v5327 = vadd.f32 0.0, %v5326
    %v5328 = vpop.f32.mrb[0].mxu0
    %v5329 = vadd.f32 0.0, %v5328
    %v5330 = vpop.f32.mrb[0].mxu0
    %v5331 = vadd.f32 0.0, %v5330
    %5332 = vmatprep.mubr.bf16.mxu0 0
    %5333 = vmatmul.mubr.bf16.gmra.mrb[0].mxu0 %v5239
    %v5334 = vpop.f32.mrb[0].mxu0
    %v5335 = vadd.f32 0.0, %v5334
    %v5336 = vpop.f32.mrb[0].mxu0
    %v5337 = vadd.f32 0.0, %v5336
    %v5338 = vpop.f32.mrb[0].mxu0
    %v5339 = vadd.f32 0.0, %v5338
    %v5340 = vpop.f32.mrb[0].mxu0
    %v5341 = vadd.f32 0.0, %v5340
    %5342 = vmatprep.mubr.bf16.mxu0 0
    %5343 = vmatmul.mubr.bf16.gmra.mrb[0].mxu0 %v5242
    %v5344 = vpop.f32.mrb[0].mxu0
    %v5345 = vadd.f32 0.0, %v5344
    %v5346 = vpop.f32.mrb[0].mxu0
    %v5347 = vadd.f32 0.0, %v5346
    %v5348 = vpop.f32.mrb[0].mxu0
    %v5349 = vadd.f32 0.0, %v5348
    %v5350 = vpop.f32.mrb[0].mxu0
    %v5351 = vadd.f32 0.0, %v5350
    %5352 = vmatprep.mubr.bf16.mxu0 0
    %5353 = vmatmul.mubr.bf16.gmra.mrb[0].mxu0 %v5245
    %v5354 = vpop.f32.mrb[0].mxu0
    %v5355 = vadd.f32 0.0, %v5354
    %v5356 = vpop.f32.mrb[0].mxu0
    %v5357 = vadd.f32 0.0, %v5356
    %v5358 = vpop.f32.mrb[0].mxu0
    %v5359 = vadd.f32 0.0, %v5358
    %v5360 = vpop.f32.mrb[0].mxu0
    %v5361 = vadd.f32 0.0, %v5360
    %5362 = vmatprep.mubr.bf16.mxu0 0
    %5363 = vmatmul.mubr.bf16.gmra.mrb[0].mxu0 %v5248
    %v5364 = vpop.f32.mrb[0].mxu0
    %v5365 = vadd.f32 0.0, %v5364
    %v5366 = vpop.f32.mrb[0].mxu0
    %v5367 = vadd.f32 0.0, %v5366
    %v5368 = vpop.f32.mrb[0].mxu0
    %v5369 = vadd.f32 0.0, %v5368
    %v5370 = vpop.f32.mrb[0].mxu0
    %v5371 = vadd.f32 0.0, %v5370
    %5372 = vmatprep.mubr.bf16.mxu0 0
    %5373 = vmatmul.mubr.bf16.gmra.mrb[0].mxu0 %v5251
    %v5374 = vpop.f32.mrb[0].mxu0
    %v5375 = vadd.f32 0.0, %v5374
    %v5376 = vpop.f32.mrb[0].mxu0
    %v5377 = vadd.f32 0.0, %v5376
    %v5378 = vpop.f32.mrb[0].mxu0
    %v5379 = vadd.f32 0.0, %v5378
    %v5380 = vpop.f32.mrb[0].mxu0
    %v5381 = vadd.f32 0.0, %v5380
    %5382 = vmatprep.mubr.bf16.mxu0 0
    %5383 = vmatmul.mubr.bf16.gmra.mrb[0].mxu0 %v5254
    %v5384 = vpop.f32.mrb[0].mxu0
    %v5385 = vadd.f32 0.0, %v5384
    %v5386 = vpop.f32.mrb[0].mxu0
    %v5387 = vadd.f32 0.0, %v5386
    %v5388 = vpop.f32.mrb[0].mxu0
    %v5389 = vadd.f32 0.0, %v5388
    %v5390 = vpop.f32.mrb[0].mxu0
    %v5391 = vadd.f32 0.0, %v5390
    %5392 = vmatprep.mubr.bf16.mxu0 0
    %5393 = vmatmul.mubr.bf16.gmra.mrb[0].mxu0 %v5257
    %v5394 = vpop.f32.mrb[0].mxu0
    %v5395 = vadd.f32 0.0, %v5394
    %v5396 = vpop.f32.mrb[0].mxu0
    %v5397 = vadd.f32 0.0, %v5396
    %v5398 = vpop.f32.mrb[0].mxu0
    %v5399 = vadd.f32 0.0, %v5398
    %v5400 = vpop.f32.mrb[0].mxu0
    %v5401 = vadd.f32 0.0, %v5400
    %5402 = vmatprep.mubr.bf16.mxu0 0
    %5403 = vmatmul.mubr.bf16.gmra.mrb[0].mxu0 %v5260
    %v5404 = vpop.f32.mrb[0].mxu0
    %v5405 = vadd.f32 0.0, %v5404
    %v5406 = vpop.f32.mrb[0].mxu0
    %v5407 = vadd.f32 0.0, %v5406
    %v5408 = vpop.f32.mrb[0].mxu0
    %v5409 = vadd.f32 0.0, %v5408
    %v5410 = vpop.f32.mrb[0].mxu0
    %v5411 = vadd.f32 0.0, %v5410
    %5412 = vmatprep.mubr.bf16.mxu0 0
    %5413 = vmatmul.mubr.bf16.gmra.mrb[0].mxu0 %v5263
    %v5414 = vpop.f32.mrb[0].mxu0
    %v5415 = vadd.f32 0.0, %v5414
    %v5416 = vpop.f32.mrb[0].mxu0
    %v5417 = vadd.f32 0.0, %v5416
    %v5418 = vpop.f32.mrb[0].mxu0
    %v5419 = vadd.f32 0.0, %v5418
    %v5420 = vpop.f32.mrb[0].mxu0
    %v5421 = vadd.f32 0.0, %v5420
    %5422 = vmatprep.mubr.bf16.mxu0 0
    %5423 = vmatmul.mubr.bf16.gmra.mrb[0].mxu0 %v5266
    %v5424 = vpop.f32.mrb[0].mxu0
    %v5425 = vadd.f32 0.0, %v5424
    %v5426 = vpop.f32.mrb[0].mxu0
    %v5427 = vadd.f32 0.0, %v5426
    %v5428 = vpop.f32.mrb[0].mxu0
    %v5429 = vadd.f32 0.0, %v5428
    %v5430 = vpop.f32.mrb[0].mxu0
    %v5431 = vadd.f32 0.0, %v5430
    %5432 = vmatprep.mubr.bf16.mxu0 0
    %5433 = vmatmul.mubr.bf16.gmra.mrb[0].mxu0 %v5269
    %v5434 = vpop.f32.mrb[0].mxu0
    %v5435 = vadd.f32 0.0, %v5434
    %v5436 = vpop.f32.mrb[0].mxu0
    %v5437 = vadd.f32 0.0, %v5436
    %v5438 = vpop.f32.mrb[0].mxu0
    %v5439 = vadd.f32 0.0, %v5438
    %v5440 = vpop.f32.mrb[0].mxu0
    %v5441 = vadd.f32 0.0, %v5440
    %5442 = vmatprep.mubr.bf16.mxu0 0
    %5443 = vmatmul.mubr.bf16.gmra.mrb[0].mxu0 %v5272
    %v5444 = vpop.f32.mrb[0].mxu0
    %v5445 = vadd.f32 0.0, %v5444
    %v5446 = vpop.f32.mrb[0].mxu0
    %v5447 = vadd.f32 0.0, %v5446
    %v5448 = vpop.f32.mrb[0].mxu0
    %v5449 = vadd.f32 0.0, %v5448
    %v5450 = vpop.f32.mrb[0].mxu0
    %v5451 = vadd.f32 0.0, %v5450
    %5452 = vmatprep.mubr.bf16.mxu0 0
    %5453 = vmatmul.mubr.bf16.gmra.mrb[0].mxu0 %v5275
    %v5454 = vpop.f32.mrb[0].mxu0
    %v5455 = vadd.f32 0.0, %v5454
    %v5456 = vpop.f32.mrb[0].mxu0
    %v5457 = vadd.f32 0.0, %v5456
    %v5458 = vpop.f32.mrb[0].mxu0
    %v5459 = vadd.f32 0.0, %v5458
    %v5460 = vpop.f32.mrb[0].mxu0
    %v5461 = vadd.f32 0.0, %v5460
    %5462 = vmatprep.mubr.bf16.mxu0 0
    %5463 = vmatmul.mubr.bf16.gmra.mrb[0].mxu0 %v5278
    %v5464 = vpop.f32.mrb[0].mxu0
    %v5465 = vadd.f32 0.0, %v5464
    %v5466 = vpop.f32.mrb[0].mxu0
    %v5467 = vadd.f32 0.0, %v5466
    %v5468 = vpop.f32.mrb[0].mxu0
    %v5469 = vadd.f32 0.0, %v5468
    %v5470 = vpop.f32.mrb[0].mxu0
    %v5471 = vadd.f32 0.0, %v5470
    %5472 = vdwg.mxu0
    %v5473 = vmax.f32 %v5315, %v5325
    %v5474 = vmax.f32 %v5319, %v5329
    %v5475 = vmax.f32 %v5473, %v5335
    %v5476 = vmax.f32 %v5474, %v5339
    %v5477 = vmax.f32 %v5475, %v5345
    %v5478 = vmax.f32 %v5476, %v5349
    %v5479 = vmax.f32 %v5477, %v5355
    %v5480 = vmax.f32 %v5478, %v5359
    %v5481 = vmax.f32 %v5479, %v5365
    %v5482 = vmax.f32 %v5480, %v5369
    %v5483 = vmax.f32 %v5481, %v5375
    %v5484 = vmax.f32 %v5482, %v5379
    %v5485 = vmax.f32 %v5483, %v5385
    %v5486 = vmax.f32 %v5484, %v5389
    %v5487 = vmax.f32 %v5485, %v5395
    %v5488 = vmax.f32 %v5486, %v5399
    %v5489 = vmax.f32 %v5487, %v5405
    %v5490 = vmax.f32 %v5488, %v5409
    %v5491 = vmax.f32 %v5489, %v5415
    %v5492 = vmax.f32 %v5490, %v5419
    %v5493 = vmax.f32 %v5491, %v5425
    %v5494 = vmax.f32 %v5492, %v5429
    %v5495 = vmax.f32 %v5493, %v5435
    %v5496 = vmax.f32 %v5494, %v5439
    %v5497 = vmax.f32 %v5495, %v5445
    %v5498 = vmax.f32 %v5496, %v5449
    %v5499 = vmax.f32 %v5497, %v5455
    %v5500 = vmax.f32 %v5498, %v5459
    %v5501 = vmax.f32 %v5499, %v5465
    %v5502 = vmax.f32 %v5500, %v5469
    %v5503 = vmax.f32 %v5501, %v5502
    %v5504 = vrot.slane %v5503, 4
    %v5505 = vmax.f32 %v5503, %v5504
    %v5506 = vrot.slane %v5505, 2
    %v5507 = vmax.f32 %v5505, %v5506
    %v5508 = vrot.slane %v5507, 1
    %v5509 = vmax.f32 %v5507, %v5508
    %v5510 = vmax.f32 %v5317, %v5327
    %v5511 = vmax.f32 %v5321, %v5331
    %v5512 = vmax.f32 %v5510, %v5337
    %v5513 = vmax.f32 %v5511, %v5341
    %v5514 = vmax.f32 %v5512, %v5347
    %v5515 = vmax.f32 %v5513, %v5351
    %v5516 = vmax.f32 %v5514, %v5357
    %v5517 = vmax.f32 %v5515, %v5361
    %v5518 = vmax.f32 %v5516, %v5367
    %v5519 = vmax.f32 %v5517, %v5371
    %v5520 = vmax.f32 %v5518, %v5377
    %v5521 = vmax.f32 %v5519, %v5381
    %v5522 = vmax.f32 %v5520, %v5387
    %v5523 = vmax.f32 %v5521, %v5391
    %v5524 = vmax.f32 %v5522, %v5397
    %v5525 = vmax.f32 %v5523, %v5401
    %v5526 = vmax.f32 %v5524, %v5407
    %v5527 = vmax.f32 %v5525, %v5411
    %v5528 = vmax.f32 %v5526, %v5417
    %v5529 = vmax.f32 %v5527, %v5421
    %v5530 = vmax.f32 %v5528, %v5427
    %v5531 = vmax.f32 %v5529, %v5431
    %v5532 = vmax.f32 %v5530, %v5437
    %v5533 = vmax.f32 %v5531, %v5441
    %v5534 = vmax.f32 %v5532, %v5447
    %v5535 = vmax.f32 %v5533, %v5451
    %v5536 = vmax.f32 %v5534, %v5457
    %v5537 = vmax.f32 %v5535, %v5461
    %v5538 = vmax.f32 %v5536, %v5467
    %v5539 = vmax.f32 %v5537, %v5471
    %v5540 = vmax.f32 %v5538, %v5539
    %v5541 = vrot.slane %v5540, 4
    %v5542 = vmax.f32 %v5540, %v5541
    %v5543 = vrot.slane %v5542, 2
    %v5544 = vmax.f32 %v5542, %v5543
    %v5545 = vrot.slane %v5544, 1
    %v5546 = vmax.f32 %v5544, %v5545
    %v5547 = vsub.f32 %v5315, %v5509
    %v5548 = vsub.f32 %v5317, %v5546
    %v5549 = vsub.f32 %v5319, %v5509
    %v5550 = vsub.f32 %v5321, %v5546
    %v5551 = vsub.f32 %v5325, %v5509
    %v5552 = vsub.f32 %v5327, %v5546
    %v5553 = vsub.f32 %v5329, %v5509
    %v5554 = vsub.f32 %v5331, %v5546
    %v5555 = vsub.f32 %v5335, %v5509
    %v5556 = vsub.f32 %v5337, %v5546
    %v5557 = vsub.f32 %v5339, %v5509
    %v5558 = vsub.f32 %v5341, %v5546
    %v5559 = vsub.f32 %v5345, %v5509
    %v5560 = vsub.f32 %v5347, %v5546
    %v5561 = vsub.f32 %v5349, %v5509
    %v5562 = vsub.f32 %v5351, %v5546
    %v5563 = vsub.f32 %v5355, %v5509
    %v5564 = vsub.f32 %v5357, %v5546
    %v5565 = vsub.f32 %v5359, %v5509
    %v5566 = vsub.f32 %v5361, %v5546
    %v5567 = vsub.f32 %v5365, %v5509
    %v5568 = vsub.f32 %v5367, %v5546
    %v5569 = vsub.f32 %v5369, %v5509
    %v5570 = vsub.f32 %v5371, %v5546
    %v5571 = vsub.f32 %v5375, %v5509
    %v5572 = vsub.f32 %v5377, %v5546
    %v5573 = vsub.f32 %v5379, %v5509
    %v5574 = vsub.f32 %v5381, %v5546
    %v5575 = vsub.f32 %v5385, %v5509
    %v5576 = vsub.f32 %v5387, %v5546
    %v5577 = vsub.f32 %v5389, %v5509
    %v5578 = vsub.f32 %v5391, %v5546
    %v5579 = vsub.f32 %v5395, %v5509
    %v5580 = vsub.f32 %v5397, %v5546
    %v5581 = vsub.f32 %v5399, %v5509
    %v5582 = vsub.f32 %v5401, %v5546
    %v5583 = vsub.f32 %v5405, %v5509
    %v5584 = vsub.f32 %v5407, %v5546
    %v5585 = vsub.f32 %v5409, %v5509
    %v5586 = vsub.f32 %v5411, %v5546
    %v5587 = vsub.f32 %v5415, %v5509
    %v5588 = vsub.f32 %v5417, %v5546
    %v5589 = vsub.f32 %v5419, %v5509
    %v5590 = vsub.f32 %v5421, %v5546
    %v5591 = vsub.f32 %v5425, %v5509
    %v5592 = vsub.f32 %v5427, %v5546
    %v5593 = vsub.f32 %v5429, %v5509
    %v5594 = vsub.f32 %v5431, %v5546
    %v5595 = vsub.f32 %v5435, %v5509
    %v5596 = vsub.f32 %v5437, %v5546
    %v5597 = vsub.f32 %v5439, %v5509
    %v5598 = vsub.f32 %v5441, %v5546
    %v5599 = vsub.f32 %v5445, %v5509
    %v5600 = vsub.f32 %v5447, %v5546
    %v5601 = vsub.f32 %v5449, %v5509
    %v5602 = vsub.f32 %v5451, %v5546
    %v5603 = vsub.f32 %v5455, %v5509
    %v5604 = vsub.f32 %v5457, %v5546
    %v5605 = vsub.f32 %v5459, %v5509
    %v5606 = vsub.f32 %v5461, %v5546
    %v5607 = vsub.f32 %v5465, %v5509
    %v5608 = vsub.f32 %v5467, %v5546
    %v5609 = vsub.f32 %v5469, %v5509
    %v5610 = vsub.f32 %v5471, %v5546
    %v5611 = vmul.f32 %v5547, 1.442695
    %v5612 = vpow.pop %v5611
    %v5613 = vmul.f32 %v5548, 1.442695
    %v5614 = vpow.pop %v5613
    %v5615 = vmul.f32 %v5549, 1.442695
    %v5616 = vpow.pop %v5615
    %v5617 = vmul.f32 %v5550, 1.442695
    %v5618 = vpow.pop %v5617
    %v5619 = vmul.f32 %v5551, 1.442695
    %v5620 = vpow.pop %v5619
    %v5621 = vmul.f32 %v5552, 1.442695
    %v5622 = vpow.pop %v5621
    %v5623 = vmul.f32 %v5553, 1.442695
    %v5624 = vpow.pop %v5623
    %v5625 = vmul.f32 %v5554, 1.442695
    %v5626 = vpow.pop %v5625
    %v5627 = vmul.f32 %v5555, 1.442695
    %v5628 = vpow.pop %v5627
    %v5629 = vmul.f32 %v5556, 1.442695
    %v5630 = vpow.pop %v5629
    %v5631 = vmul.f32 %v5557, 1.442695
    %v5632 = vpow.pop %v5631
    %v5633 = vmul.f32 %v5558, 1.442695
    %v5634 = vpow.pop %v5633
    %v5635 = vmul.f32 %v5559, 1.442695
    %v5636 = vpow.pop %v5635
    %v5637 = vmul.f32 %v5560, 1.442695
    %v5638 = vpow.pop %v5637
    %v5639 = vmul.f32 %v5561, 1.442695
    %v5640 = vpow.pop %v5639
    %v5641 = vmul.f32 %v5562, 1.442695
    %v5642 = vpow.pop %v5641
    %v5643 = vmul.f32 %v5563, 1.442695
    %v5644 = vpow.pop %v5643
    %v5645 = vmul.f32 %v5564, 1.442695
    %v5646 = vpow.pop %v5645
    %v5647 = vmul.f32 %v5565, 1.442695
    %v5648 = vpow.pop %v5647
    %v5649 = vmul.f32 %v5566, 1.442695
    %v5650 = vpow.pop %v5649
    %v5651 = vmul.f32 %v5567, 1.442695
    %v5652 = vpow.pop %v5651
    %v5653 = vmul.f32 %v5568, 1.442695
    %v5654 = vpow.pop %v5653
    %v5655 = vmul.f32 %v5569, 1.442695
    %v5656 = vpow.pop %v5655
    %v5657 = vmul.f32 %v5570, 1.442695
    %v5658 = vpow.pop %v5657
    %v5659 = vmul.f32 %v5571, 1.442695
    %v5660 = vpow.pop %v5659
    %v5661 = vmul.f32 %v5572, 1.442695
    %v5662 = vpow.pop %v5661
    %v5663 = vmul.f32 %v5573, 1.442695
    %v5664 = vpow.pop %v5663
    %v5665 = vmul.f32 %v5574, 1.442695
    %v5666 = vpow.pop %v5665
    %v5667 = vmul.f32 %v5575, 1.442695
    %v5668 = vpow.pop %v5667
    %v5669 = vmul.f32 %v5576, 1.442695
    %v5670 = vpow.pop %v5669
    %v5671 = vmul.f32 %v5577, 1.442695
    %v5672 = vpow.pop %v5671
    %v5673 = vmul.f32 %v5578, 1.442695
    %v5674 = vpow.pop %v5673
    %v5675 = vmul.f32 %v5579, 1.442695
    %v5676 = vpow.pop %v5675
    %v5677 = vmul.f32 %v5580, 1.442695
    %v5678 = vpow.pop %v5677
    %v5679 = vmul.f32 %v5581, 1.442695
    %v5680 = vpow.pop %v5679
    %v5681 = vmul.f32 %v5582, 1.442695
    %v5682 = vpow.pop %v5681
    %v5683 = vmul.f32 %v5583, 1.442695
    %v5684 = vpow.pop %v5683
    %v5685 = vmul.f32 %v5584, 1.442695
    %v5686 = vpow.pop %v5685
    %v5687 = vmul.f32 %v5585, 1.442695
    %v5688 = vpow.pop %v5687
    %v5689 = vmul.f32 %v5586, 1.442695
    %v5690 = vpow.pop %v5689
    %v5691 = vmul.f32 %v5587, 1.442695
    %v5692 = vpow.pop %v5691
    %v5693 = vmul.f32 %v5588, 1.442695
    %v5694 = vpow.pop %v5693
    %v5695 = vmul.f32 %v5589, 1.442695
    %v5696 = vpow.pop %v5695
    %v5697 = vmul.f32 %v5590, 1.442695
    %v5698 = vpow.pop %v5697
    %v5699 = vmul.f32 %v5591, 1.442695
    %v5700 = vpow.pop %v5699
    %v5701 = vmul.f32 %v5592, 1.442695
    %v5702 = vpow.pop %v5701
    %v5703 = vmul.f32 %v5593, 1.442695
    %v5704 = vpow.pop %v5703
    %v5705 = vmul.f32 %v5594, 1.442695
    %v5706 = vpow.pop %v5705
    %v5707 = vmul.f32 %v5595, 1.442695
    %v5708 = vpow.pop %v5707
    %v5709 = vmul.f32 %v5596, 1.442695
    %v5710 = vpow.pop %v5709
    %v5711 = vmul.f32 %v5597, 1.442695
    %v5712 = vpow.pop %v5711
    %v5713 = vmul.f32 %v5598, 1.442695
    %v5714 = vpow.pop %v5713
    %v5715 = vmul.f32 %v5599, 1.442695
    %v5716 = vpow.pop %v5715
    %v5717 = vmul.f32 %v5600, 1.442695
    %v5718 = vpow.pop %v5717
    %v5719 = vmul.f32 %v5601, 1.442695
    %v5720 = vpow.pop %v5719
    %v5721 = vmul.f32 %v5602, 1.442695
    %v5722 = vpow.pop %v5721
    %v5723 = vmul.f32 %v5603, 1.442695
    %v5724 = vpow.pop %v5723
    %v5725 = vmul.f32 %v5604, 1.442695
    %v5726 = vpow.pop %v5725
    %v5727 = vmul.f32 %v5605, 1.442695
    %v5728 = vpow.pop %v5727
    %v5729 = vmul.f32 %v5606, 1.442695
    %v5730 = vpow.pop %v5729
    %v5731 = vmul.f32 %v5607, 1.442695
    %v5732 = vpow.pop %v5731
    %v5733 = vmul.f32 %v5608, 1.442695
    %v5734 = vpow.pop %v5733
    %v5735 = vmul.f32 %v5609, 1.442695
    %v5736 = vpow.pop %v5735
    %v5737 = vmul.f32 %v5610, 1.442695
    %v5738 = vpow.pop %v5737
    %v5739 = vadd.f32 %v5612, %v5616
    %v5740 = vadd.f32 %v5739, %v5620
    %v5741 = vadd.f32 %v5740, %v5624
    %v5742 = vadd.f32 %v5741, %v5628
    %v5743 = vadd.f32 %v5742, %v5632
    %v5744 = vadd.f32 %v5743, %v5636
    %v5745 = vadd.f32 %v5744, %v5640
    %v5746 = vadd.f32 %v5745, %v5644
    %v5747 = vadd.f32 %v5746, %v5648
    %v5748 = vadd.f32 %v5747, %v5652
    %v5749 = vadd.f32 %v5748, %v5656
    %v5750 = vadd.f32 %v5749, %v5660
    %v5751 = vadd.f32 %v5750, %v5664
    %v5752 = vadd.f32 %v5751, %v5668
    %v5753 = vadd.f32 %v5752, %v5672
    %v5754 = vadd.f32 %v5753, %v5676
    %v5755 = vadd.f32 %v5754, %v5680
    %v5756 = vadd.f32 %v5755, %v5684
    %v5757 = vadd.f32 %v5756, %v5688
    %v5758 = vadd.f32 %v5757, %v5692
    %v5759 = vadd.f32 %v5758, %v5696
    %v5760 = vadd.f32 %v5759, %v5700
    %v5761 = vadd.f32 %v5760, %v5704
    %v5762 = vadd.f32 %v5761, %v5708
    %v5763 = vadd.f32 %v5762, %v5712
    %v5764 = vadd.f32 %v5763, %v5716
    %v5765 = vadd.f32 %v5764, %v5720
    %v5766 = vadd.f32 %v5765, %v5724
    %v5767 = vadd.f32 %v5766, %v5728
    %v5768 = vadd.f32 %v5767, %v5732
    %v5769 = vadd.f32 %v5768, %v5736
    %v5770 = vrot.slane %v5769, 4
    %v5771 = vadd.f32 %v5769, %v5770
    %v5772 = vrot.slane %v5771, 2
    %v5773 = vadd.f32 %v5771, %v5772
    %v5774 = vrot.slane %v5773, 1
    %v5775 = vadd.f32 %v5773, %v5774
    %v5776 = vadd.f32 %v5614, %v5618
    %v5777 = vadd.f32 %v5776, %v5622
    %v5778 = vadd.f32 %v5777, %v5626
    %v5779 = vadd.f32 %v5778, %v5630
    %v5780 = vadd.f32 %v5779, %v5634
    %v5781 = vadd.f32 %v5780, %v5638
    %v5782 = vadd.f32 %v5781, %v5642
    %v5783 = vadd.f32 %v5782, %v5646
    %v5784 = vadd.f32 %v5783, %v5650
    %v5785 = vadd.f32 %v5784, %v5654
    %v5786 = vadd.f32 %v5785, %v5658
    %v5787 = vadd.f32 %v5786, %v5662
    %v5788 = vadd.f32 %v5787, %v5666
    %v5789 = vadd.f32 %v5788, %v5670
    %v5790 = vadd.f32 %v5789, %v5674
    %v5791 = vadd.f32 %v5790, %v5678
    %v5792 = vadd.f32 %v5791, %v5682
    %v5793 = vadd.f32 %v5792, %v5686
    %v5794 = vadd.f32 %v5793, %v5690
    %v5795 = vadd.f32 %v5794, %v5694
    %v5796 = vadd.f32 %v5795, %v5698
    %v5797 = vadd.f32 %v5796, %v5702
    %v5798 = vadd.f32 %v5797, %v5706
    %v5799 = vadd.f32 %v5798, %v5710
    %v5800 = vadd.f32 %v5799, %v5714
    %v5801 = vadd.f32 %v5800, %v5718
    %v5802 = vadd.f32 %v5801, %v5722
    %v5803 = vadd.f32 %v5802, %v5726
    %v5804 = vadd.f32 %v5803, %v5730
    %v5805 = vadd.f32 %v5804, %v5734
    %v5806 = vadd.f32 %v5805, %v5738
    %v5807 = vrot.slane %v5806, 4
    %v5808 = vadd.f32 %v5806, %v5807
    %v5809 = vrot.slane %v5808, 2
    %v5810 = vadd.f32 %v5808, %v5809
    %v5811 = vrot.slane %v5810, 1
    %v5812 = vadd.f32 %v5810, %v5811
    %v5813 = vpack.c.bf16 %v5616, %v5612
    %v5814 = vpack.c.bf16 %v5618, %v5614
    %v5815 = vpack.c.bf16 %v5624, %v5620
    %v5816 = vpack.c.bf16 %v5626, %v5622
    %v5817 = vpack.c.bf16 %v5632, %v5628
    %v5818 = vpack.c.bf16 %v5634, %v5630
    %v5819 = vpack.c.bf16 %v5640, %v5636
    %v5820 = vpack.c.bf16 %v5642, %v5638
    %v5821 = vpack.c.bf16 %v5648, %v5644
    %v5822 = vpack.c.bf16 %v5650, %v5646
    %v5823 = vpack.c.bf16 %v5656, %v5652
    %v5824 = vpack.c.bf16 %v5658, %v5654
    %v5825 = vpack.c.bf16 %v5664, %v5660
    %v5826 = vpack.c.bf16 %v5666, %v5662
    %v5827 = vpack.c.bf16 %v5672, %v5668
    %v5828 = vpack.c.bf16 %v5674, %v5670
    %v5829 = vpack.c.bf16 %v5680, %v5676
    %v5830 = vpack.c.bf16 %v5682, %v5678
    %v5831 = vpack.c.bf16 %v5688, %v5684
    %v5832 = vpack.c.bf16 %v5690, %v5686
    %v5833 = vpack.c.bf16 %v5696, %v5692
    %v5834 = vpack.c.bf16 %v5698, %v5694
    %v5835 = vpack.c.bf16 %v5704, %v5700
    %v5836 = vpack.c.bf16 %v5706, %v5702
    %v5837 = vpack.c.bf16 %v5712, %v5708
    %v5838 = vpack.c.bf16 %v5714, %v5710
    %v5839 = vpack.c.bf16 %v5720, %v5716
    %v5840 = vpack.c.bf16 %v5722, %v5718
    %v5841 = vpack.c.bf16 %v5728, %v5724
    %v5842 = vpack.c.bf16 %v5730, %v5726
    %v5843 = vpack.c.bf16 %v5736, %v5732
    %v5844 = vpack.c.bf16 %v5738, %v5734
    %5845 = vmatprep.subr.bf16.mxu0 %v5814
    %5846 = vmatpush1.bf16.msra.mxu0 %v5813
    %5847 = vmatprep.subr.bf16.mxu0 %v5816
    %5848 = vmatpush1.bf16.msra.mxu0 %v5815
    %5849 = vmatprep.subr.bf16.mxu0 %v5818
    %5850 = vmatpush1.bf16.msra.mxu0 %v5817
    %5851 = vmatprep.subr.bf16.mxu0 %v5820
    %5852 = vmatpush1.bf16.msra.mxu0 %v5819
    %5853 = vmatprep.subr.bf16.mxu0 %v5822
    %5854 = vmatpush1.bf16.msra.mxu0 %v5821
    %5855 = vmatprep.subr.bf16.mxu0 %v5824
    %5856 = vmatpush1.bf16.msra.mxu0 %v5823
    %5857 = vmatprep.subr.bf16.mxu0 %v5826
    %5858 = vmatpush1.bf16.msra.mxu0 %v5825
    %5859 = vmatprep.subr.bf16.mxu0 %v5828
    %5860 = vmatpush1.bf16.msra.mxu0 %v5827
    %5861 = vmatprep.subr.bf16.mxu0 %v5830
    %5862 = vmatpush1.bf16.msra.mxu0 %v5829
    %5863 = vmatprep.subr.bf16.mxu0 %v5832
    %5864 = vmatpush1.bf16.msra.mxu0 %v5831
    %5865 = vmatprep.subr.bf16.mxu0 %v5834
    %5866 = vmatpush1.bf16.msra.mxu0 %v5833
    %5867 = vmatprep.subr.bf16.mxu0 %v5836
    %5868 = vmatpush1.bf16.msra.mxu0 %v5835
    %5869 = vmatprep.subr.bf16.mxu0 %v5838
    %5870 = vmatpush1.bf16.msra.mxu0 %v5837
    %5871 = vmatprep.subr.bf16.mxu0 %v5840
    %5872 = vmatpush1.bf16.msra.mxu0 %v5839
    %5873 = vmatprep.subr.bf16.mxu0 %v5842
    %5874 = vmatpush1.bf16.msra.mxu0 %v5841
    %5875 = vmatprep.subr.bf16.mxu0 %v5844
    %5876 = vmatpush1.bf16.msra.mxu0 %v5843
    %5877 = vmatprep.mubr.bf16.mxu0 %v914
    %5878 = vmatmul.mubr.bf16.gmra.mrb[0].mxu0 %v913
    %v5879 = vpop.f32.mrb[0].mxu0
    %v5880 = vadd.f32 0.0, %v5879
    %v5881 = vpop.f32.mrb[0].mxu0
    %v5882 = vadd.f32 0.0, %v5881
    %v5883 = vpop.f32.mrb[0].mxu0
    %v5884 = vadd.f32 0.0, %v5883
    %v5885 = vpop.f32.mrb[0].mxu0
    %v5886 = vadd.f32 0.0, %v5885
    %5887 = vmatprep.mubr.bf16.mxu0 %v918
    %5888 = vmatmul.mubr.bf16.gmra.mrb[0].mxu0 %v917
    %v5889 = vpop.f32.mrb[0].mxu0
    %v5890 = vadd.f32 0.0, %v5889
    %v5891 = vpop.f32.mrb[0].mxu0
    %v5892 = vadd.f32 0.0, %v5891
    %v5893 = vpop.f32.mrb[0].mxu0
    %v5894 = vadd.f32 0.0, %v5893
    %v5895 = vpop.f32.mrb[0].mxu0
    %v5896 = vadd.f32 0.0, %v5895
    %5897 = vdwg.mxu0
    %v5898 = vrcp.pop %v5775
    %v5899 = vrcp.pop %v5812
    %v5900 = vmul.f32 %v5880, %v5898
    %v5901 = vmul.f32 %v5882, %v5899
    %v5902 = vmul.f32 %v5884, %v5898
    %v5903 = vmul.f32 %v5886, %v5899
    %v5904 = vmul.f32 %v5890, %v5898
    %v5905 = vmul.f32 %v5892, %v5899
    %v5906 = vmul.f32 %v5894, %v5898
    %v5907 = vmul.f32 %v5896, %v5899
    %v5908 = vpack.c.bf16 %v5902, %v5900
    %v5909 = vpack.c.bf16 %v5903, %v5901
    %v5910 = vpack.c.bf16 %v5906, %v5904
    %v5911 = vpack.c.bf16 %v5907, %v5905
    %5912 = vxpose.xlu0.c.b16.start [1/8] %v889, 128
    %5913 = vxpose.xlu0.c.b16.cont [2/8] %v893, 128
    %5914 = vxpose.xlu0.c.b16.cont [3/8] 0, 128
    %5915 = vxpose.xlu0.c.b16.cont [4/8] 0, 128
    %5916 = vxpose.xlu0.c.b16.cont [5/8] 0, 128
    %5917 = vxpose.xlu0.c.b16.cont [6/8] 0, 128
    %5918 = vxpose.xlu0.c.b16.cont [7/8] 0, 128
    %5919 = vxpose.xlu0.c.b16.end [8/8] 0, 128
    %v5920 = vpop.trf.xlu0
    %v5921 = vpop.trf.xlu0
    %v5922 = vpop.trf.xlu0
    %v5923 = vpop.trf.xlu0
    %v5924 = vpop.trf.xlu0
    %v5925 = vpop.trf.xlu0
    %v5926 = vpop.trf.xlu0
    %v5927 = vpop.trf.xlu0
    %5928 = vxpose.xlu0.c.b16.start [1/8] %v890, 128
    %5929 = vxpose.xlu0.c.b16.cont [2/8] %v894, 128
    %5930 = vxpose.xlu0.c.b16.cont [3/8] 0, 128
    %5931 = vxpose.xlu0.c.b16.cont [4/8] 0, 128
    %5932 = vxpose.xlu0.c.b16.cont [5/8] 0, 128
    %5933 = vxpose.xlu0.c.b16.cont [6/8] 0, 128
    %5934 = vxpose.xlu0.c.b16.cont [7/8] 0, 128
    %5935 = vxpose.xlu0.c.b16.end [8/8] 0, 128
    %v5936 = vpop.trf.xlu0
    %v5937 = vpop.trf.xlu0
    %v5938 = vpop.trf.xlu0
    %v5939 = vpop.trf.xlu0
    %v5940 = vpop.trf.xlu0
    %v5941 = vpop.trf.xlu0
    %v5942 = vpop.trf.xlu0
    %v5943 = vpop.trf.xlu0
    %v5945 = vsel %vm959, %v5920, 0
    %v5948 = vsel %vm959, %v5921, 0
    %v5951 = vsel %vm959, %v5922, 0
    %v5954 = vsel %vm959, %v5923, 0
    %v5957 = vsel %vm959, %v5924, 0
    %v5960 = vsel %vm959, %v5925, 0
    %v5963 = vsel %vm959, %v5926, 0
    %v5966 = vsel %vm959, %v5927, 0
    %v5969 = vsel %vm959, %v5936, 0
    %v5972 = vsel %vm959, %v5937, 0
    %v5975 = vsel %vm959, %v5938, 0
    %v5978 = vsel %vm959, %v5939, 0
    %v5981 = vsel %vm959, %v5940, 0
    %v5984 = vsel %vm959, %v5941, 0
    %v5987 = vsel %vm959, %v5942, 0
    %v5990 = vsel %vm959, %v5943, 0
    %5992 = vmatprep.subr.bf16.mxu0 %v858
    %5993 = vmatpush1.bf16.msra.mxu0 %v857
    %5994 = vmatprep.subr.bf16.mxu0 %v862
    %5995 = vmatpush1.bf16.msra.mxu0 %v861
    %5996 = vmatprep.subr.bf16.mxu0 0
    %5997 = vmatpush1.bf16.msra.mxu0 0
    %5998 = vmatprep.subr.bf16.mxu0 0
    %5999 = vmatpush1.bf16.msra.mxu0 0
    %6000 = vmatprep.subr.bf16.mxu0 0
    %6001 = vmatpush1.bf16.msra.mxu0 0
    %6002 = vmatprep.subr.bf16.mxu0 0
    %6003 = vmatpush1.bf16.msra.mxu0 0
    %6004 = vmatprep.subr.bf16.mxu0 0
    %6005 = vmatpush1.bf16.msra.mxu0 0
    %6006 = vmatprep.subr.bf16.mxu0 0
    %6007 = vmatpush1.bf16.msra.mxu0 0
    %6008 = vmatprep.subr.bf16.mxu0 0
    %6009 = vmatpush1.bf16.msra.mxu0 0
    %6010 = vmatprep.subr.bf16.mxu0 0
    %6011 = vmatpush1.bf16.msra.mxu0 0
    %6012 = vmatprep.subr.bf16.mxu0 0
    %6013 = vmatpush1.bf16.msra.mxu0 0
    %6014 = vmatprep.subr.bf16.mxu0 0
    %6015 = vmatpush1.bf16.msra.mxu0 0
    %6016 = vmatprep.subr.bf16.mxu0 0
    %6017 = vmatpush1.bf16.msra.mxu0 0
    %6018 = vmatprep.subr.bf16.mxu0 0
    %6019 = vmatpush1.bf16.msra.mxu0 0
    %6020 = vmatprep.subr.bf16.mxu0 0
    %6021 = vmatpush1.bf16.msra.mxu0 0
    %6022 = vmatprep.subr.bf16.mxu0 0
    %6023 = vmatpush1.bf16.msra.mxu0 0
    %6024 = vmatprep.mubr.bf16.mxu0 0
    %6025 = vmatmul.mubr.bf16.gmra.mrb[0].mxu0 %v5945
    %v6026 = vpop.f32.mrb[0].mxu0
    %v6027 = vadd.f32 0.0, %v6026
    %v6028 = vpop.f32.mrb[0].mxu0
    %v6029 = vadd.f32 0.0, %v6028
    %v6030 = vpop.f32.mrb[0].mxu0
    %v6031 = vadd.f32 0.0, %v6030
    %v6032 = vpop.f32.mrb[0].mxu0
    %v6033 = vadd.f32 0.0, %v6032
    %6034 = vmatprep.mubr.bf16.mxu0 0
    %6035 = vmatmul.mubr.bf16.gmra.mrb[0].mxu0 %v5948
    %v6036 = vpop.f32.mrb[0].mxu0
    %v6037 = vadd.f32 0.0, %v6036
    %v6038 = vpop.f32.mrb[0].mxu0
    %v6039 = vadd.f32 0.0, %v6038
    %v6040 = vpop.f32.mrb[0].mxu0
    %v6041 = vadd.f32 0.0, %v6040
    %v6042 = vpop.f32.mrb[0].mxu0
    %v6043 = vadd.f32 0.0, %v6042
    %6044 = vmatprep.mubr.bf16.mxu0 0
    %6045 = vmatmul.mubr.bf16.gmra.mrb[0].mxu0 %v5951
    %v6046 = vpop.f32.mrb[0].mxu0
    %v6047 = vadd.f32 0.0, %v6046
    %v6048 = vpop.f32.mrb[0].mxu0
    %v6049 = vadd.f32 0.0, %v6048
    %v6050 = vpop.f32.mrb[0].mxu0
    %v6051 = vadd.f32 0.0, %v6050
    %v6052 = vpop.f32.mrb[0].mxu0
    %v6053 = vadd.f32 0.0, %v6052
    %6054 = vmatprep.mubr.bf16.mxu0 0
    %6055 = vmatmul.mubr.bf16.gmra.mrb[0].mxu0 %v5954
    %v6056 = vpop.f32.mrb[0].mxu0
    %v6057 = vadd.f32 0.0, %v6056
    %v6058 = vpop.f32.mrb[0].mxu0
    %v6059 = vadd.f32 0.0, %v6058
    %v6060 = vpop.f32.mrb[0].mxu0
    %v6061 = vadd.f32 0.0, %v6060
    %v6062 = vpop.f32.mrb[0].mxu0
    %v6063 = vadd.f32 0.0, %v6062
    %6064 = vmatprep.mubr.bf16.mxu0 0
    %6065 = vmatmul.mubr.bf16.gmra.mrb[0].mxu0 %v5957
    %v6066 = vpop.f32.mrb[0].mxu0
    %v6067 = vadd.f32 0.0, %v6066
    %v6068 = vpop.f32.mrb[0].mxu0
    %v6069 = vadd.f32 0.0, %v6068
    %v6070 = vpop.f32.mrb[0].mxu0
    %v6071 = vadd.f32 0.0, %v6070
    %v6072 = vpop.f32.mrb[0].mxu0
    %v6073 = vadd.f32 0.0, %v6072
    %6074 = vmatprep.mubr.bf16.mxu0 0
    %6075 = vmatmul.mubr.bf16.gmra.mrb[0].mxu0 %v5960
    %v6076 = vpop.f32.mrb[0].mxu0
    %v6077 = vadd.f32 0.0, %v6076
    %v6078 = vpop.f32.mrb[0].mxu0
    %v6079 = vadd.f32 0.0, %v6078
    %v6080 = vpop.f32.mrb[0].mxu0
    %v6081 = vadd.f32 0.0, %v6080
    %v6082 = vpop.f32.mrb[0].mxu0
    %v6083 = vadd.f32 0.0, %v6082
    %6084 = vmatprep.mubr.bf16.mxu0 0
    %6085 = vmatmul.mubr.bf16.gmra.mrb[0].mxu0 %v5963
    %v6086 = vpop.f32.mrb[0].mxu0
    %v6087 = vadd.f32 0.0, %v6086
    %v6088 = vpop.f32.mrb[0].mxu0
    %v6089 = vadd.f32 0.0, %v6088
    %v6090 = vpop.f32.mrb[0].mxu0
    %v6091 = vadd.f32 0.0, %v6090
    %v6092 = vpop.f32.mrb[0].mxu0
    %v6093 = vadd.f32 0.0, %v6092
    %6094 = vmatprep.mubr.bf16.mxu0 0
    %6095 = vmatmul.mubr.bf16.gmra.mrb[0].mxu0 %v5966
    %v6096 = vpop.f32.mrb[0].mxu0
    %v6097 = vadd.f32 0.0, %v6096
    %v6098 = vpop.f32.mrb[0].mxu0
    %v6099 = vadd.f32 0.0, %v6098
    %v6100 = vpop.f32.mrb[0].mxu0
    %v6101 = vadd.f32 0.0, %v6100
    %v6102 = vpop.f32.mrb[0].mxu0
    %v6103 = vadd.f32 0.0, %v6102
    %6104 = vmatprep.mubr.bf16.mxu0 0
    %6105 = vmatmul.mubr.bf16.gmra.mrb[0].mxu0 %v5969
    %v6106 = vpop.f32.mrb[0].mxu0
    %v6107 = vadd.f32 0.0, %v6106
    %v6108 = vpop.f32.mrb[0].mxu0
    %v6109 = vadd.f32 0.0, %v6108
    %v6110 = vpop.f32.mrb[0].mxu0
    %v6111 = vadd.f32 0.0, %v6110
    %v6112 = vpop.f32.mrb[0].mxu0
    %v6113 = vadd.f32 0.0, %v6112
    %6114 = vmatprep.mubr.bf16.mxu0 0
    %6115 = vmatmul.mubr.bf16.gmra.mrb[0].mxu0 %v5972
    %v6116 = vpop.f32.mrb[0].mxu0
    %v6117 = vadd.f32 0.0, %v6116
    %v6118 = vpop.f32.mrb[0].mxu0
    %v6119 = vadd.f32 0.0, %v6118
    %v6120 = vpop.f32.mrb[0].mxu0
    %v6121 = vadd.f32 0.0, %v6120
    %v6122 = vpop.f32.mrb[0].mxu0
    %v6123 = vadd.f32 0.0, %v6122
    %6124 = vmatprep.mubr.bf16.mxu0 0
    %6125 = vmatmul.mubr.bf16.gmra.mrb[0].mxu0 %v5975
    %v6126 = vpop.f32.mrb[0].mxu0
    %v6127 = vadd.f32 0.0, %v6126
    %v6128 = vpop.f32.mrb[0].mxu0
    %v6129 = vadd.f32 0.0, %v6128
    %v6130 = vpop.f32.mrb[0].mxu0
    %v6131 = vadd.f32 0.0, %v6130
    %v6132 = vpop.f32.mrb[0].mxu0
    %v6133 = vadd.f32 0.0, %v6132
    %6134 = vmatprep.mubr.bf16.mxu0 0
    %6135 = vmatmul.mubr.bf16.gmra.mrb[0].mxu0 %v5978
    %v6136 = vpop.f32.mrb[0].mxu0
    %v6137 = vadd.f32 0.0, %v6136
    %v6138 = vpop.f32.mrb[0].mxu0
    %v6139 = vadd.f32 0.0, %v6138
    %v6140 = vpop.f32.mrb[0].mxu0
    %v6141 = vadd.f32 0.0, %v6140
    %v6142 = vpop.f32.mrb[0].mxu0
    %v6143 = vadd.f32 0.0, %v6142
    %6144 = vmatprep.mubr.bf16.mxu0 0
    %6145 = vmatmul.mubr.bf16.gmra.mrb[0].mxu0 %v5981
    %v6146 = vpop.f32.mrb[0].mxu0
    %v6147 = vadd.f32 0.0, %v6146
    %v6148 = vpop.f32.mrb[0].mxu0
    %v6149 = vadd.f32 0.0, %v6148
    %v6150 = vpop.f32.mrb[0].mxu0
    %v6151 = vadd.f32 0.0, %v6150
    %v6152 = vpop.f32.mrb[0].mxu0
    %v6153 = vadd.f32 0.0, %v6152
    %6154 = vmatprep.mubr.bf16.mxu0 0
    %6155 = vmatmul.mubr.bf16.gmra.mrb[0].mxu0 %v5984
    %v6156 = vpop.f32.mrb[0].mxu0
    %v6157 = vadd.f32 0.0, %v6156
    %v6158 = vpop.f32.mrb[0].mxu0
    %v6159 = vadd.f32 0.0, %v6158
    %v6160 = vpop.f32.mrb[0].mxu0
    %v6161 = vadd.f32 0.0, %v6160
    %v6162 = vpop.f32.mrb[0].mxu0
    %v6163 = vadd.f32 0.0, %v6162
    %6164 = vmatprep.mubr.bf16.mxu0 0
    %6165 = vmatmul.mubr.bf16.gmra.mrb[0].mxu0 %v5987
    %v6166 = vpop.f32.mrb[0].mxu0
    %v6167 = vadd.f32 0.0, %v6166
    %v6168 = vpop.f32.mrb[0].mxu0
    %v6169 = vadd.f32 0.0, %v6168
    %v6170 = vpop.f32.mrb[0].mxu0
    %v6171 = vadd.f32 0.0, %v6170
    %v6172 = vpop.f32.mrb[0].mxu0
    %v6173 = vadd.f32 0.0, %v6172
    %6174 = vmatprep.mubr.bf16.mxu0 0
    %6175 = vmatmul.mubr.bf16.gmra.mrb[0].mxu0 %v5990
    %v6176 = vpop.f32.mrb[0].mxu0
    %v6177 = vadd.f32 0.0, %v6176
    %v6178 = vpop.f32.mrb[0].mxu0
    %v6179 = vadd.f32 0.0, %v6178
    %v6180 = vpop.f32.mrb[0].mxu0
    %v6181 = vadd.f32 0.0, %v6180
    %v6182 = vpop.f32.mrb[0].mxu0
    %v6183 = vadd.f32 0.0, %v6182
    %6184 = vdwg.mxu0
    %v6185 = vmax.f32 %v6027, %v6037
    %v6186 = vmax.f32 %v6031, %v6041
    %v6187 = vmax.f32 %v6185, %v6047
    %v6188 = vmax.f32 %v6186, %v6051
    %v6189 = vmax.f32 %v6187, %v6057
    %v6190 = vmax.f32 %v6188, %v6061
    %v6191 = vmax.f32 %v6189, %v6067
    %v6192 = vmax.f32 %v6190, %v6071
    %v6193 = vmax.f32 %v6191, %v6077
    %v6194 = vmax.f32 %v6192, %v6081
    %v6195 = vmax.f32 %v6193, %v6087
    %v6196 = vmax.f32 %v6194, %v6091
    %v6197 = vmax.f32 %v6195, %v6097
    %v6198 = vmax.f32 %v6196, %v6101
    %v6199 = vmax.f32 %v6197, %v6107
    %v6200 = vmax.f32 %v6198, %v6111
    %v6201 = vmax.f32 %v6199, %v6117
    %v6202 = vmax.f32 %v6200, %v6121
    %v6203 = vmax.f32 %v6201, %v6127
    %v6204 = vmax.f32 %v6202, %v6131
    %v6205 = vmax.f32 %v6203, %v6137
    %v6206 = vmax.f32 %v6204, %v6141
    %v6207 = vmax.f32 %v6205, %v6147
    %v6208 = vmax.f32 %v6206, %v6151
    %v6209 = vmax.f32 %v6207, %v6157
    %v6210 = vmax.f32 %v6208, %v6161
    %v6211 = vmax.f32 %v6209, %v6167
    %v6212 = vmax.f32 %v6210, %v6171
    %v6213 = vmax.f32 %v6211, %v6177
    %v6214 = vmax.f32 %v6212, %v6181
    %v6215 = vmax.f32 %v6213, %v6214
    %v6216 = vrot.slane %v6215, 4
    %v6217 = vmax.f32 %v6215, %v6216
    %v6218 = vrot.slane %v6217, 2
    %v6219 = vmax.f32 %v6217, %v6218
    %v6220 = vrot.slane %v6219, 1
    %v6221 = vmax.f32 %v6219, %v6220
    %v6222 = vmax.f32 %v6029, %v6039
    %v6223 = vmax.f32 %v6033, %v6043
    %v6224 = vmax.f32 %v6222, %v6049
    %v6225 = vmax.f32 %v6223, %v6053
    %v6226 = vmax.f32 %v6224, %v6059
    %v6227 = vmax.f32 %v6225, %v6063
    %v6228 = vmax.f32 %v6226, %v6069
    %v6229 = vmax.f32 %v6227, %v6073
    %v6230 = vmax.f32 %v6228, %v6079
    %v6231 = vmax.f32 %v6229, %v6083
    %v6232 = vmax.f32 %v6230, %v6089
    %v6233 = vmax.f32 %v6231, %v6093
    %v6234 = vmax.f32 %v6232, %v6099
    %v6235 = vmax.f32 %v6233, %v6103
    %v6236 = vmax.f32 %v6234, %v6109
    %v6237 = vmax.f32 %v6235, %v6113
    %v6238 = vmax.f32 %v6236, %v6119
    %v6239 = vmax.f32 %v6237, %v6123
    %v6240 = vmax.f32 %v6238, %v6129
    %v6241 = vmax.f32 %v6239, %v6133
    %v6242 = vmax.f32 %v6240, %v6139
    %v6243 = vmax.f32 %v6241, %v6143
    %v6244 = vmax.f32 %v6242, %v6149
    %v6245 = vmax.f32 %v6243, %v6153
    %v6246 = vmax.f32 %v6244, %v6159
    %v6247 = vmax.f32 %v6245, %v6163
    %v6248 = vmax.f32 %v6246, %v6169
    %v6249 = vmax.f32 %v6247, %v6173
    %v6250 = vmax.f32 %v6248, %v6179
    %v6251 = vmax.f32 %v6249, %v6183
    %v6252 = vmax.f32 %v6250, %v6251
    %v6253 = vrot.slane %v6252, 4
    %v6254 = vmax.f32 %v6252, %v6253
    %v6255 = vrot.slane %v6254, 2
    %v6256 = vmax.f32 %v6254, %v6255
    %v6257 = vrot.slane %v6256, 1
    %v6258 = vmax.f32 %v6256, %v6257
    %v6259 = vsub.f32 %v6027, %v6221
    %v6260 = vsub.f32 %v6029, %v6258
    %v6261 = vsub.f32 %v6031, %v6221
    %v6262 = vsub.f32 %v6033, %v6258
    %v6263 = vsub.f32 %v6037, %v6221
    %v6264 = vsub.f32 %v6039, %v6258
    %v6265 = vsub.f32 %v6041, %v6221
    %v6266 = vsub.f32 %v6043, %v6258
    %v6267 = vsub.f32 %v6047, %v6221
    %v6268 = vsub.f32 %v6049, %v6258
    %v6269 = vsub.f32 %v6051, %v6221
    %v6270 = vsub.f32 %v6053, %v6258
    %v6271 = vsub.f32 %v6057, %v6221
    %v6272 = vsub.f32 %v6059, %v6258
    %v6273 = vsub.f32 %v6061, %v6221
    %v6274 = vsub.f32 %v6063, %v6258
    %v6275 = vsub.f32 %v6067, %v6221
    %v6276 = vsub.f32 %v6069, %v6258
    %v6277 = vsub.f32 %v6071, %v6221
    %v6278 = vsub.f32 %v6073, %v6258
    %v6279 = vsub.f32 %v6077, %v6221
    %v6280 = vsub.f32 %v6079, %v6258
    %v6281 = vsub.f32 %v6081, %v6221
    %v6282 = vsub.f32 %v6083, %v6258
    %v6283 = vsub.f32 %v6087, %v6221
    %v6284 = vsub.f32 %v6089, %v6258
    %v6285 = vsub.f32 %v6091, %v6221
    %v6286 = vsub.f32 %v6093, %v6258
    %v6287 = vsub.f32 %v6097, %v6221
    %v6288 = vsub.f32 %v6099, %v6258
    %v6289 = vsub.f32 %v6101, %v6221
    %v6290 = vsub.f32 %v6103, %v6258
    %v6291 = vsub.f32 %v6107, %v6221
    %v6292 = vsub.f32 %v6109, %v6258
    %v6293 = vsub.f32 %v6111, %v6221
    %v6294 = vsub.f32 %v6113, %v6258
    %v6295 = vsub.f32 %v6117, %v6221
    %v6296 = vsub.f32 %v6119, %v6258
    %v6297 = vsub.f32 %v6121, %v6221
    %v6298 = vsub.f32 %v6123, %v6258
    %v6299 = vsub.f32 %v6127, %v6221
    %v6300 = vsub.f32 %v6129, %v6258
    %v6301 = vsub.f32 %v6131, %v6221
    %v6302 = vsub.f32 %v6133, %v6258
    %v6303 = vsub.f32 %v6137, %v6221
    %v6304 = vsub.f32 %v6139, %v6258
    %v6305 = vsub.f32 %v6141, %v6221
    %v6306 = vsub.f32 %v6143, %v6258
    %v6307 = vsub.f32 %v6147, %v6221
    %v6308 = vsub.f32 %v6149, %v6258
    %v6309 = vsub.f32 %v6151, %v6221
    %v6310 = vsub.f32 %v6153, %v6258
    %v6311 = vsub.f32 %v6157, %v6221
    %v6312 = vsub.f32 %v6159, %v6258
    %v6313 = vsub.f32 %v6161, %v6221
    %v6314 = vsub.f32 %v6163, %v6258
    %v6315 = vsub.f32 %v6167, %v6221
    %v6316 = vsub.f32 %v6169, %v6258
    %v6317 = vsub.f32 %v6171, %v6221
    %v6318 = vsub.f32 %v6173, %v6258
    %v6319 = vsub.f32 %v6177, %v6221
    %v6320 = vsub.f32 %v6179, %v6258
    %v6321 = vsub.f32 %v6181, %v6221
    %v6322 = vsub.f32 %v6183, %v6258
    %v6323 = vmul.f32 %v6259, 1.442695
    %v6324 = vpow.pop %v6323
    %v6325 = vmul.f32 %v6260, 1.442695
    %v6326 = vpow.pop %v6325
    %v6327 = vmul.f32 %v6261, 1.442695
    %v6328 = vpow.pop %v6327
    %v6329 = vmul.f32 %v6262, 1.442695
    %v6330 = vpow.pop %v6329
    %v6331 = vmul.f32 %v6263, 1.442695
    %v6332 = vpow.pop %v6331
    %v6333 = vmul.f32 %v6264, 1.442695
    %v6334 = vpow.pop %v6333
    %v6335 = vmul.f32 %v6265, 1.442695
    %v6336 = vpow.pop %v6335
    %v6337 = vmul.f32 %v6266, 1.442695
    %v6338 = vpow.pop %v6337
    %v6339 = vmul.f32 %v6267, 1.442695
    %v6340 = vpow.pop %v6339
    %v6341 = vmul.f32 %v6268, 1.442695
    %v6342 = vpow.pop %v6341
    %v6343 = vmul.f32 %v6269, 1.442695
    %v6344 = vpow.pop %v6343
    %v6345 = vmul.f32 %v6270, 1.442695
    %v6346 = vpow.pop %v6345
    %v6347 = vmul.f32 %v6271, 1.442695
    %v6348 = vpow.pop %v6347
    %v6349 = vmul.f32 %v6272, 1.442695
    %v6350 = vpow.pop %v6349
    %v6351 = vmul.f32 %v6273, 1.442695
    %v6352 = vpow.pop %v6351
    %v6353 = vmul.f32 %v6274, 1.442695
    %v6354 = vpow.pop %v6353
    %v6355 = vmul.f32 %v6275, 1.442695
    %v6356 = vpow.pop %v6355
    %v6357 = vmul.f32 %v6276, 1.442695
    %v6358 = vpow.pop %v6357
    %v6359 = vmul.f32 %v6277, 1.442695
    %v6360 = vpow.pop %v6359
    %v6361 = vmul.f32 %v6278, 1.442695
    %v6362 = vpow.pop %v6361
    %v6363 = vmul.f32 %v6279, 1.442695
    %v6364 = vpow.pop %v6363
    %v6365 = vmul.f32 %v6280, 1.442695
    %v6366 = vpow.pop %v6365
    %v6367 = vmul.f32 %v6281, 1.442695
    %v6368 = vpow.pop %v6367
    %v6369 = vmul.f32 %v6282, 1.442695
    %v6370 = vpow.pop %v6369
    %v6371 = vmul.f32 %v6283, 1.442695
    %v6372 = vpow.pop %v6371
    %v6373 = vmul.f32 %v6284, 1.442695
    %v6374 = vpow.pop %v6373
    %v6375 = vmul.f32 %v6285, 1.442695
    %v6376 = vpow.pop %v6375
    %v6377 = vmul.f32 %v6286, 1.442695
    %v6378 = vpow.pop %v6377
    %v6379 = vmul.f32 %v6287, 1.442695
    %v6380 = vpow.pop %v6379
    %v6381 = vmul.f32 %v6288, 1.442695
    %v6382 = vpow.pop %v6381
    %v6383 = vmul.f32 %v6289, 1.442695
    %v6384 = vpow.pop %v6383
    %v6385 = vmul.f32 %v6290, 1.442695
    %v6386 = vpow.pop %v6385
    %v6387 = vmul.f32 %v6291, 1.442695
    %v6388 = vpow.pop %v6387
    %v6389 = vmul.f32 %v6292, 1.442695
    %v6390 = vpow.pop %v6389
    %v6391 = vmul.f32 %v6293, 1.442695
    %v6392 = vpow.pop %v6391
    %v6393 = vmul.f32 %v6294, 1.442695
    %v6394 = vpow.pop %v6393
    %v6395 = vmul.f32 %v6295, 1.442695
    %v6396 = vpow.pop %v6395
    %v6397 = vmul.f32 %v6296, 1.442695
    %v6398 = vpow.pop %v6397
    %v6399 = vmul.f32 %v6297, 1.442695
    %v6400 = vpow.pop %v6399
    %v6401 = vmul.f32 %v6298, 1.442695
    %v6402 = vpow.pop %v6401
    %v6403 = vmul.f32 %v6299, 1.442695
    %v6404 = vpow.pop %v6403
    %v6405 = vmul.f32 %v6300, 1.442695
    %v6406 = vpow.pop %v6405
    %v6407 = vmul.f32 %v6301, 1.442695
    %v6408 = vpow.pop %v6407
    %v6409 = vmul.f32 %v6302, 1.442695
    %v6410 = vpow.pop %v6409
    %v6411 = vmul.f32 %v6303, 1.442695
    %v6412 = vpow.pop %v6411
    %v6413 = vmul.f32 %v6304, 1.442695
    %v6414 = vpow.pop %v6413
    %v6415 = vmul.f32 %v6305, 1.442695
    %v6416 = vpow.pop %v6415
    %v6417 = vmul.f32 %v6306, 1.442695
    %v6418 = vpow.pop %v6417
    %v6419 = vmul.f32 %v6307, 1.442695
    %v6420 = vpow.pop %v6419
    %v6421 = vmul.f32 %v6308, 1.442695
    %v6422 = vpow.pop %v6421
    %v6423 = vmul.f32 %v6309, 1.442695
    %v6424 = vpow.pop %v6423
    %v6425 = vmul.f32 %v6310, 1.442695
    %v6426 = vpow.pop %v6425
    %v6427 = vmul.f32 %v6311, 1.442695
    %v6428 = vpow.pop %v6427
    %v6429 = vmul.f32 %v6312, 1.442695
    %v6430 = vpow.pop %v6429
    %v6431 = vmul.f32 %v6313, 1.442695
    %v6432 = vpow.pop %v6431
    %v6433 = vmul.f32 %v6314, 1.442695
    %v6434 = vpow.pop %v6433
    %v6435 = vmul.f32 %v6315, 1.442695
    %v6436 = vpow.pop %v6435
    %v6437 = vmul.f32 %v6316, 1.442695
    %v6438 = vpow.pop %v6437
    %v6439 = vmul.f32 %v6317, 1.442695
    %v6440 = vpow.pop %v6439
    %v6441 = vmul.f32 %v6318, 1.442695
    %v6442 = vpow.pop %v6441
    %v6443 = vmul.f32 %v6319, 1.442695
    %v6444 = vpow.pop %v6443
    %v6445 = vmul.f32 %v6320, 1.442695
    %v6446 = vpow.pop %v6445
    %v6447 = vmul.f32 %v6321, 1.442695
    %v6448 = vpow.pop %v6447
    %v6449 = vmul.f32 %v6322, 1.442695
    %v6450 = vpow.pop %v6449
    %v6451 = vadd.f32 %v6324, %v6328
    %v6452 = vadd.f32 %v6451, %v6332
    %v6453 = vadd.f32 %v6452, %v6336
    %v6454 = vadd.f32 %v6453, %v6340
    %v6455 = vadd.f32 %v6454, %v6344
    %v6456 = vadd.f32 %v6455, %v6348
    %v6457 = vadd.f32 %v6456, %v6352
    %v6458 = vadd.f32 %v6457, %v6356
    %v6459 = vadd.f32 %v6458, %v6360
    %v6460 = vadd.f32 %v6459, %v6364
    %v6461 = vadd.f32 %v6460, %v6368
    %v6462 = vadd.f32 %v6461, %v6372
    %v6463 = vadd.f32 %v6462, %v6376
    %v6464 = vadd.f32 %v6463, %v6380
    %v6465 = vadd.f32 %v6464, %v6384
    %v6466 = vadd.f32 %v6465, %v6388
    %v6467 = vadd.f32 %v6466, %v6392
    %v6468 = vadd.f32 %v6467, %v6396
    %v6469 = vadd.f32 %v6468, %v6400
    %v6470 = vadd.f32 %v6469, %v6404
    %v6471 = vadd.f32 %v6470, %v6408
    %v6472 = vadd.f32 %v6471, %v6412
    %v6473 = vadd.f32 %v6472, %v6416
    %v6474 = vadd.f32 %v6473, %v6420
    %v6475 = vadd.f32 %v6474, %v6424
    %v6476 = vadd.f32 %v6475, %v6428
    %v6477 = vadd.f32 %v6476, %v6432
    %v6478 = vadd.f32 %v6477, %v6436
    %v6479 = vadd.f32 %v6478, %v6440
    %v6480 = vadd.f32 %v6479, %v6444
    %v6481 = vadd.f32 %v6480, %v6448
    %v6482 = vrot.slane %v6481, 4
    %v6483 = vadd.f32 %v6481, %v6482
    %v6484 = vrot.slane %v6483, 2
    %v6485 = vadd.f32 %v6483, %v6484
    %v6486 = vrot.slane %v6485, 1
    %v6487 = vadd.f32 %v6485, %v6486
    %v6488 = vadd.f32 %v6326, %v6330
    %v6489 = vadd.f32 %v6488, %v6334
    %v6490 = vadd.f32 %v6489, %v6338
    %v6491 = vadd.f32 %v6490, %v6342
    %v6492 = vadd.f32 %v6491, %v6346
    %v6493 = vadd.f32 %v6492, %v6350
    %v6494 = vadd.f32 %v6493, %v6354
    %v6495 = vadd.f32 %v6494, %v6358
    %v6496 = vadd.f32 %v6495, %v6362
    %v6497 = vadd.f32 %v6496, %v6366
    %v6498 = vadd.f32 %v6497, %v6370
    %v6499 = vadd.f32 %v6498, %v6374
    %v6500 = vadd.f32 %v6499, %v6378
    %v6501 = vadd.f32 %v6500, %v6382
    %v6502 = vadd.f32 %v6501, %v6386
    %v6503 = vadd.f32 %v6502, %v6390
    %v6504 = vadd.f32 %v6503, %v6394
    %v6505 = vadd.f32 %v6504, %v6398
    %v6506 = vadd.f32 %v6505, %v6402
    %v6507 = vadd.f32 %v6506, %v6406
    %v6508 = vadd.f32 %v6507, %v6410
    %v6509 = vadd.f32 %v6508, %v6414
    %v6510 = vadd.f32 %v6509, %v6418
    %v6511 = vadd.f32 %v6510, %v6422
    %v6512 = vadd.f32 %v6511, %v6426
    %v6513 = vadd.f32 %v6512, %v6430
    %v6514 = vadd.f32 %v6513, %v6434
    %v6515 = vadd.f32 %v6514, %v6438
    %v6516 = vadd.f32 %v6515, %v6442
    %v6517 = vadd.f32 %v6516, %v6446
    %v6518 = vadd.f32 %v6517, %v6450
    %v6519 = vrot.slane %v6518, 4
    %v6520 = vadd.f32 %v6518, %v6519
    %v6521 = vrot.slane %v6520, 2
    %v6522 = vadd.f32 %v6520, %v6521
    %v6523 = vrot.slane %v6522, 1
    %v6524 = vadd.f32 %v6522, %v6523
    %v6525 = vpack.c.bf16 %v6328, %v6324
    %v6526 = vpack.c.bf16 %v6330, %v6326
    %v6527 = vpack.c.bf16 %v6336, %v6332
    %v6528 = vpack.c.bf16 %v6338, %v6334
    %v6529 = vpack.c.bf16 %v6344, %v6340
    %v6530 = vpack.c.bf16 %v6346, %v6342
    %v6531 = vpack.c.bf16 %v6352, %v6348
    %v6532 = vpack.c.bf16 %v6354, %v6350
    %v6533 = vpack.c.bf16 %v6360, %v6356
    %v6534 = vpack.c.bf16 %v6362, %v6358
    %v6535 = vpack.c.bf16 %v6368, %v6364
    %v6536 = vpack.c.bf16 %v6370, %v6366
    %v6537 = vpack.c.bf16 %v6376, %v6372
    %v6538 = vpack.c.bf16 %v6378, %v6374
    %v6539 = vpack.c.bf16 %v6384, %v6380
    %v6540 = vpack.c.bf16 %v6386, %v6382
    %v6541 = vpack.c.bf16 %v6392, %v6388
    %v6542 = vpack.c.bf16 %v6394, %v6390
    %v6543 = vpack.c.bf16 %v6400, %v6396
    %v6544 = vpack.c.bf16 %v6402, %v6398
    %v6545 = vpack.c.bf16 %v6408, %v6404
    %v6546 = vpack.c.bf16 %v6410, %v6406
    %v6547 = vpack.c.bf16 %v6416, %v6412
    %v6548 = vpack.c.bf16 %v6418, %v6414
    %v6549 = vpack.c.bf16 %v6424, %v6420
    %v6550 = vpack.c.bf16 %v6426, %v6422
    %v6551 = vpack.c.bf16 %v6432, %v6428
    %v6552 = vpack.c.bf16 %v6434, %v6430
    %v6553 = vpack.c.bf16 %v6440, %v6436
    %v6554 = vpack.c.bf16 %v6442, %v6438
    %v6555 = vpack.c.bf16 %v6448, %v6444
    %v6556 = vpack.c.bf16 %v6450, %v6446
    %6557 = vmatprep.subr.bf16.mxu0 %v6526
    %6558 = vmatpush1.bf16.msra.mxu0 %v6525
    %6559 = vmatprep.subr.bf16.mxu0 %v6528
    %6560 = vmatpush1.bf16.msra.mxu0 %v6527
    %6561 = vmatprep.subr.bf16.mxu0 %v6530
    %6562 = vmatpush1.bf16.msra.mxu0 %v6529
    %6563 = vmatprep.subr.bf16.mxu0 %v6532
    %6564 = vmatpush1.bf16.msra.mxu0 %v6531
    %6565 = vmatprep.subr.bf16.mxu0 %v6534
    %6566 = vmatpush1.bf16.msra.mxu0 %v6533
    %6567 = vmatprep.subr.bf16.mxu0 %v6536
    %6568 = vmatpush1.bf16.msra.mxu0 %v6535
    %6569 = vmatprep.subr.bf16.mxu0 %v6538
    %6570 = vmatpush1.bf16.msra.mxu0 %v6537
    %6571 = vmatprep.subr.bf16.mxu0 %v6540
    %6572 = vmatpush1.bf16.msra.mxu0 %v6539
    %6573 = vmatprep.subr.bf16.mxu0 %v6542
    %6574 = vmatpush1.bf16.msra.mxu0 %v6541
    %6575 = vmatprep.subr.bf16.mxu0 %v6544
    %6576 = vmatpush1.bf16.msra.mxu0 %v6543
    %6577 = vmatprep.subr.bf16.mxu0 %v6546
    %6578 = vmatpush1.bf16.msra.mxu0 %v6545
    %6579 = vmatprep.subr.bf16.mxu0 %v6548
    %6580 = vmatpush1.bf16.msra.mxu0 %v6547
    %6581 = vmatprep.subr.bf16.mxu0 %v6550
    %6582 = vmatpush1.bf16.msra.mxu0 %v6549
    %6583 = vmatprep.subr.bf16.mxu0 %v6552
    %6584 = vmatpush1.bf16.msra.mxu0 %v6551
    %6585 = vmatprep.subr.bf16.mxu0 %v6554
    %6586 = vmatpush1.bf16.msra.mxu0 %v6553
    %6587 = vmatprep.subr.bf16.mxu0 %v6556
    %6588 = vmatpush1.bf16.msra.mxu0 %v6555
    %6589 = vmatprep.mubr.bf16.mxu0 %v922
    %6590 = vmatmul.mubr.bf16.gmra.mrb[0].mxu0 %v921
    %v6591 = vpop.f32.mrb[0].mxu0
    %v6592 = vadd.f32 0.0, %v6591
    %v6593 = vpop.f32.mrb[0].mxu0
    %v6594 = vadd.f32 0.0, %v6593
    %v6595 = vpop.f32.mrb[0].mxu0
    %v6596 = vadd.f32 0.0, %v6595
    %v6597 = vpop.f32.mrb[0].mxu0
    %v6598 = vadd.f32 0.0, %v6597
    %6599 = vmatprep.mubr.bf16.mxu0 %v926
    %6600 = vmatmul.mubr.bf16.gmra.mrb[0].mxu0 %v925
    %v6601 = vpop.f32.mrb[0].mxu0
    %v6602 = vadd.f32 0.0, %v6601
    %v6603 = vpop.f32.mrb[0].mxu0
    %v6604 = vadd.f32 0.0, %v6603
    %v6605 = vpop.f32.mrb[0].mxu0
    %v6606 = vadd.f32 0.0, %v6605
    %v6607 = vpop.f32.mrb[0].mxu0
    %v6608 = vadd.f32 0.0, %v6607
    %6609 = vdwg.mxu0
    %v6610 = vrcp.pop %v6487
    %v6611 = vrcp.pop %v6524
    %v6612 = vmul.f32 %v6592, %v6610
    %v6613 = vmul.f32 %v6594, %v6611
    %v6614 = vmul.f32 %v6596, %v6610
    %v6615 = vmul.f32 %v6598, %v6611
    %v6616 = vmul.f32 %v6602, %v6610
    %v6617 = vmul.f32 %v6604, %v6611
    %v6618 = vmul.f32 %v6606, %v6610
    %v6619 = vmul.f32 %v6608, %v6611
    %v6620 = vpack.c.bf16 %v6614, %v6612
    %v6621 = vpack.c.bf16 %v6615, %v6613
    %v6622 = vpack.c.bf16 %v6618, %v6616
    %v6623 = vpack.c.bf16 %v6619, %v6617
    %v6624 = vld [vmem:[%s2] sm:$0xf]
    %v6625 = vld [vmem:[%s3] sm:$0xff]
    %6627 = vset.pattern.permute.xlu0 0
    %6628 = vperm.xlu0 %6627, %v6625
    %v6629 = vpop.permute.xlu0 %6628
    %6631 = vmatprep.subr.bf16.mxu0 %v1637
    %6632 = vmatpush1.bf16.msra.mxu0 %v1636
    %6633 = vmatprep.subr.bf16.mxu0 %v1639
    %6634 = vmatpush1.bf16.msra.mxu0 %v1638
    %6635 = vmatprep.subr.bf16.mxu0 %v2349
    %6636 = vmatpush1.bf16.msra.mxu0 %v2348
    %6637 = vmatprep.subr.bf16.mxu0 %v2351
    %6638 = vmatpush1.bf16.msra.mxu0 %v2350
    %6639 = vmatprep.subr.bf16.mxu0 %v3061
    %6640 = vmatpush1.bf16.msra.mxu0 %v3060
    %6641 = vmatprep.subr.bf16.mxu0 %v3063
    %6642 = vmatpush1.bf16.msra.mxu0 %v3062
    %6643 = vmatprep.subr.bf16.mxu0 %v3773
    %6644 = vmatpush1.bf16.msra.mxu0 %v3772
    %6645 = vmatprep.subr.bf16.mxu0 %v3775
    %6646 = vmatpush1.bf16.msra.mxu0 %v3774
    %6647 = vmatprep.subr.bf16.mxu0 0
    %6648 = vmatpush1.bf16.msra.mxu0 0
    %6649 = vmatprep.subr.bf16.mxu0 0
    %6650 = vmatpush1.bf16.msra.mxu0 0
    %6651 = vmatprep.subr.bf16.mxu0 0
    %6652 = vmatpush1.bf16.msra.mxu0 0
    %6653 = vmatprep.subr.bf16.mxu0 0
    %6654 = vmatpush1.bf16.msra.mxu0 0
    %6655 = vmatprep.subr.bf16.mxu0 0
    %6656 = vmatpush1.bf16.msra.mxu0 0
    %6657 = vmatprep.subr.bf16.mxu0 0
    %6658 = vmatpush1.bf16.msra.mxu0 0
    %6659 = vmatprep.subr.bf16.mxu0 0
    %6660 = vmatpush1.bf16.msra.mxu0 0
    %6661 = vmatprep.subr.bf16.mxu0 0
    %6662 = vmatpush1.bf16.msra.mxu0 0
    %6663 = vmatprep.mubr.bf16.mxu0 0
    %6664 = vmatmul.mubr.bf16.gmra.mrb[0].mxu0 %v6624
    %v6665 = vpop.f32.mrb[0].mxu0
    %v6666 = vadd.f32 %v6629, %v6665
    %v6667 = vpop.f32.mrb[0].mxu0
    %v6668 = vadd.f32 %v6629, %v6667
    %v6669 = vpop.f32.mrb[0].mxu0
    %v6670 = vpop.f32.mrb[0].mxu0
    %6671 = vdwg.mxu0
    %6672 = vmatprep.subr.bf16.mxu0 %v4485
    %6673 = vmatpush1.bf16.msra.mxu0 %v4484
    %6674 = vmatprep.subr.bf16.mxu0 %v4487
    %6675 = vmatpush1.bf16.msra.mxu0 %v4486
    %6676 = vmatprep.subr.bf16.mxu0 %v5197
    %6677 = vmatpush1.bf16.msra.mxu0 %v5196
    %6678 = vmatprep.subr.bf16.mxu0 %v5199
    %6679 = vmatpush1.bf16.msra.mxu0 %v5198
    %6680 = vmatprep.subr.bf16.mxu0 %v5909
    %6681 = vmatpush1.bf16.msra.mxu0 %v5908
    %6682 = vmatprep.subr.bf16.mxu0 %v5911
    %6683 = vmatpush1.bf16.msra.mxu0 %v5910
    %6684 = vmatprep.subr.bf16.mxu0 %v6621
    %6685 = vmatpush1.bf16.msra.mxu0 %v6620
    %6686 = vmatprep.subr.bf16.mxu0 %v6623
    %6687 = vmatpush1.bf16.msra.mxu0 %v6622
    %6688 = vmatprep.subr.bf16.mxu0 0
    %6689 = vmatpush1.bf16.msra.mxu0 0
    %6690 = vmatprep.subr.bf16.mxu0 0
    %6691 = vmatpush1.bf16.msra.mxu0 0
    %6692 = vmatprep.subr.bf16.mxu0 0
    %6693 = vmatpush1.bf16.msra.mxu0 0
    %6694 = vmatprep.subr.bf16.mxu0 0
    %6695 = vmatpush1.bf16.msra.mxu0 0
    %6696 = vmatprep.subr.bf16.mxu0 0
    %6697 = vmatpush1.bf16.msra.mxu0 0
    %6698 = vmatprep.subr.bf16.mxu0 0
    %6699 = vmatpush1.bf16.msra.mxu0 0
    %6700 = vmatprep.subr.bf16.mxu0 0
    %6701 = vmatpush1.bf16.msra.mxu0 0
    %6702 = vmatprep.subr.bf16.mxu0 0
    %6703 = vmatpush1.bf16.msra.mxu0 0
    %6704 = vmatprep.mubr.bf16.mxu0 0
    %6705 = vmatmul.mubr.bf16.gmra.mrb[0].mxu0 %v6624
    %v6706 = vpop.f32.mrb[0].mxu0
    %v6707 = vadd.f32 %v6629, %v6706
    %v6708 = vpop.f32.mrb[0].mxu0
    %v6709 = vadd.f32 %v6629, %v6708
    %v6710 = vpop.f32.mrb[0].mxu0
    %v6711 = vpop.f32.mrb[0].mxu0
    %6712 = vdwg.mxu0
    %6713 = vst [vmem:[#allocation2] sm:$0xff] %v6666
    %6714 = vst [vmem:[#allocation2 + $0x8] sm:$0xff] %v6668
    %6715 = vst [vmem:[#allocation2 + $0x10] sm:$0xff] %v6707
    %6716 = vst [vmem:[#allocation2 + $0x18] sm:$0xff] %v6709
    // Predicated region
    $region18: #{tpu_custom_call.1} parent=1 // pred_check
      _
    $region19: #{tpu_custom_call.1} parent=1 // pred_check_branch
      %6718 = sbr.rel (0) target = $region21
    $region20: #{tpu_custom_call.1} parent=1 // pred_region
      %s6720 = ssub.s32 512, 512
      %6721 = vsyncadd [#allocation3], %s6720
      %s6723 = sshll.u32 [#allocation2], 4
      %s6724 = int_to_ptr.vmem [resolvable:$true] %s6723
      %6726 = dma.vmem_to_hbm [thread:$0]  %s6724, 512, %s4, [#allocation3]
    $region21: #{tpu_custom_call.1} parent=1 // pred_fallthru
      _
    // Predicated region
    $region22: #{tpu_custom_call.1} parent=1 // pred_check
      _
    $region23: #{tpu_custom_call.1} parent=1 // pred_check_branch
      %6728 = sbr.rel (0) target = $region25
    $region24: #{tpu_custom_call.1} parent=1 // pred_region
      %6729 = dma.done [#allocation3], 512
    $region25: #{tpu_custom_call.1} parent=1 // pred_fallthru
      _
    %6730 = vsyncpa [#allocation3], 1

</llo_original>
